<compile_context>
chip_gen: v7x
topology: tpu7x:2x2x1
jax: 0.10.0
libtpu: 0.0.40
codegen_flags: <defaults>
</compile_context>

<pallas_src>
import math
import functools

import jax
import jax.numpy as jnp
from jax.experimental import pallas as pl
from jax.experimental.pallas import tpu as pltpu


_VMEM_LIMIT_BYTES = 48 * 1024 * 1024


# ----------------------------- helpers ------------------------------

def _layernorm(y, g, b, eps):
    mean = jnp.mean(y, axis=-1, keepdims=True)
    c = y - mean
    var = jnp.mean(c * c, axis=-1, keepdims=True)
    return c * jax.lax.rsqrt(var + eps) * g + b


def _tile(M, target):
    """Largest tile <= target that divides M exactly and is a multiple of 8
       (or M itself)."""
    if M <= target:
        return M
    if M % target == 0:
        return target
    t = (target // 8) * 8
    while t >= 8:
        if M % t == 0:
            return t
        t -= 8
    return M


# ----------------------------- Pallas kernels ------------------------------

def _mha_block_kernel(xq_ref, kv_ref, wq_ref, bq_ref, wk_ref, bk_ref,
                      wv_ref, bv_ref, wo_ref, bo_ref, g_ref, beta_ref,
                      o_ref, *, nhead, eps):
    """Fused multi-head attention sub-block on one (batch, query-tile):
         per-head Q/K/V proj (K=D matmuls, bf16 in / f32 acc)
         + per-head SDPA (softmax in f32, exact normalization)
         + single hoisted out-proj (K=D) + residual + LayerNorm.
       xq_ref block: (1, TQ, D); kv_ref block: (1, Skv, D).
       Weights arrive as per-head stacks (H, D, Dh) in bf16; Wq/bq are
       pre-scaled by 1/sqrt(Dh) in the wrapper."""
    x_q = xq_ref[0]                                   # (TQ, D)  f32 (residual)
    x_kv = kv_ref[0]                                  # (Skv, D) f32
    xq_b = x_q.astype(jnp.bfloat16)
    xkv_b = x_kv.astype(jnp.bfloat16)

    ctx_parts = []
    for h in range(nhead):                            # static loop; no activation slicing
        q = jnp.dot(xq_b, wq_ref[h],
                    preferred_element_type=jnp.float32) + bq_ref[h]   # (TQ, Dh)
        k = jnp.dot(xkv_b, wk_ref[h],
                    preferred_element_type=jnp.float32) + bk_ref[h]   # (Skv, Dh)
        v = jnp.dot(xkv_b, wv_ref[h],
                    preferred_element_type=jnp.float32) + bv_ref[h]   # (Skv, Dh)
        s = jax.lax.dot_general(q.astype(jnp.bfloat16), k.astype(jnp.bfloat16),
                                (((1,), (1,)), ((), ())),
                                preferred_element_type=jnp.float32)    # (TQ, Skv)
        m = jnp.max(s, axis=-1, keepdims=True)
        e = jnp.exp(s - m)
        p = e / jnp.sum(e, axis=-1, keepdims=True)     # exact softmax (f32)
        ctx_parts.append(jnp.dot(p.astype(jnp.bfloat16), v.astype(jnp.bfloat16),
                                 preferred_element_type=jnp.float32))  # (TQ, Dh)

    ctx = jnp.concatenate(ctx_parts, axis=-1)          # (TQ, D)
    attn = jnp.dot(ctx.astype(jnp.bfloat16), wo_ref[...],
                   preferred_element_type=jnp.float32) + bo_ref[...]

    o_ref[0] = _layernorm(x_q + attn, g_ref[...], beta_ref[...], eps)


def _ffn_block_kernel(x_ref, w1_ref, b1_ref, w2_ref, b2_ref, g_ref, beta_ref,
                      *rest, eps, fuse_final_ln):
    """Fused: linear1 + ReLU + linear2 + residual + LayerNorm on a row tile.
       Optionally applies a second (stack-final) LayerNorm in the same pass."""
    if fuse_final_ln:
        g2_ref, beta2_ref, o_ref = rest
    else:
        (o_ref,) = rest

    x = x_ref[...]                                     # (TM, D) f32
    h = jnp.dot(x.astype(jnp.bfloat16), w1_ref[...],
                preferred_element_type=jnp.float32) + b1_ref[...]
    h = jnp.maximum(h, 0.0)
    y = jnp.dot(h.astype(jnp.bfloat16), w2_ref[...],
                preferred_element_type=jnp.float32) + b2_ref[...]
    out = _layernorm(x + y, g_ref[...], beta_ref[...], eps)
    if fuse_final_ln:
        out = _layernorm(out, g2_ref[...], beta2_ref[...], eps)
    o_ref[...] = out


# ----------------------------- kernel wrappers ------------------------------

def mha_block(x, kv, p, ln_g, ln_b, nhead, eps):
    """x: (B, Sq, D) queries, kv: (B, Skv, D) keys/values -> (B, Sq, D).
       Self-attention when kv is x."""
    B, Sq, D = x.shape
    Skv = kv.shape[1]
    Dh = D // nhead
    scale = 1.0 / math.sqrt(Dh)
    TQ = _tile(Sq, 256)
    nq = Sq // TQ

    # bf16 weights at the wrapper boundary; fold the softmax scale into Wq/bq.
    wq = (p['wq'] * scale).astype(jnp.bfloat16)        # (H, D, Dh)
    bq = p['bq'] * scale                               # (H, 1, Dh) f32
    wk = p['wk'].astype(jnp.bfloat16)
    wv = p['wv'].astype(jnp.bfloat16)
    wo = p['wo'].astype(jnp.bfloat16)                  # (D, D)

    flops = 2 * B * (Sq * D * D                        # q projection
                     + 2 * nq * Skv * D * D            # k/v projection per q-tile
                     + 2 * Sq * Skv * D                # scores + PV (summed over heads)
                     + Sq * D * D)                     # out projection
    cost = pl.CostEstimate(
        flops=int(flops),
        transcendentals=int(B * nhead * Sq * Skv),
        bytes_accessed=int(4 * B * (2 * Sq * D + Skv * D) + 2 * 4 * D * D),
    )

    kern = functools.partial(_mha_block_kernel, nhead=nhead, eps=eps)
    return pl.pallas_call(
        kern,
        out_shape=jax.ShapeDtypeStruct((B, Sq, D), jnp.float32),
        grid=(B, nq),
        in_specs=[
            pl.BlockSpec((1, TQ, D), lambda b, q: (b, q, 0)),
            pl.BlockSpec((1, Skv, D), lambda b, q: (b, 0, 0)),
            pl.BlockSpec((nhead, D, Dh), lambda b, q: (0, 0, 0)),
            pl.BlockSpec((nhead, 1, Dh), lambda b, q: (0, 0, 0)),
            pl.BlockSpec((nhead, D, Dh), lambda b, q: (0, 0, 0)),
            pl.BlockSpec((nhead, 1, Dh), lambda b, q: (0, 0, 0)),
            pl.BlockSpec((nhead, D, Dh), lambda b, q: (0, 0, 0)),
            pl.BlockSpec((nhead, 1, Dh), lambda b, q: (0, 0, 0)),
            pl.BlockSpec((D, D), lambda b, q: (0, 0)),
            pl.BlockSpec((1, D), lambda b, q: (0, 0)),
            pl.BlockSpec((1, D), lambda b, q: (0, 0)),
            pl.BlockSpec((1, D), lambda b, q: (0, 0)),
        ],
        out_specs=pl.BlockSpec((1, TQ, D), lambda b, q: (b, q, 0)),
        compiler_params=pltpu.CompilerParams(
            dimension_semantics=("parallel", "parallel"),
            vmem_limit_bytes=_VMEM_LIMIT_BYTES),
        cost_estimate=cost,
    )(x, kv, wq, bq, wk, p['bk'], wv, p['bv'], wo, p['bo'], ln_g, ln_b)


def ffn_block(x2, p, ln_g, ln_b, eps, final_ln=None):
    """x2: (M, D) row slab -> (M, D). Row-tiled grid, 'parallel'.
       If final_ln=(g2, b2), the stack-final LayerNorm is fused in."""
    M, D = x2.shape
    dff = p['ff1_w'].shape[1]
    TM = _tile(M, 512)

    w1 = p['ff1_w'].astype(jnp.bfloat16)               # (D, dff) bf16
    w2 = p['ff2_w'].astype(jnp.bfloat16)               # (dff, D) bf16

    fuse = final_ln is not None
    args = [x2, w1, p['ff1_b'], w2, p['ff2_b'], ln_g, ln_b]
    in_specs = [
        pl.BlockSpec((TM, D), lambda i: (i, 0)),
        pl.BlockSpec((D, dff), lambda i: (0, 0)),
        pl.BlockSpec((1, dff), lambda i: (0, 0)),
        pl.BlockSpec((dff, D), lambda i: (0, 0)),
        pl.BlockSpec((1, D), lambda i: (0, 0)),
        pl.BlockSpec((1, D), lambda i: (0, 0)),
        pl.BlockSpec((1, D), lambda i: (0, 0)),
    ]
    if fuse:
        args += [final_ln[0], final_ln[1]]
        in_specs += [pl.BlockSpec((1, D), lambda i: (0, 0)),
                     pl.BlockSpec((1, D), lambda i: (0, 0))]

    cost = pl.CostEstimate(
        flops=int(4 * M * D * dff),
        transcendentals=0,
        bytes_accessed=int(4 * 2 * M * D + 2 * 2 * D * dff),
    )
    kern = functools.partial(_ffn_block_kernel, eps=eps, fuse_final_ln=fuse)
    return pl.pallas_call(
        kern,
        out_shape=jax.ShapeDtypeStruct((M, D), jnp.float32),
        grid=(M // TM,),
        in_specs=in_specs,
        out_specs=pl.BlockSpec((TM, D), lambda i: (i, 0)),
        compiler_params=pltpu.CompilerParams(
            dimension_semantics=("parallel",),
            vmem_limit_bytes=_VMEM_LIMIT_BYTES),
        cost_estimate=cost,
    )(*args)


# ------------------------- model building blocks ---------------------------

def encoder_layer(x, p, nhead, eps=1e-5, final_ln=None):
    B, S, D = x.shape
    x = mha_block(x, x, p['self_attn'], p['ln1_g'], p['ln1_b'], nhead, eps)
    x2 = ffn_block(x.reshape(B * S, D), p, p['ln2_g'], p['ln2_b'], eps,
                   final_ln=final_ln)
    return x2.reshape(B, S, D)


def decoder_layer(x, memory, p, nhead, eps=1e-5, final_ln=None):
    B, S, D = x.shape
    x = mha_block(x, x, p['self_attn'], p['ln1_g'], p['ln1_b'], nhead, eps)
    x = mha_block(x, memory, p['cross_attn'], p['ln2_g'], p['ln2_b'], nhead, eps)
    x2 = ffn_block(x.reshape(B * S, D), p, p['ln3_g'], p['ln3_b'], eps,
                   final_ln=final_ln)
    return x2.reshape(B, S, D)


def transformer_forward(params, src, tgt, nhead, eps=1e-5):
    """src: (S_src, B, D), tgt: (S_tgt, B, D)  (batch_first=False, like nn.Transformer).
       Dropout = identity (eval mode); masks = None."""
    # One layout change to batch-major for the whole model; back at the end.
    src_b = jnp.transpose(src, (1, 0, 2))   # (B, Ss, D)
    tgt_b = jnp.transpose(tgt, (1, 0, 2))   # (B, St, D)

    memory = src_b
    n_enc = len(params['encoder_layers'])
    for i, lp in enumerate(params['encoder_layers']):
        fl = ((params['enc_norm_g'], params['enc_norm_b'])
              if i == n_enc - 1 else None)        # fold final encoder norm
        memory = encoder_layer(memory, lp, nhead, eps, final_ln=fl)

    out = tgt_b
    n_dec = len(params['decoder_layers'])
    for i, lp in enumerate(params['decoder_layers']):
        fl = ((params['dec_norm_g'], params['dec_norm_b'])
              if i == n_dec - 1 else None)        # fold final decoder norm
        out = decoder_layer(out, memory, lp, nhead, eps, final_ln=fl)

    return jnp.transpose(out, (1, 0, 2))    # back to (S_tgt, B, D)


# ------------------------------ initialization -----------------------------

def _xavier(key, shape):
    fan_in, fan_out = shape
    limit = math.sqrt(6.0 / (fan_in + fan_out))
    return jax.random.uniform(key, shape, jnp.float32, -limit, limit)


def _split_heads(w, nhead):
    """(D, D) -> (nhead, D, Dh): per-head output-column slabs."""
    d = w.shape[0]
    dh = d // nhead
    return jnp.transpose(w.reshape(d, nhead, dh), (1, 0, 2))


def _init_mha(key, d, nhead):
    dh = d // nhead
    k1, k2 = jax.random.split(key)
    w_in = _xavier(k1, (d, 3 * d))      # fused QKV, then split per head
    w_out = _xavier(k2, (d, d))
    return dict(
        wq=_split_heads(w_in[:, :d], nhead),
        wk=_split_heads(w_in[:, d:2 * d], nhead),
        wv=_split_heads(w_in[:, 2 * d:], nhead),
        bq=jnp.zeros((nhead, 1, dh), jnp.float32),
        bk=jnp.zeros((nhead, 1, dh), jnp.float32),
        bv=jnp.zeros((nhead, 1, dh), jnp.float32),
        wo=w_out, bo=jnp.zeros((1, d), jnp.float32),
    )


def _init_enc_layer(key, d, nhead, dff):
    k1, k2, k3 = jax.random.split(key, 3)
    return dict(
        self_attn=_init_mha(k1, d, nhead),
        ff1_w=_xavier(k2, (d, dff)), ff1_b=jnp.zeros((1, dff), jnp.float32),
        ff2_w=_xavier(k3, (dff, d)), ff2_b=jnp.zeros((1, d), jnp.float32),
        ln1_g=jnp.ones((1, d), jnp.float32), ln1_b=jnp.zeros((1, d), jnp.float32),
        ln2_g=jnp.ones((1, d), jnp.float32), ln2_b=jnp.zeros((1, d), jnp.float32),
    )


def _init_dec_layer(key, d, nhead, dff):
    k1, k2, k3, k4 = jax.random.split(key, 4)
    return dict(
        self_attn=_init_mha(k1, d, nhead),
        cross_attn=_init_mha(k2, d, nhead),
        ff1_w=_xavier(k3, (d, dff)), ff1_b=jnp.zeros((1, dff), jnp.float32),
        ff2_w=_xavier(k4, (dff, d)), ff2_b=jnp.zeros((1, d), jnp.float32),
        ln1_g=jnp.ones((1, d), jnp.float32), ln1_b=jnp.zeros((1, d), jnp.float32),
        ln2_g=jnp.ones((1, d), jnp.float32), ln2_b=jnp.zeros((1, d), jnp.float32),
        ln3_g=jnp.ones((1, d), jnp.float32), ln3_b=jnp.zeros((1, d), jnp.float32),
    )


def init_transformer_params(key, d_model, nhead, num_enc, num_dec, dff):
    keys = jax.random.split(key, num_enc + num_dec)
    enc_layers = [_init_enc_layer(keys[i], d_model, nhead, dff)
                  for i in range(num_enc)]
    dec_layers = [_init_dec_layer(keys[num_enc + i], d_model, nhead, dff)
                  for i in range(num_dec)]
    return dict(
        encoder_layers=enc_layers,
        decoder_layers=dec_layers,
        enc_norm_g=jnp.ones((1, d_model), jnp.float32),
        enc_norm_b=jnp.zeros((1, d_model), jnp.float32),
        dec_norm_g=jnp.ones((1, d_model), jnp.float32),
        dec_norm_b=jnp.zeros((1, d_model), jnp.float32),
    )


# ----------------------------------- main -----------------------------------

if __name__ == "__main__":
    # Small, forward-consistent shapes: d_model=32, nhead=4, 2 enc + 2 dec layers,
    # dim_feedforward=64, src seq=8, tgt seq=10, batch=2  (batch_first=False).
    # NOTE: these demo shapes are plumbing-only; tune tiles at D a multiple of 128.
    d_model, nhead = 32, 4
    num_enc, num_dec, dff = 2, 2, 64
    S_src, S_tgt, B = 8, 10, 2

    key = jax.random.PRNGKey(0)
    k_src, k_tgt, k_par = jax.random.split(key, 3)
    src = jax.random.normal(k_src, (S_src, B, d_model), jnp.float32)
    tgt = jax.random.normal(k_tgt, (S_tgt, B, d_model), jnp.float32)

    params = init_transformer_params(k_par, d_model, nhead, num_enc, num_dec, dff)

    # TODO(synk): dropout (p=0.1) is stochastic at train time; implemented as
    # identity (eval-mode semantics). src/tgt/memory masks default to None.
    fwd = jax.jit(functools.partial(transformer_forward, nhead=nhead))
    out = fwd(params, src, tgt)
    out = jax.block_until_ready(out)
    assert out.shape == (S_tgt, B, d_model), out.shape
    assert bool(jnp.all(jnp.isfinite(out)))
    print("KERNEL_OK")
</pallas_src>

<mosaic_0001>
module attributes {stable_mosaic.version = 11 : i64} {
  func.func @_ffn_block_kernel(%arg0: i32, %arg1: memref<16x32xf32, #tpu.memory_space<vmem>>, %arg2: memref<32x64xbf16, #tpu.memory_space<vmem>>, %arg3: memref<1x64xf32, #tpu.memory_space<vmem>>, %arg4: memref<64x32xbf16, #tpu.memory_space<vmem>>, %arg5: memref<1x32xf32, #tpu.memory_space<vmem>>, %arg6: memref<1x32xf32, #tpu.memory_space<vmem>>, %arg7: memref<1x32xf32, #tpu.memory_space<vmem>>, %arg8: memref<16x32xf32, #tpu.memory_space<vmem>>) attributes {dimension_semantics = [#tpu.dimension_semantics<parallel>], iteration_bounds = array<i64: 1>, scalar_prefetch = 0 : i64, scratch_operands = 0 : i64, tpu.core_type = #tpu.core_type<tc>, window_params = [{transform_indices = @transform_0, window_bounds = array<i64: 16, 32>}, {pipeline_mode = #tpu.pipeline_mode<synchronous>, transform_indices = @transform_1, window_bounds = array<i64: 32, 64>}, {pipeline_mode = #tpu.pipeline_mode<synchronous>, transform_indices = @transform_2, window_bounds = array<i64: 1, 64>}, {pipeline_mode = #tpu.pipeline_mode<synchronous>, transform_indices = @transform_3, window_bounds = array<i64: 64, 32>}, {pipeline_mode = #tpu.pipeline_mode<synchronous>, transform_indices = @transform_4, window_bounds = array<i64: 1, 32>}, {pipeline_mode = #tpu.pipeline_mode<synchronous>, transform_indices = @transform_5, window_bounds = array<i64: 1, 32>}, {pipeline_mode = #tpu.pipeline_mode<synchronous>, transform_indices = @transform_6, window_bounds = array<i64: 1, 32>}, {transform_indices = @transform_7, window_bounds = array<i64: 16, 32>}]} {
    %c0 = arith.constant 0 : index
    %c0_0 = arith.constant 0 : index
    %0 = vector.load %arg1[%c0, %c0_0] : memref<16x32xf32, #tpu.memory_space<vmem>>, vector<16x32xf32>
    %1 = arith.truncf %0 : vector<16x32xf32> to vector<16x32xbf16>
    %c0_1 = arith.constant 0 : index
    %c0_2 = arith.constant 0 : index
    %2 = vector.load %arg2[%c0_1, %c0_2] : memref<32x64xbf16, #tpu.memory_space<vmem>>, vector<32x64xbf16>
    %cst = arith.constant dense<0.000000e+00> : vector<16x64xf32>
    %3 = tpu.matmul %1, %2, %cst {dimension_numbers = #tpu.dot_dimension_numbers<[1], [0], [0], [1], [0, 0, 1, 1], [], []>} : vector<16x32xbf16>, vector<32x64xbf16>, vector<16x64xf32> -> vector<16x64xf32>
    %c0_3 = arith.constant 0 : index
    %c0_4 = arith.constant 0 : index
    %4 = vector.load %arg3[%c0_3, %c0_4] : memref<1x64xf32, #tpu.memory_space<vmem>>, vector<1x64xf32>
    %5 = vector.broadcast %4 : vector<1x64xf32> to vector<16x64xf32>
    %6 = arith.addf %3, %5 : vector<16x64xf32>
    %cst_5 = arith.constant 0.000000e+00 : f32
    %7 = vector.broadcast %cst_5 : f32 to vector<16x64xf32>
    %8 = arith.maximumf %6, %7 : vector<16x64xf32>
    %9 = arith.truncf %8 : vector<16x64xf32> to vector<16x64xbf16>
    %c0_6 = arith.constant 0 : index
    %c0_7 = arith.constant 0 : index
    %10 = vector.load %arg4[%c0_6, %c0_7] : memref<64x32xbf16, #tpu.memory_space<vmem>>, vector<64x32xbf16>
    %cst_8 = arith.constant dense<0.000000e+00> : vector<16x32xf32>
    %11 = tpu.matmul %9, %10, %cst_8 {dimension_numbers = #tpu.dot_dimension_numbers<[1], [0], [0], [1], [0, 0, 1, 1], [], []>} : vector<16x64xbf16>, vector<64x32xbf16>, vector<16x32xf32> -> vector<16x32xf32>
    %c0_9 = arith.constant 0 : index
    %c0_10 = arith.constant 0 : index
    %12 = vector.load %arg5[%c0_9, %c0_10] : memref<1x32xf32, #tpu.memory_space<vmem>>, vector<1x32xf32>
    %13 = vector.broadcast %12 : vector<1x32xf32> to vector<16x32xf32>
    %14 = arith.addf %11, %13 : vector<16x32xf32>
    %15 = arith.addf %0, %14 : vector<16x32xf32>
    %c0_11 = arith.constant 0 : index
    %c0_12 = arith.constant 0 : index
    %16 = vector.load %arg6[%c0_11, %c0_12] : memref<1x32xf32, #tpu.memory_space<vmem>>, vector<1x32xf32>
    %c0_13 = arith.constant 0 : index
    %c0_14 = arith.constant 0 : index
    %17 = vector.load %arg7[%c0_13, %c0_14] : memref<1x32xf32, #tpu.memory_space<vmem>>, vector<1x32xf32>
    %cst_15 = arith.constant dense<0.000000e+00> : vector<16xf32>
    %18 = vector.multi_reduction <add>, %15, %cst_15 [1] : vector<16x32xf32> to vector<16xf32>
    %19 = vector.shape_cast %18 : vector<16xf32> to vector<16x1xf32>
    %cst_16 = arith.constant 3.200000e+01 : f32
    %20 = vector.broadcast %cst_16 : f32 to vector<16x1xf32>
    %21 = arith.divf %19, %20 : vector<16x1xf32>
    %22 = vector.broadcast %21 : vector<16x1xf32> to vector<16x32xf32>
    %23 = arith.subf %15, %22 : vector<16x32xf32>
    %24 = arith.mulf %23, %23 : vector<16x32xf32>
    %cst_17 = arith.constant dense<0.000000e+00> : vector<16xf32>
    %25 = vector.multi_reduction <add>, %24, %cst_17 [1] : vector<16x32xf32> to vector<16xf32>
    %26 = vector.shape_cast %25 : vector<16xf32> to vector<16x1xf32>
    %cst_18 = arith.constant 3.200000e+01 : f32
    %27 = vector.broadcast %cst_18 : f32 to vector<16x1xf32>
    %28 = arith.divf %26, %27 : vector<16x1xf32>
    %cst_19 = arith.constant 9.99999974E-6 : f32
    %29 = vector.broadcast %cst_19 : f32 to vector<16x1xf32>
    %30 = arith.addf %28, %29 : vector<16x1xf32>
    %31 = math.rsqrt %30 : vector<16x1xf32>
    %32 = vector.broadcast %31 : vector<16x1xf32> to vector<16x32xf32>
    %33 = arith.mulf %23, %32 : vector<16x32xf32>
    %34 = vector.broadcast %16 : vector<1x32xf32> to vector<16x32xf32>
    %35 = arith.mulf %33, %34 : vector<16x32xf32>
    %36 = vector.broadcast %17 : vector<1x32xf32> to vector<16x32xf32>
    %37 = arith.addf %35, %36 : vector<16x32xf32>
    %c0_20 = arith.constant 0 : index
    %c0_21 = arith.constant 0 : index
    %38 = vector.load %arg8[%c0_20, %c0_21] : memref<16x32xf32, #tpu.memory_space<vmem>>, vector<16x32xf32>
    tpu.vector_store %arg8[%c0_20, %c0_21], %37 {strides = array<i32>} : memref<16x32xf32, #tpu.memory_space<vmem>>, vector<16x32xf32>,
    return
  }
  func.func @transform_0(%arg0: i32) -> (i32, i32) {
    %c0_i32 = arith.constant 0 : i32
    %c0_i32_0 = arith.constant 0 : i32
    return %arg0, %c0_i32 : i32, i32
  }
  func.func @transform_1(%arg0: i32) -> (i32, i32) {
    %c0_i32 = arith.constant 0 : i32
    %c0_i32_0 = arith.constant 0 : i32
    %c0_i32_1 = arith.constant 0 : i32
    return %c0_i32, %c0_i32_0 : i32, i32
  }
  func.func @transform_2(%arg0: i32) -> (i32, i32) {
    %c0_i32 = arith.constant 0 : i32
    %c0_i32_0 = arith.constant 0 : i32
    %c0_i32_1 = arith.constant 0 : i32
    return %c0_i32, %c0_i32_0 : i32, i32
  }
  func.func @transform_3(%arg0: i32) -> (i32, i32) {
    %c0_i32 = arith.constant 0 : i32
    %c0_i32_0 = arith.constant 0 : i32
    %c0_i32_1 = arith.constant 0 : i32
    return %c0_i32, %c0_i32_0 : i32, i32
  }
  func.func @transform_4(%arg0: i32) -> (i32, i32) {
    %c0_i32 = arith.constant 0 : i32
    %c0_i32_0 = arith.constant 0 : i32
    %c0_i32_1 = arith.constant 0 : i32
    return %c0_i32, %c0_i32_0 : i32, i32
  }
  func.func @transform_5(%arg0: i32) -> (i32, i32) {
    %c0_i32 = arith.constant 0 : i32
    %c0_i32_0 = arith.constant 0 : i32
    %c0_i32_1 = arith.constant 0 : i32
    return %c0_i32, %c0_i32_0 : i32, i32
  }
  func.func @transform_6(%arg0: i32) -> (i32, i32) {
    %c0_i32 = arith.constant 0 : i32
    %c0_i32_0 = arith.constant 0 : i32
    %c0_i32_1 = arith.constant 0 : i32
    return %c0_i32, %c0_i32_0 : i32, i32
  }
  func.func @transform_7(%arg0: i32) -> (i32, i32) {
    %c0_i32 = arith.constant 0 : i32
    %c0_i32_0 = arith.constant 0 : i32
    return %arg0, %c0_i32 : i32, i32
  }
}

module attributes {stable_mosaic.version = 11 : i64} {
  func.func @_mha_block_kernel(%arg0: i32, %arg1: i32, %arg2: memref<1x8x32xf32, #tpu.memory_space<vmem>>, %arg3: memref<1x8x32xf32, #tpu.memory_space<vmem>>, %arg4: memref<4x32x8xbf16, #tpu.memory_space<vmem>>, %arg5: memref<4x1x8xf32, #tpu.memory_space<vmem>>, %arg6: memref<4x32x8xbf16, #tpu.memory_space<vmem>>, %arg7: memref<4x1x8xf32, #tpu.memory_space<vmem>>, %arg8: memref<4x32x8xbf16, #tpu.memory_space<vmem>>, %arg9: memref<4x1x8xf32, #tpu.memory_space<vmem>>, %arg10: memref<32x32xbf16, #tpu.memory_space<vmem>>, %arg11: memref<1x32xf32, #tpu.memory_space<vmem>>, %arg12: memref<1x32xf32, #tpu.memory_space<vmem>>, %arg13: memref<1x32xf32, #tpu.memory_space<vmem>>, %arg14: memref<1x8x32xf32, #tpu.memory_space<vmem>>) attributes {dimension_semantics = [#tpu.dimension_semantics<parallel>, #tpu.dimension_semantics<parallel>], iteration_bounds = array<i64: 2, 1>, scalar_prefetch = 0 : i64, scratch_operands = 0 : i64, tpu.core_type = #tpu.core_type<tc>, window_params = [{transform_indices = @transform_0, window_bounds = array<i64: 1, 8, 32>}, {transform_indices = @transform_1, window_bounds = array<i64: 1, 8, 32>}, {pipeline_mode = #tpu.pipeline_mode<synchronous>, transform_indices = @transform_2, window_bounds = array<i64: 4, 32, 8>}, {pipeline_mode = #tpu.pipeline_mode<synchronous>, transform_indices = @transform_3, window_bounds = array<i64: 4, 1, 8>}, {pipeline_mode = #tpu.pipeline_mode<synchronous>, transform_indices = @transform_4, window_bounds = array<i64: 4, 32, 8>}, {pipeline_mode = #tpu.pipeline_mode<synchronous>, transform_indices = @transform_5, window_bounds = array<i64: 4, 1, 8>}, {pipeline_mode = #tpu.pipeline_mode<synchronous>, transform_indices = @transform_6, window_bounds = array<i64: 4, 32, 8>}, {pipeline_mode = #tpu.pipeline_mode<synchronous>, transform_indices = @transform_7, window_bounds = array<i64: 4, 1, 8>}, {pipeline_mode = #tpu.pipeline_mode<synchronous>, transform_indices = @transform_8, window_bounds = array<i64: 32, 32>}, {pipeline_mode = #tpu.pipeline_mode<synchronous>, transform_indices = @transform_9, window_bounds = array<i64: 1, 32>}, {pipeline_mode = #tpu.pipeline_mode<synchronous>, transform_indices = @transform_10, window_bounds = array<i64: 1, 32>}, {pipeline_mode = #tpu.pipeline_mode<synchronous>, transform_indices = @transform_11, window_bounds = array<i64: 1, 32>}, {transform_indices = @transform_12, window_bounds = array<i64: 1, 8, 32>}]} {
    %c0 = arith.constant 0 : index
    %c0_0 = arith.constant 0 : index
    %c0_1 = arith.constant 0 : index
    %0 = vector.load %arg2[%c0, %c0_0, %c0_1] : memref<1x8x32xf32, #tpu.memory_space<vmem>>, vector<1x8x32xf32>
    %1 = vector.shape_cast %0 : vector<1x8x32xf32> to vector<8x32xf32>
    %c0_2 = arith.constant 0 : index
    %c0_3 = arith.constant 0 : index
    %c0_4 = arith.constant 0 : index
    %2 = vector.load %arg3[%c0_2, %c0_3, %c0_4] : memref<1x8x32xf32, #tpu.memory_space<vmem>>, vector<1x8x32xf32>
    %3 = vector.shape_cast %2 : vector<1x8x32xf32> to vector<8x32xf32>
    %4 = arith.truncf %1 : vector<8x32xf32> to vector<8x32xbf16>
    %5 = arith.truncf %3 : vector<8x32xf32> to vector<8x32xbf16>
    %c0_5 = arith.constant 0 : index
    %c0_6 = arith.constant 0 : index
    %c0_7 = arith.constant 0 : index
    %6 = vector.load %arg4[%c0_5, %c0_6, %c0_7] : memref<4x32x8xbf16, #tpu.memory_space<vmem>>, vector<1x32x8xbf16>
    %7 = vector.shape_cast %6 : vector<1x32x8xbf16> to vector<32x8xbf16>
    %cst = arith.constant dense<0.000000e+00> : vector<8x8xf32>
    %8 = tpu.matmul %4, %7, %cst {dimension_numbers = #tpu.dot_dimension_numbers<[1], [0], [0], [1], [0, 0, 1, 1], [], []>} : vector<8x32xbf16>, vector<32x8xbf16>, vector<8x8xf32> -> vector<8x8xf32>
    %c0_8 = arith.constant 0 : index
    %c0_9 = arith.constant 0 : index
    %c0_10 = arith.constant 0 : index
    %9 = vector.load %arg5[%c0_8, %c0_9, %c0_10] : memref<4x1x8xf32, #tpu.memory_space<vmem>>, vector<1x1x8xf32>
    %10 = vector.shape_cast %9 : vector<1x1x8xf32> to vector<1x8xf32>
    %11 = vector.broadcast %10 : vector<1x8xf32> to vector<8x8xf32>
    %12 = arith.addf %8, %11 : vector<8x8xf32>
    %c0_11 = arith.constant 0 : index
    %c0_12 = arith.constant 0 : index
    %c0_13 = arith.constant 0 : index
    %13 = vector.load %arg6[%c0_11, %c0_12, %c0_13] : memref<4x32x8xbf16, #tpu.memory_space<vmem>>, vector<1x32x8xbf16>
    %14 = vector.shape_cast %13 : vector<1x32x8xbf16> to vector<32x8xbf16>
    %cst_14 = arith.constant dense<0.000000e+00> : vector<8x8xf32>
    %15 = tpu.matmul %5, %14, %cst_14 {dimension_numbers = #tpu.dot_dimension_numbers<[1], [0], [0], [1], [0, 0, 1, 1], [], []>} : vector<8x32xbf16>, vector<32x8xbf16>, vector<8x8xf32> -> vector<8x8xf32>
    %c0_15 = arith.constant 0 : index
    %c0_16 = arith.constant 0 : index
    %c0_17 = arith.constant 0 : index
    %16 = vector.load %arg7[%c0_15, %c0_16, %c0_17] : memref<4x1x8xf32, #tpu.memory_space<vmem>>, vector<1x1x8xf32>
    %17 = vector.shape_cast %16 : vector<1x1x8xf32> to vector<1x8xf32>
    %18 = vector.broadcast %17 : vector<1x8xf32> to vector<8x8xf32>
    %19 = arith.addf %15, %18 : vector<8x8xf32>
    %c0_18 = arith.constant 0 : index
    %c0_19 = arith.constant 0 : index
    %c0_20 = arith.constant 0 : index
    %20 = vector.load %arg8[%c0_18, %c0_19, %c0_20] : memref<4x32x8xbf16, #tpu.memory_space<vmem>>, vector<1x32x8xbf16>
    %21 = vector.shape_cast %20 : vector<1x32x8xbf16> to vector<32x8xbf16>
    %cst_21 = arith.constant dense<0.000000e+00> : vector<8x8xf32>
    %22 = tpu.matmul %5, %21, %cst_21 {dimension_numbers = #tpu.dot_dimension_numbers<[1], [0], [0], [1], [0, 0, 1, 1], [], []>} : vector<8x32xbf16>, vector<32x8xbf16>, vector<8x8xf32> -> vector<8x8xf32>
    %c0_22 = arith.constant 0 : index
    %c0_23 = arith.constant 0 : index
    %c0_24 = arith.constant 0 : index
    %23 = vector.load %arg9[%c0_22, %c0_23, %c0_24] : memref<4x1x8xf32, #tpu.memory_space<vmem>>, vector<1x1x8xf32>
    %24 = vector.shape_cast %23 : vector<1x1x8xf32> to vector<1x8xf32>
    %25 = vector.broadcast %24 : vector<1x8xf32> to vector<8x8xf32>
    %26 = arith.addf %22, %25 : vector<8x8xf32>
    %27 = arith.truncf %12 : vector<8x8xf32> to vector<8x8xbf16>
    %28 = arith.truncf %19 : vector<8x8xf32> to vector<8x8xbf16>
    %cst_25 = arith.constant dense<0.000000e+00> : vector<8x8xf32>
    %29 = tpu.matmul %27, %28, %cst_25 {dimension_numbers = #tpu.dot_dimension_numbers<[1], [1], [0], [0], [0, 0, 1, 0], [], []>} : vector<8x8xbf16>, vector<8x8xbf16>, vector<8x8xf32> -> vector<8x8xf32>
    %cst_26 = arith.constant dense<0xFF800000> : vector<8xf32>
    %30 = vector.multi_reduction <maximumf>, %29, %cst_26 [1] : vector<8x8xf32> to vector<8xf32>
    %31 = vector.shape_cast %30 : vector<8xf32> to vector<8x1xf32>
    %32 = vector.broadcast %31 : vector<8x1xf32> to vector<8x8xf32>
    %33 = arith.subf %29, %32 : vector<8x8xf32>
    %34 = math.exp %33 : vector<8x8xf32>
    %cst_27 = arith.constant dense<0.000000e+00> : vector<8xf32>
    %35 = vector.multi_reduction <add>, %34, %cst_27 [1] : vector<8x8xf32> to vector<8xf32>
    %36 = vector.shape_cast %35 : vector<8xf32> to vector<8x1xf32>
    %37 = vector.broadcast %36 : vector<8x1xf32> to vector<8x8xf32>
    %38 = arith.divf %34, %37 : vector<8x8xf32>
    %39 = arith.truncf %38 : vector<8x8xf32> to vector<8x8xbf16>
    %40 = arith.truncf %26 : vector<8x8xf32> to vector<8x8xbf16>
    %cst_28 = arith.constant dense<0.000000e+00> : vector<8x8xf32>
    %41 = tpu.matmul %39, %40, %cst_28 {dimension_numbers = #tpu.dot_dimension_numbers<[1], [0], [0], [1], [0, 0, 1, 1], [], []>} : vector<8x8xbf16>, vector<8x8xbf16>, vector<8x8xf32> -> vector<8x8xf32>
    %c1 = arith.constant 1 : index
    %c0_29 = arith.constant 0 : index
    %c0_30 = arith.constant 0 : index
    %42 = vector.load %arg4[%c1, %c0_29, %c0_30] : memref<4x32x8xbf16, #tpu.memory_space<vmem>>, vector<1x32x8xbf16>
    %43 = vector.shape_cast %42 : vector<1x32x8xbf16> to vector<32x8xbf16>
    %cst_31 = arith.constant dense<0.000000e+00> : vector<8x8xf32>
    %44 = tpu.matmul %4, %43, %cst_31 {dimension_numbers = #tpu.dot_dimension_numbers<[1], [0], [0], [1], [0, 0, 1, 1], [], []>} : vector<8x32xbf16>, vector<32x8xbf16>, vector<8x8xf32> -> vector<8x8xf32>
    %c1_32 = arith.constant 1 : index
    %c0_33 = arith.constant 0 : index
    %c0_34 = arith.constant 0 : index
    %45 = vector.load %arg5[%c1_32, %c0_33, %c0_34] : memref<4x1x8xf32, #tpu.memory_space<vmem>>, vector<1x1x8xf32>
    %46 = vector.shape_cast %45 : vector<1x1x8xf32> to vector<1x8xf32>
    %47 = vector.broadcast %46 : vector<1x8xf32> to vector<8x8xf32>
    %48 = arith.addf %44, %47 : vector<8x8xf32>
    %c1_35 = arith.constant 1 : index
    %c0_36 = arith.constant 0 : index
    %c0_37 = arith.constant 0 : index
    %49 = vector.load %arg6[%c1_35, %c0_36, %c0_37] : memref<4x32x8xbf16, #tpu.memory_space<vmem>>, vector<1x32x8xbf16>
    %50 = vector.shape_cast %49 : vector<1x32x8xbf16> to vector<32x8xbf16>
    %cst_38 = arith.constant dense<0.000000e+00> : vector<8x8xf32>
    %51 = tpu.matmul %5, %50, %cst_38 {dimension_numbers = #tpu.dot_dimension_numbers<[1], [0], [0], [1], [0, 0, 1, 1], [], []>} : vector<8x32xbf16>, vector<32x8xbf16>, vector<8x8xf32> -> vector<8x8xf32>
    %c1_39 = arith.constant 1 : index
    %c0_40 = arith.constant 0 : index
    %c0_41 = arith.constant 0 : index
    %52 = vector.load %arg7[%c1_39, %c0_40, %c0_41] : memref<4x1x8xf32, #tpu.memory_space<vmem>>, vector<1x1x8xf32>
    %53 = vector.shape_cast %52 : vector<1x1x8xf32> to vector<1x8xf32>
    %54 = vector.broadcast %53 : vector<1x8xf32> to vector<8x8xf32>
    %55 = arith.addf %51, %54 : vector<8x8xf32>
    %c1_42 = arith.constant 1 : index
    %c0_43 = arith.constant 0 : index
    %c0_44 = arith.constant 0 : index
    %56 = vector.load %arg8[%c1_42, %c0_43, %c0_44] : memref<4x32x8xbf16, #tpu.memory_space<vmem>>, vector<1x32x8xbf16>
    %57 = vector.shape_cast %56 : vector<1x32x8xbf16> to vector<32x8xbf16>
    %cst_45 = arith.constant dense<0.000000e+00> : vector<8x8xf32>
    %58 = tpu.matmul %5, %57, %cst_45 {dimension_numbers = #tpu.dot_dimension_numbers<[1], [0], [0], [1], [0, 0, 1, 1], [], []>} : vector<8x32xbf16>, vector<32x8xbf16>, vector<8x8xf32> -> vector<8x8xf32>
    %c1_46 = arith.constant 1 : index
    %c0_47 = arith.constant 0 : index
    %c0_48 = arith.constant 0 : index
    %59 = vector.load %arg9[%c1_46, %c0_47, %c0_48] : memref<4x1x8xf32, #tpu.memory_space<vmem>>, vector<1x1x8xf32>
    %60 = vector.shape_cast %59 : vector<1x1x8xf32> to vector<1x8xf32>
    %61 = vector.broadcast %60 : vector<1x8xf32> to vector<8x8xf32>
    %62 = arith.addf %58, %61 : vector<8x8xf32>
    %63 = arith.truncf %48 : vector<8x8xf32> to vector<8x8xbf16>
    %64 = arith.truncf %55 : vector<8x8xf32> to vector<8x8xbf16>
    %cst_49 = arith.constant dense<0.000000e+00> : vector<8x8xf32>
    %65 = tpu.matmul %63, %64, %cst_49 {dimension_numbers = #tpu.dot_dimension_numbers<[1], [1], [0], [0], [0, 0, 1, 0], [], []>} : vector<8x8xbf16>, vector<8x8xbf16>, vector<8x8xf32> -> vector<8x8xf32>
    %cst_50 = arith.constant dense<0xFF800000> : vector<8xf32>
    %66 = vector.multi_reduction <maximumf>, %65, %cst_50 [1] : vector<8x8xf32> to vector<8xf32>
    %67 = vector.shape_cast %66 : vector<8xf32> to vector<8x1xf32>
    %68 = vector.broadcast %67 : vector<8x1xf32> to vector<8x8xf32>
    %69 = arith.subf %65, %68 : vector<8x8xf32>
    %70 = math.exp %69 : vector<8x8xf32>
    %cst_51 = arith.constant dense<0.000000e+00> : vector<8xf32>
    %71 = vector.multi_reduction <add>, %70, %cst_51 [1] : vector<8x8xf32> to vector<8xf32>
    %72 = vector.shape_cast %71 : vector<8xf32> to vector<8x1xf32>
    %73 = vector.broadcast %72 : vector<8x1xf32> to vector<8x8xf32>
    %74 = arith.divf %70, %73 : vector<8x8xf32>
    %75 = arith.truncf %74 : vector<8x8xf32> to vector<8x8xbf16>
    %76 = arith.truncf %62 : vector<8x8xf32> to vector<8x8xbf16>
    %cst_52 = arith.constant dense<0.000000e+00> : vector<8x8xf32>
    %77 = tpu.matmul %75, %76, %cst_52 {dimension_numbers = #tpu.dot_dimension_numbers<[1], [0], [0], [1], [0, 0, 1, 1], [], []>} : vector<8x8xbf16>, vector<8x8xbf16>, vector<8x8xf32> -> vector<8x8xf32>
    %c2 = arith.constant 2 : index
    %c0_53 = arith.constant 0 : index
    %c0_54 = arith.constant 0 : index
    %78 = vector.load %arg4[%c2, %c0_53, %c0_54] : memref<4x32x8xbf16, #tpu.memory_space<vmem>>, vector<1x32x8xbf16>
    %79 = vector.shape_cast %78 : vector<1x32x8xbf16> to vector<32x8xbf16>
    %cst_55 = arith.constant dense<0.000000e+00> : vector<8x8xf32>
    %80 = tpu.matmul %4, %79, %cst_55 {dimension_numbers = #tpu.dot_dimension_numbers<[1], [0], [0], [1], [0, 0, 1, 1], [], []>} : vector<8x32xbf16>, vector<32x8xbf16>, vector<8x8xf32> -> vector<8x8xf32>
    %c2_56 = arith.constant 2 : index
    %c0_57 = arith.constant 0 : index
    %c0_58 = arith.constant 0 : index
    %81 = vector.load %arg5[%c2_56, %c0_57, %c0_58] : memref<4x1x8xf32, #tpu.memory_space<vmem>>, vector<1x1x8xf32>
    %82 = vector.shape_cast %81 : vector<1x1x8xf32> to vector<1x8xf32>
    %83 = vector.broadcast %82 : vector<1x8xf32> to vector<8x8xf32>
    %84 = arith.addf %80, %83 : vector<8x8xf32>
    %c2_59 = arith.constant 2 : index
    %c0_60 = arith.constant 0 : index
    %c0_61 = arith.constant 0 : index
    %85 = vector.load %arg6[%c2_59, %c0_60, %c0_61] : memref<4x32x8xbf16, #tpu.memory_space<vmem>>, vector<1x32x8xbf16>
    %86 = vector.shape_cast %85 : vector<1x32x8xbf16> to vector<32x8xbf16>
    %cst_62 = arith.constant dense<0.000000e+00> : vector<8x8xf32>
    %87 = tpu.matmul %5, %86, %cst_62 {dimension_numbers = #tpu.dot_dimension_numbers<[1], [0], [0], [1], [0, 0, 1, 1], [], []>} : vector<8x32xbf16>, vector<32x8xbf16>, vector<8x8xf32> -> vector<8x8xf32>
    %c2_63 = arith.constant 2 : index
    %c0_64 = arith.constant 0 : index
    %c0_65 = arith.constant 0 : index
    %88 = vector.load %arg7[%c2_63, %c0_64, %c0_65] : memref<4x1x8xf32, #tpu.memory_space<vmem>>, vector<1x1x8xf32>
    %89 = vector.shape_cast %88 : vector<1x1x8xf32> to vector<1x8xf32>
    %90 = vector.broadcast %89 : vector<1x8xf32> to vector<8x8xf32>
    %91 = arith.addf %87, %90 : vector<8x8xf32>
    %c2_66 = arith.constant 2 : index
    %c0_67 = arith.constant 0 : index
    %c0_68 = arith.constant 0 : index
    %92 = vector.load %arg8[%c2_66, %c0_67, %c0_68] : memref<4x32x8xbf16, #tpu.memory_space<vmem>>, vector<1x32x8xbf16>
    %93 = vector.shape_cast %92 : vector<1x32x8xbf16> to vector<32x8xbf16>
    %cst_69 = arith.constant dense<0.000000e+00> : vector<8x8xf32>
    %94 = tpu.matmul %5, %93, %cst_69 {dimension_numbers = #tpu.dot_dimension_numbers<[1], [0], [0], [1], [0, 0, 1, 1], [], []>} : vector<8x32xbf16>, vector<32x8xbf16>, vector<8x8xf32> -> vector<8x8xf32>
    %c2_70 = arith.constant 2 : index
    %c0_71 = arith.constant 0 : index
    %c0_72 = arith.constant 0 : index
    %95 = vector.load %arg9[%c2_70, %c0_71, %c0_72] : memref<4x1x8xf32, #tpu.memory_space<vmem>>, vector<1x1x8xf32>
    %96 = vector.shape_cast %95 : vector<1x1x8xf32> to vector<1x8xf32>
    %97 = vector.broadcast %96 : vector<1x8xf32> to vector<8x8xf32>
    %98 = arith.addf %94, %97 : vector<8x8xf32>
    %99 = arith.truncf %84 : vector<8x8xf32> to vector<8x8xbf16>
    %100 = arith.truncf %91 : vector<8x8xf32> to vector<8x8xbf16>
    %cst_73 = arith.constant dense<0.000000e+00> : vector<8x8xf32>
    %101 = tpu.matmul %99, %100, %cst_73 {dimension_numbers = #tpu.dot_dimension_numbers<[1], [1], [0], [0], [0, 0, 1, 0], [], []>} : vector<8x8xbf16>, vector<8x8xbf16>, vector<8x8xf32> -> vector<8x8xf32>
    %cst_74 = arith.constant dense<0xFF800000> : vector<8xf32>
    %102 = vector.multi_reduction <maximumf>, %101, %cst_74 [1] : vector<8x8xf32> to vector<8xf32>
    %103 = vector.shape_cast %102 : vector<8xf32> to vector<8x1xf32>
    %104 = vector.broadcast %103 : vector<8x1xf32> to vector<8x8xf32>
    %105 = arith.subf %101, %104 : vector<8x8xf32>
    %106 = math.exp %105 : vector<8x8xf32>
    %cst_75 = arith.constant dense<0.000000e+00> : vector<8xf32>
    %107 = vector.multi_reduction <add>, %106, %cst_75 [1] : vector<8x8xf32> to vector<8xf32>
    %108 = vector.shape_cast %107 : vector<8xf32> to vector<8x1xf32>
    %109 = vector.broadcast %108 : vector<8x1xf32> to vector<8x8xf32>
    %110 = arith.divf %106, %109 : vector<8x8xf32>
    %111 = arith.truncf %110 : vector<8x8xf32> to vector<8x8xbf16>
    %112 = arith.truncf %98 : vector<8x8xf32> to vector<8x8xbf16>
    %cst_76 = arith.constant dense<0.000000e+00> : vector<8x8xf32>
    %113 = tpu.matmul %111, %112, %cst_76 {dimension_numbers = #tpu.dot_dimension_numbers<[1], [0], [0], [1], [0, 0, 1, 1], [], []>} : vector<8x8xbf16>, vector<8x8xbf16>, vector<8x8xf32> -> vector<8x8xf32>
    %c3 = arith.constant 3 : index
    %c0_77 = arith.constant 0 : index
    %c0_78 = arith.constant 0 : index
    %114 = vector.load %arg4[%c3, %c0_77, %c0_78] : memref<4x32x8xbf16, #tpu.memory_space<vmem>>, vector<1x32x8xbf16>
    %115 = vector.shape_cast %114 : vector<1x32x8xbf16> to vector<32x8xbf16>
    %cst_79 = arith.constant dense<0.000000e+00> : vector<8x8xf32>
    %116 = tpu.matmul %4, %115, %cst_79 {dimension_numbers = #tpu.dot_dimension_numbers<[1], [0], [0], [1], [0, 0, 1, 1], [], []>} : vector<8x32xbf16>, vector<32x8xbf16>, vector<8x8xf32> -> vector<8x8xf32>
    %c3_80 = arith.constant 3 : index
    %c0_81 = arith.constant 0 : index
    %c0_82 = arith.constant 0 : index
    %117 = vector.load %arg5[%c3_80, %c0_81, %c0_82] : memref<4x1x8xf32, #tpu.memory_space<vmem>>, vector<1x1x8xf32>
    %118 = vector.shape_cast %117 : vector<1x1x8xf32> to vector<1x8xf32>
    %119 = vector.broadcast %118 : vector<1x8xf32> to vector<8x8xf32>
    %120 = arith.addf %116, %119 : vector<8x8xf32>
    %c3_83 = arith.constant 3 : index
    %c0_84 = arith.constant 0 : index
    %c0_85 = arith.constant 0 : index
    %121 = vector.load %arg6[%c3_83, %c0_84, %c0_85] : memref<4x32x8xbf16, #tpu.memory_space<vmem>>, vector<1x32x8xbf16>
    %122 = vector.shape_cast %121 : vector<1x32x8xbf16> to vector<32x8xbf16>
    %cst_86 = arith.constant dense<0.000000e+00> : vector<8x8xf32>
    %123 = tpu.matmul %5, %122, %cst_86 {dimension_numbers = #tpu.dot_dimension_numbers<[1], [0], [0], [1], [0, 0, 1, 1], [], []>} : vector<8x32xbf16>, vector<32x8xbf16>, vector<8x8xf32> -> vector<8x8xf32>
    %c3_87 = arith.constant 3 : index
    %c0_88 = arith.constant 0 : index
    %c0_89 = arith.constant 0 : index
    %124 = vector.load %arg7[%c3_87, %c0_88, %c0_89] : memref<4x1x8xf32, #tpu.memory_space<vmem>>, vector<1x1x8xf32>
    %125 = vector.shape_cast %124 : vector<1x1x8xf32> to vector<1x8xf32>
    %126 = vector.broadcast %125 : vector<1x8xf32> to vector<8x8xf32>
    %127 = arith.addf %123, %126 : vector<8x8xf32>
    %c3_90 = arith.constant 3 : index
    %c0_91 = arith.constant 0 : index
    %c0_92 = arith.constant 0 : index
    %128 = vector.load %arg8[%c3_90, %c0_91, %c0_92] : memref<4x32x8xbf16, #tpu.memory_space<vmem>>, vector<1x32x8xbf16>
    %129 = vector.shape_cast %128 : vector<1x32x8xbf16> to vector<32x8xbf16>
    %cst_93 = arith.constant dense<0.000000e+00> : vector<8x8xf32>
    %130 = tpu.matmul %5, %129, %cst_93 {dimension_numbers = #tpu.dot_dimension_numbers<[1], [0], [0], [1], [0, 0, 1, 1], [], []>} : vector<8x32xbf16>, vector<32x8xbf16>, vector<8x8xf32> -> vector<8x8xf32>
    %c3_94 = arith.constant 3 : index
    %c0_95 = arith.constant 0 : index
    %c0_96 = arith.constant 0 : index
    %131 = vector.load %arg9[%c3_94, %c0_95, %c0_96] : memref<4x1x8xf32, #tpu.memory_space<vmem>>, vector<1x1x8xf32>
    %132 = vector.shape_cast %131 : vector<1x1x8xf32> to vector<1x8xf32>
    %133 = vector.broadcast %132 : vector<1x8xf32> to vector<8x8xf32>
    %134 = arith.addf %130, %133 : vector<8x8xf32>
    %135 = arith.truncf %120 : vector<8x8xf32> to vector<8x8xbf16>
    %136 = arith.truncf %127 : vector<8x8xf32> to vector<8x8xbf16>
    %cst_97 = arith.constant dense<0.000000e+00> : vector<8x8xf32>
    %137 = tpu.matmul %135, %136, %cst_97 {dimension_numbers = #tpu.dot_dimension_numbers<[1], [1], [0], [0], [0, 0, 1, 0], [], []>} : vector<8x8xbf16>, vector<8x8xbf16>, vector<8x8xf32> -> vector<8x8xf32>
    %cst_98 = arith.constant dense<0xFF800000> : vector<8xf32>
    %138 = vector.multi_reduction <maximumf>, %137, %cst_98 [1] : vector<8x8xf32> to vector<8xf32>
    %139 = vector.shape_cast %138 : vector<8xf32> to vector<8x1xf32>
    %140 = vector.broadcast %139 : vector<8x1xf32> to vector<8x8xf32>
    %141 = arith.subf %137, %140 : vector<8x8xf32>
    %142 = math.exp %141 : vector<8x8xf32>
    %cst_99 = arith.constant dense<0.000000e+00> : vector<8xf32>
    %143 = vector.multi_reduction <add>, %142, %cst_99 [1] : vector<8x8xf32> to vector<8xf32>
    %144 = vector.shape_cast %143 : vector<8xf32> to vector<8x1xf32>
    %145 = vector.broadcast %144 : vector<8x1xf32> to vector<8x8xf32>
    %146 = arith.divf %142, %145 : vector<8x8xf32>
    %147 = arith.truncf %146 : vector<8x8xf32> to vector<8x8xbf16>
    %148 = arith.truncf %134 : vector<8x8xf32> to vector<8x8xbf16>
    %cst_100 = arith.constant dense<0.000000e+00> : vector<8x8xf32>
    %149 = tpu.matmul %147, %148, %cst_100 {dimension_numbers = #tpu.dot_dimension_numbers<[1], [0], [0], [1], [0, 0, 1, 1], [], []>} : vector<8x8xbf16>, vector<8x8xbf16>, vector<8x8xf32> -> vector<8x8xf32>
    %150 = tpu.concatenate %41, %77, %113, %149 in 1 : vector<8x8xf32>, vector<8x8xf32>, vector<8x8xf32>, vector<8x8xf32> -> vector<8x32xf32>
    %151 = arith.truncf %150 : vector<8x32xf32> to vector<8x32xbf16>
    %c0_101 = arith.constant 0 : index
    %c0_102 = arith.constant 0 : index
    %152 = vector.load %arg10[%c0_101, %c0_102] : memref<32x32xbf16, #tpu.memory_space<vmem>>, vector<32x32xbf16>
    %cst_103 = arith.constant dense<0.000000e+00> : vector<8x32xf32>
    %153 = tpu.matmul %151, %152, %cst_103 {dimension_numbers = #tpu.dot_dimension_numbers<[1], [0], [0], [1], [0, 0, 1, 1], [], []>} : vector<8x32xbf16>, vector<32x32xbf16>, vector<8x32xf32> -> vector<8x32xf32>
    %c0_104 = arith.constant 0 : index
    %c0_105 = arith.constant 0 : index
    %154 = vector.load %arg11[%c0_104, %c0_105] : memref<1x32xf32, #tpu.memory_space<vmem>>, vector<1x32xf32>
    %155 = vector.broadcast %154 : vector<1x32xf32> to vector<8x32xf32>
    %156 = arith.addf %153, %155 : vector<8x32xf32>
    %157 = arith.addf %1, %156 : vector<8x32xf32>
    %c0_106 = arith.constant 0 : index
    %c0_107 = arith.constant 0 : index
    %158 = vector.load %arg12[%c0_106, %c0_107] : memref<1x32xf32, #tpu.memory_space<vmem>>, vector<1x32xf32>
    %c0_108 = arith.constant 0 : index
    %c0_109 = arith.constant 0 : index
    %159 = vector.load %arg13[%c0_108, %c0_109] : memref<1x32xf32, #tpu.memory_space<vmem>>, vector<1x32xf32>
    %cst_110 = arith.constant dense<0.000000e+00> : vector<8xf32>
    %160 = vector.multi_reduction <add>, %157, %cst_110 [1] : vector<8x32xf32> to vector<8xf32>
    %161 = vector.shape_cast %160 : vector<8xf32> to vector<8x1xf32>
    %cst_111 = arith.constant 3.200000e+01 : f32
    %162 = vector.broadcast %cst_111 : f32 to vector<8x1xf32>
    %163 = arith.divf %161, %162 : vector<8x1xf32>
    %164 = vector.broadcast %163 : vector<8x1xf32> to vector<8x32xf32>
    %165 = arith.subf %157, %164 : vector<8x32xf32>
    %166 = arith.mulf %165, %165 : vector<8x32xf32>
    %cst_112 = arith.constant dense<0.000000e+00> : vector<8xf32>
    %167 = vector.multi_reduction <add>, %166, %cst_112 [1] : vector<8x32xf32> to vector<8xf32>
    %168 = vector.shape_cast %167 : vector<8xf32> to vector<8x1xf32>
    %cst_113 = arith.constant 3.200000e+01 : f32
    %169 = vector.broadcast %cst_113 : f32 to vector<8x1xf32>
    %170 = arith.divf %168, %169 : vector<8x1xf32>
    %cst_114 = arith.constant 9.99999974E-6 : f32
    %171 = vector.broadcast %cst_114 : f32 to vector<8x1xf32>
    %172 = arith.addf %170, %171 : vector<8x1xf32>
    %173 = math.rsqrt %172 : vector<8x1xf32>
    %174 = vector.broadcast %173 : vector<8x1xf32> to vector<8x32xf32>
    %175 = arith.mulf %165, %174 : vector<8x32xf32>
    %176 = vector.broadcast %158 : vector<1x32xf32> to vector<8x32xf32>
    %177 = arith.mulf %175, %176 : vector<8x32xf32>
    %178 = vector.broadcast %159 : vector<1x32xf32> to vector<8x32xf32>
    %179 = arith.addf %177, %178 : vector<8x32xf32>
    %c0_115 = arith.constant 0 : index
    %c0_116 = arith.constant 0 : index
    %c0_117 = arith.constant 0 : index
    %180 = vector.load %arg14[%c0_115, %c0_116, %c0_117] : memref<1x8x32xf32, #tpu.memory_space<vmem>>, vector<1x8x32xf32>
    %181 = vector.shape_cast %180 : vector<1x8x32xf32> to vector<8x32xf32>
    %182 = vector.shape_cast %179 : vector<8x32xf32> to vector<1x8x32xf32>
    tpu.vector_store %arg14[%c0_115, %c0_116, %c0_117], %182 {strides = array<i32>} : memref<1x8x32xf32, #tpu.memory_space<vmem>>, vector<1x8x32xf32>,
    return
  }
  func.func @transform_0(%arg0: i32, %arg1: i32) -> (i32, i32, i32) {
    %c0_i32 = arith.constant 0 : i32
    %c0_i32_0 = arith.constant 0 : i32
    return %arg0, %arg1, %c0_i32 : i32, i32, i32
  }
  func.func @transform_1(%arg0: i32, %arg1: i32) -> (i32, i32, i32) {
    %c0_i32 = arith.constant 0 : i32
    %c0_i32_0 = arith.constant 0 : i32
    %c0_i32_1 = arith.constant 0 : i32
    return %arg0, %c0_i32, %c0_i32_0 : i32, i32, i32
  }
  func.func @transform_2(%arg0: i32, %arg1: i32) -> (i32, i32, i32) {
    %c0_i32 = arith.constant 0 : i32
    %c0_i32_0 = arith.constant 0 : i32
    %c0_i32_1 = arith.constant 0 : i32
    %c0_i32_2 = arith.constant 0 : i32
    return %c0_i32, %c0_i32_0, %c0_i32_1 : i32, i32, i32
  }
  func.func @transform_3(%arg0: i32, %arg1: i32) -> (i32, i32, i32) {
    %c0_i32 = arith.constant 0 : i32
    %c0_i32_0 = arith.constant 0 : i32
    %c0_i32_1 = arith.constant 0 : i32
    %c0_i32_2 = arith.constant 0 : i32
    return %c0_i32, %c0_i32_0, %c0_i32_1 : i32, i32, i32
  }
  func.func @transform_4(%arg0: i32, %arg1: i32) -> (i32, i32, i32) {
    %c0_i32 = arith.constant 0 : i32
    %c0_i32_0 = arith.constant 0 : i32
    %c0_i32_1 = arith.constant 0 : i32
    %c0_i32_2 = arith.constant 0 : i32
    return %c0_i32, %c0_i32_0, %c0_i32_1 : i32, i32, i32
  }
  func.func @transform_5(%arg0: i32, %arg1: i32) -> (i32, i32, i32) {
    %c0_i32 = arith.constant 0 : i32
    %c0_i32_0 = arith.constant 0 : i32
    %c0_i32_1 = arith.constant 0 : i32
    %c0_i32_2 = arith.constant 0 : i32
    return %c0_i32, %c0_i32_0, %c0_i32_1 : i32, i32, i32
  }
  func.func @transform_6(%arg0: i32, %arg1: i32) -> (i32, i32, i32) {
    %c0_i32 = arith.constant 0 : i32
    %c0_i32_0 = arith.constant 0 : i32
    %c0_i32_1 = arith.constant 0 : i32
    %c0_i32_2 = arith.constant 0 : i32
    return %c0_i32, %c0_i32_0, %c0_i32_1 : i32, i32, i32
  }
  func.func @transform_7(%arg0: i32, %arg1: i32) -> (i32, i32, i32) {
    %c0_i32 = arith.constant 0 : i32
    %c0_i32_0 = arith.constant 0 : i32
    %c0_i32_1 = arith.constant 0 : i32
    %c0_i32_2 = arith.constant 0 : i32
    return %c0_i32, %c0_i32_0, %c0_i32_1 : i32, i32, i32
  }
  func.func @transform_8(%arg0: i32, %arg1: i32) -> (i32, i32) {
    %c0_i32 = arith.constant 0 : i32
    %c0_i32_0 = arith.constant 0 : i32
    %c0_i32_1 = arith.constant 0 : i32
    return %c0_i32, %c0_i32_0 : i32, i32
  }
  func.func @transform_9(%arg0: i32, %arg1: i32) -> (i32, i32) {
    %c0_i32 = arith.constant 0 : i32
    %c0_i32_0 = arith.constant 0 : i32
    %c0_i32_1 = arith.constant 0 : i32
    return %c0_i32, %c0_i32_0 : i32, i32
  }
  func.func @transform_10(%arg0: i32, %arg1: i32) -> (i32, i32) {
    %c0_i32 = arith.constant 0 : i32
    %c0_i32_0 = arith.constant 0 : i32
    %c0_i32_1 = arith.constant 0 : i32
    return %c0_i32, %c0_i32_0 : i32, i32
  }
  func.func @transform_11(%arg0: i32, %arg1: i32) -> (i32, i32) {
    %c0_i32 = arith.constant 0 : i32
    %c0_i32_0 = arith.constant 0 : i32
    %c0_i32_1 = arith.constant 0 : i32
    return %c0_i32, %c0_i32_0 : i32, i32
  }
  func.func @transform_12(%arg0: i32, %arg1: i32) -> (i32, i32, i32) {
    %c0_i32 = arith.constant 0 : i32
    %c0_i32_0 = arith.constant 0 : i32
    return %arg0, %arg1, %c0_i32 : i32, i32, i32
  }
}

module attributes {stable_mosaic.version = 11 : i64} {
  func.func @_ffn_block_kernel(%arg0: i32, %arg1: memref<16x32xf32, #tpu.memory_space<vmem>>, %arg2: memref<32x64xbf16, #tpu.memory_space<vmem>>, %arg3: memref<1x64xf32, #tpu.memory_space<vmem>>, %arg4: memref<64x32xbf16, #tpu.memory_space<vmem>>, %arg5: memref<1x32xf32, #tpu.memory_space<vmem>>, %arg6: memref<1x32xf32, #tpu.memory_space<vmem>>, %arg7: memref<1x32xf32, #tpu.memory_space<vmem>>, %arg8: memref<1x32xf32, #tpu.memory_space<vmem>>, %arg9: memref<1x32xf32, #tpu.memory_space<vmem>>, %arg10: memref<16x32xf32, #tpu.memory_space<vmem>>) attributes {dimension_semantics = [#tpu.dimension_semantics<parallel>], iteration_bounds = array<i64: 1>, scalar_prefetch = 0 : i64, scratch_operands = 0 : i64, tpu.core_type = #tpu.core_type<tc>, window_params = [{transform_indices = @transform_0, window_bounds = array<i64: 16, 32>}, {pipeline_mode = #tpu.pipeline_mode<synchronous>, transform_indices = @transform_1, window_bounds = array<i64: 32, 64>}, {pipeline_mode = #tpu.pipeline_mode<synchronous>, transform_indices = @transform_2, window_bounds = array<i64: 1, 64>}, {pipeline_mode = #tpu.pipeline_mode<synchronous>, transform_indices = @transform_3, window_bounds = array<i64: 64, 32>}, {pipeline_mode = #tpu.pipeline_mode<synchronous>, transform_indices = @transform_4, window_bounds = array<i64: 1, 32>}, {pipeline_mode = #tpu.pipeline_mode<synchronous>, transform_indices = @transform_5, window_bounds = array<i64: 1, 32>}, {pipeline_mode = #tpu.pipeline_mode<synchronous>, transform_indices = @transform_6, window_bounds = array<i64: 1, 32>}, {pipeline_mode = #tpu.pipeline_mode<synchronous>, transform_indices = @transform_7, window_bounds = array<i64: 1, 32>}, {pipeline_mode = #tpu.pipeline_mode<synchronous>, transform_indices = @transform_8, window_bounds = array<i64: 1, 32>}, {transform_indices = @transform_9, window_bounds = array<i64: 16, 32>}]} {
    %c0 = arith.constant 0 : index
    %c0_0 = arith.constant 0 : index
    %0 = vector.load %arg1[%c0, %c0_0] : memref<16x32xf32, #tpu.memory_space<vmem>>, vector<16x32xf32>
    %1 = arith.truncf %0 : vector<16x32xf32> to vector<16x32xbf16>
    %c0_1 = arith.constant 0 : index
    %c0_2 = arith.constant 0 : index
    %2 = vector.load %arg2[%c0_1, %c0_2] : memref<32x64xbf16, #tpu.memory_space<vmem>>, vector<32x64xbf16>
    %cst = arith.constant dense<0.000000e+00> : vector<16x64xf32>
    %3 = tpu.matmul %1, %2, %cst {dimension_numbers = #tpu.dot_dimension_numbers<[1], [0], [0], [1], [0, 0, 1, 1], [], []>} : vector<16x32xbf16>, vector<32x64xbf16>, vector<16x64xf32> -> vector<16x64xf32>
    %c0_3 = arith.constant 0 : index
    %c0_4 = arith.constant 0 : index
    %4 = vector.load %arg3[%c0_3, %c0_4] : memref<1x64xf32, #tpu.memory_space<vmem>>, vector<1x64xf32>
    %5 = vector.broadcast %4 : vector<1x64xf32> to vector<16x64xf32>
    %6 = arith.addf %3, %5 : vector<16x64xf32>
    %cst_5 = arith.constant 0.000000e+00 : f32
    %7 = vector.broadcast %cst_5 : f32 to vector<16x64xf32>
    %8 = arith.maximumf %6, %7 : vector<16x64xf32>
    %9 = arith.truncf %8 : vector<16x64xf32> to vector<16x64xbf16>
    %c0_6 = arith.constant 0 : index
    %c0_7 = arith.constant 0 : index
    %10 = vector.load %arg4[%c0_6, %c0_7] : memref<64x32xbf16, #tpu.memory_space<vmem>>, vector<64x32xbf16>
    %cst_8 = arith.constant dense<0.000000e+00> : vector<16x32xf32>
    %11 = tpu.matmul %9, %10, %cst_8 {dimension_numbers = #tpu.dot_dimension_numbers<[1], [0], [0], [1], [0, 0, 1, 1], [], []>} : vector<16x64xbf16>, vector<64x32xbf16>, vector<16x32xf32> -> vector<16x32xf32>
    %c0_9 = arith.constant 0 : index
    %c0_10 = arith.constant 0 : index
    %12 = vector.load %arg5[%c0_9, %c0_10] : memref<1x32xf32, #tpu.memory_space<vmem>>, vector<1x32xf32>
    %13 = vector.broadcast %12 : vector<1x32xf32> to vector<16x32xf32>
    %14 = arith.addf %11, %13 : vector<16x32xf32>
    %15 = arith.addf %0, %14 : vector<16x32xf32>
    %c0_11 = arith.constant 0 : index
    %c0_12 = arith.constant 0 : index
    %16 = vector.load %arg6[%c0_11, %c0_12] : memref<1x32xf32, #tpu.memory_space<vmem>>, vector<1x32xf32>
    %c0_13 = arith.constant 0 : index
    %c0_14 = arith.constant 0 : index
    %17 = vector.load %arg7[%c0_13, %c0_14] : memref<1x32xf32, #tpu.memory_space<vmem>>, vector<1x32xf32>
    %cst_15 = arith.constant dense<0.000000e+00> : vector<16xf32>
    %18 = vector.multi_reduction <add>, %15, %cst_15 [1] : vector<16x32xf32> to vector<16xf32>
    %19 = vector.shape_cast %18 : vector<16xf32> to vector<16x1xf32>
    %cst_16 = arith.constant 3.200000e+01 : f32
    %20 = vector.broadcast %cst_16 : f32 to vector<16x1xf32>
    %21 = arith.divf %19, %20 : vector<16x1xf32>
    %22 = vector.broadcast %21 : vector<16x1xf32> to vector<16x32xf32>
    %23 = arith.subf %15, %22 : vector<16x32xf32>
    %24 = arith.mulf %23, %23 : vector<16x32xf32>
    %cst_17 = arith.constant dense<0.000000e+00> : vector<16xf32>
    %25 = vector.multi_reduction <add>, %24, %cst_17 [1] : vector<16x32xf32> to vector<16xf32>
    %26 = vector.shape_cast %25 : vector<16xf32> to vector<16x1xf32>
    %cst_18 = arith.constant 3.200000e+01 : f32
    %27 = vector.broadcast %cst_18 : f32 to vector<16x1xf32>
    %28 = arith.divf %26, %27 : vector<16x1xf32>
    %cst_19 = arith.constant 9.99999974E-6 : f32
    %29 = vector.broadcast %cst_19 : f32 to vector<16x1xf32>
    %30 = arith.addf %28, %29 : vector<16x1xf32>
    %31 = math.rsqrt %30 : vector<16x1xf32>
    %32 = vector.broadcast %31 : vector<16x1xf32> to vector<16x32xf32>
    %33 = arith.mulf %23, %32 : vector<16x32xf32>
    %34 = vector.broadcast %16 : vector<1x32xf32> to vector<16x32xf32>
    %35 = arith.mulf %33, %34 : vector<16x32xf32>
    %36 = vector.broadcast %17 : vector<1x32xf32> to vector<16x32xf32>
    %37 = arith.addf %35, %36 : vector<16x32xf32>
    %c0_20 = arith.constant 0 : index
    %c0_21 = arith.constant 0 : index
    %38 = vector.load %arg8[%c0_20, %c0_21] : memref<1x32xf32, #tpu.memory_space<vmem>>, vector<1x32xf32>
    %c0_22 = arith.constant 0 : index
    %c0_23 = arith.constant 0 : index
    %39 = vector.load %arg9[%c0_22, %c0_23] : memref<1x32xf32, #tpu.memory_space<vmem>>, vector<1x32xf32>
    %cst_24 = arith.constant dense<0.000000e+00> : vector<16xf32>
    %40 = vector.multi_reduction <add>, %37, %cst_24 [1] : vector<16x32xf32> to vector<16xf32>
    %41 = vector.shape_cast %40 : vector<16xf32> to vector<16x1xf32>
    %cst_25 = arith.constant 3.200000e+01 : f32
    %42 = vector.broadcast %cst_25 : f32 to vector<16x1xf32>
    %43 = arith.divf %41, %42 : vector<16x1xf32>
    %44 = vector.broadcast %43 : vector<16x1xf32> to vector<16x32xf32>
    %45 = arith.subf %37, %44 : vector<16x32xf32>
    %46 = arith.mulf %45, %45 : vector<16x32xf32>
    %cst_26 = arith.constant dense<0.000000e+00> : vector<16xf32>
    %47 = vector.multi_reduction <add>, %46, %cst_26 [1] : vector<16x32xf32> to vector<16xf32>
    %48 = vector.shape_cast %47 : vector<16xf32> to vector<16x1xf32>
    %cst_27 = arith.constant 3.200000e+01 : f32
    %49 = vector.broadcast %cst_27 : f32 to vector<16x1xf32>
    %50 = arith.divf %48, %49 : vector<16x1xf32>
    %cst_28 = arith.constant 9.99999974E-6 : f32
    %51 = vector.broadcast %cst_28 : f32 to vector<16x1xf32>
    %52 = arith.addf %50, %51 : vector<16x1xf32>
    %53 = math.rsqrt %52 : vector<16x1xf32>
    %54 = vector.broadcast %53 : vector<16x1xf32> to vector<16x32xf32>
    %55 = arith.mulf %45, %54 : vector<16x32xf32>
    %56 = vector.broadcast %38 : vector<1x32xf32> to vector<16x32xf32>
    %57 = arith.mulf %55, %56 : vector<16x32xf32>
    %58 = vector.broadcast %39 : vector<1x32xf32> to vector<16x32xf32>
    %59 = arith.addf %57, %58 : vector<16x32xf32>
    %c0_29 = arith.constant 0 : index
    %c0_30 = arith.constant 0 : index
    %60 = vector.load %arg10[%c0_29, %c0_30] : memref<16x32xf32, #tpu.memory_space<vmem>>, vector<16x32xf32>
    tpu.vector_store %arg10[%c0_29, %c0_30], %59 {strides = array<i32>} : memref<16x32xf32, #tpu.memory_space<vmem>>, vector<16x32xf32>,
    return
  }
  func.func @transform_0(%arg0: i32) -> (i32, i32) {
    %c0_i32 = arith.constant 0 : i32
    %c0_i32_0 = arith.constant 0 : i32
    return %arg0, %c0_i32 : i32, i32
  }
  func.func @transform_1(%arg0: i32) -> (i32, i32) {
    %c0_i32 = arith.constant 0 : i32
    %c0_i32_0 = arith.constant 0 : i32
    %c0_i32_1 = arith.constant 0 : i32
    return %c0_i32, %c0_i32_0 : i32, i32
  }
  func.func @transform_2(%arg0: i32) -> (i32, i32) {
    %c0_i32 = arith.constant 0 : i32
    %c0_i32_0 = arith.constant 0 : i32
    %c0_i32_1 = arith.constant 0 : i32
    return %c0_i32, %c0_i32_0 : i32, i32
  }
  func.func @transform_3(%arg0: i32) -> (i32, i32) {
    %c0_i32 = arith.constant 0 : i32
    %c0_i32_0 = arith.constant 0 : i32
    %c0_i32_1 = arith.constant 0 : i32
    return %c0_i32, %c0_i32_0 : i32, i32
  }
  func.func @transform_4(%arg0: i32) -> (i32, i32) {
    %c0_i32 = arith.constant 0 : i32
    %c0_i32_0 = arith.constant 0 : i32
    %c0_i32_1 = arith.constant 0 : i32
    return %c0_i32, %c0_i32_0 : i32, i32
  }
  func.func @transform_5(%arg0: i32) -> (i32, i32) {
    %c0_i32 = arith.constant 0 : i32
    %c0_i32_0 = arith.constant 0 : i32
    %c0_i32_1 = arith.constant 0 : i32
    return %c0_i32, %c0_i32_0 : i32, i32
  }
  func.func @transform_6(%arg0: i32) -> (i32, i32) {
    %c0_i32 = arith.constant 0 : i32
    %c0_i32_0 = arith.constant 0 : i32
    %c0_i32_1 = arith.constant 0 : i32
    return %c0_i32, %c0_i32_0 : i32, i32
  }
  func.func @transform_7(%arg0: i32) -> (i32, i32) {
    %c0_i32 = arith.constant 0 : i32
    %c0_i32_0 = arith.constant 0 : i32
    %c0_i32_1 = arith.constant 0 : i32
    return %c0_i32, %c0_i32_0 : i32, i32
  }
  func.func @transform_8(%arg0: i32) -> (i32, i32) {
    %c0_i32 = arith.constant 0 : i32
    %c0_i32_0 = arith.constant 0 : i32
    %c0_i32_1 = arith.constant 0 : i32
    return %c0_i32, %c0_i32_0 : i32, i32
  }
  func.func @transform_9(%arg0: i32) -> (i32, i32) {
    %c0_i32 = arith.constant 0 : i32
    %c0_i32_0 = arith.constant 0 : i32
    return %arg0, %c0_i32 : i32, i32
  }
}

module attributes {stable_mosaic.version = 11 : i64} {
  func.func @_mha_block_kernel(%arg0: i32, %arg1: i32, %arg2: memref<1x10x32xf32, #tpu.memory_space<vmem>>, %arg3: memref<1x10x32xf32, #tpu.memory_space<vmem>>, %arg4: memref<4x32x8xbf16, #tpu.memory_space<vmem>>, %arg5: memref<4x1x8xf32, #tpu.memory_space<vmem>>, %arg6: memref<4x32x8xbf16, #tpu.memory_space<vmem>>, %arg7: memref<4x1x8xf32, #tpu.memory_space<vmem>>, %arg8: memref<4x32x8xbf16, #tpu.memory_space<vmem>>, %arg9: memref<4x1x8xf32, #tpu.memory_space<vmem>>, %arg10: memref<32x32xbf16, #tpu.memory_space<vmem>>, %arg11: memref<1x32xf32, #tpu.memory_space<vmem>>, %arg12: memref<1x32xf32, #tpu.memory_space<vmem>>, %arg13: memref<1x32xf32, #tpu.memory_space<vmem>>, %arg14: memref<1x10x32xf32, #tpu.memory_space<vmem>>) attributes {dimension_semantics = [#tpu.dimension_semantics<parallel>, #tpu.dimension_semantics<parallel>], iteration_bounds = array<i64: 2, 1>, scalar_prefetch = 0 : i64, scratch_operands = 0 : i64, tpu.core_type = #tpu.core_type<tc>, window_params = [{transform_indices = @transform_0, window_bounds = array<i64: 1, 10, 32>}, {transform_indices = @transform_1, window_bounds = array<i64: 1, 10, 32>}, {pipeline_mode = #tpu.pipeline_mode<synchronous>, transform_indices = @transform_2, window_bounds = array<i64: 4, 32, 8>}, {pipeline_mode = #tpu.pipeline_mode<synchronous>, transform_indices = @transform_3, window_bounds = array<i64: 4, 1, 8>}, {pipeline_mode = #tpu.pipeline_mode<synchronous>, transform_indices = @transform_4, window_bounds = array<i64: 4, 32, 8>}, {pipeline_mode = #tpu.pipeline_mode<synchronous>, transform_indices = @transform_5, window_bounds = array<i64: 4, 1, 8>}, {pipeline_mode = #tpu.pipeline_mode<synchronous>, transform_indices = @transform_6, window_bounds = array<i64: 4, 32, 8>}, {pipeline_mode = #tpu.pipeline_mode<synchronous>, transform_indices = @transform_7, window_bounds = array<i64: 4, 1, 8>}, {pipeline_mode = #tpu.pipeline_mode<synchronous>, transform_indices = @transform_8, window_bounds = array<i64: 32, 32>}, {pipeline_mode = #tpu.pipeline_mode<synchronous>, transform_indices = @transform_9, window_bounds = array<i64: 1, 32>}, {pipeline_mode = #tpu.pipeline_mode<synchronous>, transform_indices = @transform_10, window_bounds = array<i64: 1, 32>}, {pipeline_mode = #tpu.pipeline_mode<synchronous>, transform_indices = @transform_11, window_bounds = array<i64: 1, 32>}, {transform_indices = @transform_12, window_bounds = array<i64: 1, 10, 32>}]} {
    %c0 = arith.constant 0 : index
    %c0_0 = arith.constant 0 : index
    %c0_1 = arith.constant 0 : index
    %0 = vector.load %arg2[%c0, %c0_0, %c0_1] : memref<1x10x32xf32, #tpu.memory_space<vmem>>, vector<1x10x32xf32>
    %1 = vector.shape_cast %0 : vector<1x10x32xf32> to vector<10x32xf32>
    %c0_2 = arith.constant 0 : index
    %c0_3 = arith.constant 0 : index
    %c0_4 = arith.constant 0 : index
    %2 = vector.load %arg3[%c0_2, %c0_3, %c0_4] : memref<1x10x32xf32, #tpu.memory_space<vmem>>, vector<1x10x32xf32>
    %3 = vector.shape_cast %2 : vector<1x10x32xf32> to vector<10x32xf32>
    %4 = arith.truncf %1 : vector<10x32xf32> to vector<10x32xbf16>
    %5 = arith.truncf %3 : vector<10x32xf32> to vector<10x32xbf16>
    %c0_5 = arith.constant 0 : index
    %c0_6 = arith.constant 0 : index
    %c0_7 = arith.constant 0 : index
    %6 = vector.load %arg4[%c0_5, %c0_6, %c0_7] : memref<4x32x8xbf16, #tpu.memory_space<vmem>>, vector<1x32x8xbf16>
    %7 = vector.shape_cast %6 : vector<1x32x8xbf16> to vector<32x8xbf16>
    %cst = arith.constant dense<0.000000e+00> : vector<10x8xf32>
    %8 = tpu.matmul %4, %7, %cst {dimension_numbers = #tpu.dot_dimension_numbers<[1], [0], [0], [1], [0, 0, 1, 1], [], []>} : vector<10x32xbf16>, vector<32x8xbf16>, vector<10x8xf32> -> vector<10x8xf32>
    %c0_8 = arith.constant 0 : index
    %c0_9 = arith.constant 0 : index
    %c0_10 = arith.constant 0 : index
    %9 = vector.load %arg5[%c0_8, %c0_9, %c0_10] : memref<4x1x8xf32, #tpu.memory_space<vmem>>, vector<1x1x8xf32>
    %10 = vector.shape_cast %9 : vector<1x1x8xf32> to vector<1x8xf32>
    %11 = vector.broadcast %10 : vector<1x8xf32> to vector<10x8xf32>
    %12 = arith.addf %8, %11 : vector<10x8xf32>
    %c0_11 = arith.constant 0 : index
    %c0_12 = arith.constant 0 : index
    %c0_13 = arith.constant 0 : index
    %13 = vector.load %arg6[%c0_11, %c0_12, %c0_13] : memref<4x32x8xbf16, #tpu.memory_space<vmem>>, vector<1x32x8xbf16>
    %14 = vector.shape_cast %13 : vector<1x32x8xbf16> to vector<32x8xbf16>
    %cst_14 = arith.constant dense<0.000000e+00> : vector<10x8xf32>
    %15 = tpu.matmul %5, %14, %cst_14 {dimension_numbers = #tpu.dot_dimension_numbers<[1], [0], [0], [1], [0, 0, 1, 1], [], []>} : vector<10x32xbf16>, vector<32x8xbf16>, vector<10x8xf32> -> vector<10x8xf32>
    %c0_15 = arith.constant 0 : index
    %c0_16 = arith.constant 0 : index
    %c0_17 = arith.constant 0 : index
    %16 = vector.load %arg7[%c0_15, %c0_16, %c0_17] : memref<4x1x8xf32, #tpu.memory_space<vmem>>, vector<1x1x8xf32>
    %17 = vector.shape_cast %16 : vector<1x1x8xf32> to vector<1x8xf32>
    %18 = vector.broadcast %17 : vector<1x8xf32> to vector<10x8xf32>
    %19 = arith.addf %15, %18 : vector<10x8xf32>
    %c0_18 = arith.constant 0 : index
    %c0_19 = arith.constant 0 : index
    %c0_20 = arith.constant 0 : index
    %20 = vector.load %arg8[%c0_18, %c0_19, %c0_20] : memref<4x32x8xbf16, #tpu.memory_space<vmem>>, vector<1x32x8xbf16>
    %21 = vector.shape_cast %20 : vector<1x32x8xbf16> to vector<32x8xbf16>
    %cst_21 = arith.constant dense<0.000000e+00> : vector<10x8xf32>
    %22 = tpu.matmul %5, %21, %cst_21 {dimension_numbers = #tpu.dot_dimension_numbers<[1], [0], [0], [1], [0, 0, 1, 1], [], []>} : vector<10x32xbf16>, vector<32x8xbf16>, vector<10x8xf32> -> vector<10x8xf32>
    %c0_22 = arith.constant 0 : index
    %c0_23 = arith.constant 0 : index
    %c0_24 = arith.constant 0 : index
    %23 = vector.load %arg9[%c0_22, %c0_23, %c0_24] : memref<4x1x8xf32, #tpu.memory_space<vmem>>, vector<1x1x8xf32>
    %24 = vector.shape_cast %23 : vector<1x1x8xf32> to vector<1x8xf32>
    %25 = vector.broadcast %24 : vector<1x8xf32> to vector<10x8xf32>
    %26 = arith.addf %22, %25 : vector<10x8xf32>
    %27 = arith.truncf %12 : vector<10x8xf32> to vector<10x8xbf16>
    %28 = arith.truncf %19 : vector<10x8xf32> to vector<10x8xbf16>
    %cst_25 = arith.constant dense<0.000000e+00> : vector<10x10xf32>
    %29 = tpu.matmul %27, %28, %cst_25 {dimension_numbers = #tpu.dot_dimension_numbers<[1], [1], [0], [0], [0, 0, 1, 0], [], []>} : vector<10x8xbf16>, vector<10x8xbf16>, vector<10x10xf32> -> vector<10x10xf32>
    %cst_26 = arith.constant dense<0xFF800000> : vector<10xf32>
    %30 = vector.multi_reduction <maximumf>, %29, %cst_26 [1] : vector<10x10xf32> to vector<10xf32>
    %31 = vector.shape_cast %30 : vector<10xf32> to vector<10x1xf32>
    %32 = vector.broadcast %31 : vector<10x1xf32> to vector<10x10xf32>
    %33 = arith.subf %29, %32 : vector<10x10xf32>
    %34 = math.exp %33 : vector<10x10xf32>
    %cst_27 = arith.constant dense<0.000000e+00> : vector<10xf32>
    %35 = vector.multi_reduction <add>, %34, %cst_27 [1] : vector<10x10xf32> to vector<10xf32>
    %36 = vector.shape_cast %35 : vector<10xf32> to vector<10x1xf32>
    %37 = vector.broadcast %36 : vector<10x1xf32> to vector<10x10xf32>
    %38 = arith.divf %34, %37 : vector<10x10xf32>
    %39 = arith.truncf %38 : vector<10x10xf32> to vector<10x10xbf16>
    %40 = arith.truncf %26 : vector<10x8xf32> to vector<10x8xbf16>
    %cst_28 = arith.constant dense<0.000000e+00> : vector<10x8xf32>
    %41 = tpu.matmul %39, %40, %cst_28 {dimension_numbers = #tpu.dot_dimension_numbers<[1], [0], [0], [1], [0, 0, 1, 1], [], []>} : vector<10x10xbf16>, vector<10x8xbf16>, vector<10x8xf32> -> vector<10x8xf32>
    %c1 = arith.constant 1 : index
    %c0_29 = arith.constant 0 : index
    %c0_30 = arith.constant 0 : index
    %42 = vector.load %arg4[%c1, %c0_29, %c0_30] : memref<4x32x8xbf16, #tpu.memory_space<vmem>>, vector<1x32x8xbf16>
    %43 = vector.shape_cast %42 : vector<1x32x8xbf16> to vector<32x8xbf16>
    %cst_31 = arith.constant dense<0.000000e+00> : vector<10x8xf32>
    %44 = tpu.matmul %4, %43, %cst_31 {dimension_numbers = #tpu.dot_dimension_numbers<[1], [0], [0], [1], [0, 0, 1, 1], [], []>} : vector<10x32xbf16>, vector<32x8xbf16>, vector<10x8xf32> -> vector<10x8xf32>
    %c1_32 = arith.constant 1 : index
    %c0_33 = arith.constant 0 : index
    %c0_34 = arith.constant 0 : index
    %45 = vector.load %arg5[%c1_32, %c0_33, %c0_34] : memref<4x1x8xf32, #tpu.memory_space<vmem>>, vector<1x1x8xf32>
    %46 = vector.shape_cast %45 : vector<1x1x8xf32> to vector<1x8xf32>
    %47 = vector.broadcast %46 : vector<1x8xf32> to vector<10x8xf32>
    %48 = arith.addf %44, %47 : vector<10x8xf32>
    %c1_35 = arith.constant 1 : index
    %c0_36 = arith.constant 0 : index
    %c0_37 = arith.constant 0 : index
    %49 = vector.load %arg6[%c1_35, %c0_36, %c0_37] : memref<4x32x8xbf16, #tpu.memory_space<vmem>>, vector<1x32x8xbf16>
    %50 = vector.shape_cast %49 : vector<1x32x8xbf16> to vector<32x8xbf16>
    %cst_38 = arith.constant dense<0.000000e+00> : vector<10x8xf32>
    %51 = tpu.matmul %5, %50, %cst_38 {dimension_numbers = #tpu.dot_dimension_numbers<[1], [0], [0], [1], [0, 0, 1, 1], [], []>} : vector<10x32xbf16>, vector<32x8xbf16>, vector<10x8xf32> -> vector<10x8xf32>
    %c1_39 = arith.constant 1 : index
    %c0_40 = arith.constant 0 : index
    %c0_41 = arith.constant 0 : index
    %52 = vector.load %arg7[%c1_39, %c0_40, %c0_41] : memref<4x1x8xf32, #tpu.memory_space<vmem>>, vector<1x1x8xf32>
    %53 = vector.shape_cast %52 : vector<1x1x8xf32> to vector<1x8xf32>
    %54 = vector.broadcast %53 : vector<1x8xf32> to vector<10x8xf32>
    %55 = arith.addf %51, %54 : vector<10x8xf32>
    %c1_42 = arith.constant 1 : index
    %c0_43 = arith.constant 0 : index
    %c0_44 = arith.constant 0 : index
    %56 = vector.load %arg8[%c1_42, %c0_43, %c0_44] : memref<4x32x8xbf16, #tpu.memory_space<vmem>>, vector<1x32x8xbf16>
    %57 = vector.shape_cast %56 : vector<1x32x8xbf16> to vector<32x8xbf16>
    %cst_45 = arith.constant dense<0.000000e+00> : vector<10x8xf32>
    %58 = tpu.matmul %5, %57, %cst_45 {dimension_numbers = #tpu.dot_dimension_numbers<[1], [0], [0], [1], [0, 0, 1, 1], [], []>} : vector<10x32xbf16>, vector<32x8xbf16>, vector<10x8xf32> -> vector<10x8xf32>
    %c1_46 = arith.constant 1 : index
    %c0_47 = arith.constant 0 : index
    %c0_48 = arith.constant 0 : index
    %59 = vector.load %arg9[%c1_46, %c0_47, %c0_48] : memref<4x1x8xf32, #tpu.memory_space<vmem>>, vector<1x1x8xf32>
    %60 = vector.shape_cast %59 : vector<1x1x8xf32> to vector<1x8xf32>
    %61 = vector.broadcast %60 : vector<1x8xf32> to vector<10x8xf32>
    %62 = arith.addf %58, %61 : vector<10x8xf32>
    %63 = arith.truncf %48 : vector<10x8xf32> to vector<10x8xbf16>
    %64 = arith.truncf %55 : vector<10x8xf32> to vector<10x8xbf16>
    %cst_49 = arith.constant dense<0.000000e+00> : vector<10x10xf32>
    %65 = tpu.matmul %63, %64, %cst_49 {dimension_numbers = #tpu.dot_dimension_numbers<[1], [1], [0], [0], [0, 0, 1, 0], [], []>} : vector<10x8xbf16>, vector<10x8xbf16>, vector<10x10xf32> -> vector<10x10xf32>
    %cst_50 = arith.constant dense<0xFF800000> : vector<10xf32>
    %66 = vector.multi_reduction <maximumf>, %65, %cst_50 [1] : vector<10x10xf32> to vector<10xf32>
    %67 = vector.shape_cast %66 : vector<10xf32> to vector<10x1xf32>
    %68 = vector.broadcast %67 : vector<10x1xf32> to vector<10x10xf32>
    %69 = arith.subf %65, %68 : vector<10x10xf32>
    %70 = math.exp %69 : vector<10x10xf32>
    %cst_51 = arith.constant dense<0.000000e+00> : vector<10xf32>
    %71 = vector.multi_reduction <add>, %70, %cst_51 [1] : vector<10x10xf32> to vector<10xf32>
    %72 = vector.shape_cast %71 : vector<10xf32> to vector<10x1xf32>
    %73 = vector.broadcast %72 : vector<10x1xf32> to vector<10x10xf32>
    %74 = arith.divf %70, %73 : vector<10x10xf32>
    %75 = arith.truncf %74 : vector<10x10xf32> to vector<10x10xbf16>
    %76 = arith.truncf %62 : vector<10x8xf32> to vector<10x8xbf16>
    %cst_52 = arith.constant dense<0.000000e+00> : vector<10x8xf32>
    %77 = tpu.matmul %75, %76, %cst_52 {dimension_numbers = #tpu.dot_dimension_numbers<[1], [0], [0], [1], [0, 0, 1, 1], [], []>} : vector<10x10xbf16>, vector<10x8xbf16>, vector<10x8xf32> -> vector<10x8xf32>
    %c2 = arith.constant 2 : index
    %c0_53 = arith.constant 0 : index
    %c0_54 = arith.constant 0 : index
    %78 = vector.load %arg4[%c2, %c0_53, %c0_54] : memref<4x32x8xbf16, #tpu.memory_space<vmem>>, vector<1x32x8xbf16>
    %79 = vector.shape_cast %78 : vector<1x32x8xbf16> to vector<32x8xbf16>
    %cst_55 = arith.constant dense<0.000000e+00> : vector<10x8xf32>
    %80 = tpu.matmul %4, %79, %cst_55 {dimension_numbers = #tpu.dot_dimension_numbers<[1], [0], [0], [1], [0, 0, 1, 1], [], []>} : vector<10x32xbf16>, vector<32x8xbf16>, vector<10x8xf32> -> vector<10x8xf32>
    %c2_56 = arith.constant 2 : index
    %c0_57 = arith.constant 0 : index
    %c0_58 = arith.constant 0 : index
    %81 = vector.load %arg5[%c2_56, %c0_57, %c0_58] : memref<4x1x8xf32, #tpu.memory_space<vmem>>, vector<1x1x8xf32>
    %82 = vector.shape_cast %81 : vector<1x1x8xf32> to vector<1x8xf32>
    %83 = vector.broadcast %82 : vector<1x8xf32> to vector<10x8xf32>
    %84 = arith.addf %80, %83 : vector<10x8xf32>
    %c2_59 = arith.constant 2 : index
    %c0_60 = arith.constant 0 : index
    %c0_61 = arith.constant 0 : index
    %85 = vector.load %arg6[%c2_59, %c0_60, %c0_61] : memref<4x32x8xbf16, #tpu.memory_space<vmem>>, vector<1x32x8xbf16>
    %86 = vector.shape_cast %85 : vector<1x32x8xbf16> to vector<32x8xbf16>
    %cst_62 = arith.constant dense<0.000000e+00> : vector<10x8xf32>
    %87 = tpu.matmul %5, %86, %cst_62 {dimension_numbers = #tpu.dot_dimension_numbers<[1], [0], [0], [1], [0, 0, 1, 1], [], []>} : vector<10x32xbf16>, vector<32x8xbf16>, vector<10x8xf32> -> vector<10x8xf32>
    %c2_63 = arith.constant 2 : index
    %c0_64 = arith.constant 0 : index
    %c0_65 = arith.constant 0 : index
    %88 = vector.load %arg7[%c2_63, %c0_64, %c0_65] : memref<4x1x8xf32, #tpu.memory_space<vmem>>, vector<1x1x8xf32>
    %89 = vector.shape_cast %88 : vector<1x1x8xf32> to vector<1x8xf32>
    %90 = vector.broadcast %89 : vector<1x8xf32> to vector<10x8xf32>
    %91 = arith.addf %87, %90 : vector<10x8xf32>
    %c2_66 = arith.constant 2 : index
    %c0_67 = arith.constant 0 : index
    %c0_68 = arith.constant 0 : index
    %92 = vector.load %arg8[%c2_66, %c0_67, %c0_68] : memref<4x32x8xbf16, #tpu.memory_space<vmem>>, vector<1x32x8xbf16>
    %93 = vector.shape_cast %92 : vector<1x32x8xbf16> to vector<32x8xbf16>
    %cst_69 = arith.constant dense<0.000000e+00> : vector<10x8xf32>
    %94 = tpu.matmul %5, %93, %cst_69 {dimension_numbers = #tpu.dot_dimension_numbers<[1], [0], [0], [1], [0, 0, 1, 1], [], []>} : vector<10x32xbf16>, vector<32x8xbf16>, vector<10x8xf32> -> vector<10x8xf32>
    %c2_70 = arith.constant 2 : index
    %c0_71 = arith.constant 0 : index
    %c0_72 = arith.constant 0 : index
    %95 = vector.load %arg9[%c2_70, %c0_71, %c0_72] : memref<4x1x8xf32, #tpu.memory_space<vmem>>, vector<1x1x8xf32>
    %96 = vector.shape_cast %95 : vector<1x1x8xf32> to vector<1x8xf32>
    %97 = vector.broadcast %96 : vector<1x8xf32> to vector<10x8xf32>
    %98 = arith.addf %94, %97 : vector<10x8xf32>
    %99 = arith.truncf %84 : vector<10x8xf32> to vector<10x8xbf16>
    %100 = arith.truncf %91 : vector<10x8xf32> to vector<10x8xbf16>
    %cst_73 = arith.constant dense<0.000000e+00> : vector<10x10xf32>
    %101 = tpu.matmul %99, %100, %cst_73 {dimension_numbers = #tpu.dot_dimension_numbers<[1], [1], [0], [0], [0, 0, 1, 0], [], []>} : vector<10x8xbf16>, vector<10x8xbf16>, vector<10x10xf32> -> vector<10x10xf32>
    %cst_74 = arith.constant dense<0xFF800000> : vector<10xf32>
    %102 = vector.multi_reduction <maximumf>, %101, %cst_74 [1] : vector<10x10xf32> to vector<10xf32>
    %103 = vector.shape_cast %102 : vector<10xf32> to vector<10x1xf32>
    %104 = vector.broadcast %103 : vector<10x1xf32> to vector<10x10xf32>
    %105 = arith.subf %101, %104 : vector<10x10xf32>
    %106 = math.exp %105 : vector<10x10xf32>
    %cst_75 = arith.constant dense<0.000000e+00> : vector<10xf32>
    %107 = vector.multi_reduction <add>, %106, %cst_75 [1] : vector<10x10xf32> to vector<10xf32>
    %108 = vector.shape_cast %107 : vector<10xf32> to vector<10x1xf32>
    %109 = vector.broadcast %108 : vector<10x1xf32> to vector<10x10xf32>
    %110 = arith.divf %106, %109 : vector<10x10xf32>
    %111 = arith.truncf %110 : vector<10x10xf32> to vector<10x10xbf16>
    %112 = arith.truncf %98 : vector<10x8xf32> to vector<10x8xbf16>
    %cst_76 = arith.constant dense<0.000000e+00> : vector<10x8xf32>
    %113 = tpu.matmul %111, %112, %cst_76 {dimension_numbers = #tpu.dot_dimension_numbers<[1], [0], [0], [1], [0, 0, 1, 1], [], []>} : vector<10x10xbf16>, vector<10x8xbf16>, vector<10x8xf32> -> vector<10x8xf32>
    %c3 = arith.constant 3 : index
    %c0_77 = arith.constant 0 : index
    %c0_78 = arith.constant 0 : index
    %114 = vector.load %arg4[%c3, %c0_77, %c0_78] : memref<4x32x8xbf16, #tpu.memory_space<vmem>>, vector<1x32x8xbf16>
    %115 = vector.shape_cast %114 : vector<1x32x8xbf16> to vector<32x8xbf16>
    %cst_79 = arith.constant dense<0.000000e+00> : vector<10x8xf32>
    %116 = tpu.matmul %4, %115, %cst_79 {dimension_numbers = #tpu.dot_dimension_numbers<[1], [0], [0], [1], [0, 0, 1, 1], [], []>} : vector<10x32xbf16>, vector<32x8xbf16>, vector<10x8xf32> -> vector<10x8xf32>
    %c3_80 = arith.constant 3 : index
    %c0_81 = arith.constant 0 : index
    %c0_82 = arith.constant 0 : index
    %117 = vector.load %arg5[%c3_80, %c0_81, %c0_82] : memref<4x1x8xf32, #tpu.memory_space<vmem>>, vector<1x1x8xf32>
    %118 = vector.shape_cast %117 : vector<1x1x8xf32> to vector<1x8xf32>
    %119 = vector.broadcast %118 : vector<1x8xf32> to vector<10x8xf32>
    %120 = arith.addf %116, %119 : vector<10x8xf32>
    %c3_83 = arith.constant 3 : index
    %c0_84 = arith.constant 0 : index
    %c0_85 = arith.constant 0 : index
    %121 = vector.load %arg6[%c3_83, %c0_84, %c0_85] : memref<4x32x8xbf16, #tpu.memory_space<vmem>>, vector<1x32x8xbf16>
    %122 = vector.shape_cast %121 : vector<1x32x8xbf16> to vector<32x8xbf16>
    %cst_86 = arith.constant dense<0.000000e+00> : vector<10x8xf32>
    %123 = tpu.matmul %5, %122, %cst_86 {dimension_numbers = #tpu.dot_dimension_numbers<[1], [0], [0], [1], [0, 0, 1, 1], [], []>} : vector<10x32xbf16>, vector<32x8xbf16>, vector<10x8xf32> -> vector<10x8xf32>
    %c3_87 = arith.constant 3 : index
    %c0_88 = arith.constant 0 : index
    %c0_89 = arith.constant 0 : index
    %124 = vector.load %arg7[%c3_87, %c0_88, %c0_89] : memref<4x1x8xf32, #tpu.memory_space<vmem>>, vector<1x1x8xf32>
    %125 = vector.shape_cast %124 : vector<1x1x8xf32> to vector<1x8xf32>
    %126 = vector.broadcast %125 : vector<1x8xf32> to vector<10x8xf32>
    %127 = arith.addf %123, %126 : vector<10x8xf32>
    %c3_90 = arith.constant 3 : index
    %c0_91 = arith.constant 0 : index
    %c0_92 = arith.constant 0 : index
    %128 = vector.load %arg8[%c3_90, %c0_91, %c0_92] : memref<4x32x8xbf16, #tpu.memory_space<vmem>>, vector<1x32x8xbf16>
    %129 = vector.shape_cast %128 : vector<1x32x8xbf16> to vector<32x8xbf16>
    %cst_93 = arith.constant dense<0.000000e+00> : vector<10x8xf32>
    %130 = tpu.matmul %5, %129, %cst_93 {dimension_numbers = #tpu.dot_dimension_numbers<[1], [0], [0], [1], [0, 0, 1, 1], [], []>} : vector<10x32xbf16>, vector<32x8xbf16>, vector<10x8xf32> -> vector<10x8xf32>
    %c3_94 = arith.constant 3 : index
    %c0_95 = arith.constant 0 : index
    %c0_96 = arith.constant 0 : index
    %131 = vector.load %arg9[%c3_94, %c0_95, %c0_96] : memref<4x1x8xf32, #tpu.memory_space<vmem>>, vector<1x1x8xf32>
    %132 = vector.shape_cast %131 : vector<1x1x8xf32> to vector<1x8xf32>
    %133 = vector.broadcast %132 : vector<1x8xf32> to vector<10x8xf32>
    %134 = arith.addf %130, %133 : vector<10x8xf32>
    %135 = arith.truncf %120 : vector<10x8xf32> to vector<10x8xbf16>
    %136 = arith.truncf %127 : vector<10x8xf32> to vector<10x8xbf16>
    %cst_97 = arith.constant dense<0.000000e+00> : vector<10x10xf32>
    %137 = tpu.matmul %135, %136, %cst_97 {dimension_numbers = #tpu.dot_dimension_numbers<[1], [1], [0], [0], [0, 0, 1, 0], [], []>} : vector<10x8xbf16>, vector<10x8xbf16>, vector<10x10xf32> -> vector<10x10xf32>
    %cst_98 = arith.constant dense<0xFF800000> : vector<10xf32>
    %138 = vector.multi_reduction <maximumf>, %137, %cst_98 [1] : vector<10x10xf32> to vector<10xf32>
    %139 = vector.shape_cast %138 : vector<10xf32> to vector<10x1xf32>
    %140 = vector.broadcast %139 : vector<10x1xf32> to vector<10x10xf32>
    %141 = arith.subf %137, %140 : vector<10x10xf32>
    %142 = math.exp %141 : vector<10x10xf32>
    %cst_99 = arith.constant dense<0.000000e+00> : vector<10xf32>
    %143 = vector.multi_reduction <add>, %142, %cst_99 [1] : vector<10x10xf32> to vector<10xf32>
    %144 = vector.shape_cast %143 : vector<10xf32> to vector<10x1xf32>
    %145 = vector.broadcast %144 : vector<10x1xf32> to vector<10x10xf32>
    %146 = arith.divf %142, %145 : vector<10x10xf32>
    %147 = arith.truncf %146 : vector<10x10xf32> to vector<10x10xbf16>
    %148 = arith.truncf %134 : vector<10x8xf32> to vector<10x8xbf16>
    %cst_100 = arith.constant dense<0.000000e+00> : vector<10x8xf32>
    %149 = tpu.matmul %147, %148, %cst_100 {dimension_numbers = #tpu.dot_dimension_numbers<[1], [0], [0], [1], [0, 0, 1, 1], [], []>} : vector<10x10xbf16>, vector<10x8xbf16>, vector<10x8xf32> -> vector<10x8xf32>
    %150 = tpu.concatenate %41, %77, %113, %149 in 1 : vector<10x8xf32>, vector<10x8xf32>, vector<10x8xf32>, vector<10x8xf32> -> vector<10x32xf32>
    %151 = arith.truncf %150 : vector<10x32xf32> to vector<10x32xbf16>
    %c0_101 = arith.constant 0 : index
    %c0_102 = arith.constant 0 : index
    %152 = vector.load %arg10[%c0_101, %c0_102] : memref<32x32xbf16, #tpu.memory_space<vmem>>, vector<32x32xbf16>
    %cst_103 = arith.constant dense<0.000000e+00> : vector<10x32xf32>
    %153 = tpu.matmul %151, %152, %cst_103 {dimension_numbers = #tpu.dot_dimension_numbers<[1], [0], [0], [1], [0, 0, 1, 1], [], []>} : vector<10x32xbf16>, vector<32x32xbf16>, vector<10x32xf32> -> vector<10x32xf32>
    %c0_104 = arith.constant 0 : index
    %c0_105 = arith.constant 0 : index
    %154 = vector.load %arg11[%c0_104, %c0_105] : memref<1x32xf32, #tpu.memory_space<vmem>>, vector<1x32xf32>
    %155 = vector.broadcast %154 : vector<1x32xf32> to vector<10x32xf32>
    %156 = arith.addf %153, %155 : vector<10x32xf32>
    %157 = arith.addf %1, %156 : vector<10x32xf32>
    %c0_106 = arith.constant 0 : index
    %c0_107 = arith.constant 0 : index
    %158 = vector.load %arg12[%c0_106, %c0_107] : memref<1x32xf32, #tpu.memory_space<vmem>>, vector<1x32xf32>
    %c0_108 = arith.constant 0 : index
    %c0_109 = arith.constant 0 : index
    %159 = vector.load %arg13[%c0_108, %c0_109] : memref<1x32xf32, #tpu.memory_space<vmem>>, vector<1x32xf32>
    %cst_110 = arith.constant dense<0.000000e+00> : vector<10xf32>
    %160 = vector.multi_reduction <add>, %157, %cst_110 [1] : vector<10x32xf32> to vector<10xf32>
    %161 = vector.shape_cast %160 : vector<10xf32> to vector<10x1xf32>
    %cst_111 = arith.constant 3.200000e+01 : f32
    %162 = vector.broadcast %cst_111 : f32 to vector<10x1xf32>
    %163 = arith.divf %161, %162 : vector<10x1xf32>
    %164 = vector.broadcast %163 : vector<10x1xf32> to vector<10x32xf32>
    %165 = arith.subf %157, %164 : vector<10x32xf32>
    %166 = arith.mulf %165, %165 : vector<10x32xf32>
    %cst_112 = arith.constant dense<0.000000e+00> : vector<10xf32>
    %167 = vector.multi_reduction <add>, %166, %cst_112 [1] : vector<10x32xf32> to vector<10xf32>
    %168 = vector.shape_cast %167 : vector<10xf32> to vector<10x1xf32>
    %cst_113 = arith.constant 3.200000e+01 : f32
    %169 = vector.broadcast %cst_113 : f32 to vector<10x1xf32>
    %170 = arith.divf %168, %169 : vector<10x1xf32>
    %cst_114 = arith.constant 9.99999974E-6 : f32
    %171 = vector.broadcast %cst_114 : f32 to vector<10x1xf32>
    %172 = arith.addf %170, %171 : vector<10x1xf32>
    %173 = math.rsqrt %172 : vector<10x1xf32>
    %174 = vector.broadcast %173 : vector<10x1xf32> to vector<10x32xf32>
    %175 = arith.mulf %165, %174 : vector<10x32xf32>
    %176 = vector.broadcast %158 : vector<1x32xf32> to vector<10x32xf32>
    %177 = arith.mulf %175, %176 : vector<10x32xf32>
    %178 = vector.broadcast %159 : vector<1x32xf32> to vector<10x32xf32>
    %179 = arith.addf %177, %178 : vector<10x32xf32>
    %c0_115 = arith.constant 0 : index
    %c0_116 = arith.constant 0 : index
    %c0_117 = arith.constant 0 : index
    %180 = vector.load %arg14[%c0_115, %c0_116, %c0_117] : memref<1x10x32xf32, #tpu.memory_space<vmem>>, vector<1x10x32xf32>
    %181 = vector.shape_cast %180 : vector<1x10x32xf32> to vector<10x32xf32>
    %182 = vector.shape_cast %179 : vector<10x32xf32> to vector<1x10x32xf32>
    tpu.vector_store %arg14[%c0_115, %c0_116, %c0_117], %182 {strides = array<i32>} : memref<1x10x32xf32, #tpu.memory_space<vmem>>, vector<1x10x32xf32>,
    return
  }
  func.func @transform_0(%arg0: i32, %arg1: i32) -> (i32, i32, i32) {
    %c0_i32 = arith.constant 0 : i32
    %c0_i32_0 = arith.constant 0 : i32
    return %arg0, %arg1, %c0_i32 : i32, i32, i32
  }
  func.func @transform_1(%arg0: i32, %arg1: i32) -> (i32, i32, i32) {
    %c0_i32 = arith.constant 0 : i32
    %c0_i32_0 = arith.constant 0 : i32
    %c0_i32_1 = arith.constant 0 : i32
    return %arg0, %c0_i32, %c0_i32_0 : i32, i32, i32
  }
  func.func @transform_2(%arg0: i32, %arg1: i32) -> (i32, i32, i32) {
    %c0_i32 = arith.constant 0 : i32
    %c0_i32_0 = arith.constant 0 : i32
    %c0_i32_1 = arith.constant 0 : i32
    %c0_i32_2 = arith.constant 0 : i32
    return %c0_i32, %c0_i32_0, %c0_i32_1 : i32, i32, i32
  }
  func.func @transform_3(%arg0: i32, %arg1: i32) -> (i32, i32, i32) {
    %c0_i32 = arith.constant 0 : i32
    %c0_i32_0 = arith.constant 0 : i32
    %c0_i32_1 = arith.constant 0 : i32
    %c0_i32_2 = arith.constant 0 : i32
    return %c0_i32, %c0_i32_0, %c0_i32_1 : i32, i32, i32
  }
  func.func @transform_4(%arg0: i32, %arg1: i32) -> (i32, i32, i32) {
    %c0_i32 = arith.constant 0 : i32
    %c0_i32_0 = arith.constant 0 : i32
    %c0_i32_1 = arith.constant 0 : i32
    %c0_i32_2 = arith.constant 0 : i32
    return %c0_i32, %c0_i32_0, %c0_i32_1 : i32, i32, i32
  }
  func.func @transform_5(%arg0: i32, %arg1: i32) -> (i32, i32, i32) {
    %c0_i32 = arith.constant 0 : i32
    %c0_i32_0 = arith.constant 0 : i32
    %c0_i32_1 = arith.constant 0 : i32
    %c0_i32_2 = arith.constant 0 : i32
    return %c0_i32, %c0_i32_0, %c0_i32_1 : i32, i32, i32
  }
  func.func @transform_6(%arg0: i32, %arg1: i32) -> (i32, i32, i32) {
    %c0_i32 = arith.constant 0 : i32
    %c0_i32_0 = arith.constant 0 : i32
    %c0_i32_1 = arith.constant 0 : i32
    %c0_i32_2 = arith.constant 0 : i32
    return %c0_i32, %c0_i32_0, %c0_i32_1 : i32, i32, i32
  }
  func.func @transform_7(%arg0: i32, %arg1: i32) -> (i32, i32, i32) {
    %c0_i32 = arith.constant 0 : i32
    %c0_i32_0 = arith.constant 0 : i32
    %c0_i32_1 = arith.constant 0 : i32
    %c0_i32_2 = arith.constant 0 : i32
    return %c0_i32, %c0_i32_0, %c0_i32_1 : i32, i32, i32
  }
  func.func @transform_8(%arg0: i32, %arg1: i32) -> (i32, i32) {
    %c0_i32 = arith.constant 0 : i32
    %c0_i32_0 = arith.constant 0 : i32
    %c0_i32_1 = arith.constant 0 : i32
    return %c0_i32, %c0_i32_0 : i32, i32
  }
  func.func @transform_9(%arg0: i32, %arg1: i32) -> (i32, i32) {
    %c0_i32 = arith.constant 0 : i32
    %c0_i32_0 = arith.constant 0 : i32
    %c0_i32_1 = arith.constant 0 : i32
    return %c0_i32, %c0_i32_0 : i32, i32
  }
  func.func @transform_10(%arg0: i32, %arg1: i32) -> (i32, i32) {
    %c0_i32 = arith.constant 0 : i32
    %c0_i32_0 = arith.constant 0 : i32
    %c0_i32_1 = arith.constant 0 : i32
    return %c0_i32, %c0_i32_0 : i32, i32
  }
  func.func @transform_11(%arg0: i32, %arg1: i32) -> (i32, i32) {
    %c0_i32 = arith.constant 0 : i32
    %c0_i32_0 = arith.constant 0 : i32
    %c0_i32_1 = arith.constant 0 : i32
    return %c0_i32, %c0_i32_0 : i32, i32
  }
  func.func @transform_12(%arg0: i32, %arg1: i32) -> (i32, i32, i32) {
    %c0_i32 = arith.constant 0 : i32
    %c0_i32_0 = arith.constant 0 : i32
    return %arg0, %arg1, %c0_i32 : i32, i32, i32
  }
}

module attributes {stable_mosaic.version = 11 : i64} {
  func.func @_mha_block_kernel(%arg0: i32, %arg1: i32, %arg2: memref<1x10x32xf32, #tpu.memory_space<vmem>>, %arg3: memref<1x8x32xf32, #tpu.memory_space<vmem>>, %arg4: memref<4x32x8xbf16, #tpu.memory_space<vmem>>, %arg5: memref<4x1x8xf32, #tpu.memory_space<vmem>>, %arg6: memref<4x32x8xbf16, #tpu.memory_space<vmem>>, %arg7: memref<4x1x8xf32, #tpu.memory_space<vmem>>, %arg8: memref<4x32x8xbf16, #tpu.memory_space<vmem>>, %arg9: memref<4x1x8xf32, #tpu.memory_space<vmem>>, %arg10: memref<32x32xbf16, #tpu.memory_space<vmem>>, %arg11: memref<1x32xf32, #tpu.memory_space<vmem>>, %arg12: memref<1x32xf32, #tpu.memory_space<vmem>>, %arg13: memref<1x32xf32, #tpu.memory_space<vmem>>, %arg14: memref<1x10x32xf32, #tpu.memory_space<vmem>>) attributes {dimension_semantics = [#tpu.dimension_semantics<parallel>, #tpu.dimension_semantics<parallel>], iteration_bounds = array<i64: 2, 1>, scalar_prefetch = 0 : i64, scratch_operands = 0 : i64, tpu.core_type = #tpu.core_type<tc>, window_params = [{transform_indices = @transform_0, window_bounds = array<i64: 1, 10, 32>}, {transform_indices = @transform_1, window_bounds = array<i64: 1, 8, 32>}, {pipeline_mode = #tpu.pipeline_mode<synchronous>, transform_indices = @transform_2, window_bounds = array<i64: 4, 32, 8>}, {pipeline_mode = #tpu.pipeline_mode<synchronous>, transform_indices = @transform_3, window_bounds = array<i64: 4, 1, 8>}, {pipeline_mode = #tpu.pipeline_mode<synchronous>, transform_indices = @transform_4, window_bounds = array<i64: 4, 32, 8>}, {pipeline_mode = #tpu.pipeline_mode<synchronous>, transform_indices = @transform_5, window_bounds = array<i64: 4, 1, 8>}, {pipeline_mode = #tpu.pipeline_mode<synchronous>, transform_indices = @transform_6, window_bounds = array<i64: 4, 32, 8>}, {pipeline_mode = #tpu.pipeline_mode<synchronous>, transform_indices = @transform_7, window_bounds = array<i64: 4, 1, 8>}, {pipeline_mode = #tpu.pipeline_mode<synchronous>, transform_indices = @transform_8, window_bounds = array<i64: 32, 32>}, {pipeline_mode = #tpu.pipeline_mode<synchronous>, transform_indices = @transform_9, window_bounds = array<i64: 1, 32>}, {pipeline_mode = #tpu.pipeline_mode<synchronous>, transform_indices = @transform_10, window_bounds = array<i64: 1, 32>}, {pipeline_mode = #tpu.pipeline_mode<synchronous>, transform_indices = @transform_11, window_bounds = array<i64: 1, 32>}, {transform_indices = @transform_12, window_bounds = array<i64: 1, 10, 32>}]} {
    %c0 = arith.constant 0 : index
    %c0_0 = arith.constant 0 : index
    %c0_1 = arith.constant 0 : index
    %0 = vector.load %arg2[%c0, %c0_0, %c0_1] : memref<1x10x32xf32, #tpu.memory_space<vmem>>, vector<1x10x32xf32>
    %1 = vector.shape_cast %0 : vector<1x10x32xf32> to vector<10x32xf32>
    %c0_2 = arith.constant 0 : index
    %c0_3 = arith.constant 0 : index
    %c0_4 = arith.constant 0 : index
    %2 = vector.load %arg3[%c0_2, %c0_3, %c0_4] : memref<1x8x32xf32, #tpu.memory_space<vmem>>, vector<1x8x32xf32>
    %3 = vector.shape_cast %2 : vector<1x8x32xf32> to vector<8x32xf32>
    %4 = arith.truncf %1 : vector<10x32xf32> to vector<10x32xbf16>
    %5 = arith.truncf %3 : vector<8x32xf32> to vector<8x32xbf16>
    %c0_5 = arith.constant 0 : index
    %c0_6 = arith.constant 0 : index
    %c0_7 = arith.constant 0 : index
    %6 = vector.load %arg4[%c0_5, %c0_6, %c0_7] : memref<4x32x8xbf16, #tpu.memory_space<vmem>>, vector<1x32x8xbf16>
    %7 = vector.shape_cast %6 : vector<1x32x8xbf16> to vector<32x8xbf16>
    %cst = arith.constant dense<0.000000e+00> : vector<10x8xf32>
    %8 = tpu.matmul %4, %7, %cst {dimension_numbers = #tpu.dot_dimension_numbers<[1], [0], [0], [1], [0, 0, 1, 1], [], []>} : vector<10x32xbf16>, vector<32x8xbf16>, vector<10x8xf32> -> vector<10x8xf32>
    %c0_8 = arith.constant 0 : index
    %c0_9 = arith.constant 0 : index
    %c0_10 = arith.constant 0 : index
    %9 = vector.load %arg5[%c0_8, %c0_9, %c0_10] : memref<4x1x8xf32, #tpu.memory_space<vmem>>, vector<1x1x8xf32>
    %10 = vector.shape_cast %9 : vector<1x1x8xf32> to vector<1x8xf32>
    %11 = vector.broadcast %10 : vector<1x8xf32> to vector<10x8xf32>
    %12 = arith.addf %8, %11 : vector<10x8xf32>
    %c0_11 = arith.constant 0 : index
    %c0_12 = arith.constant 0 : index
    %c0_13 = arith.constant 0 : index
    %13 = vector.load %arg6[%c0_11, %c0_12, %c0_13] : memref<4x32x8xbf16, #tpu.memory_space<vmem>>, vector<1x32x8xbf16>
    %14 = vector.shape_cast %13 : vector<1x32x8xbf16> to vector<32x8xbf16>
    %cst_14 = arith.constant dense<0.000000e+00> : vector<8x8xf32>
    %15 = tpu.matmul %5, %14, %cst_14 {dimension_numbers = #tpu.dot_dimension_numbers<[1], [0], [0], [1], [0, 0, 1, 1], [], []>} : vector<8x32xbf16>, vector<32x8xbf16>, vector<8x8xf32> -> vector<8x8xf32>
    %c0_15 = arith.constant 0 : index
    %c0_16 = arith.constant 0 : index
    %c0_17 = arith.constant 0 : index
    %16 = vector.load %arg7[%c0_15, %c0_16, %c0_17] : memref<4x1x8xf32, #tpu.memory_space<vmem>>, vector<1x1x8xf32>
    %17 = vector.shape_cast %16 : vector<1x1x8xf32> to vector<1x8xf32>
    %18 = vector.broadcast %17 : vector<1x8xf32> to vector<8x8xf32>
    %19 = arith.addf %15, %18 : vector<8x8xf32>
    %c0_18 = arith.constant 0 : index
    %c0_19 = arith.constant 0 : index
    %c0_20 = arith.constant 0 : index
    %20 = vector.load %arg8[%c0_18, %c0_19, %c0_20] : memref<4x32x8xbf16, #tpu.memory_space<vmem>>, vector<1x32x8xbf16>
    %21 = vector.shape_cast %20 : vector<1x32x8xbf16> to vector<32x8xbf16>
    %cst_21 = arith.constant dense<0.000000e+00> : vector<8x8xf32>
    %22 = tpu.matmul %5, %21, %cst_21 {dimension_numbers = #tpu.dot_dimension_numbers<[1], [0], [0], [1], [0, 0, 1, 1], [], []>} : vector<8x32xbf16>, vector<32x8xbf16>, vector<8x8xf32> -> vector<8x8xf32>
    %c0_22 = arith.constant 0 : index
    %c0_23 = arith.constant 0 : index
    %c0_24 = arith.constant 0 : index
    %23 = vector.load %arg9[%c0_22, %c0_23, %c0_24] : memref<4x1x8xf32, #tpu.memory_space<vmem>>, vector<1x1x8xf32>
    %24 = vector.shape_cast %23 : vector<1x1x8xf32> to vector<1x8xf32>
    %25 = vector.broadcast %24 : vector<1x8xf32> to vector<8x8xf32>
    %26 = arith.addf %22, %25 : vector<8x8xf32>
    %27 = arith.truncf %12 : vector<10x8xf32> to vector<10x8xbf16>
    %28 = arith.truncf %19 : vector<8x8xf32> to vector<8x8xbf16>
    %cst_25 = arith.constant dense<0.000000e+00> : vector<10x8xf32>
    %29 = tpu.matmul %27, %28, %cst_25 {dimension_numbers = #tpu.dot_dimension_numbers<[1], [1], [0], [0], [0, 0, 1, 0], [], []>} : vector<10x8xbf16>, vector<8x8xbf16>, vector<10x8xf32> -> vector<10x8xf32>
    %cst_26 = arith.constant dense<0xFF800000> : vector<10xf32>
    %30 = vector.multi_reduction <maximumf>, %29, %cst_26 [1] : vector<10x8xf32> to vector<10xf32>
    %31 = vector.shape_cast %30 : vector<10xf32> to vector<10x1xf32>
    %32 = vector.broadcast %31 : vector<10x1xf32> to vector<10x8xf32>
    %33 = arith.subf %29, %32 : vector<10x8xf32>
    %34 = math.exp %33 : vector<10x8xf32>
    %cst_27 = arith.constant dense<0.000000e+00> : vector<10xf32>
    %35 = vector.multi_reduction <add>, %34, %cst_27 [1] : vector<10x8xf32> to vector<10xf32>
    %36 = vector.shape_cast %35 : vector<10xf32> to vector<10x1xf32>
    %37 = vector.broadcast %36 : vector<10x1xf32> to vector<10x8xf32>
    %38 = arith.divf %34, %37 : vector<10x8xf32>
    %39 = arith.truncf %38 : vector<10x8xf32> to vector<10x8xbf16>
    %40 = arith.truncf %26 : vector<8x8xf32> to vector<8x8xbf16>
    %cst_28 = arith.constant dense<0.000000e+00> : vector<10x8xf32>
    %41 = tpu.matmul %39, %40, %cst_28 {dimension_numbers = #tpu.dot_dimension_numbers<[1], [0], [0], [1], [0, 0, 1, 1], [], []>} : vector<10x8xbf16>, vector<8x8xbf16>, vector<10x8xf32> -> vector<10x8xf32>
    %c1 = arith.constant 1 : index
    %c0_29 = arith.constant 0 : index
    %c0_30 = arith.constant 0 : index
    %42 = vector.load %arg4[%c1, %c0_29, %c0_30] : memref<4x32x8xbf16, #tpu.memory_space<vmem>>, vector<1x32x8xbf16>
    %43 = vector.shape_cast %42 : vector<1x32x8xbf16> to vector<32x8xbf16>
    %cst_31 = arith.constant dense<0.000000e+00> : vector<10x8xf32>
    %44 = tpu.matmul %4, %43, %cst_31 {dimension_numbers = #tpu.dot_dimension_numbers<[1], [0], [0], [1], [0, 0, 1, 1], [], []>} : vector<10x32xbf16>, vector<32x8xbf16>, vector<10x8xf32> -> vector<10x8xf32>
    %c1_32 = arith.constant 1 : index
    %c0_33 = arith.constant 0 : index
    %c0_34 = arith.constant 0 : index
    %45 = vector.load %arg5[%c1_32, %c0_33, %c0_34] : memref<4x1x8xf32, #tpu.memory_space<vmem>>, vector<1x1x8xf32>
    %46 = vector.shape_cast %45 : vector<1x1x8xf32> to vector<1x8xf32>
    %47 = vector.broadcast %46 : vector<1x8xf32> to vector<10x8xf32>
    %48 = arith.addf %44, %47 : vector<10x8xf32>
    %c1_35 = arith.constant 1 : index
    %c0_36 = arith.constant 0 : index
    %c0_37 = arith.constant 0 : index
    %49 = vector.load %arg6[%c1_35, %c0_36, %c0_37] : memref<4x32x8xbf16, #tpu.memory_space<vmem>>, vector<1x32x8xbf16>
    %50 = vector.shape_cast %49 : vector<1x32x8xbf16> to vector<32x8xbf16>
    %cst_38 = arith.constant dense<0.000000e+00> : vector<8x8xf32>
    %51 = tpu.matmul %5, %50, %cst_38 {dimension_numbers = #tpu.dot_dimension_numbers<[1], [0], [0], [1], [0, 0, 1, 1], [], []>} : vector<8x32xbf16>, vector<32x8xbf16>, vector<8x8xf32> -> vector<8x8xf32>
    %c1_39 = arith.constant 1 : index
    %c0_40 = arith.constant 0 : index
    %c0_41 = arith.constant 0 : index
    %52 = vector.load %arg7[%c1_39, %c0_40, %c0_41] : memref<4x1x8xf32, #tpu.memory_space<vmem>>, vector<1x1x8xf32>
    %53 = vector.shape_cast %52 : vector<1x1x8xf32> to vector<1x8xf32>
    %54 = vector.broadcast %53 : vector<1x8xf32> to vector<8x8xf32>
    %55 = arith.addf %51, %54 : vector<8x8xf32>
    %c1_42 = arith.constant 1 : index
    %c0_43 = arith.constant 0 : index
    %c0_44 = arith.constant 0 : index
    %56 = vector.load %arg8[%c1_42, %c0_43, %c0_44] : memref<4x32x8xbf16, #tpu.memory_space<vmem>>, vector<1x32x8xbf16>
    %57 = vector.shape_cast %56 : vector<1x32x8xbf16> to vector<32x8xbf16>
    %cst_45 = arith.constant dense<0.000000e+00> : vector<8x8xf32>
    %58 = tpu.matmul %5, %57, %cst_45 {dimension_numbers = #tpu.dot_dimension_numbers<[1], [0], [0], [1], [0, 0, 1, 1], [], []>} : vector<8x32xbf16>, vector<32x8xbf16>, vector<8x8xf32> -> vector<8x8xf32>
    %c1_46 = arith.constant 1 : index
    %c0_47 = arith.constant 0 : index
    %c0_48 = arith.constant 0 : index
    %59 = vector.load %arg9[%c1_46, %c0_47, %c0_48] : memref<4x1x8xf32, #tpu.memory_space<vmem>>, vector<1x1x8xf32>
    %60 = vector.shape_cast %59 : vector<1x1x8xf32> to vector<1x8xf32>
    %61 = vector.broadcast %60 : vector<1x8xf32> to vector<8x8xf32>
    %62 = arith.addf %58, %61 : vector<8x8xf32>
    %63 = arith.truncf %48 : vector<10x8xf32> to vector<10x8xbf16>
    %64 = arith.truncf %55 : vector<8x8xf32> to vector<8x8xbf16>
    %cst_49 = arith.constant dense<0.000000e+00> : vector<10x8xf32>
    %65 = tpu.matmul %63, %64, %cst_49 {dimension_numbers = #tpu.dot_dimension_numbers<[1], [1], [0], [0], [0, 0, 1, 0], [], []>} : vector<10x8xbf16>, vector<8x8xbf16>, vector<10x8xf32> -> vector<10x8xf32>
    %cst_50 = arith.constant dense<0xFF800000> : vector<10xf32>
    %66 = vector.multi_reduction <maximumf>, %65, %cst_50 [1] : vector<10x8xf32> to vector<10xf32>
    %67 = vector.shape_cast %66 : vector<10xf32> to vector<10x1xf32>
    %68 = vector.broadcast %67 : vector<10x1xf32> to vector<10x8xf32>
    %69 = arith.subf %65, %68 : vector<10x8xf32>
    %70 = math.exp %69 : vector<10x8xf32>
    %cst_51 = arith.constant dense<0.000000e+00> : vector<10xf32>
    %71 = vector.multi_reduction <add>, %70, %cst_51 [1] : vector<10x8xf32> to vector<10xf32>
    %72 = vector.shape_cast %71 : vector<10xf32> to vector<10x1xf32>
    %73 = vector.broadcast %72 : vector<10x1xf32> to vector<10x8xf32>
    %74 = arith.divf %70, %73 : vector<10x8xf32>
    %75 = arith.truncf %74 : vector<10x8xf32> to vector<10x8xbf16>
    %76 = arith.truncf %62 : vector<8x8xf32> to vector<8x8xbf16>
    %cst_52 = arith.constant dense<0.000000e+00> : vector<10x8xf32>
    %77 = tpu.matmul %75, %76, %cst_52 {dimension_numbers = #tpu.dot_dimension_numbers<[1], [0], [0], [1], [0, 0, 1, 1], [], []>} : vector<10x8xbf16>, vector<8x8xbf16>, vector<10x8xf32> -> vector<10x8xf32>
    %c2 = arith.constant 2 : index
    %c0_53 = arith.constant 0 : index
    %c0_54 = arith.constant 0 : index
    %78 = vector.load %arg4[%c2, %c0_53, %c0_54] : memref<4x32x8xbf16, #tpu.memory_space<vmem>>, vector<1x32x8xbf16>
    %79 = vector.shape_cast %78 : vector<1x32x8xbf16> to vector<32x8xbf16>
    %cst_55 = arith.constant dense<0.000000e+00> : vector<10x8xf32>
    %80 = tpu.matmul %4, %79, %cst_55 {dimension_numbers = #tpu.dot_dimension_numbers<[1], [0], [0], [1], [0, 0, 1, 1], [], []>} : vector<10x32xbf16>, vector<32x8xbf16>, vector<10x8xf32> -> vector<10x8xf32>
    %c2_56 = arith.constant 2 : index
    %c0_57 = arith.constant 0 : index
    %c0_58 = arith.constant 0 : index
    %81 = vector.load %arg5[%c2_56, %c0_57, %c0_58] : memref<4x1x8xf32, #tpu.memory_space<vmem>>, vector<1x1x8xf32>
    %82 = vector.shape_cast %81 : vector<1x1x8xf32> to vector<1x8xf32>
    %83 = vector.broadcast %82 : vector<1x8xf32> to vector<10x8xf32>
    %84 = arith.addf %80, %83 : vector<10x8xf32>
    %c2_59 = arith.constant 2 : index
    %c0_60 = arith.constant 0 : index
    %c0_61 = arith.constant 0 : index
    %85 = vector.load %arg6[%c2_59, %c0_60, %c0_61] : memref<4x32x8xbf16, #tpu.memory_space<vmem>>, vector<1x32x8xbf16>
    %86 = vector.shape_cast %85 : vector<1x32x8xbf16> to vector<32x8xbf16>
    %cst_62 = arith.constant dense<0.000000e+00> : vector<8x8xf32>
    %87 = tpu.matmul %5, %86, %cst_62 {dimension_numbers = #tpu.dot_dimension_numbers<[1], [0], [0], [1], [0, 0, 1, 1], [], []>} : vector<8x32xbf16>, vector<32x8xbf16>, vector<8x8xf32> -> vector<8x8xf32>
    %c2_63 = arith.constant 2 : index
    %c0_64 = arith.constant 0 : index
    %c0_65 = arith.constant 0 : index
    %88 = vector.load %arg7[%c2_63, %c0_64, %c0_65] : memref<4x1x8xf32, #tpu.memory_space<vmem>>, vector<1x1x8xf32>
    %89 = vector.shape_cast %88 : vector<1x1x8xf32> to vector<1x8xf32>
    %90 = vector.broadcast %89 : vector<1x8xf32> to vector<8x8xf32>
    %91 = arith.addf %87, %90 : vector<8x8xf32>
    %c2_66 = arith.constant 2 : index
    %c0_67 = arith.constant 0 : index
    %c0_68 = arith.constant 0 : index
    %92 = vector.load %arg8[%c2_66, %c0_67, %c0_68] : memref<4x32x8xbf16, #tpu.memory_space<vmem>>, vector<1x32x8xbf16>
    %93 = vector.shape_cast %92 : vector<1x32x8xbf16> to vector<32x8xbf16>
    %cst_69 = arith.constant dense<0.000000e+00> : vector<8x8xf32>
    %94 = tpu.matmul %5, %93, %cst_69 {dimension_numbers = #tpu.dot_dimension_numbers<[1], [0], [0], [1], [0, 0, 1, 1], [], []>} : vector<8x32xbf16>, vector<32x8xbf16>, vector<8x8xf32> -> vector<8x8xf32>
    %c2_70 = arith.constant 2 : index
    %c0_71 = arith.constant 0 : index
    %c0_72 = arith.constant 0 : index
    %95 = vector.load %arg9[%c2_70, %c0_71, %c0_72] : memref<4x1x8xf32, #tpu.memory_space<vmem>>, vector<1x1x8xf32>
    %96 = vector.shape_cast %95 : vector<1x1x8xf32> to vector<1x8xf32>
    %97 = vector.broadcast %96 : vector<1x8xf32> to vector<8x8xf32>
    %98 = arith.addf %94, %97 : vector<8x8xf32>
    %99 = arith.truncf %84 : vector<10x8xf32> to vector<10x8xbf16>
    %100 = arith.truncf %91 : vector<8x8xf32> to vector<8x8xbf16>
    %cst_73 = arith.constant dense<0.000000e+00> : vector<10x8xf32>
    %101 = tpu.matmul %99, %100, %cst_73 {dimension_numbers = #tpu.dot_dimension_numbers<[1], [1], [0], [0], [0, 0, 1, 0], [], []>} : vector<10x8xbf16>, vector<8x8xbf16>, vector<10x8xf32> -> vector<10x8xf32>
    %cst_74 = arith.constant dense<0xFF800000> : vector<10xf32>
    %102 = vector.multi_reduction <maximumf>, %101, %cst_74 [1] : vector<10x8xf32> to vector<10xf32>
    %103 = vector.shape_cast %102 : vector<10xf32> to vector<10x1xf32>
    %104 = vector.broadcast %103 : vector<10x1xf32> to vector<10x8xf32>
    %105 = arith.subf %101, %104 : vector<10x8xf32>
    %106 = math.exp %105 : vector<10x8xf32>
    %cst_75 = arith.constant dense<0.000000e+00> : vector<10xf32>
    %107 = vector.multi_reduction <add>, %106, %cst_75 [1] : vector<10x8xf32> to vector<10xf32>
    %108 = vector.shape_cast %107 : vector<10xf32> to vector<10x1xf32>
    %109 = vector.broadcast %108 : vector<10x1xf32> to vector<10x8xf32>
    %110 = arith.divf %106, %109 : vector<10x8xf32>
    %111 = arith.truncf %110 : vector<10x8xf32> to vector<10x8xbf16>
    %112 = arith.truncf %98 : vector<8x8xf32> to vector<8x8xbf16>
    %cst_76 = arith.constant dense<0.000000e+00> : vector<10x8xf32>
    %113 = tpu.matmul %111, %112, %cst_76 {dimension_numbers = #tpu.dot_dimension_numbers<[1], [0], [0], [1], [0, 0, 1, 1], [], []>} : vector<10x8xbf16>, vector<8x8xbf16>, vector<10x8xf32> -> vector<10x8xf32>
    %c3 = arith.constant 3 : index
    %c0_77 = arith.constant 0 : index
    %c0_78 = arith.constant 0 : index
    %114 = vector.load %arg4[%c3, %c0_77, %c0_78] : memref<4x32x8xbf16, #tpu.memory_space<vmem>>, vector<1x32x8xbf16>
    %115 = vector.shape_cast %114 : vector<1x32x8xbf16> to vector<32x8xbf16>
    %cst_79 = arith.constant dense<0.000000e+00> : vector<10x8xf32>
    %116 = tpu.matmul %4, %115, %cst_79 {dimension_numbers = #tpu.dot_dimension_numbers<[1], [0], [0], [1], [0, 0, 1, 1], [], []>} : vector<10x32xbf16>, vector<32x8xbf16>, vector<10x8xf32> -> vector<10x8xf32>
    %c3_80 = arith.constant 3 : index
    %c0_81 = arith.constant 0 : index
    %c0_82 = arith.constant 0 : index
    %117 = vector.load %arg5[%c3_80, %c0_81, %c0_82] : memref<4x1x8xf32, #tpu.memory_space<vmem>>, vector<1x1x8xf32>
    %118 = vector.shape_cast %117 : vector<1x1x8xf32> to vector<1x8xf32>
    %119 = vector.broadcast %118 : vector<1x8xf32> to vector<10x8xf32>
    %120 = arith.addf %116, %119 : vector<10x8xf32>
    %c3_83 = arith.constant 3 : index
    %c0_84 = arith.constant 0 : index
    %c0_85 = arith.constant 0 : index
    %121 = vector.load %arg6[%c3_83, %c0_84, %c0_85] : memref<4x32x8xbf16, #tpu.memory_space<vmem>>, vector<1x32x8xbf16>
    %122 = vector.shape_cast %121 : vector<1x32x8xbf16> to vector<32x8xbf16>
    %cst_86 = arith.constant dense<0.000000e+00> : vector<8x8xf32>
    %123 = tpu.matmul %5, %122, %cst_86 {dimension_numbers = #tpu.dot_dimension_numbers<[1], [0], [0], [1], [0, 0, 1, 1], [], []>} : vector<8x32xbf16>, vector<32x8xbf16>, vector<8x8xf32> -> vector<8x8xf32>
    %c3_87 = arith.constant 3 : index
    %c0_88 = arith.constant 0 : index
    %c0_89 = arith.constant 0 : index
    %124 = vector.load %arg7[%c3_87, %c0_88, %c0_89] : memref<4x1x8xf32, #tpu.memory_space<vmem>>, vector<1x1x8xf32>
    %125 = vector.shape_cast %124 : vector<1x1x8xf32> to vector<1x8xf32>
    %126 = vector.broadcast %125 : vector<1x8xf32> to vector<8x8xf32>
    %127 = arith.addf %123, %126 : vector<8x8xf32>
    %c3_90 = arith.constant 3 : index
    %c0_91 = arith.constant 0 : index
    %c0_92 = arith.constant 0 : index
    %128 = vector.load %arg8[%c3_90, %c0_91, %c0_92] : memref<4x32x8xbf16, #tpu.memory_space<vmem>>, vector<1x32x8xbf16>
    %129 = vector.shape_cast %128 : vector<1x32x8xbf16> to vector<32x8xbf16>
    %cst_93 = arith.constant dense<0.000000e+00> : vector<8x8xf32>
    %130 = tpu.matmul %5, %129, %cst_93 {dimension_numbers = #tpu.dot_dimension_numbers<[1], [0], [0], [1], [0, 0, 1, 1], [], []>} : vector<8x32xbf16>, vector<32x8xbf16>, vector<8x8xf32> -> vector<8x8xf32>
    %c3_94 = arith.constant 3 : index
    %c0_95 = arith.constant 0 : index
    %c0_96 = arith.constant 0 : index
    %131 = vector.load %arg9[%c3_94, %c0_95, %c0_96] : memref<4x1x8xf32, #tpu.memory_space<vmem>>, vector<1x1x8xf32>
    %132 = vector.shape_cast %131 : vector<1x1x8xf32> to vector<1x8xf32>
    %133 = vector.broadcast %132 : vector<1x8xf32> to vector<8x8xf32>
    %134 = arith.addf %130, %133 : vector<8x8xf32>
    %135 = arith.truncf %120 : vector<10x8xf32> to vector<10x8xbf16>
    %136 = arith.truncf %127 : vector<8x8xf32> to vector<8x8xbf16>
    %cst_97 = arith.constant dense<0.000000e+00> : vector<10x8xf32>
    %137 = tpu.matmul %135, %136, %cst_97 {dimension_numbers = #tpu.dot_dimension_numbers<[1], [1], [0], [0], [0, 0, 1, 0], [], []>} : vector<10x8xbf16>, vector<8x8xbf16>, vector<10x8xf32> -> vector<10x8xf32>
    %cst_98 = arith.constant dense<0xFF800000> : vector<10xf32>
    %138 = vector.multi_reduction <maximumf>, %137, %cst_98 [1] : vector<10x8xf32> to vector<10xf32>
    %139 = vector.shape_cast %138 : vector<10xf32> to vector<10x1xf32>
    %140 = vector.broadcast %139 : vector<10x1xf32> to vector<10x8xf32>
    %141 = arith.subf %137, %140 : vector<10x8xf32>
    %142 = math.exp %141 : vector<10x8xf32>
    %cst_99 = arith.constant dense<0.000000e+00> : vector<10xf32>
    %143 = vector.multi_reduction <add>, %142, %cst_99 [1] : vector<10x8xf32> to vector<10xf32>
    %144 = vector.shape_cast %143 : vector<10xf32> to vector<10x1xf32>
    %145 = vector.broadcast %144 : vector<10x1xf32> to vector<10x8xf32>
    %146 = arith.divf %142, %145 : vector<10x8xf32>
    %147 = arith.truncf %146 : vector<10x8xf32> to vector<10x8xbf16>
    %148 = arith.truncf %134 : vector<8x8xf32> to vector<8x8xbf16>
    %cst_100 = arith.constant dense<0.000000e+00> : vector<10x8xf32>
    %149 = tpu.matmul %147, %148, %cst_100 {dimension_numbers = #tpu.dot_dimension_numbers<[1], [0], [0], [1], [0, 0, 1, 1], [], []>} : vector<10x8xbf16>, vector<8x8xbf16>, vector<10x8xf32> -> vector<10x8xf32>
    %150 = tpu.concatenate %41, %77, %113, %149 in 1 : vector<10x8xf32>, vector<10x8xf32>, vector<10x8xf32>, vector<10x8xf32> -> vector<10x32xf32>
    %151 = arith.truncf %150 : vector<10x32xf32> to vector<10x32xbf16>
    %c0_101 = arith.constant 0 : index
    %c0_102 = arith.constant 0 : index
    %152 = vector.load %arg10[%c0_101, %c0_102] : memref<32x32xbf16, #tpu.memory_space<vmem>>, vector<32x32xbf16>
    %cst_103 = arith.constant dense<0.000000e+00> : vector<10x32xf32>
    %153 = tpu.matmul %151, %152, %cst_103 {dimension_numbers = #tpu.dot_dimension_numbers<[1], [0], [0], [1], [0, 0, 1, 1], [], []>} : vector<10x32xbf16>, vector<32x32xbf16>, vector<10x32xf32> -> vector<10x32xf32>
    %c0_104 = arith.constant 0 : index
    %c0_105 = arith.constant 0 : index
    %154 = vector.load %arg11[%c0_104, %c0_105] : memref<1x32xf32, #tpu.memory_space<vmem>>, vector<1x32xf32>
    %155 = vector.broadcast %154 : vector<1x32xf32> to vector<10x32xf32>
    %156 = arith.addf %153, %155 : vector<10x32xf32>
    %157 = arith.addf %1, %156 : vector<10x32xf32>
    %c0_106 = arith.constant 0 : index
    %c0_107 = arith.constant 0 : index
    %158 = vector.load %arg12[%c0_106, %c0_107] : memref<1x32xf32, #tpu.memory_space<vmem>>, vector<1x32xf32>
    %c0_108 = arith.constant 0 : index
    %c0_109 = arith.constant 0 : index
    %159 = vector.load %arg13[%c0_108, %c0_109] : memref<1x32xf32, #tpu.memory_space<vmem>>, vector<1x32xf32>
    %cst_110 = arith.constant dense<0.000000e+00> : vector<10xf32>
    %160 = vector.multi_reduction <add>, %157, %cst_110 [1] : vector<10x32xf32> to vector<10xf32>
    %161 = vector.shape_cast %160 : vector<10xf32> to vector<10x1xf32>
    %cst_111 = arith.constant 3.200000e+01 : f32
    %162 = vector.broadcast %cst_111 : f32 to vector<10x1xf32>
    %163 = arith.divf %161, %162 : vector<10x1xf32>
    %164 = vector.broadcast %163 : vector<10x1xf32> to vector<10x32xf32>
    %165 = arith.subf %157, %164 : vector<10x32xf32>
    %166 = arith.mulf %165, %165 : vector<10x32xf32>
    %cst_112 = arith.constant dense<0.000000e+00> : vector<10xf32>
    %167 = vector.multi_reduction <add>, %166, %cst_112 [1] : vector<10x32xf32> to vector<10xf32>
    %168 = vector.shape_cast %167 : vector<10xf32> to vector<10x1xf32>
    %cst_113 = arith.constant 3.200000e+01 : f32
    %169 = vector.broadcast %cst_113 : f32 to vector<10x1xf32>
    %170 = arith.divf %168, %169 : vector<10x1xf32>
    %cst_114 = arith.constant 9.99999974E-6 : f32
    %171 = vector.broadcast %cst_114 : f32 to vector<10x1xf32>
    %172 = arith.addf %170, %171 : vector<10x1xf32>
    %173 = math.rsqrt %172 : vector<10x1xf32>
    %174 = vector.broadcast %173 : vector<10x1xf32> to vector<10x32xf32>
    %175 = arith.mulf %165, %174 : vector<10x32xf32>
    %176 = vector.broadcast %158 : vector<1x32xf32> to vector<10x32xf32>
    %177 = arith.mulf %175, %176 : vector<10x32xf32>
    %178 = vector.broadcast %159 : vector<1x32xf32> to vector<10x32xf32>
    %179 = arith.addf %177, %178 : vector<10x32xf32>
    %c0_115 = arith.constant 0 : index
    %c0_116 = arith.constant 0 : index
    %c0_117 = arith.constant 0 : index
    %180 = vector.load %arg14[%c0_115, %c0_116, %c0_117] : memref<1x10x32xf32, #tpu.memory_space<vmem>>, vector<1x10x32xf32>
    %181 = vector.shape_cast %180 : vector<1x10x32xf32> to vector<10x32xf32>
    %182 = vector.shape_cast %179 : vector<10x32xf32> to vector<1x10x32xf32>
    tpu.vector_store %arg14[%c0_115, %c0_116, %c0_117], %182 {strides = array<i32>} : memref<1x10x32xf32, #tpu.memory_space<vmem>>, vector<1x10x32xf32>,
    return
  }
  func.func @transform_0(%arg0: i32, %arg1: i32) -> (i32, i32, i32) {
    %c0_i32 = arith.constant 0 : i32
    %c0_i32_0 = arith.constant 0 : i32
    return %arg0, %arg1, %c0_i32 : i32, i32, i32
  }
  func.func @transform_1(%arg0: i32, %arg1: i32) -> (i32, i32, i32) {
    %c0_i32 = arith.constant 0 : i32
    %c0_i32_0 = arith.constant 0 : i32
    %c0_i32_1 = arith.constant 0 : i32
    return %arg0, %c0_i32, %c0_i32_0 : i32, i32, i32
  }
  func.func @transform_2(%arg0: i32, %arg1: i32) -> (i32, i32, i32) {
    %c0_i32 = arith.constant 0 : i32
    %c0_i32_0 = arith.constant 0 : i32
    %c0_i32_1 = arith.constant 0 : i32
    %c0_i32_2 = arith.constant 0 : i32
    return %c0_i32, %c0_i32_0, %c0_i32_1 : i32, i32, i32
  }
  func.func @transform_3(%arg0: i32, %arg1: i32) -> (i32, i32, i32) {
    %c0_i32 = arith.constant 0 : i32
    %c0_i32_0 = arith.constant 0 : i32
    %c0_i32_1 = arith.constant 0 : i32
    %c0_i32_2 = arith.constant 0 : i32
    return %c0_i32, %c0_i32_0, %c0_i32_1 : i32, i32, i32
  }
  func.func @transform_4(%arg0: i32, %arg1: i32) -> (i32, i32, i32) {
    %c0_i32 = arith.constant 0 : i32
    %c0_i32_0 = arith.constant 0 : i32
    %c0_i32_1 = arith.constant 0 : i32
    %c0_i32_2 = arith.constant 0 : i32
    return %c0_i32, %c0_i32_0, %c0_i32_1 : i32, i32, i32
  }
  func.func @transform_5(%arg0: i32, %arg1: i32) -> (i32, i32, i32) {
    %c0_i32 = arith.constant 0 : i32
    %c0_i32_0 = arith.constant 0 : i32
    %c0_i32_1 = arith.constant 0 : i32
    %c0_i32_2 = arith.constant 0 : i32
    return %c0_i32, %c0_i32_0, %c0_i32_1 : i32, i32, i32
  }
  func.func @transform_6(%arg0: i32, %arg1: i32) -> (i32, i32, i32) {
    %c0_i32 = arith.constant 0 : i32
    %c0_i32_0 = arith.constant 0 : i32
    %c0_i32_1 = arith.constant 0 : i32
    %c0_i32_2 = arith.constant 0 : i32
    return %c0_i32, %c0_i32_0, %c0_i32_1 : i32, i32, i32
  }
  func.func @transform_7(%arg0: i32, %arg1: i32) -> (i32, i32, i32) {
    %c0_i32 = arith.constant 0 : i32
    %c0_i32_0 = arith.constant 0 : i32
    %c0_i32_1 = arith.constant 0 : i32
    %c0_i32_2 = arith.constant 0 : i32
    return %c0_i32, %c0_i32_0, %c0_i32_1 : i32, i32, i32
  }
  func.func @transform_8(%arg0: i32, %arg1: i32) -> (i32, i32) {
    %c0_i32 = arith.constant 0 : i32
    %c0_i32_0 = arith.constant 0 : i32
    %c0_i32_1 = arith.constant 0 : i32
    return %c0_i32, %c0_i32_0 : i32, i32
  }
  func.func @transform_9(%arg0: i32, %arg1: i32) -> (i32, i32) {
    %c0_i32 = arith.constant 0 : i32
    %c0_i32_0 = arith.constant 0 : i32
    %c0_i32_1 = arith.constant 0 : i32
    return %c0_i32, %c0_i32_0 : i32, i32
  }
  func.func @transform_10(%arg0: i32, %arg1: i32) -> (i32, i32) {
    %c0_i32 = arith.constant 0 : i32
    %c0_i32_0 = arith.constant 0 : i32
    %c0_i32_1 = arith.constant 0 : i32
    return %c0_i32, %c0_i32_0 : i32, i32
  }
  func.func @transform_11(%arg0: i32, %arg1: i32) -> (i32, i32) {
    %c0_i32 = arith.constant 0 : i32
    %c0_i32_0 = arith.constant 0 : i32
    %c0_i32_1 = arith.constant 0 : i32
    return %c0_i32, %c0_i32_0 : i32, i32
  }
  func.func @transform_12(%arg0: i32, %arg1: i32) -> (i32, i32, i32) {
    %c0_i32 = arith.constant 0 : i32
    %c0_i32_0 = arith.constant 0 : i32
    return %arg0, %arg1, %c0_i32 : i32, i32, i32
  }
}

module attributes {stable_mosaic.version = 11 : i64} {
  func.func @_ffn_block_kernel(%arg0: i32, %arg1: memref<20x32xf32, #tpu.memory_space<vmem>>, %arg2: memref<32x64xbf16, #tpu.memory_space<vmem>>, %arg3: memref<1x64xf32, #tpu.memory_space<vmem>>, %arg4: memref<64x32xbf16, #tpu.memory_space<vmem>>, %arg5: memref<1x32xf32, #tpu.memory_space<vmem>>, %arg6: memref<1x32xf32, #tpu.memory_space<vmem>>, %arg7: memref<1x32xf32, #tpu.memory_space<vmem>>, %arg8: memref<20x32xf32, #tpu.memory_space<vmem>>) attributes {dimension_semantics = [#tpu.dimension_semantics<parallel>], iteration_bounds = array<i64: 1>, scalar_prefetch = 0 : i64, scratch_operands = 0 : i64, tpu.core_type = #tpu.core_type<tc>, window_params = [{transform_indices = @transform_0, window_bounds = array<i64: 20, 32>}, {pipeline_mode = #tpu.pipeline_mode<synchronous>, transform_indices = @transform_1, window_bounds = array<i64: 32, 64>}, {pipeline_mode = #tpu.pipeline_mode<synchronous>, transform_indices = @transform_2, window_bounds = array<i64: 1, 64>}, {pipeline_mode = #tpu.pipeline_mode<synchronous>, transform_indices = @transform_3, window_bounds = array<i64: 64, 32>}, {pipeline_mode = #tpu.pipeline_mode<synchronous>, transform_indices = @transform_4, window_bounds = array<i64: 1, 32>}, {pipeline_mode = #tpu.pipeline_mode<synchronous>, transform_indices = @transform_5, window_bounds = array<i64: 1, 32>}, {pipeline_mode = #tpu.pipeline_mode<synchronous>, transform_indices = @transform_6, window_bounds = array<i64: 1, 32>}, {transform_indices = @transform_7, window_bounds = array<i64: 20, 32>}]} {
    %c0 = arith.constant 0 : index
    %c0_0 = arith.constant 0 : index
    %0 = vector.load %arg1[%c0, %c0_0] : memref<20x32xf32, #tpu.memory_space<vmem>>, vector<20x32xf32>
    %1 = arith.truncf %0 : vector<20x32xf32> to vector<20x32xbf16>
    %c0_1 = arith.constant 0 : index
    %c0_2 = arith.constant 0 : index
    %2 = vector.load %arg2[%c0_1, %c0_2] : memref<32x64xbf16, #tpu.memory_space<vmem>>, vector<32x64xbf16>
    %cst = arith.constant dense<0.000000e+00> : vector<20x64xf32>
    %3 = tpu.matmul %1, %2, %cst {dimension_numbers = #tpu.dot_dimension_numbers<[1], [0], [0], [1], [0, 0, 1, 1], [], []>} : vector<20x32xbf16>, vector<32x64xbf16>, vector<20x64xf32> -> vector<20x64xf32>
    %c0_3 = arith.constant 0 : index
    %c0_4 = arith.constant 0 : index
    %4 = vector.load %arg3[%c0_3, %c0_4] : memref<1x64xf32, #tpu.memory_space<vmem>>, vector<1x64xf32>
    %5 = vector.broadcast %4 : vector<1x64xf32> to vector<20x64xf32>
    %6 = arith.addf %3, %5 : vector<20x64xf32>
    %cst_5 = arith.constant 0.000000e+00 : f32
    %7 = vector.broadcast %cst_5 : f32 to vector<20x64xf32>
    %8 = arith.maximumf %6, %7 : vector<20x64xf32>
    %9 = arith.truncf %8 : vector<20x64xf32> to vector<20x64xbf16>
    %c0_6 = arith.constant 0 : index
    %c0_7 = arith.constant 0 : index
    %10 = vector.load %arg4[%c0_6, %c0_7] : memref<64x32xbf16, #tpu.memory_space<vmem>>, vector<64x32xbf16>
    %cst_8 = arith.constant dense<0.000000e+00> : vector<20x32xf32>
    %11 = tpu.matmul %9, %10, %cst_8 {dimension_numbers = #tpu.dot_dimension_numbers<[1], [0], [0], [1], [0, 0, 1, 1], [], []>} : vector<20x64xbf16>, vector<64x32xbf16>, vector<20x32xf32> -> vector<20x32xf32>
    %c0_9 = arith.constant 0 : index
    %c0_10 = arith.constant 0 : index
    %12 = vector.load %arg5[%c0_9, %c0_10] : memref<1x32xf32, #tpu.memory_space<vmem>>, vector<1x32xf32>
    %13 = vector.broadcast %12 : vector<1x32xf32> to vector<20x32xf32>
    %14 = arith.addf %11, %13 : vector<20x32xf32>
    %15 = arith.addf %0, %14 : vector<20x32xf32>
    %c0_11 = arith.constant 0 : index
    %c0_12 = arith.constant 0 : index
    %16 = vector.load %arg6[%c0_11, %c0_12] : memref<1x32xf32, #tpu.memory_space<vmem>>, vector<1x32xf32>
    %c0_13 = arith.constant 0 : index
    %c0_14 = arith.constant 0 : index
    %17 = vector.load %arg7[%c0_13, %c0_14] : memref<1x32xf32, #tpu.memory_space<vmem>>, vector<1x32xf32>
    %cst_15 = arith.constant dense<0.000000e+00> : vector<20xf32>
    %18 = vector.multi_reduction <add>, %15, %cst_15 [1] : vector<20x32xf32> to vector<20xf32>
    %19 = vector.shape_cast %18 : vector<20xf32> to vector<20x1xf32>
    %cst_16 = arith.constant 3.200000e+01 : f32
    %20 = vector.broadcast %cst_16 : f32 to vector<20x1xf32>
    %21 = arith.divf %19, %20 : vector<20x1xf32>
    %22 = vector.broadcast %21 : vector<20x1xf32> to vector<20x32xf32>
    %23 = arith.subf %15, %22 : vector<20x32xf32>
    %24 = arith.mulf %23, %23 : vector<20x32xf32>
    %cst_17 = arith.constant dense<0.000000e+00> : vector<20xf32>
    %25 = vector.multi_reduction <add>, %24, %cst_17 [1] : vector<20x32xf32> to vector<20xf32>
    %26 = vector.shape_cast %25 : vector<20xf32> to vector<20x1xf32>
    %cst_18 = arith.constant 3.200000e+01 : f32
    %27 = vector.broadcast %cst_18 : f32 to vector<20x1xf32>
    %28 = arith.divf %26, %27 : vector<20x1xf32>
    %cst_19 = arith.constant 9.99999974E-6 : f32
    %29 = vector.broadcast %cst_19 : f32 to vector<20x1xf32>
    %30 = arith.addf %28, %29 : vector<20x1xf32>
    %31 = math.rsqrt %30 : vector<20x1xf32>
    %32 = vector.broadcast %31 : vector<20x1xf32> to vector<20x32xf32>
    %33 = arith.mulf %23, %32 : vector<20x32xf32>
    %34 = vector.broadcast %16 : vector<1x32xf32> to vector<20x32xf32>
    %35 = arith.mulf %33, %34 : vector<20x32xf32>
    %36 = vector.broadcast %17 : vector<1x32xf32> to vector<20x32xf32>
    %37 = arith.addf %35, %36 : vector<20x32xf32>
    %c0_20 = arith.constant 0 : index
    %c0_21 = arith.constant 0 : index
    %38 = vector.load %arg8[%c0_20, %c0_21] : memref<20x32xf32, #tpu.memory_space<vmem>>, vector<20x32xf32>
    tpu.vector_store %arg8[%c0_20, %c0_21], %37 {strides = array<i32>} : memref<20x32xf32, #tpu.memory_space<vmem>>, vector<20x32xf32>,
    return
  }
  func.func @transform_0(%arg0: i32) -> (i32, i32) {
    %c0_i32 = arith.constant 0 : i32
    %c0_i32_0 = arith.constant 0 : i32
    return %arg0, %c0_i32 : i32, i32
  }
  func.func @transform_1(%arg0: i32) -> (i32, i32) {
    %c0_i32 = arith.constant 0 : i32
    %c0_i32_0 = arith.constant 0 : i32
    %c0_i32_1 = arith.constant 0 : i32
    return %c0_i32, %c0_i32_0 : i32, i32
  }
  func.func @transform_2(%arg0: i32) -> (i32, i32) {
    %c0_i32 = arith.constant 0 : i32
    %c0_i32_0 = arith.constant 0 : i32
    %c0_i32_1 = arith.constant 0 : i32
    return %c0_i32, %c0_i32_0 : i32, i32
  }
  func.func @transform_3(%arg0: i32) -> (i32, i32) {
    %c0_i32 = arith.constant 0 : i32
    %c0_i32_0 = arith.constant 0 : i32
    %c0_i32_1 = arith.constant 0 : i32
    return %c0_i32, %c0_i32_0 : i32, i32
  }
  func.func @transform_4(%arg0: i32) -> (i32, i32) {
    %c0_i32 = arith.constant 0 : i32
    %c0_i32_0 = arith.constant 0 : i32
    %c0_i32_1 = arith.constant 0 : i32
    return %c0_i32, %c0_i32_0 : i32, i32
  }
  func.func @transform_5(%arg0: i32) -> (i32, i32) {
    %c0_i32 = arith.constant 0 : i32
    %c0_i32_0 = arith.constant 0 : i32
    %c0_i32_1 = arith.constant 0 : i32
    return %c0_i32, %c0_i32_0 : i32, i32
  }
  func.func @transform_6(%arg0: i32) -> (i32, i32) {
    %c0_i32 = arith.constant 0 : i32
    %c0_i32_0 = arith.constant 0 : i32
    %c0_i32_1 = arith.constant 0 : i32
    return %c0_i32, %c0_i32_0 : i32, i32
  }
  func.func @transform_7(%arg0: i32) -> (i32, i32) {
    %c0_i32 = arith.constant 0 : i32
    %c0_i32_0 = arith.constant 0 : i32
    return %arg0, %c0_i32 : i32, i32
  }
}

module attributes {stable_mosaic.version = 11 : i64} {
  func.func @_ffn_block_kernel(%arg0: i32, %arg1: memref<20x32xf32, #tpu.memory_space<vmem>>, %arg2: memref<32x64xbf16, #tpu.memory_space<vmem>>, %arg3: memref<1x64xf32, #tpu.memory_space<vmem>>, %arg4: memref<64x32xbf16, #tpu.memory_space<vmem>>, %arg5: memref<1x32xf32, #tpu.memory_space<vmem>>, %arg6: memref<1x32xf32, #tpu.memory_space<vmem>>, %arg7: memref<1x32xf32, #tpu.memory_space<vmem>>, %arg8: memref<1x32xf32, #tpu.memory_space<vmem>>, %arg9: memref<1x32xf32, #tpu.memory_space<vmem>>, %arg10: memref<20x32xf32, #tpu.memory_space<vmem>>) attributes {dimension_semantics = [#tpu.dimension_semantics<parallel>], iteration_bounds = array<i64: 1>, scalar_prefetch = 0 : i64, scratch_operands = 0 : i64, tpu.core_type = #tpu.core_type<tc>, window_params = [{transform_indices = @transform_0, window_bounds = array<i64: 20, 32>}, {pipeline_mode = #tpu.pipeline_mode<synchronous>, transform_indices = @transform_1, window_bounds = array<i64: 32, 64>}, {pipeline_mode = #tpu.pipeline_mode<synchronous>, transform_indices = @transform_2, window_bounds = array<i64: 1, 64>}, {pipeline_mode = #tpu.pipeline_mode<synchronous>, transform_indices = @transform_3, window_bounds = array<i64: 64, 32>}, {pipeline_mode = #tpu.pipeline_mode<synchronous>, transform_indices = @transform_4, window_bounds = array<i64: 1, 32>}, {pipeline_mode = #tpu.pipeline_mode<synchronous>, transform_indices = @transform_5, window_bounds = array<i64: 1, 32>}, {pipeline_mode = #tpu.pipeline_mode<synchronous>, transform_indices = @transform_6, window_bounds = array<i64: 1, 32>}, {pipeline_mode = #tpu.pipeline_mode<synchronous>, transform_indices = @transform_7, window_bounds = array<i64: 1, 32>}, {pipeline_mode = #tpu.pipeline_mode<synchronous>, transform_indices = @transform_8, window_bounds = array<i64: 1, 32>}, {transform_indices = @transform_9, window_bounds = array<i64: 20, 32>}]} {
    %c0 = arith.constant 0 : index
    %c0_0 = arith.constant 0 : index
    %0 = vector.load %arg1[%c0, %c0_0] : memref<20x32xf32, #tpu.memory_space<vmem>>, vector<20x32xf32>
    %1 = arith.truncf %0 : vector<20x32xf32> to vector<20x32xbf16>
    %c0_1 = arith.constant 0 : index
    %c0_2 = arith.constant 0 : index
    %2 = vector.load %arg2[%c0_1, %c0_2] : memref<32x64xbf16, #tpu.memory_space<vmem>>, vector<32x64xbf16>
    %cst = arith.constant dense<0.000000e+00> : vector<20x64xf32>
    %3 = tpu.matmul %1, %2, %cst {dimension_numbers = #tpu.dot_dimension_numbers<[1], [0], [0], [1], [0, 0, 1, 1], [], []>} : vector<20x32xbf16>, vector<32x64xbf16>, vector<20x64xf32> -> vector<20x64xf32>
    %c0_3 = arith.constant 0 : index
    %c0_4 = arith.constant 0 : index
    %4 = vector.load %arg3[%c0_3, %c0_4] : memref<1x64xf32, #tpu.memory_space<vmem>>, vector<1x64xf32>
    %5 = vector.broadcast %4 : vector<1x64xf32> to vector<20x64xf32>
    %6 = arith.addf %3, %5 : vector<20x64xf32>
    %cst_5 = arith.constant 0.000000e+00 : f32
    %7 = vector.broadcast %cst_5 : f32 to vector<20x64xf32>
    %8 = arith.maximumf %6, %7 : vector<20x64xf32>
    %9 = arith.truncf %8 : vector<20x64xf32> to vector<20x64xbf16>
    %c0_6 = arith.constant 0 : index
    %c0_7 = arith.constant 0 : index
    %10 = vector.load %arg4[%c0_6, %c0_7] : memref<64x32xbf16, #tpu.memory_space<vmem>>, vector<64x32xbf16>
    %cst_8 = arith.constant dense<0.000000e+00> : vector<20x32xf32>
    %11 = tpu.matmul %9, %10, %cst_8 {dimension_numbers = #tpu.dot_dimension_numbers<[1], [0], [0], [1], [0, 0, 1, 1], [], []>} : vector<20x64xbf16>, vector<64x32xbf16>, vector<20x32xf32> -> vector<20x32xf32>
    %c0_9 = arith.constant 0 : index
    %c0_10 = arith.constant 0 : index
    %12 = vector.load %arg5[%c0_9, %c0_10] : memref<1x32xf32, #tpu.memory_space<vmem>>, vector<1x32xf32>
    %13 = vector.broadcast %12 : vector<1x32xf32> to vector<20x32xf32>
    %14 = arith.addf %11, %13 : vector<20x32xf32>
    %15 = arith.addf %0, %14 : vector<20x32xf32>
    %c0_11 = arith.constant 0 : index
    %c0_12 = arith.constant 0 : index
    %16 = vector.load %arg6[%c0_11, %c0_12] : memref<1x32xf32, #tpu.memory_space<vmem>>, vector<1x32xf32>
    %c0_13 = arith.constant 0 : index
    %c0_14 = arith.constant 0 : index
    %17 = vector.load %arg7[%c0_13, %c0_14] : memref<1x32xf32, #tpu.memory_space<vmem>>, vector<1x32xf32>
    %cst_15 = arith.constant dense<0.000000e+00> : vector<20xf32>
    %18 = vector.multi_reduction <add>, %15, %cst_15 [1] : vector<20x32xf32> to vector<20xf32>
    %19 = vector.shape_cast %18 : vector<20xf32> to vector<20x1xf32>
    %cst_16 = arith.constant 3.200000e+01 : f32
    %20 = vector.broadcast %cst_16 : f32 to vector<20x1xf32>
    %21 = arith.divf %19, %20 : vector<20x1xf32>
    %22 = vector.broadcast %21 : vector<20x1xf32> to vector<20x32xf32>
    %23 = arith.subf %15, %22 : vector<20x32xf32>
    %24 = arith.mulf %23, %23 : vector<20x32xf32>
    %cst_17 = arith.constant dense<0.000000e+00> : vector<20xf32>
    %25 = vector.multi_reduction <add>, %24, %cst_17 [1] : vector<20x32xf32> to vector<20xf32>
    %26 = vector.shape_cast %25 : vector<20xf32> to vector<20x1xf32>
    %cst_18 = arith.constant 3.200000e+01 : f32
    %27 = vector.broadcast %cst_18 : f32 to vector<20x1xf32>
    %28 = arith.divf %26, %27 : vector<20x1xf32>
    %cst_19 = arith.constant 9.99999974E-6 : f32
    %29 = vector.broadcast %cst_19 : f32 to vector<20x1xf32>
    %30 = arith.addf %28, %29 : vector<20x1xf32>
    %31 = math.rsqrt %30 : vector<20x1xf32>
    %32 = vector.broadcast %31 : vector<20x1xf32> to vector<20x32xf32>
    %33 = arith.mulf %23, %32 : vector<20x32xf32>
    %34 = vector.broadcast %16 : vector<1x32xf32> to vector<20x32xf32>
    %35 = arith.mulf %33, %34 : vector<20x32xf32>
    %36 = vector.broadcast %17 : vector<1x32xf32> to vector<20x32xf32>
    %37 = arith.addf %35, %36 : vector<20x32xf32>
    %c0_20 = arith.constant 0 : index
    %c0_21 = arith.constant 0 : index
    %38 = vector.load %arg8[%c0_20, %c0_21] : memref<1x32xf32, #tpu.memory_space<vmem>>, vector<1x32xf32>
    %c0_22 = arith.constant 0 : index
    %c0_23 = arith.constant 0 : index
    %39 = vector.load %arg9[%c0_22, %c0_23] : memref<1x32xf32, #tpu.memory_space<vmem>>, vector<1x32xf32>
    %cst_24 = arith.constant dense<0.000000e+00> : vector<20xf32>
    %40 = vector.multi_reduction <add>, %37, %cst_24 [1] : vector<20x32xf32> to vector<20xf32>
    %41 = vector.shape_cast %40 : vector<20xf32> to vector<20x1xf32>
    %cst_25 = arith.constant 3.200000e+01 : f32
    %42 = vector.broadcast %cst_25 : f32 to vector<20x1xf32>
    %43 = arith.divf %41, %42 : vector<20x1xf32>
    %44 = vector.broadcast %43 : vector<20x1xf32> to vector<20x32xf32>
    %45 = arith.subf %37, %44 : vector<20x32xf32>
    %46 = arith.mulf %45, %45 : vector<20x32xf32>
    %cst_26 = arith.constant dense<0.000000e+00> : vector<20xf32>
    %47 = vector.multi_reduction <add>, %46, %cst_26 [1] : vector<20x32xf32> to vector<20xf32>
    %48 = vector.shape_cast %47 : vector<20xf32> to vector<20x1xf32>
    %cst_27 = arith.constant 3.200000e+01 : f32
    %49 = vector.broadcast %cst_27 : f32 to vector<20x1xf32>
    %50 = arith.divf %48, %49 : vector<20x1xf32>
    %cst_28 = arith.constant 9.99999974E-6 : f32
    %51 = vector.broadcast %cst_28 : f32 to vector<20x1xf32>
    %52 = arith.addf %50, %51 : vector<20x1xf32>
    %53 = math.rsqrt %52 : vector<20x1xf32>
    %54 = vector.broadcast %53 : vector<20x1xf32> to vector<20x32xf32>
    %55 = arith.mulf %45, %54 : vector<20x32xf32>
    %56 = vector.broadcast %38 : vector<1x32xf32> to vector<20x32xf32>
    %57 = arith.mulf %55, %56 : vector<20x32xf32>
    %58 = vector.broadcast %39 : vector<1x32xf32> to vector<20x32xf32>
    %59 = arith.addf %57, %58 : vector<20x32xf32>
    %c0_29 = arith.constant 0 : index
    %c0_30 = arith.constant 0 : index
    %60 = vector.load %arg10[%c0_29, %c0_30] : memref<20x32xf32, #tpu.memory_space<vmem>>, vector<20x32xf32>
    tpu.vector_store %arg10[%c0_29, %c0_30], %59 {strides = array<i32>} : memref<20x32xf32, #tpu.memory_space<vmem>>, vector<20x32xf32>,
    return
  }
  func.func @transform_0(%arg0: i32) -> (i32, i32) {
    %c0_i32 = arith.constant 0 : i32
    %c0_i32_0 = arith.constant 0 : i32
    return %arg0, %c0_i32 : i32, i32
  }
  func.func @transform_1(%arg0: i32) -> (i32, i32) {
    %c0_i32 = arith.constant 0 : i32
    %c0_i32_0 = arith.constant 0 : i32
    %c0_i32_1 = arith.constant 0 : i32
    return %c0_i32, %c0_i32_0 : i32, i32
  }
  func.func @transform_2(%arg0: i32) -> (i32, i32) {
    %c0_i32 = arith.constant 0 : i32
    %c0_i32_0 = arith.constant 0 : i32
    %c0_i32_1 = arith.constant 0 : i32
    return %c0_i32, %c0_i32_0 : i32, i32
  }
  func.func @transform_3(%arg0: i32) -> (i32, i32) {
    %c0_i32 = arith.constant 0 : i32
    %c0_i32_0 = arith.constant 0 : i32
    %c0_i32_1 = arith.constant 0 : i32
    return %c0_i32, %c0_i32_0 : i32, i32
  }
  func.func @transform_4(%arg0: i32) -> (i32, i32) {
    %c0_i32 = arith.constant 0 : i32
    %c0_i32_0 = arith.constant 0 : i32
    %c0_i32_1 = arith.constant 0 : i32
    return %c0_i32, %c0_i32_0 : i32, i32
  }
  func.func @transform_5(%arg0: i32) -> (i32, i32) {
    %c0_i32 = arith.constant 0 : i32
    %c0_i32_0 = arith.constant 0 : i32
    %c0_i32_1 = arith.constant 0 : i32
    return %c0_i32, %c0_i32_0 : i32, i32
  }
  func.func @transform_6(%arg0: i32) -> (i32, i32) {
    %c0_i32 = arith.constant 0 : i32
    %c0_i32_0 = arith.constant 0 : i32
    %c0_i32_1 = arith.constant 0 : i32
    return %c0_i32, %c0_i32_0 : i32, i32
  }
  func.func @transform_7(%arg0: i32) -> (i32, i32) {
    %c0_i32 = arith.constant 0 : i32
    %c0_i32_0 = arith.constant 0 : i32
    %c0_i32_1 = arith.constant 0 : i32
    return %c0_i32, %c0_i32_0 : i32, i32
  }
  func.func @transform_8(%arg0: i32) -> (i32, i32) {
    %c0_i32 = arith.constant 0 : i32
    %c0_i32_0 = arith.constant 0 : i32
    %c0_i32_1 = arith.constant 0 : i32
    return %c0_i32, %c0_i32_0 : i32, i32
  }
  func.func @transform_9(%arg0: i32) -> (i32, i32) {
    %c0_i32 = arith.constant 0 : i32
    %c0_i32_0 = arith.constant 0 : i32
    return %arg0, %c0_i32 : i32, i32
  }
}

</mosaic_0001>

<llo_original>
// kernel: transformer_forward.11
$region0: #{transformer_forward.11}
  #allocation0 [shape = 'u32[]', space=smem, size = 0x4, offset = 0x4, fixed_abs, tag = 'smem constant byte address 0x4 - core index']
  #allocation1 [shape = 'u32[144,128]{1,0:T(1,128)}', space=vmem, size = 0x12000, scoped, tag = 'internal scratch']
  %s0 = inlined_call_operand.vmem [shape: f32[16,32], index: 0, kind: input, shape index: {}]
  %s1 = inlined_call_operand.vmem [shape: bf16[32,64], index: 1, kind: input, shape index: {}]
  %s2 = inlined_call_operand.vmem [shape: f32[1,64], index: 2, kind: input, shape index: {}]
  %s3 = inlined_call_operand.vmem [shape: bf16[64,32], index: 3, kind: input, shape index: {}]
  %s4 = inlined_call_operand.vmem [shape: f32[1,32], index: 4, kind: input, shape index: {}]
  %s5 = inlined_call_operand.vmem [shape: f32[1,32], index: 5, kind: input, shape index: {}]
  %s6 = inlined_call_operand.vmem [shape: f32[1,32], index: 6, kind: input, shape index: {}]
  %s7 = inlined_call_operand.vmem [shape: f32[16,32], index: 7, kind: output, shape index: {}]
  %s8 = sld [smem:[#allocation0]]
  $region38: #{transformer_forward.11} parent=0
    _
  %s10 = ssub.s32 1, %s8
  %s11 = scalar_select 0, %s10, %s8
  // Predicated region
  $region2: #{transformer_forward.11} parent=0 // pred_check
    _
  $region3: #{transformer_forward.11} parent=0 // pred_check_branch
    %13 = sbr.rel (0) target = $region5
  $region4: #{transformer_forward.11} parent=0 // pred_region
    _
  $region5: #{transformer_forward.11} parent=0 // pred_fallthru
    _
  // Predicated region
  $region6: #{transformer_forward.11} parent=0 // pred_check
    _
  $region7: #{transformer_forward.11} parent=0 // pred_check_branch
    %15 = sbr.rel (0) target = $region9
  $region8: #{transformer_forward.11} parent=0 // pred_region
    _
  $region9: #{transformer_forward.11} parent=0 // pred_fallthru
    _
  // Predicated region
  $region10: #{transformer_forward.11} parent=0 // pred_check
    _
  $region11: #{transformer_forward.11} parent=0 // pred_check_branch
    %17 = sbr.rel (0) target = $region13
  $region12: #{transformer_forward.11} parent=0 // pred_region
    _
  $region13: #{transformer_forward.11} parent=0 // pred_fallthru
    _
  // Predicated region
  $region14: #{transformer_forward.11} parent=0 // pred_check
    _
  $region15: #{transformer_forward.11} parent=0 // pred_check_branch
    %19 = sbr.rel (0) target = $region17
  $region16: #{transformer_forward.11} parent=0 // pred_region
    _
  $region17: #{transformer_forward.11} parent=0 // pred_fallthru
    _
  // Predicated region
  $region18: #{transformer_forward.11} parent=0 // pred_check
    _
  $region19: #{transformer_forward.11} parent=0 // pred_check_branch
    %21 = sbr.rel (0) target = $region21
  $region20: #{transformer_forward.11} parent=0 // pred_region
    _
  $region21: #{transformer_forward.11} parent=0 // pred_fallthru
    _
  // Predicated region
  $region22: #{transformer_forward.11} parent=0 // pred_check
    _
  $region23: #{transformer_forward.11} parent=0 // pred_check_branch
    %23 = sbr.rel (0) target = $region25
  $region24: #{transformer_forward.11} parent=0 // pred_region
    _
  $region25: #{transformer_forward.11} parent=0 // pred_fallthru
    _
  // Predicated region
  $region26: #{transformer_forward.11} parent=0 // pred_check
    _
  $region27: #{transformer_forward.11} parent=0 // pred_check_branch
    %25 = sbr.rel (0) target = $region29
  $region28: #{transformer_forward.11} parent=0 // pred_region
    _
  $region29: #{transformer_forward.11} parent=0 // pred_fallthru
    _
  %v27 = vld [vmem:[%s0] sm:$0xff]
  %v28 = vld [vmem:[%s0 + $0x8] sm:$0xff]
  %v29 = vpack.c.bf16 %v28, %v27
  %v30 = vld [vmem:[%s1] sm:$0xf]
  %v31 = vld [vmem:[%s1 + $0x4] sm:$0xf]
  %v32 = vld [vmem:[%s1 + $0x8] sm:$0xf]
  %v33 = vld [vmem:[%s1 + $0xc] sm:$0xf]
  %v34 = vld [vmem:[%s2] sm:$0x1]
  %v36 = vlaneseq
  %v37 = vshrl.u32 %v36, 7
  %v38 = vsub.s32 0, %v37
  %v39 = vrot.slane %v34, %v38
  %v45 = vunpack.c.l.b16 %v30
  %v46 = vunpack.c.l.b16 %v31
  %v47 = vunpack.c.l.b16 %v32
  %v48 = vunpack.c.l.b16 %v33
  %v49 = vpack.c.b16 %v46, %v45
  %v50 = vpack.c.b16 %v48, %v47
  %vm53 = vcmask 261120
  %v55 = vsel %vm53, %v29, 0
  %57 = vmatprep.subr.bf16.mxu0 0
  %58 = vmatpush1.bf16.msra.mxu0 %v49
  %59 = vmatprep.subr.bf16.mxu0 0
  %60 = vmatpush1.bf16.msra.mxu0 %v50
  %61 = vmatprep.subr.bf16.mxu0 0
  %62 = vmatpush1.bf16.msra.mxu0 0
  %63 = vmatprep.subr.bf16.mxu0 0
  %64 = vmatpush1.bf16.msra.mxu0 0
  %65 = vmatprep.subr.bf16.mxu0 0
  %66 = vmatpush1.bf16.msra.mxu0 0
  %67 = vmatprep.subr.bf16.mxu0 0
  %68 = vmatpush1.bf16.msra.mxu0 0
  %69 = vmatprep.subr.bf16.mxu0 0
  %70 = vmatpush1.bf16.msra.mxu0 0
  %71 = vmatprep.subr.bf16.mxu0 0
  %72 = vmatpush1.bf16.msra.mxu0 0
  %73 = vmatprep.subr.bf16.mxu0 0
  %74 = vmatpush1.bf16.msra.mxu0 0
  %75 = vmatprep.subr.bf16.mxu0 0
  %76 = vmatpush1.bf16.msra.mxu0 0
  %77 = vmatprep.subr.bf16.mxu0 0
  %78 = vmatpush1.bf16.msra.mxu0 0
  %79 = vmatprep.subr.bf16.mxu0 0
  %80 = vmatpush1.bf16.msra.mxu0 0
  %81 = vmatprep.subr.bf16.mxu0 0
  %82 = vmatpush1.bf16.msra.mxu0 0
  %83 = vmatprep.subr.bf16.mxu0 0
  %84 = vmatpush1.bf16.msra.mxu0 0
  %85 = vmatprep.subr.bf16.mxu0 0
  %86 = vmatpush1.bf16.msra.mxu0 0
  %87 = vmatprep.subr.bf16.mxu0 0
  %88 = vmatpush1.bf16.msra.mxu0 0
  %89 = vmatprep.mubr.bf16.mxu0 0
  %90 = vmatmul.mubr.bf16.gmra.mrb[0].mxu0 %v55
  %v91 = vpop.f32.mrb[0].mxu0
  %v92 = vadd.f32 %v39, %v91
  %v93 = vpop.f32.mrb[0].mxu0
  %v94 = vpop.f32.mrb[0].mxu0
  %v95 = vadd.f32 %v39, %v94
  %v96 = vpop.f32.mrb[0].mxu0
  %97 = vdwg.mxu0
  %v98 = vmax.f32 %v92, 0.0
  %v99 = vmax.f32 %v95, 0.0
  %v100 = vpack.c.bf16 %v99, %v98
  %v101 = vld [vmem:[%s3] sm:$0xf]
  %v102 = vld [vmem:[%s3 + $0x4] sm:$0xf]
  %v103 = vld [vmem:[%s3 + $0x8] sm:$0xf]
  %v104 = vld [vmem:[%s3 + $0xc] sm:$0xf]
  %v105 = vld [vmem:[%s3 + $0x10] sm:$0xf]
  %v106 = vld [vmem:[%s3 + $0x14] sm:$0xf]
  %v107 = vld [vmem:[%s3 + $0x18] sm:$0xf]
  %v108 = vld [vmem:[%s3 + $0x1c] sm:$0xf]
  %v109 = vld [vmem:[%s4] sm:$0x1]
  %v111 = vlaneseq
  %v112 = vshrl.u32 %v111, 7
  %v113 = vsub.s32 0, %v112
  %v114 = vrot.slane %v109, %v113
  %v124 = vunpack.c.l.b16 %v101
  %v125 = vunpack.c.l.b16 %v102
  %v126 = vunpack.c.l.b16 %v103
  %v127 = vunpack.c.l.b16 %v104
  %v128 = vunpack.c.l.b16 %v105
  %v129 = vunpack.c.l.b16 %v106
  %v130 = vunpack.c.l.b16 %v107
  %v131 = vunpack.c.l.b16 %v108
  %v132 = vpack.c.b16 %v125, %v124
  %v133 = vpack.c.b16 %v127, %v126
  %v134 = vpack.c.b16 %v129, %v128
  %v135 = vpack.c.b16 %v131, %v130
  %vm140 = vcmask 523264
  %v142 = vsel %vm140, %v100, 0
  %144 = vmatprep.subr.bf16.mxu0 0
  %145 = vmatpush1.bf16.msra.mxu0 %v132
  %146 = vmatprep.subr.bf16.mxu0 0
  %147 = vmatpush1.bf16.msra.mxu0 %v133
  %148 = vmatprep.subr.bf16.mxu0 0
  %149 = vmatpush1.bf16.msra.mxu0 %v134
  %150 = vmatprep.subr.bf16.mxu0 0
  %151 = vmatpush1.bf16.msra.mxu0 %v135
  %152 = vmatprep.subr.bf16.mxu0 0
  %153 = vmatpush1.bf16.msra.mxu0 0
  %154 = vmatprep.subr.bf16.mxu0 0
  %155 = vmatpush1.bf16.msra.mxu0 0
  %156 = vmatprep.subr.bf16.mxu0 0
  %157 = vmatpush1.bf16.msra.mxu0 0
  %158 = vmatprep.subr.bf16.mxu0 0
  %159 = vmatpush1.bf16.msra.mxu0 0
  %160 = vmatprep.subr.bf16.mxu0 0
  %161 = vmatpush1.bf16.msra.mxu0 0
  %162 = vmatprep.subr.bf16.mxu0 0
  %163 = vmatpush1.bf16.msra.mxu0 0
  %164 = vmatprep.subr.bf16.mxu0 0
  %165 = vmatpush1.bf16.msra.mxu0 0
  %166 = vmatprep.subr.bf16.mxu0 0
  %167 = vmatpush1.bf16.msra.mxu0 0
  %168 = vmatprep.subr.bf16.mxu0 0
  %169 = vmatpush1.bf16.msra.mxu0 0
  %170 = vmatprep.subr.bf16.mxu0 0
  %171 = vmatpush1.bf16.msra.mxu0 0
  %172 = vmatprep.subr.bf16.mxu0 0
  %173 = vmatpush1.bf16.msra.mxu0 0
  %174 = vmatprep.subr.bf16.mxu0 0
  %175 = vmatpush1.bf16.msra.mxu0 0
  %176 = vmatprep.mubr.bf16.mxu0 0
  %177 = vmatmul.mubr.bf16.gmra.mrb[0].mxu0 %v142
  %v178 = vpop.f32.mrb[0].mxu0
  %v179 = vadd.f32 %v114, %v178
  %v180 = vpop.f32.mrb[0].mxu0
  %v181 = vpop.f32.mrb[0].mxu0
  %v182 = vadd.f32 %v114, %v181
  %v183 = vpop.f32.mrb[0].mxu0
  %184 = vdwg.mxu0
  %v185 = vadd.f32 %v27, %v179
  %v186 = vadd.f32 %v28, %v182
  %v187 = vld [vmem:[%s5] sm:$0x1]
  %v188 = vld [vmem:[%s6] sm:$0x1]
  %v189 = vsel %vm53, %v185, 0.0
  %190 = vadd.xlane.f32.xlu0 %v189
  %v191 = vpop.xlane.xlu0 %190
  %v192 = vsel %vm53, %v186, 0.0
  %193 = vadd.xlane.f32.xlu0 %v192
  %v194 = vpop.xlane.xlu0 %193
  %v195 = vrcp.pop 32.0
  %v196 = vmul.f32 %v191, %v195
  %v197 = vmul.f32 %v194, %v195
  %v198 = vsub.f32 %v185, %v196
  %v199 = vsub.f32 %v186, %v197
  %v200 = vmul.f32 %v198, %v198
  %v201 = vmul.f32 %v199, %v199
  %v202 = vsel %vm53, %v200, 0.0
  %203 = vadd.xlane.f32.xlu0 %v202
  %v204 = vpop.xlane.xlu0 %203
  %v205 = vsel %vm53, %v201, 0.0
  %206 = vadd.xlane.f32.xlu0 %v205
  %v207 = vpop.xlane.xlu0 %206
  %v208 = vmul.f32 %v204, %v195
  %v209 = vmul.f32 %v207, %v195
  %v210 = vadd.f32 %v208, 1e-05
  %v211 = vadd.f32 %v209, 1e-05
  %v212 = vrsqrt.pop %v210
  %v213 = vrsqrt.pop %v211
  %v214 = vmul.f32 %v198, %v212
  %v215 = vmul.f32 %v199, %v213
  %v217 = vlaneseq
  %v218 = vshrl.u32 %v217, 7
  %v219 = vsub.s32 0, %v218
  %v220 = vrot.slane %v187, %v219
  %v222 = vmul.f32 %v214, %v220
  %v223 = vmul.f32 %v215, %v220
  %v225 = vlaneseq
  %v226 = vshrl.u32 %v225, 7
  %v227 = vsub.s32 0, %v226
  %v228 = vrot.slane %v188, %v227
  %v230 = vadd.f32 %v222, %v228
  %v231 = vadd.f32 %v223, %v228
  %232 = vst.msk [vmem:[%s7] sm:$0xff] %vm53, %v230
  %233 = vst.msk [vmem:[%s7 + $0x8] sm:$0xff] %vm53, %v231
  // Predicated region
  $region30: #{transformer_forward.11} parent=0 // pred_check
    _
  $region31: #{transformer_forward.11} parent=0 // pred_check_branch
    %235 = sbr.rel (0) target = $region33
  $region32: #{transformer_forward.11} parent=0 // pred_region
    _
  $region33: #{transformer_forward.11} parent=0 // pred_fallthru
    _
  // Predicated region
  $region34: #{transformer_forward.11} parent=0 // pred_check
    _
  $region35: #{transformer_forward.11} parent=0 // pred_check_branch
    %237 = sbr.rel (0) target = $region37
  $region36: #{transformer_forward.11} parent=0 // pred_region
    _
  $region37: #{transformer_forward.11} parent=0 // pred_fallthru
    _

// kernel: transformer_forward.13
$region0: #{transformer_forward.13}
  #allocation0 [shape = 'u32[]', space=smem, size = 0x4, offset = 0x4, fixed_abs, tag = 'smem constant byte address 0x4 - core index']
  #allocation1 [shape = 'u32[144,128]{1,0:T(1,128)}', space=vmem, size = 0x12000, scoped, tag = 'internal scratch']
  %s0 = inlined_call_operand.vmem [shape: f32[16,32], index: 0, kind: input, shape index: {}]
  %s1 = inlined_call_operand.vmem [shape: bf16[32,64], index: 1, kind: input, shape index: {}]
  %s2 = inlined_call_operand.vmem [shape: f32[1,64], index: 2, kind: input, shape index: {}]
  %s3 = inlined_call_operand.vmem [shape: bf16[64,32], index: 3, kind: input, shape index: {}]
  %s4 = inlined_call_operand.vmem [shape: f32[1,32], index: 4, kind: input, shape index: {}]
  %s5 = inlined_call_operand.vmem [shape: f32[1,32], index: 5, kind: input, shape index: {}]
  %s6 = inlined_call_operand.vmem [shape: f32[1,32], index: 6, kind: input, shape index: {}]
  %s7 = inlined_call_operand.vmem [shape: f32[1,32], index: 7, kind: input, shape index: {}]
  %s8 = inlined_call_operand.vmem [shape: f32[1,32], index: 8, kind: input, shape index: {}]
  %s9 = inlined_call_operand.vmem [shape: f32[16,32], index: 9, kind: output, shape index: {}]
  %s10 = sld [smem:[#allocation0]]
  $region46: #{transformer_forward.13} parent=0
    _
  %s12 = ssub.s32 1, %s10
  %s13 = scalar_select 0, %s12, %s10
  // Predicated region
  $region2: #{transformer_forward.13} parent=0 // pred_check
    _
  $region3: #{transformer_forward.13} parent=0 // pred_check_branch
    %15 = sbr.rel (0) target = $region5
  $region4: #{transformer_forward.13} parent=0 // pred_region
    _
  $region5: #{transformer_forward.13} parent=0 // pred_fallthru
    _
  // Predicated region
  $region6: #{transformer_forward.13} parent=0 // pred_check
    _
  $region7: #{transformer_forward.13} parent=0 // pred_check_branch
    %17 = sbr.rel (0) target = $region9
  $region8: #{transformer_forward.13} parent=0 // pred_region
    _
  $region9: #{transformer_forward.13} parent=0 // pred_fallthru
    _
  // Predicated region
  $region10: #{transformer_forward.13} parent=0 // pred_check
    _
  $region11: #{transformer_forward.13} parent=0 // pred_check_branch
    %19 = sbr.rel (0) target = $region13
  $region12: #{transformer_forward.13} parent=0 // pred_region
    _
  $region13: #{transformer_forward.13} parent=0 // pred_fallthru
    _
  // Predicated region
  $region14: #{transformer_forward.13} parent=0 // pred_check
    _
  $region15: #{transformer_forward.13} parent=0 // pred_check_branch
    %21 = sbr.rel (0) target = $region17
  $region16: #{transformer_forward.13} parent=0 // pred_region
    _
  $region17: #{transformer_forward.13} parent=0 // pred_fallthru
    _
  // Predicated region
  $region18: #{transformer_forward.13} parent=0 // pred_check
    _
  $region19: #{transformer_forward.13} parent=0 // pred_check_branch
    %23 = sbr.rel (0) target = $region21
  $region20: #{transformer_forward.13} parent=0 // pred_region
    _
  $region21: #{transformer_forward.13} parent=0 // pred_fallthru
    _
  // Predicated region
  $region22: #{transformer_forward.13} parent=0 // pred_check
    _
  $region23: #{transformer_forward.13} parent=0 // pred_check_branch
    %25 = sbr.rel (0) target = $region25
  $region24: #{transformer_forward.13} parent=0 // pred_region
    _
  $region25: #{transformer_forward.13} parent=0 // pred_fallthru
    _
  // Predicated region
  $region26: #{transformer_forward.13} parent=0 // pred_check
    _
  $region27: #{transformer_forward.13} parent=0 // pred_check_branch
    %27 = sbr.rel (0) target = $region29
  $region28: #{transformer_forward.13} parent=0 // pred_region
    _
  $region29: #{transformer_forward.13} parent=0 // pred_fallthru
    _
  // Predicated region
  $region30: #{transformer_forward.13} parent=0 // pred_check
    _
  $region31: #{transformer_forward.13} parent=0 // pred_check_branch
    %29 = sbr.rel (0) target = $region33
  $region32: #{transformer_forward.13} parent=0 // pred_region
    _
  $region33: #{transformer_forward.13} parent=0 // pred_fallthru
    _
  // Predicated region
  $region34: #{transformer_forward.13} parent=0 // pred_check
    _
  $region35: #{transformer_forward.13} parent=0 // pred_check_branch
    %31 = sbr.rel (0) target = $region37
  $region36: #{transformer_forward.13} parent=0 // pred_region
    _
  $region37: #{transformer_forward.13} parent=0 // pred_fallthru
    _
  %v33 = vld [vmem:[%s0] sm:$0xff]
  %v34 = vld [vmem:[%s0 + $0x8] sm:$0xff]
  %v35 = vpack.c.bf16 %v34, %v33
  %v36 = vld [vmem:[%s1] sm:$0xf]
  %v37 = vld [vmem:[%s1 + $0x4] sm:$0xf]
  %v38 = vld [vmem:[%s1 + $0x8] sm:$0xf]
  %v39 = vld [vmem:[%s1 + $0xc] sm:$0xf]
  %v40 = vld [vmem:[%s2] sm:$0x1]
  %v42 = vlaneseq
  %v43 = vshrl.u32 %v42, 7
  %v44 = vsub.s32 0, %v43
  %v45 = vrot.slane %v40, %v44
  %v51 = vunpack.c.l.b16 %v36
  %v52 = vunpack.c.l.b16 %v37
  %v53 = vunpack.c.l.b16 %v38
  %v54 = vunpack.c.l.b16 %v39
  %v55 = vpack.c.b16 %v52, %v51
  %v56 = vpack.c.b16 %v54, %v53
  %vm59 = vcmask 261120
  %v61 = vsel %vm59, %v35, 0
  %63 = vmatprep.subr.bf16.mxu0 0
  %64 = vmatpush1.bf16.msra.mxu0 %v55
  %65 = vmatprep.subr.bf16.mxu0 0
  %66 = vmatpush1.bf16.msra.mxu0 %v56
  %67 = vmatprep.subr.bf16.mxu0 0
  %68 = vmatpush1.bf16.msra.mxu0 0
  %69 = vmatprep.subr.bf16.mxu0 0
  %70 = vmatpush1.bf16.msra.mxu0 0
  %71 = vmatprep.subr.bf16.mxu0 0
  %72 = vmatpush1.bf16.msra.mxu0 0
  %73 = vmatprep.subr.bf16.mxu0 0
  %74 = vmatpush1.bf16.msra.mxu0 0
  %75 = vmatprep.subr.bf16.mxu0 0
  %76 = vmatpush1.bf16.msra.mxu0 0
  %77 = vmatprep.subr.bf16.mxu0 0
  %78 = vmatpush1.bf16.msra.mxu0 0
  %79 = vmatprep.subr.bf16.mxu0 0
  %80 = vmatpush1.bf16.msra.mxu0 0
  %81 = vmatprep.subr.bf16.mxu0 0
  %82 = vmatpush1.bf16.msra.mxu0 0
  %83 = vmatprep.subr.bf16.mxu0 0
  %84 = vmatpush1.bf16.msra.mxu0 0
  %85 = vmatprep.subr.bf16.mxu0 0
  %86 = vmatpush1.bf16.msra.mxu0 0
  %87 = vmatprep.subr.bf16.mxu0 0
  %88 = vmatpush1.bf16.msra.mxu0 0
  %89 = vmatprep.subr.bf16.mxu0 0
  %90 = vmatpush1.bf16.msra.mxu0 0
  %91 = vmatprep.subr.bf16.mxu0 0
  %92 = vmatpush1.bf16.msra.mxu0 0
  %93 = vmatprep.subr.bf16.mxu0 0
  %94 = vmatpush1.bf16.msra.mxu0 0
  %95 = vmatprep.mubr.bf16.mxu0 0
  %96 = vmatmul.mubr.bf16.gmra.mrb[0].mxu0 %v61
  %v97 = vpop.f32.mrb[0].mxu0
  %v98 = vadd.f32 %v45, %v97
  %v99 = vpop.f32.mrb[0].mxu0
  %v100 = vpop.f32.mrb[0].mxu0
  %v101 = vadd.f32 %v45, %v100
  %v102 = vpop.f32.mrb[0].mxu0
  %103 = vdwg.mxu0
  %v104 = vmax.f32 %v98, 0.0
  %v105 = vmax.f32 %v101, 0.0
  %v106 = vpack.c.bf16 %v105, %v104
  %v107 = vld [vmem:[%s3] sm:$0xf]
  %v108 = vld [vmem:[%s3 + $0x4] sm:$0xf]
  %v109 = vld [vmem:[%s3 + $0x8] sm:$0xf]
  %v110 = vld [vmem:[%s3 + $0xc] sm:$0xf]
  %v111 = vld [vmem:[%s3 + $0x10] sm:$0xf]
  %v112 = vld [vmem:[%s3 + $0x14] sm:$0xf]
  %v113 = vld [vmem:[%s3 + $0x18] sm:$0xf]
  %v114 = vld [vmem:[%s3 + $0x1c] sm:$0xf]
  %v115 = vld [vmem:[%s4] sm:$0x1]
  %v117 = vlaneseq
  %v118 = vshrl.u32 %v117, 7
  %v119 = vsub.s32 0, %v118
  %v120 = vrot.slane %v115, %v119
  %v130 = vunpack.c.l.b16 %v107
  %v131 = vunpack.c.l.b16 %v108
  %v132 = vunpack.c.l.b16 %v109
  %v133 = vunpack.c.l.b16 %v110
  %v134 = vunpack.c.l.b16 %v111
  %v135 = vunpack.c.l.b16 %v112
  %v136 = vunpack.c.l.b16 %v113
  %v137 = vunpack.c.l.b16 %v114
  %v138 = vpack.c.b16 %v131, %v130
  %v139 = vpack.c.b16 %v133, %v132
  %v140 = vpack.c.b16 %v135, %v134
  %v141 = vpack.c.b16 %v137, %v136
  %vm146 = vcmask 523264
  %v148 = vsel %vm146, %v106, 0
  %150 = vmatprep.subr.bf16.mxu0 0
  %151 = vmatpush1.bf16.msra.mxu0 %v138
  %152 = vmatprep.subr.bf16.mxu0 0
  %153 = vmatpush1.bf16.msra.mxu0 %v139
  %154 = vmatprep.subr.bf16.mxu0 0
  %155 = vmatpush1.bf16.msra.mxu0 %v140
  %156 = vmatprep.subr.bf16.mxu0 0
  %157 = vmatpush1.bf16.msra.mxu0 %v141
  %158 = vmatprep.subr.bf16.mxu0 0
  %159 = vmatpush1.bf16.msra.mxu0 0
  %160 = vmatprep.subr.bf16.mxu0 0
  %161 = vmatpush1.bf16.msra.mxu0 0
  %162 = vmatprep.subr.bf16.mxu0 0
  %163 = vmatpush1.bf16.msra.mxu0 0
  %164 = vmatprep.subr.bf16.mxu0 0
  %165 = vmatpush1.bf16.msra.mxu0 0
  %166 = vmatprep.subr.bf16.mxu0 0
  %167 = vmatpush1.bf16.msra.mxu0 0
  %168 = vmatprep.subr.bf16.mxu0 0
  %169 = vmatpush1.bf16.msra.mxu0 0
  %170 = vmatprep.subr.bf16.mxu0 0
  %171 = vmatpush1.bf16.msra.mxu0 0
  %172 = vmatprep.subr.bf16.mxu0 0
  %173 = vmatpush1.bf16.msra.mxu0 0
  %174 = vmatprep.subr.bf16.mxu0 0
  %175 = vmatpush1.bf16.msra.mxu0 0
  %176 = vmatprep.subr.bf16.mxu0 0
  %177 = vmatpush1.bf16.msra.mxu0 0
  %178 = vmatprep.subr.bf16.mxu0 0
  %179 = vmatpush1.bf16.msra.mxu0 0
  %180 = vmatprep.subr.bf16.mxu0 0
  %181 = vmatpush1.bf16.msra.mxu0 0
  %182 = vmatprep.mubr.bf16.mxu0 0
  %183 = vmatmul.mubr.bf16.gmra.mrb[0].mxu0 %v148
  %v184 = vpop.f32.mrb[0].mxu0
  %v185 = vadd.f32 %v120, %v184
  %v186 = vpop.f32.mrb[0].mxu0
  %v187 = vpop.f32.mrb[0].mxu0
  %v188 = vadd.f32 %v120, %v187
  %v189 = vpop.f32.mrb[0].mxu0
  %190 = vdwg.mxu0
  %v191 = vadd.f32 %v33, %v185
  %v192 = vadd.f32 %v34, %v188
  %v193 = vld [vmem:[%s5] sm:$0x1]
  %v194 = vld [vmem:[%s6] sm:$0x1]
  %v195 = vsel %vm59, %v191, 0.0
  %196 = vadd.xlane.f32.xlu0 %v195
  %v197 = vpop.xlane.xlu0 %196
  %v198 = vsel %vm59, %v192, 0.0
  %199 = vadd.xlane.f32.xlu0 %v198
  %v200 = vpop.xlane.xlu0 %199
  %v201 = vrcp.pop 32.0
  %v202 = vmul.f32 %v197, %v201
  %v203 = vmul.f32 %v200, %v201
  %v204 = vsub.f32 %v191, %v202
  %v205 = vsub.f32 %v192, %v203
  %v206 = vmul.f32 %v204, %v204
  %v207 = vmul.f32 %v205, %v205
  %v208 = vsel %vm59, %v206, 0.0
  %209 = vadd.xlane.f32.xlu0 %v208
  %v210 = vpop.xlane.xlu0 %209
  %v211 = vsel %vm59, %v207, 0.0
  %212 = vadd.xlane.f32.xlu0 %v211
  %v213 = vpop.xlane.xlu0 %212
  %v214 = vmul.f32 %v210, %v201
  %v215 = vmul.f32 %v213, %v201
  %v216 = vadd.f32 %v214, 1e-05
  %v217 = vadd.f32 %v215, 1e-05
  %v218 = vrsqrt.pop %v216
  %v219 = vrsqrt.pop %v217
  %v220 = vmul.f32 %v204, %v218
  %v221 = vmul.f32 %v205, %v219
  %v223 = vlaneseq
  %v224 = vshrl.u32 %v223, 7
  %v225 = vsub.s32 0, %v224
  %v226 = vrot.slane %v193, %v225
  %v228 = vmul.f32 %v220, %v226
  %v229 = vmul.f32 %v221, %v226
  %v231 = vlaneseq
  %v232 = vshrl.u32 %v231, 7
  %v233 = vsub.s32 0, %v232
  %v234 = vrot.slane %v194, %v233
  %v236 = vadd.f32 %v228, %v234
  %v237 = vadd.f32 %v229, %v234
  %v238 = vld [vmem:[%s7] sm:$0x1]
  %v239 = vld [vmem:[%s8] sm:$0x1]
  %v240 = vsel %vm59, %v236, 0.0
  %241 = vadd.xlane.f32.xlu0 %v240
  %v242 = vpop.xlane.xlu0 %241
  %v243 = vsel %vm59, %v237, 0.0
  %244 = vadd.xlane.f32.xlu0 %v243
  %v245 = vpop.xlane.xlu0 %244
  %v246 = vmul.f32 %v242, %v201
  %v247 = vmul.f32 %v245, %v201
  %v248 = vsub.f32 %v236, %v246
  %v249 = vsub.f32 %v237, %v247
  %v250 = vmul.f32 %v248, %v248
  %v251 = vmul.f32 %v249, %v249
  %v252 = vsel %vm59, %v250, 0.0
  %253 = vadd.xlane.f32.xlu0 %v252
  %v254 = vpop.xlane.xlu0 %253
  %v255 = vsel %vm59, %v251, 0.0
  %256 = vadd.xlane.f32.xlu0 %v255
  %v257 = vpop.xlane.xlu0 %256
  %v258 = vmul.f32 %v254, %v201
  %v259 = vmul.f32 %v257, %v201
  %v260 = vadd.f32 %v258, 1e-05
  %v261 = vadd.f32 %v259, 1e-05
  %v262 = vrsqrt.pop %v260
  %v263 = vrsqrt.pop %v261
  %v264 = vmul.f32 %v248, %v262
  %v265 = vmul.f32 %v249, %v263
  %v267 = vlaneseq
  %v268 = vshrl.u32 %v267, 7
  %v269 = vsub.s32 0, %v268
  %v270 = vrot.slane %v238, %v269
  %v272 = vmul.f32 %v264, %v270
  %v273 = vmul.f32 %v265, %v270
  %v275 = vlaneseq
  %v276 = vshrl.u32 %v275, 7
  %v277 = vsub.s32 0, %v276
  %v278 = vrot.slane %v239, %v277
  %v280 = vadd.f32 %v272, %v278
  %v281 = vadd.f32 %v273, %v278
  %282 = vst.msk [vmem:[%s9] sm:$0xff] %vm59, %v280
  %283 = vst.msk [vmem:[%s9 + $0x8] sm:$0xff] %vm59, %v281
  // Predicated region
  $region38: #{transformer_forward.13} parent=0 // pred_check
    _
  $region39: #{transformer_forward.13} parent=0 // pred_check_branch
    %285 = sbr.rel (0) target = $region41
  $region40: #{transformer_forward.13} parent=0 // pred_region
    _
  $region41: #{transformer_forward.13} parent=0 // pred_fallthru
    _
  // Predicated region
  $region42: #{transformer_forward.13} parent=0 // pred_check
    _
  $region43: #{transformer_forward.13} parent=0 // pred_check_branch
    %287 = sbr.rel (0) target = $region45
  $region44: #{transformer_forward.13} parent=0 // pred_region
    _
  $region45: #{transformer_forward.13} parent=0 // pred_fallthru
    _

// kernel: transformer_forward.14
$region0: #{transformer_forward.14}
  #allocation0 [shape = 'u32[]', space=smem, size = 0x4, offset = 0x4, fixed_abs, tag = 'smem constant byte address 0x4 - core index']
  #allocation1 [shape = 'u32[144,128]{1,0:T(1,128)}', space=vmem, size = 0x12000, scoped, tag = 'internal scratch']
  %s0 = inlined_call_operand.vmem [shape: f32[2,10,32], index: 0, kind: input, shape index: {}, may-alias: {0,1}]
  %s1 = inlined_call_operand.vmem [shape: f32[2,10,32], index: 1, kind: input, shape index: {}, may-alias: {0,1}]
  %s2 = inlined_call_operand.vmem [shape: bf16[4,32,8], index: 2, kind: input, shape index: {}]
  %s3 = inlined_call_operand.vmem [shape: f32[4,1,8], index: 3, kind: input, shape index: {}]
  %s4 = inlined_call_operand.vmem [shape: bf16[4,32,8], index: 4, kind: input, shape index: {}]
  %s5 = inlined_call_operand.vmem [shape: f32[4,1,8], index: 5, kind: input, shape index: {}]
  %s6 = inlined_call_operand.vmem [shape: bf16[4,32,8], index: 6, kind: input, shape index: {}]
  %s7 = inlined_call_operand.vmem [shape: f32[4,1,8], index: 7, kind: input, shape index: {}]
  %s8 = inlined_call_operand.vmem [shape: bf16[32,32], index: 8, kind: input, shape index: {}]
  %s9 = inlined_call_operand.vmem [shape: f32[1,32], index: 9, kind: input, shape index: {}]
  %s10 = inlined_call_operand.vmem [shape: f32[1,32], index: 10, kind: input, shape index: {}]
  %s11 = inlined_call_operand.vmem [shape: f32[1,32], index: 11, kind: input, shape index: {}]
  %s12 = inlined_call_operand.vmem [shape: f32[2,10,32], index: 12, kind: output, shape index: {}]
  %s13 = sld [smem:[#allocation0]]
  $region81: #{transformer_forward.14} parent=0
    _
  %s15 = ssub.s32 1, %s13
  %s16 = scalar_select 0, %s15, %s13
  loop: start=0, step=1, limit=4
  $region2: #{transformer_forward.14} parent=0 // loop_pre_header
    _
  $region3: #{transformer_forward.14} parent=0 // loop_header
    %s18 = sphi 0, %s22
    %p19 = scmp.ge.s32.totalorder %s18, 4
    %s25 = sphi 0, %s37
    %s26 = sphi 0, %s33
    %s27 = sphi 0, %s25
    %s28 = sphi 0, %s26
    %s29 = sphi 0, %s27
    %s30 = sphi 0, %s28
    %s42 = sphi 0, %s44
    %s45 = sphi 0, %s42
    %s46 = sphi 0, %s45
    %s62 = sphi 0, %s46
    %s68 = sphi 0, %s70
    %s71 = sphi 0, %s68
    %s72 = sphi 0, %s71
    %s88 = sphi 0, %s72
    %s92 = sphi 0, %s92
    %s94 = sphi 0, %s92
    %s95 = sphi 0, %s94
    %s109 = sphi 0, %s95
    %s113 = sphi 0, %s113
    %s115 = sphi 0, %s113
    %s116 = sphi 0, %s115
    %s130 = sphi 0, %s116
    %s134 = sphi 0, %s134
    %s136 = sphi 0, %s134
    %s137 = sphi 0, %s136
    %s151 = sphi 0, %s137
    %s155 = sphi 0, %s155
    %s157 = sphi 0, %s155
    %s158 = sphi 0, %s157
    %s172 = sphi 0, %s158
    %s176 = sphi 0, %s176
    %s178 = sphi 0, %s176
    %s179 = sphi 0, %s178
    %s193 = sphi 0, %s179
    %s197 = sphi 0, %s197
    %s199 = sphi 0, %s197
    %s200 = sphi 0, %s199
    %s214 = sphi 0, %s200
    %s218 = sphi 0, %s218
    %s220 = sphi 0, %s218
    %s221 = sphi 0, %s220
    %s235 = sphi 0, %s221
    %s239 = sphi 0, %s239
    %s241 = sphi 0, %s239
    %s242 = sphi 0, %s241
    %s256 = sphi 0, %s242
    %s260 = sphi 0, %s260
    %s262 = sphi 0, %s260
    %s263 = sphi 0, %s262
    %s277 = sphi 0, %s263
    %s281 = sphi 0, %s281
    %s283 = sphi 0, %s281
    %s284 = sphi 0, %s283
    %s298 = sphi 0, %s284
    %s306 = sphi 0, %s308
    %s309 = sphi 0, %s306
    %s310 = sphi 0, %s309
    %s326 = sphi 0, %s310
  $region4: #{transformer_forward.14} parent=0 // loop_header_branch
    %21 = sbr.rel (%p19) target = $region8
  $region5: #{transformer_forward.14} parent=0 // loop_body
    %s23 = ssub.s32 %s18, 1
    %s24 = ssub.s32 %s18, 2
    %s31 = sadd.s32 1, %s26
    %p32 = scmp.ge.s32.totalorder %s31, 1
    %s33 = scalar_select %p32, 0, %s31
    %s34 = sadd.s32 1, %s25
    %s35 = scalar_select %p32, %s34, %s25
    %p36 = scmp.ge.s32.totalorder %s35, 2
    %s37 = scalar_select %p36, 0, %s35
    %s38 = ssub.s32 %s25, %s37
    %s39 = ssub.s32 %s26, %s33
    %s40 = sor.u32 %s38, %s39
    %p41 = scmp.eq.s32.totalorder %s40, 0
    %s43 = sadd.s32 %s42, 1
    %s44 = scalar_select %p41, %s42, %s43
    %p47 = pneg %p41
    %p48 = scmp.eq.s32.totalorder %s18, 1
    %p49 = por %p47, %p48
    %p50 = scmp.ne.s32.totalorder %s42, %s45
    %p51 = scmp.eq.s32.totalorder %s18, 0
    %p52 = por %p50, %p51
    %p53 = scmp.ne.s32.totalorder %s42, %s45
    %p54 = scmp.eq.s32.totalorder %s23, 1
    %p55 = por %p53, %p54
    %p56 = scmp.ne.s32.totalorder %s45, %s46
    %p57 = scmp.eq.s32.totalorder %s23, 0
    %p58 = por %p56, %p57
    %p59 = scmp.ne.s32.totalorder %s45, %s46
    %p60 = scmp.eq.s32.totalorder %s24, 1
    %p61 = por %p59, %p60
    %p63 = scmp.ne.s32.totalorder %s46, %s62
    %p64 = scmp.eq.s32.totalorder %s24, 0
    %p65 = por %p63, %p64
    %s66 = ssub.s32 %s25, %s37
    %p67 = scmp.eq.s32.totalorder %s66, 0
    %s69 = sadd.s32 %s68, 1
    %s70 = scalar_select %p67, %s68, %s69
    %p73 = pneg %p67
    %p74 = scmp.eq.s32.totalorder %s18, 1
    %p75 = por %p73, %p74
    %p76 = scmp.ne.s32.totalorder %s68, %s71
    %p77 = scmp.eq.s32.totalorder %s18, 0
    %p78 = por %p76, %p77
    %p79 = scmp.ne.s32.totalorder %s68, %s71
    %p80 = scmp.eq.s32.totalorder %s23, 1
    %p81 = por %p79, %p80
    %p82 = scmp.ne.s32.totalorder %s71, %s72
    %p83 = scmp.eq.s32.totalorder %s23, 0
    %p84 = por %p82, %p83
    %p85 = scmp.ne.s32.totalorder %s71, %s72
    %p86 = scmp.eq.s32.totalorder %s24, 1
    %p87 = por %p85, %p86
    %p89 = scmp.ne.s32.totalorder %s72, %s88
    %p90 = scmp.eq.s32.totalorder %s24, 0
    %p91 = por %p89, %p90
    %s93 = sadd.s32 %s92, 1
    %p96 = scmp.eq.s32.totalorder %s18, 1
    %p97 = scmp.ne.s32.totalorder %s92, %s94
    %p98 = scmp.eq.s32.totalorder %s18, 0
    %p99 = por %p97, %p98
    %p100 = scmp.ne.s32.totalorder %s92, %s94
    %p101 = scmp.eq.s32.totalorder %s23, 1
    %p102 = por %p100, %p101
    %p103 = scmp.ne.s32.totalorder %s94, %s95
    %p104 = scmp.eq.s32.totalorder %s23, 0
    %p105 = por %p103, %p104
    %p106 = scmp.ne.s32.totalorder %s94, %s95
    %p107 = scmp.eq.s32.totalorder %s24, 1
    %p108 = por %p106, %p107
    %p110 = scmp.ne.s32.totalorder %s95, %s109
    %p111 = scmp.eq.s32.totalorder %s24, 0
    %p112 = por %p110, %p111
    %s114 = sadd.s32 %s113, 1
    %p117 = scmp.eq.s32.totalorder %s18, 1
    %p118 = scmp.ne.s32.totalorder %s113, %s115
    %p119 = scmp.eq.s32.totalorder %s18, 0
    %p120 = por %p118, %p119
    %p121 = scmp.ne.s32.totalorder %s113, %s115
    %p122 = scmp.eq.s32.totalorder %s23, 1
    %p123 = por %p121, %p122
    %p124 = scmp.ne.s32.totalorder %s115, %s116
    %p125 = scmp.eq.s32.totalorder %s23, 0
    %p126 = por %p124, %p125
    %p127 = scmp.ne.s32.totalorder %s115, %s116
    %p128 = scmp.eq.s32.totalorder %s24, 1
    %p129 = por %p127, %p128
    %p131 = scmp.ne.s32.totalorder %s116, %s130
    %p132 = scmp.eq.s32.totalorder %s24, 0
    %p133 = por %p131, %p132
    %s135 = sadd.s32 %s134, 1
    %p138 = scmp.eq.s32.totalorder %s18, 1
    %p139 = scmp.ne.s32.totalorder %s134, %s136
    %p140 = scmp.eq.s32.totalorder %s18, 0
    %p141 = por %p139, %p140
    %p142 = scmp.ne.s32.totalorder %s134, %s136
    %p143 = scmp.eq.s32.totalorder %s23, 1
    %p144 = por %p142, %p143
    %p145 = scmp.ne.s32.totalorder %s136, %s137
    %p146 = scmp.eq.s32.totalorder %s23, 0
    %p147 = por %p145, %p146
    %p148 = scmp.ne.s32.totalorder %s136, %s137
    %p149 = scmp.eq.s32.totalorder %s24, 1
    %p150 = por %p148, %p149
    %p152 = scmp.ne.s32.totalorder %s137, %s151
    %p153 = scmp.eq.s32.totalorder %s24, 0
    %p154 = por %p152, %p153
    %s156 = sadd.s32 %s155, 1
    %p159 = scmp.eq.s32.totalorder %s18, 1
    %p160 = scmp.ne.s32.totalorder %s155, %s157
    %p161 = scmp.eq.s32.totalorder %s18, 0
    %p162 = por %p160, %p161
    %p163 = scmp.ne.s32.totalorder %s155, %s157
    %p164 = scmp.eq.s32.totalorder %s23, 1
    %p165 = por %p163, %p164
    %p166 = scmp.ne.s32.totalorder %s157, %s158
    %p167 = scmp.eq.s32.totalorder %s23, 0
    %p168 = por %p166, %p167
    %p169 = scmp.ne.s32.totalorder %s157, %s158
    %p170 = scmp.eq.s32.totalorder %s24, 1
    %p171 = por %p169, %p170
    %p173 = scmp.ne.s32.totalorder %s158, %s172
    %p174 = scmp.eq.s32.totalorder %s24, 0
    %p175 = por %p173, %p174
    %s177 = sadd.s32 %s176, 1
    %p180 = scmp.eq.s32.totalorder %s18, 1
    %p181 = scmp.ne.s32.totalorder %s176, %s178
    %p182 = scmp.eq.s32.totalorder %s18, 0
    %p183 = por %p181, %p182
    %p184 = scmp.ne.s32.totalorder %s176, %s178
    %p185 = scmp.eq.s32.totalorder %s23, 1
    %p186 = por %p184, %p185
    %p187 = scmp.ne.s32.totalorder %s178, %s179
    %p188 = scmp.eq.s32.totalorder %s23, 0
    %p189 = por %p187, %p188
    %p190 = scmp.ne.s32.totalorder %s178, %s179
    %p191 = scmp.eq.s32.totalorder %s24, 1
    %p192 = por %p190, %p191
    %p194 = scmp.ne.s32.totalorder %s179, %s193
    %p195 = scmp.eq.s32.totalorder %s24, 0
    %p196 = por %p194, %p195
    %s198 = sadd.s32 %s197, 1
    %p201 = scmp.eq.s32.totalorder %s18, 1
    %p202 = scmp.ne.s32.totalorder %s197, %s199
    %p203 = scmp.eq.s32.totalorder %s18, 0
    %p204 = por %p202, %p203
    %p205 = scmp.ne.s32.totalorder %s197, %s199
    %p206 = scmp.eq.s32.totalorder %s23, 1
    %p207 = por %p205, %p206
    %p208 = scmp.ne.s32.totalorder %s199, %s200
    %p209 = scmp.eq.s32.totalorder %s23, 0
    %p210 = por %p208, %p209
    %p211 = scmp.ne.s32.totalorder %s199, %s200
    %p212 = scmp.eq.s32.totalorder %s24, 1
    %p213 = por %p211, %p212
    %p215 = scmp.ne.s32.totalorder %s200, %s214
    %p216 = scmp.eq.s32.totalorder %s24, 0
    %p217 = por %p215, %p216
    %s219 = sadd.s32 %s218, 1
    %p222 = scmp.eq.s32.totalorder %s18, 1
    %p223 = scmp.ne.s32.totalorder %s218, %s220
    %p224 = scmp.eq.s32.totalorder %s18, 0
    %p225 = por %p223, %p224
    %p226 = scmp.ne.s32.totalorder %s218, %s220
    %p227 = scmp.eq.s32.totalorder %s23, 1
    %p228 = por %p226, %p227
    %p229 = scmp.ne.s32.totalorder %s220, %s221
    %p230 = scmp.eq.s32.totalorder %s23, 0
    %p231 = por %p229, %p230
    %p232 = scmp.ne.s32.totalorder %s220, %s221
    %p233 = scmp.eq.s32.totalorder %s24, 1
    %p234 = por %p232, %p233
    %p236 = scmp.ne.s32.totalorder %s221, %s235
    %p237 = scmp.eq.s32.totalorder %s24, 0
    %p238 = por %p236, %p237
    %s240 = sadd.s32 %s239, 1
    %p243 = scmp.eq.s32.totalorder %s18, 1
    %p244 = scmp.ne.s32.totalorder %s239, %s241
    %p245 = scmp.eq.s32.totalorder %s18, 0
    %p246 = por %p244, %p245
    %p247 = scmp.ne.s32.totalorder %s239, %s241
    %p248 = scmp.eq.s32.totalorder %s23, 1
    %p249 = por %p247, %p248
    %p250 = scmp.ne.s32.totalorder %s241, %s242
    %p251 = scmp.eq.s32.totalorder %s23, 0
    %p252 = por %p250, %p251
    %p253 = scmp.ne.s32.totalorder %s241, %s242
    %p254 = scmp.eq.s32.totalorder %s24, 1
    %p255 = por %p253, %p254
    %p257 = scmp.ne.s32.totalorder %s242, %s256
    %p258 = scmp.eq.s32.totalorder %s24, 0
    %p259 = por %p257, %p258
    %s261 = sadd.s32 %s260, 1
    %p264 = scmp.eq.s32.totalorder %s18, 1
    %p265 = scmp.ne.s32.totalorder %s260, %s262
    %p266 = scmp.eq.s32.totalorder %s18, 0
    %p267 = por %p265, %p266
    %p268 = scmp.ne.s32.totalorder %s260, %s262
    %p269 = scmp.eq.s32.totalorder %s23, 1
    %p270 = por %p268, %p269
    %p271 = scmp.ne.s32.totalorder %s262, %s263
    %p272 = scmp.eq.s32.totalorder %s23, 0
    %p273 = por %p271, %p272
    %p274 = scmp.ne.s32.totalorder %s262, %s263
    %p275 = scmp.eq.s32.totalorder %s24, 1
    %p276 = por %p274, %p275
    %p278 = scmp.ne.s32.totalorder %s263, %s277
    %p279 = scmp.eq.s32.totalorder %s24, 0
    %p280 = por %p278, %p279
    %s282 = sadd.s32 %s281, 1
    %p285 = scmp.eq.s32.totalorder %s18, 1
    %p286 = scmp.ne.s32.totalorder %s281, %s283
    %p287 = scmp.eq.s32.totalorder %s18, 0
    %p288 = por %p286, %p287
    %p289 = scmp.ne.s32.totalorder %s281, %s283
    %p290 = scmp.eq.s32.totalorder %s23, 1
    %p291 = por %p289, %p290
    %p292 = scmp.ne.s32.totalorder %s283, %s284
    %p293 = scmp.eq.s32.totalorder %s23, 0
    %p294 = por %p292, %p293
    %p295 = scmp.ne.s32.totalorder %s283, %s284
    %p296 = scmp.eq.s32.totalorder %s24, 1
    %p297 = por %p295, %p296
    %p299 = scmp.ne.s32.totalorder %s284, %s298
    %p300 = scmp.eq.s32.totalorder %s24, 0
    %p301 = por %p299, %p300
    %s302 = ssub.s32 %s25, %s37
    %s303 = ssub.s32 %s26, %s33
    %s304 = sor.u32 %s302, %s303
    %p305 = scmp.eq.s32.totalorder %s304, 0
    %s307 = sadd.s32 %s306, 1
    %s308 = scalar_select %p305, %s306, %s307
    %p311 = pneg %p305
    %p312 = scmp.eq.s32.totalorder %s18, 1
    %p313 = por %p311, %p312
    %p314 = scmp.ne.s32.totalorder %s306, %s309
    %p315 = scmp.eq.s32.totalorder %s18, 0
    %p316 = por %p314, %p315
    %p317 = scmp.ne.s32.totalorder %s306, %s309
    %p318 = scmp.eq.s32.totalorder %s23, 1
    %p319 = por %p317, %p318
    %p320 = scmp.ne.s32.totalorder %s309, %s310
    %p321 = scmp.eq.s32.totalorder %s23, 0
    %p322 = por %p320, %p321
    %p323 = scmp.ne.s32.totalorder %s309, %s310
    %p324 = scmp.eq.s32.totalorder %s24, 1
    %p325 = por %p323, %p324
    %p327 = scmp.ne.s32.totalorder %s310, %s326
    %p328 = scmp.eq.s32.totalorder %s24, 0
    %p329 = por %p327, %p328
    %p330 = scmp.le.s32.totalorder 1, %s18
    %p331 = scmp.lt.s32.totalorder %s18, 3
    %p332 = pnand %p330, %p331
    %p333 = pneg %p332
    // Predicated region
    $region9: #{transformer_forward.14} parent=5 // pred_check
      _
    $region10: #{transformer_forward.14} parent=5 // pred_check_branch
      %335 = sbr.rel (%p332) target = $region12
    $region11: #{transformer_forward.14} parent=5 // pred_region
      %s336 = ssub.s32 %s18, 1
      // Predicated region
      $region13: #{transformer_forward.14} parent=11 // pred_check
        %p337 = pneg %p105
      $region14: #{transformer_forward.14} parent=11 // pred_check_branch
        %339 = sbr.rel (%p337) target = $region16
      $region15: #{transformer_forward.14} parent=11 // pred_region
        _
      $region16: #{transformer_forward.14} parent=11 // pred_fallthru
        _
      // Predicated region
      $region17: #{transformer_forward.14} parent=11 // pred_check
        %p340 = pneg %p126
      $region18: #{transformer_forward.14} parent=11 // pred_check_branch
        %342 = sbr.rel (%p340) target = $region20
      $region19: #{transformer_forward.14} parent=11 // pred_region
        _
      $region20: #{transformer_forward.14} parent=11 // pred_fallthru
        _
      // Predicated region
      $region21: #{transformer_forward.14} parent=11 // pred_check
        %p343 = pneg %p147
      $region22: #{transformer_forward.14} parent=11 // pred_check_branch
        %345 = sbr.rel (%p343) target = $region24
      $region23: #{transformer_forward.14} parent=11 // pred_region
        _
      $region24: #{transformer_forward.14} parent=11 // pred_fallthru
        _
      // Predicated region
      $region25: #{transformer_forward.14} parent=11 // pred_check
        %p346 = pneg %p168
      $region26: #{transformer_forward.14} parent=11 // pred_check_branch
        %348 = sbr.rel (%p346) target = $region28
      $region27: #{transformer_forward.14} parent=11 // pred_region
        _
      $region28: #{transformer_forward.14} parent=11 // pred_fallthru
        _
      // Predicated region
      $region29: #{transformer_forward.14} parent=11 // pred_check
        %p349 = pneg %p189
      $region30: #{transformer_forward.14} parent=11 // pred_check_branch
        %351 = sbr.rel (%p349) target = $region32
      $region31: #{transformer_forward.14} parent=11 // pred_region
        _
      $region32: #{transformer_forward.14} parent=11 // pred_fallthru
        _
      // Predicated region
      $region33: #{transformer_forward.14} parent=11 // pred_check
        %p352 = pneg %p210
      $region34: #{transformer_forward.14} parent=11 // pred_check_branch
        %354 = sbr.rel (%p352) target = $region36
      $region35: #{transformer_forward.14} parent=11 // pred_region
        _
      $region36: #{transformer_forward.14} parent=11 // pred_fallthru
        _
      // Predicated region
      $region37: #{transformer_forward.14} parent=11 // pred_check
        %p355 = pneg %p231
      $region38: #{transformer_forward.14} parent=11 // pred_check_branch
        %357 = sbr.rel (%p355) target = $region40
      $region39: #{transformer_forward.14} parent=11 // pred_region
        _
      $region40: #{transformer_forward.14} parent=11 // pred_fallthru
        _
      // Predicated region
      $region41: #{transformer_forward.14} parent=11 // pred_check
        %p358 = pneg %p252
      $region42: #{transformer_forward.14} parent=11 // pred_check_branch
        %360 = sbr.rel (%p358) target = $region44
      $region43: #{transformer_forward.14} parent=11 // pred_region
        _
      $region44: #{transformer_forward.14} parent=11 // pred_fallthru
        _
      // Predicated region
      $region45: #{transformer_forward.14} parent=11 // pred_check
        %p361 = pneg %p273
      $region46: #{transformer_forward.14} parent=11 // pred_check_branch
        %363 = sbr.rel (%p361) target = $region48
      $region47: #{transformer_forward.14} parent=11 // pred_region
        _
      $region48: #{transformer_forward.14} parent=11 // pred_fallthru
        _
      // Predicated region
      $region49: #{transformer_forward.14} parent=11 // pred_check
        %p364 = pneg %p294
      $region50: #{transformer_forward.14} parent=11 // pred_check_branch
        %366 = sbr.rel (%p364) target = $region52
      $region51: #{transformer_forward.14} parent=11 // pred_region
        _
      $region52: #{transformer_forward.14} parent=11 // pred_fallthru
        _
    $region12: #{transformer_forward.14} parent=5 // pred_fallthru
      _
    %p367 = scmp.lt.s32.totalorder %s18, 2
    // Predicated region
    $region53: #{transformer_forward.14} parent=5 // pred_check
      %p368 = pneg %p367
    $region54: #{transformer_forward.14} parent=5 // pred_check_branch
      %370 = sbr.rel (%p368) target = $region56
    $region55: #{transformer_forward.14} parent=5 // pred_region
      // Predicated region
      $region57: #{transformer_forward.14} parent=55 // pred_check
        %p371 = pneg %p52
      $region58: #{transformer_forward.14} parent=55 // pred_check_branch
        %373 = sbr.rel (%p371) target = $region60
      $region59: #{transformer_forward.14} parent=55 // pred_region
        %s374 = smul.u32 2, %s26
        %p375 = scmp.lt.s32.totalorder %s25, 1
        %s376 = scalar_select %p375, %s25, 1
        %p377 = scmp.lt.s32.totalorder %s374, 1
        %s378 = scalar_select %p377, %s374, 1
        %s379 = smul.addr %s376, 2
        %s380 = sadd.s32 %s378, %s379
        %s381 = smul.addr %s380, 8
        %s382 = scalar_lea.vmem %s0, %s381
        %s383 = smul.u32 2, %s26
      $region60: #{transformer_forward.14} parent=55 // pred_fallthru
        _
      // Predicated region
      $region61: #{transformer_forward.14} parent=55 // pred_check
        %p384 = pneg %p78
      $region62: #{transformer_forward.14} parent=55 // pred_check_branch
        %386 = sbr.rel (%p384) target = $region64
      $region63: #{transformer_forward.14} parent=55 // pred_region
        %p387 = scmp.lt.s32.totalorder %s25, 1
        %s388 = scalar_select %p387, %s25, 1
        %s389 = smul.addr %s388, 2
        %s390 = smul.addr %s389, 8
        %s391 = scalar_lea.vmem %s1, %s390
      $region64: #{transformer_forward.14} parent=55 // pred_fallthru
        _
    $region56: #{transformer_forward.14} parent=5 // pred_fallthru
      _
    %p392 = scmp.le.s32.totalorder 1, %s18
    %p393 = scmp.lt.s32.totalorder %s18, 3
    %p394 = pnand %p392, %p393
    %p395 = pneg %p394
    // Predicated region
    $region65: #{transformer_forward.14} parent=5 // pred_check
      _
    $region66: #{transformer_forward.14} parent=5 // pred_check_branch
      %397 = sbr.rel (%p394) target = $region68
    $region67: #{transformer_forward.14} parent=5 // pred_region
      %s398 = ssub.s32 %s18, 1
      %s399 = smul.u32 2, %s28
      %p400 = scmp.lt.s32.totalorder %s27, 1
      %s401 = scalar_select %p400, %s27, 1
      %p402 = scmp.lt.s32.totalorder %s399, 1
      %s403 = scalar_select %p402, %s399, 1
      %s404 = smul.addr %s401, 2
      %s405 = sadd.s32 %s403, %s404
      %s406 = smul.addr %s405, 8
      %s407 = scalar_lea.vmem %s0, %s406
      %p408 = pneg %p58
      %p409 = pneg %p55
      %p410 = scmp.lt.s32.totalorder %s27, 1
      %s411 = scalar_select %p410, %s27, 1
      %s412 = smul.addr %s411, 2
      %s413 = smul.addr %s412, 8
      %s414 = scalar_lea.vmem %s1, %s413
      %p415 = pneg %p84
      %p416 = pneg %p81
      %p417 = pneg %p105
      %p418 = pneg %p102
      %p419 = pneg %p126
      %p420 = pneg %p123
      %p421 = pneg %p147
      %p422 = pneg %p144
      %p423 = pneg %p168
      %p424 = pneg %p165
      %p425 = pneg %p189
      %p426 = pneg %p186
      %p427 = pneg %p210
      %p428 = pneg %p207
      %p429 = pneg %p231
      %p430 = pneg %p228
      %p431 = pneg %p252
      %p432 = pneg %p249
      %p433 = pneg %p273
      %p434 = pneg %p270
      %p435 = pneg %p294
      %p436 = pneg %p291
      %p437 = pneg %p322
      %p438 = pneg %p319
      %s439 = smul.u32 2, %s28
      %p440 = scmp.lt.s32.totalorder %s27, 1
      %s441 = scalar_select %p440, %s27, 1
      %p442 = scmp.lt.s32.totalorder %s439, 1
      %s443 = scalar_select %p442, %s439, 1
      %s444 = smul.addr %s441, 2
      %s445 = sadd.s32 %s443, %s444
      %s446 = smul.addr %s445, 8
      %s447 = scalar_lea.vmem %s12, %s446
      %s448 = smul.u32 2, %s28
      %p449 = scmp.lt.s32.totalorder %s27, 1
      %s450 = scalar_select %p449, %s27, 1
      %p451 = scmp.lt.s32.totalorder %s448, 1
      %s452 = scalar_select %p451, %s448, 1
      %s453 = smul.addr %s450, 2
      %s454 = sadd.s32 %s452, %s453
      %s455 = smul.addr %s454, 8
      %s456 = scalar_lea.vmem %s0, %s455
      %s457 = smul.u32 2, %s28
      %p458 = scmp.lt.s32.totalorder %s27, 1
      %s459 = scalar_select %p458, %s27, 1
      %s460 = smul.addr %s459, 2
      %s461 = smul.addr %s460, 8
      %s462 = scalar_lea.vmem %s1, %s461
      %s463 = smul.u32 2, %s28
      %p464 = scmp.lt.s32.totalorder %s27, 1
      %s465 = scalar_select %p464, %s27, 1
      %p466 = scmp.lt.s32.totalorder %s463, 1
      %s467 = scalar_select %p466, %s463, 1
      %s468 = smul.addr %s465, 2
      %s469 = sadd.s32 %s467, %s468
      %s470 = smul.addr %s469, 8
      %s471 = scalar_lea.vmem %s12, %s470
      %s472 = smul.u32 2, %s28
      %v474 = vld [vmem:[%s456] sm:$0xff]
      %v475 = vld [vmem:[%s456 + $0x8] sm:$0x3]
      %v476 = vld [vmem:[%s462] sm:$0xff]
      %v477 = vld [vmem:[%s462 + $0x8] sm:$0x3]
      %v478 = vpack.c.bf16 %v475, %v474
      %v479 = vpack.c.bf16 %v477, %v476
      %v480 = vld [vmem:[%s2] sm:$0xf]
      %v481 = vld [vmem:[%s2 + $0x4] sm:$0xf]
      %v482 = vld [vmem:[%s2 + $0x8] sm:$0xf]
      %v483 = vld [vmem:[%s2 + $0xc] sm:$0xf]
      %v484 = vld [vmem:[%s3] sm:$0x1]
      %v486 = vlaneseq
      %v487 = vshrl.u32 %v486, 7
      %v488 = vsub.s32 0, %v487
      %v489 = vrot.slane %v484, %v488
      %v495 = vunpack.c.l.b16 %v480
      %v496 = vunpack.c.l.b16 %v481
      %v497 = vunpack.c.l.b16 %v482
      %v498 = vunpack.c.l.b16 %v483
      %v499 = vpack.c.b16 %v496, %v495
      %v500 = vpack.c.b16 %v498, %v497
      %vm503 = vcmask 261120
      %v505 = vsel %vm503, %v478, 0
      %507 = vmatprep.subr.bf16.mxu0 0
      %508 = vmatpush1.bf16.msra.mxu0 %v499
      %509 = vmatprep.subr.bf16.mxu0 0
      %510 = vmatpush1.bf16.msra.mxu0 %v500
      %511 = vmatprep.subr.bf16.mxu0 0
      %512 = vmatpush1.bf16.msra.mxu0 0
      %513 = vmatprep.subr.bf16.mxu0 0
      %514 = vmatpush1.bf16.msra.mxu0 0
      %515 = vmatprep.subr.bf16.mxu0 0
      %516 = vmatpush1.bf16.msra.mxu0 0
      %517 = vmatprep.subr.bf16.mxu0 0
      %518 = vmatpush1.bf16.msra.mxu0 0
      %519 = vmatprep.subr.bf16.mxu0 0
      %520 = vmatpush1.bf16.msra.mxu0 0
      %521 = vmatprep.subr.bf16.mxu0 0
      %522 = vmatpush1.bf16.msra.mxu0 0
      %523 = vmatprep.subr.bf16.mxu0 0
      %524 = vmatpush1.bf16.msra.mxu0 0
      %525 = vmatprep.subr.bf16.mxu0 0
      %526 = vmatpush1.bf16.msra.mxu0 0
      %527 = vmatprep.subr.bf16.mxu0 0
      %528 = vmatpush1.bf16.msra.mxu0 0
      %529 = vmatprep.subr.bf16.mxu0 0
      %530 = vmatpush1.bf16.msra.mxu0 0
      %531 = vmatprep.subr.bf16.mxu0 0
      %532 = vmatpush1.bf16.msra.mxu0 0
      %533 = vmatprep.subr.bf16.mxu0 0
      %534 = vmatpush1.bf16.msra.mxu0 0
      %535 = vmatprep.subr.bf16.mxu0 0
      %536 = vmatpush1.bf16.msra.mxu0 0
      %537 = vmatprep.subr.bf16.mxu0 0
      %538 = vmatpush1.bf16.msra.mxu0 0
      %539 = vmatprep.mubr.bf16.mxu0 0
      %540 = vmatmul.mubr.bf16.gmra.mrb[0].mxu0 %v505
      %v541 = vpop.f32.mrb[0].mxu0
      %v542 = vadd.f32 %v489, %v541
      %v543 = vpop.f32.mrb[0].mxu0
      %v544 = vpop.f32.mrb[0].mxu0
      %v545 = vadd.f32 %v489, %v544
      %v546 = vpop.f32.mrb[0].mxu0
      %547 = vdwg.mxu0
      %v548 = vld [vmem:[%s4] sm:$0xf]
      %v549 = vld [vmem:[%s4 + $0x4] sm:$0xf]
      %v550 = vld [vmem:[%s4 + $0x8] sm:$0xf]
      %v551 = vld [vmem:[%s4 + $0xc] sm:$0xf]
      %v552 = vld [vmem:[%s5] sm:$0x1]
      %v554 = vlaneseq
      %v555 = vshrl.u32 %v554, 7
      %v556 = vsub.s32 0, %v555
      %v557 = vrot.slane %v552, %v556
      %v563 = vunpack.c.l.b16 %v548
      %v564 = vunpack.c.l.b16 %v549
      %v565 = vunpack.c.l.b16 %v550
      %v566 = vunpack.c.l.b16 %v551
      %v567 = vpack.c.b16 %v564, %v563
      %v568 = vpack.c.b16 %v566, %v565
      %v572 = vsel %vm503, %v479, 0
      %574 = vmatprep.subr.bf16.mxu0 0
      %575 = vmatpush1.bf16.msra.mxu0 %v567
      %576 = vmatprep.subr.bf16.mxu0 0
      %577 = vmatpush1.bf16.msra.mxu0 %v568
      %578 = vmatprep.subr.bf16.mxu0 0
      %579 = vmatpush1.bf16.msra.mxu0 0
      %580 = vmatprep.subr.bf16.mxu0 0
      %581 = vmatpush1.bf16.msra.mxu0 0
      %582 = vmatprep.subr.bf16.mxu0 0
      %583 = vmatpush1.bf16.msra.mxu0 0
      %584 = vmatprep.subr.bf16.mxu0 0
      %585 = vmatpush1.bf16.msra.mxu0 0
      %586 = vmatprep.subr.bf16.mxu0 0
      %587 = vmatpush1.bf16.msra.mxu0 0
      %588 = vmatprep.subr.bf16.mxu0 0
      %589 = vmatpush1.bf16.msra.mxu0 0
      %590 = vmatprep.subr.bf16.mxu0 0
      %591 = vmatpush1.bf16.msra.mxu0 0
      %592 = vmatprep.subr.bf16.mxu0 0
      %593 = vmatpush1.bf16.msra.mxu0 0
      %594 = vmatprep.subr.bf16.mxu0 0
      %595 = vmatpush1.bf16.msra.mxu0 0
      %596 = vmatprep.subr.bf16.mxu0 0
      %597 = vmatpush1.bf16.msra.mxu0 0
      %598 = vmatprep.subr.bf16.mxu0 0
      %599 = vmatpush1.bf16.msra.mxu0 0
      %600 = vmatprep.subr.bf16.mxu0 0
      %601 = vmatpush1.bf16.msra.mxu0 0
      %602 = vmatprep.subr.bf16.mxu0 0
      %603 = vmatpush1.bf16.msra.mxu0 0
      %604 = vmatprep.subr.bf16.mxu0 0
      %605 = vmatpush1.bf16.msra.mxu0 0
      %606 = vmatprep.mubr.bf16.mxu0 0
      %607 = vmatmul.mubr.bf16.gmra.mrb[0].mxu0 %v572
      %v608 = vpop.f32.mrb[0].mxu0
      %v609 = vadd.f32 %v557, %v608
      %v610 = vpop.f32.mrb[0].mxu0
      %v611 = vpop.f32.mrb[0].mxu0
      %v612 = vadd.f32 %v557, %v611
      %v613 = vpop.f32.mrb[0].mxu0
      %614 = vdwg.mxu0
      %v615 = vld [vmem:[%s6] sm:$0xf]
      %v616 = vld [vmem:[%s6 + $0x4] sm:$0xf]
      %v617 = vld [vmem:[%s6 + $0x8] sm:$0xf]
      %v618 = vld [vmem:[%s6 + $0xc] sm:$0xf]
      %v619 = vld [vmem:[%s7] sm:$0x1]
      %v621 = vlaneseq
      %v622 = vshrl.u32 %v621, 7
      %v623 = vsub.s32 0, %v622
      %v624 = vrot.slane %v619, %v623
      %v630 = vunpack.c.l.b16 %v615
      %v631 = vunpack.c.l.b16 %v616
      %v632 = vunpack.c.l.b16 %v617
      %v633 = vunpack.c.l.b16 %v618
      %v634 = vpack.c.b16 %v631, %v630
      %v635 = vpack.c.b16 %v633, %v632
      %638 = vmatprep.subr.bf16.mxu0 0
      %639 = vmatpush1.bf16.msra.mxu0 %v634
      %640 = vmatprep.subr.bf16.mxu0 0
      %641 = vmatpush1.bf16.msra.mxu0 %v635
      %642 = vmatprep.subr.bf16.mxu0 0
      %643 = vmatpush1.bf16.msra.mxu0 0
      %644 = vmatprep.subr.bf16.mxu0 0
      %645 = vmatpush1.bf16.msra.mxu0 0
      %646 = vmatprep.subr.bf16.mxu0 0
      %647 = vmatpush1.bf16.msra.mxu0 0
      %648 = vmatprep.subr.bf16.mxu0 0
      %649 = vmatpush1.bf16.msra.mxu0 0
      %650 = vmatprep.subr.bf16.mxu0 0
      %651 = vmatpush1.bf16.msra.mxu0 0
      %652 = vmatprep.subr.bf16.mxu0 0
      %653 = vmatpush1.bf16.msra.mxu0 0
      %654 = vmatprep.subr.bf16.mxu0 0
      %655 = vmatpush1.bf16.msra.mxu0 0
      %656 = vmatprep.subr.bf16.mxu0 0
      %657 = vmatpush1.bf16.msra.mxu0 0
      %658 = vmatprep.subr.bf16.mxu0 0
      %659 = vmatpush1.bf16.msra.mxu0 0
      %660 = vmatprep.subr.bf16.mxu0 0
      %661 = vmatpush1.bf16.msra.mxu0 0
      %662 = vmatprep.subr.bf16.mxu0 0
      %663 = vmatpush1.bf16.msra.mxu0 0
      %664 = vmatprep.subr.bf16.mxu0 0
      %665 = vmatpush1.bf16.msra.mxu0 0
      %666 = vmatprep.subr.bf16.mxu0 0
      %667 = vmatpush1.bf16.msra.mxu0 0
      %668 = vmatprep.subr.bf16.mxu0 0
      %669 = vmatpush1.bf16.msra.mxu0 0
      %670 = vmatprep.mubr.bf16.mxu0 0
      %671 = vmatmul.mubr.bf16.gmra.mrb[0].mxu0 %v572
      %v672 = vpop.f32.mrb[0].mxu0
      %v673 = vadd.f32 %v624, %v672
      %v674 = vpop.f32.mrb[0].mxu0
      %v675 = vpop.f32.mrb[0].mxu0
      %v676 = vadd.f32 %v624, %v675
      %v677 = vpop.f32.mrb[0].mxu0
      %678 = vdwg.mxu0
      %v679 = vpack.c.bf16 %v545, %v542
      %v680 = vpack.c.bf16 %v612, %v609
      %vm681 = vcmask 64512
      %v683 = vsel %vm681, %v679, 0
      %v686 = vsel %vm681, %v680, 0
      %688 = vmatprep.subr.bf16.mxu0 0
      %689 = vmatpush1.bf16.xpose.msra.mxu0 %v686
      %690 = vmatprep.subr.bf16.mxu0 0
      %691 = vmatpush1.bf16.xpose.msra.mxu0 0
      %692 = vmatprep.subr.bf16.mxu0 0
      %693 = vmatpush1.bf16.xpose.msra.mxu0 0
      %694 = vmatprep.subr.bf16.mxu0 0
      %695 = vmatpush1.bf16.xpose.msra.mxu0 0
      %696 = vmatprep.subr.bf16.mxu0 0
      %697 = vmatpush1.bf16.xpose.msra.mxu0 0
      %698 = vmatprep.subr.bf16.mxu0 0
      %699 = vmatpush1.bf16.xpose.msra.mxu0 0
      %700 = vmatprep.subr.bf16.mxu0 0
      %701 = vmatpush1.bf16.xpose.msra.mxu0 0
      %702 = vmatprep.subr.bf16.mxu0 0
      %703 = vmatpush1.bf16.xpose.msra.mxu0 0
      %704 = vmatprep.subr.bf16.mxu0 0
      %705 = vmatpush1.bf16.xpose.msra.mxu0 0
      %706 = vmatprep.subr.bf16.mxu0 0
      %707 = vmatpush1.bf16.xpose.msra.mxu0 0
      %708 = vmatprep.subr.bf16.mxu0 0
      %709 = vmatpush1.bf16.xpose.msra.mxu0 0
      %710 = vmatprep.subr.bf16.mxu0 0
      %711 = vmatpush1.bf16.xpose.msra.mxu0 0
      %712 = vmatprep.subr.bf16.mxu0 0
      %713 = vmatpush1.bf16.xpose.msra.mxu0 0
      %714 = vmatprep.subr.bf16.mxu0 0
      %715 = vmatpush1.bf16.xpose.msra.mxu0 0
      %716 = vmatprep.subr.bf16.mxu0 0
      %717 = vmatpush1.bf16.xpose.msra.mxu0 0
      %718 = vmatprep.subr.bf16.mxu0 0
      %719 = vmatpush1.bf16.xpose.msra.mxu0 0
      %720 = vmatprep.mubr.bf16.mxu0 0
      %721 = vmatmul.mubr.bf16.gmra.mrb[0].mxu0 %v683
      %v722 = vpop.f32.mrb[0].mxu0
      %v723 = vadd.f32 0.0, %v722
      %v724 = vpop.f32.mrb[0].mxu0
      %v725 = vpop.f32.mrb[0].mxu0
      %v726 = vadd.f32 0.0, %v725
      %v727 = vpop.f32.mrb[0].mxu0
      %728 = vdwg.mxu0
      %vm729 = vcmask 80896
      %v730 = vsel %vm729, %v723, -inf
      %731 = vmax.xlane.f32.xlu0 %v730
      %v732 = vpop.xlane.xlu0 %731
      %vm733 = vcmask 74752
      %v734 = vsel %vm733, %v726, -inf
      %735 = vmax.xlane.f32.xlu0 %v734
      %v736 = vpop.xlane.xlu0 %735
      %v737 = vsub.f32 %v723, %v732
      %v738 = vsub.f32 %v726, %v736
      %v739 = vmul.f32 %v737, 1.442695
      %v740 = vpow.pop %v739
      %v741 = vmul.f32 %v738, 1.442695
      %v742 = vpow.pop %v741
      %v743 = vsel %vm729, %v740, 0.0
      %744 = vadd.xlane.f32.xlu0 %v743
      %v745 = vpop.xlane.xlu0 %744
      %v746 = vsel %vm733, %v742, 0.0
      %747 = vadd.xlane.f32.xlu0 %v746
      %v748 = vpop.xlane.xlu0 %747
      %v749 = vrcp.pop %v745
      %v750 = vmul.f32 %v740, %v749
      %v751 = vrcp.pop %v748
      %v752 = vmul.f32 %v742, %v751
      %v753 = vpack.c.bf16 %v752, %v750
      %v754 = vpack.c.bf16 %v676, %v673
      %v756 = vsel %vm729, %v753, 0
      %vm758 = vcmask 1044480
      %v760 = vsel %vm758, %v754, 0
      %762 = vmatprep.subr.bf16.mxu0 0
      %763 = vmatpush1.bf16.msra.mxu0 %v760
      %764 = vmatprep.subr.bf16.mxu0 0
      %765 = vmatpush1.bf16.msra.mxu0 0
      %766 = vmatprep.subr.bf16.mxu0 0
      %767 = vmatpush1.bf16.msra.mxu0 0
      %768 = vmatprep.subr.bf16.mxu0 0
      %769 = vmatpush1.bf16.msra.mxu0 0
      %770 = vmatprep.subr.bf16.mxu0 0
      %771 = vmatpush1.bf16.msra.mxu0 0
      %772 = vmatprep.subr.bf16.mxu0 0
      %773 = vmatpush1.bf16.msra.mxu0 0
      %774 = vmatprep.subr.bf16.mxu0 0
      %775 = vmatpush1.bf16.msra.mxu0 0
      %776 = vmatprep.subr.bf16.mxu0 0
      %777 = vmatpush1.bf16.msra.mxu0 0
      %778 = vmatprep.subr.bf16.mxu0 0
      %779 = vmatpush1.bf16.msra.mxu0 0
      %780 = vmatprep.subr.bf16.mxu0 0
      %781 = vmatpush1.bf16.msra.mxu0 0
      %782 = vmatprep.subr.bf16.mxu0 0
      %783 = vmatpush1.bf16.msra.mxu0 0
      %784 = vmatprep.subr.bf16.mxu0 0
      %785 = vmatpush1.bf16.msra.mxu0 0
      %786 = vmatprep.subr.bf16.mxu0 0
      %787 = vmatpush1.bf16.msra.mxu0 0
      %788 = vmatprep.subr.bf16.mxu0 0
      %789 = vmatpush1.bf16.msra.mxu0 0
      %790 = vmatprep.subr.bf16.mxu0 0
      %791 = vmatpush1.bf16.msra.mxu0 0
      %792 = vmatprep.subr.bf16.mxu0 0
      %793 = vmatpush1.bf16.msra.mxu0 0
      %794 = vmatprep.mubr.bf16.mxu0 0
      %795 = vmatmul.mubr.bf16.gmra.mrb[0].mxu0 %v756
      %v796 = vpop.f32.mrb[0].mxu0
      %v797 = vadd.f32 0.0, %v796
      %v798 = vpop.f32.mrb[0].mxu0
      %v799 = vpop.f32.mrb[0].mxu0
      %v800 = vadd.f32 0.0, %v799
      %v801 = vpop.f32.mrb[0].mxu0
      %802 = vdwg.mxu0
      %s803 = scalar_lea.vmem %s2, 16
      %v804 = vld [vmem:[%s803] sm:$0xf]
      %v805 = vld [vmem:[%s803 + $0x4] sm:$0xf]
      %v806 = vld [vmem:[%s803 + $0x8] sm:$0xf]
      %v807 = vld [vmem:[%s803 + $0xc] sm:$0xf]
      %s808 = scalar_lea.vmem %s3, 1
      %v809 = vld [vmem:[%s808] sm:$0x1]
      %v811 = vlaneseq
      %v812 = vshrl.u32 %v811, 7
      %v813 = vsub.s32 0, %v812
      %v814 = vrot.slane %v809, %v813
      %v820 = vunpack.c.l.b16 %v804
      %v821 = vunpack.c.l.b16 %v805
      %v822 = vunpack.c.l.b16 %v806
      %v823 = vunpack.c.l.b16 %v807
      %v824 = vpack.c.b16 %v821, %v820
      %v825 = vpack.c.b16 %v823, %v822
      %828 = vmatprep.subr.bf16.mxu0 0
      %829 = vmatpush1.bf16.msra.mxu0 %v824
      %830 = vmatprep.subr.bf16.mxu0 0
      %831 = vmatpush1.bf16.msra.mxu0 %v825
      %832 = vmatprep.subr.bf16.mxu0 0
      %833 = vmatpush1.bf16.msra.mxu0 0
      %834 = vmatprep.subr.bf16.mxu0 0
      %835 = vmatpush1.bf16.msra.mxu0 0
      %836 = vmatprep.subr.bf16.mxu0 0
      %837 = vmatpush1.bf16.msra.mxu0 0
      %838 = vmatprep.subr.bf16.mxu0 0
      %839 = vmatpush1.bf16.msra.mxu0 0
      %840 = vmatprep.subr.bf16.mxu0 0
      %841 = vmatpush1.bf16.msra.mxu0 0
      %842 = vmatprep.subr.bf16.mxu0 0
      %843 = vmatpush1.bf16.msra.mxu0 0
      %844 = vmatprep.subr.bf16.mxu0 0
      %845 = vmatpush1.bf16.msra.mxu0 0
      %846 = vmatprep.subr.bf16.mxu0 0
      %847 = vmatpush1.bf16.msra.mxu0 0
      %848 = vmatprep.subr.bf16.mxu0 0
      %849 = vmatpush1.bf16.msra.mxu0 0
      %850 = vmatprep.subr.bf16.mxu0 0
      %851 = vmatpush1.bf16.msra.mxu0 0
      %852 = vmatprep.subr.bf16.mxu0 0
      %853 = vmatpush1.bf16.msra.mxu0 0
      %854 = vmatprep.subr.bf16.mxu0 0
      %855 = vmatpush1.bf16.msra.mxu0 0
      %856 = vmatprep.subr.bf16.mxu0 0
      %857 = vmatpush1.bf16.msra.mxu0 0
      %858 = vmatprep.subr.bf16.mxu0 0
      %859 = vmatpush1.bf16.msra.mxu0 0
      %860 = vmatprep.mubr.bf16.mxu0 0
      %861 = vmatmul.mubr.bf16.gmra.mrb[0].mxu0 %v505
      %v862 = vpop.f32.mrb[0].mxu0
      %v863 = vadd.f32 %v814, %v862
      %v864 = vpop.f32.mrb[0].mxu0
      %v865 = vpop.f32.mrb[0].mxu0
      %v866 = vadd.f32 %v814, %v865
      %v867 = vpop.f32.mrb[0].mxu0
      %868 = vdwg.mxu0
      %s869 = scalar_lea.vmem %s4, 16
      %v870 = vld [vmem:[%s869] sm:$0xf]
      %v871 = vld [vmem:[%s869 + $0x4] sm:$0xf]
      %v872 = vld [vmem:[%s869 + $0x8] sm:$0xf]
      %v873 = vld [vmem:[%s869 + $0xc] sm:$0xf]
      %s874 = scalar_lea.vmem %s5, 1
      %v875 = vld [vmem:[%s874] sm:$0x1]
      %v877 = vlaneseq
      %v878 = vshrl.u32 %v877, 7
      %v879 = vsub.s32 0, %v878
      %v880 = vrot.slane %v875, %v879
      %v886 = vunpack.c.l.b16 %v870
      %v887 = vunpack.c.l.b16 %v871
      %v888 = vunpack.c.l.b16 %v872
      %v889 = vunpack.c.l.b16 %v873
      %v890 = vpack.c.b16 %v887, %v886
      %v891 = vpack.c.b16 %v889, %v888
      %894 = vmatprep.subr.bf16.mxu0 0
      %895 = vmatpush1.bf16.msra.mxu0 %v890
      %896 = vmatprep.subr.bf16.mxu0 0
      %897 = vmatpush1.bf16.msra.mxu0 %v891
      %898 = vmatprep.subr.bf16.mxu0 0
      %899 = vmatpush1.bf16.msra.mxu0 0
      %900 = vmatprep.subr.bf16.mxu0 0
      %901 = vmatpush1.bf16.msra.mxu0 0
      %902 = vmatprep.subr.bf16.mxu0 0
      %903 = vmatpush1.bf16.msra.mxu0 0
      %904 = vmatprep.subr.bf16.mxu0 0
      %905 = vmatpush1.bf16.msra.mxu0 0
      %906 = vmatprep.subr.bf16.mxu0 0
      %907 = vmatpush1.bf16.msra.mxu0 0
      %908 = vmatprep.subr.bf16.mxu0 0
      %909 = vmatpush1.bf16.msra.mxu0 0
      %910 = vmatprep.subr.bf16.mxu0 0
      %911 = vmatpush1.bf16.msra.mxu0 0
      %912 = vmatprep.subr.bf16.mxu0 0
      %913 = vmatpush1.bf16.msra.mxu0 0
      %914 = vmatprep.subr.bf16.mxu0 0
      %915 = vmatpush1.bf16.msra.mxu0 0
      %916 = vmatprep.subr.bf16.mxu0 0
      %917 = vmatpush1.bf16.msra.mxu0 0
      %918 = vmatprep.subr.bf16.mxu0 0
      %919 = vmatpush1.bf16.msra.mxu0 0
      %920 = vmatprep.subr.bf16.mxu0 0
      %921 = vmatpush1.bf16.msra.mxu0 0
      %922 = vmatprep.subr.bf16.mxu0 0
      %923 = vmatpush1.bf16.msra.mxu0 0
      %924 = vmatprep.subr.bf16.mxu0 0
      %925 = vmatpush1.bf16.msra.mxu0 0
      %926 = vmatprep.mubr.bf16.mxu0 0
      %927 = vmatmul.mubr.bf16.gmra.mrb[0].mxu0 %v572
      %v928 = vpop.f32.mrb[0].mxu0
      %v929 = vadd.f32 %v880, %v928
      %v930 = vpop.f32.mrb[0].mxu0
      %v931 = vpop.f32.mrb[0].mxu0
      %v932 = vadd.f32 %v880, %v931
      %v933 = vpop.f32.mrb[0].mxu0
      %934 = vdwg.mxu0
      %s935 = scalar_lea.vmem %s6, 16
      %v936 = vld [vmem:[%s935] sm:$0xf]
      %v937 = vld [vmem:[%s935 + $0x4] sm:$0xf]
      %v938 = vld [vmem:[%s935 + $0x8] sm:$0xf]
      %v939 = vld [vmem:[%s935 + $0xc] sm:$0xf]
      %s940 = scalar_lea.vmem %s7, 1
      %v941 = vld [vmem:[%s940] sm:$0x1]
      %v943 = vlaneseq
      %v944 = vshrl.u32 %v943, 7
      %v945 = vsub.s32 0, %v944
      %v946 = vrot.slane %v941, %v945
      %v952 = vunpack.c.l.b16 %v936
      %v953 = vunpack.c.l.b16 %v937
      %v954 = vunpack.c.l.b16 %v938
      %v955 = vunpack.c.l.b16 %v939
      %v956 = vpack.c.b16 %v953, %v952
      %v957 = vpack.c.b16 %v955, %v954
      %960 = vmatprep.subr.bf16.mxu0 0
      %961 = vmatpush1.bf16.msra.mxu0 %v956
      %962 = vmatprep.subr.bf16.mxu0 0
      %963 = vmatpush1.bf16.msra.mxu0 %v957
      %964 = vmatprep.subr.bf16.mxu0 0
      %965 = vmatpush1.bf16.msra.mxu0 0
      %966 = vmatprep.subr.bf16.mxu0 0
      %967 = vmatpush1.bf16.msra.mxu0 0
      %968 = vmatprep.subr.bf16.mxu0 0
      %969 = vmatpush1.bf16.msra.mxu0 0
      %970 = vmatprep.subr.bf16.mxu0 0
      %971 = vmatpush1.bf16.msra.mxu0 0
      %972 = vmatprep.subr.bf16.mxu0 0
      %973 = vmatpush1.bf16.msra.mxu0 0
      %974 = vmatprep.subr.bf16.mxu0 0
      %975 = vmatpush1.bf16.msra.mxu0 0
      %976 = vmatprep.subr.bf16.mxu0 0
      %977 = vmatpush1.bf16.msra.mxu0 0
      %978 = vmatprep.subr.bf16.mxu0 0
      %979 = vmatpush1.bf16.msra.mxu0 0
      %980 = vmatprep.subr.bf16.mxu0 0
      %981 = vmatpush1.bf16.msra.mxu0 0
      %982 = vmatprep.subr.bf16.mxu0 0
      %983 = vmatpush1.bf16.msra.mxu0 0
      %984 = vmatprep.subr.bf16.mxu0 0
      %985 = vmatpush1.bf16.msra.mxu0 0
      %986 = vmatprep.subr.bf16.mxu0 0
      %987 = vmatpush1.bf16.msra.mxu0 0
      %988 = vmatprep.subr.bf16.mxu0 0
      %989 = vmatpush1.bf16.msra.mxu0 0
      %990 = vmatprep.subr.bf16.mxu0 0
      %991 = vmatpush1.bf16.msra.mxu0 0
      %992 = vmatprep.mubr.bf16.mxu0 0
      %993 = vmatmul.mubr.bf16.gmra.mrb[0].mxu0 %v572
      %v994 = vpop.f32.mrb[0].mxu0
      %v995 = vadd.f32 %v946, %v994
      %v996 = vpop.f32.mrb[0].mxu0
      %v997 = vpop.f32.mrb[0].mxu0
      %v998 = vadd.f32 %v946, %v997
      %v999 = vpop.f32.mrb[0].mxu0
      %1000 = vdwg.mxu0
      %v1001 = vpack.c.bf16 %v866, %v863
      %v1002 = vpack.c.bf16 %v932, %v929
      %v1004 = vsel %vm681, %v1001, 0
      %v1007 = vsel %vm681, %v1002, 0
      %1009 = vmatprep.subr.bf16.mxu0 0
      %1010 = vmatpush1.bf16.xpose.msra.mxu0 %v1007
      %1011 = vmatprep.subr.bf16.mxu0 0
      %1012 = vmatpush1.bf16.xpose.msra.mxu0 0
      %1013 = vmatprep.subr.bf16.mxu0 0
      %1014 = vmatpush1.bf16.xpose.msra.mxu0 0
      %1015 = vmatprep.subr.bf16.mxu0 0
      %1016 = vmatpush1.bf16.xpose.msra.mxu0 0
      %1017 = vmatprep.subr.bf16.mxu0 0
      %1018 = vmatpush1.bf16.xpose.msra.mxu0 0
      %1019 = vmatprep.subr.bf16.mxu0 0
      %1020 = vmatpush1.bf16.xpose.msra.mxu0 0
      %1021 = vmatprep.subr.bf16.mxu0 0
      %1022 = vmatpush1.bf16.xpose.msra.mxu0 0
      %1023 = vmatprep.subr.bf16.mxu0 0
      %1024 = vmatpush1.bf16.xpose.msra.mxu0 0
      %1025 = vmatprep.subr.bf16.mxu0 0
      %1026 = vmatpush1.bf16.xpose.msra.mxu0 0
      %1027 = vmatprep.subr.bf16.mxu0 0
      %1028 = vmatpush1.bf16.xpose.msra.mxu0 0
      %1029 = vmatprep.subr.bf16.mxu0 0
      %1030 = vmatpush1.bf16.xpose.msra.mxu0 0
      %1031 = vmatprep.subr.bf16.mxu0 0
      %1032 = vmatpush1.bf16.xpose.msra.mxu0 0
      %1033 = vmatprep.subr.bf16.mxu0 0
      %1034 = vmatpush1.bf16.xpose.msra.mxu0 0
      %1035 = vmatprep.subr.bf16.mxu0 0
      %1036 = vmatpush1.bf16.xpose.msra.mxu0 0
      %1037 = vmatprep.subr.bf16.mxu0 0
      %1038 = vmatpush1.bf16.xpose.msra.mxu0 0
      %1039 = vmatprep.subr.bf16.mxu0 0
      %1040 = vmatpush1.bf16.xpose.msra.mxu0 0
      %1041 = vmatprep.mubr.bf16.mxu0 0
      %1042 = vmatmul.mubr.bf16.gmra.mrb[0].mxu0 %v1004
      %v1043 = vpop.f32.mrb[0].mxu0
      %v1044 = vadd.f32 0.0, %v1043
      %v1045 = vpop.f32.mrb[0].mxu0
      %v1046 = vpop.f32.mrb[0].mxu0
      %v1047 = vadd.f32 0.0, %v1046
      %v1048 = vpop.f32.mrb[0].mxu0
      %1049 = vdwg.mxu0
      %v1050 = vsel %vm729, %v1044, -inf
      %1051 = vmax.xlane.f32.xlu0 %v1050
      %v1052 = vpop.xlane.xlu0 %1051
      %v1053 = vsel %vm733, %v1047, -inf
      %1054 = vmax.xlane.f32.xlu0 %v1053
      %v1055 = vpop.xlane.xlu0 %1054
      %v1056 = vsub.f32 %v1044, %v1052
      %v1057 = vsub.f32 %v1047, %v1055
      %v1058 = vmul.f32 %v1056, 1.442695
      %v1059 = vpow.pop %v1058
      %v1060 = vmul.f32 %v1057, 1.442695
      %v1061 = vpow.pop %v1060
      %v1062 = vsel %vm729, %v1059, 0.0
      %1063 = vadd.xlane.f32.xlu0 %v1062
      %v1064 = vpop.xlane.xlu0 %1063
      %v1065 = vsel %vm733, %v1061, 0.0
      %1066 = vadd.xlane.f32.xlu0 %v1065
      %v1067 = vpop.xlane.xlu0 %1066
      %v1068 = vrcp.pop %v1064
      %v1069 = vmul.f32 %v1059, %v1068
      %v1070 = vrcp.pop %v1067
      %v1071 = vmul.f32 %v1061, %v1070
      %v1072 = vpack.c.bf16 %v1071, %v1069
      %v1073 = vpack.c.bf16 %v998, %v995
      %v1075 = vsel %vm729, %v1072, 0
      %v1078 = vsel %vm758, %v1073, 0
      %1080 = vmatprep.subr.bf16.mxu0 0
      %1081 = vmatpush1.bf16.msra.mxu0 %v1078
      %1082 = vmatprep.subr.bf16.mxu0 0
      %1083 = vmatpush1.bf16.msra.mxu0 0
      %1084 = vmatprep.subr.bf16.mxu0 0
      %1085 = vmatpush1.bf16.msra.mxu0 0
      %1086 = vmatprep.subr.bf16.mxu0 0
      %1087 = vmatpush1.bf16.msra.mxu0 0
      %1088 = vmatprep.subr.bf16.mxu0 0
      %1089 = vmatpush1.bf16.msra.mxu0 0
      %1090 = vmatprep.subr.bf16.mxu0 0
      %1091 = vmatpush1.bf16.msra.mxu0 0
      %1092 = vmatprep.subr.bf16.mxu0 0
      %1093 = vmatpush1.bf16.msra.mxu0 0
      %1094 = vmatprep.subr.bf16.mxu0 0
      %1095 = vmatpush1.bf16.msra.mxu0 0
      %1096 = vmatprep.subr.bf16.mxu0 0
      %1097 = vmatpush1.bf16.msra.mxu0 0
      %1098 = vmatprep.subr.bf16.mxu0 0
      %1099 = vmatpush1.bf16.msra.mxu0 0
      %1100 = vmatprep.subr.bf16.mxu0 0
      %1101 = vmatpush1.bf16.msra.mxu0 0
      %1102 = vmatprep.subr.bf16.mxu0 0
      %1103 = vmatpush1.bf16.msra.mxu0 0
      %1104 = vmatprep.subr.bf16.mxu0 0
      %1105 = vmatpush1.bf16.msra.mxu0 0
      %1106 = vmatprep.subr.bf16.mxu0 0
      %1107 = vmatpush1.bf16.msra.mxu0 0
      %1108 = vmatprep.subr.bf16.mxu0 0
      %1109 = vmatpush1.bf16.msra.mxu0 0
      %1110 = vmatprep.subr.bf16.mxu0 0
      %1111 = vmatpush1.bf16.msra.mxu0 0
      %1112 = vmatprep.mubr.bf16.mxu0 0
      %1113 = vmatmul.mubr.bf16.gmra.mrb[0].mxu0 %v1075
      %v1114 = vpop.f32.mrb[0].mxu0
      %v1115 = vadd.f32 0.0, %v1114
      %v1116 = vpop.f32.mrb[0].mxu0
      %v1117 = vpop.f32.mrb[0].mxu0
      %v1118 = vadd.f32 0.0, %v1117
      %v1119 = vpop.f32.mrb[0].mxu0
      %1120 = vdwg.mxu0
      %s1121 = scalar_lea.vmem %s2, 32
      %v1122 = vld [vmem:[%s1121] sm:$0xf]
      %v1123 = vld [vmem:[%s1121 + $0x4] sm:$0xf]
      %v1124 = vld [vmem:[%s1121 + $0x8] sm:$0xf]
      %v1125 = vld [vmem:[%s1121 + $0xc] sm:$0xf]
      %s1126 = scalar_lea.vmem %s3, 2
      %v1127 = vld [vmem:[%s1126] sm:$0x1]
      %v1129 = vlaneseq
      %v1130 = vshrl.u32 %v1129, 7
      %v1131 = vsub.s32 0, %v1130
      %v1132 = vrot.slane %v1127, %v1131
      %v1138 = vunpack.c.l.b16 %v1122
      %v1139 = vunpack.c.l.b16 %v1123
      %v1140 = vunpack.c.l.b16 %v1124
      %v1141 = vunpack.c.l.b16 %v1125
      %v1142 = vpack.c.b16 %v1139, %v1138
      %v1143 = vpack.c.b16 %v1141, %v1140
      %1146 = vmatprep.subr.bf16.mxu0 0
      %1147 = vmatpush1.bf16.msra.mxu0 %v1142
      %1148 = vmatprep.subr.bf16.mxu0 0
      %1149 = vmatpush1.bf16.msra.mxu0 %v1143
      %1150 = vmatprep.subr.bf16.mxu0 0
      %1151 = vmatpush1.bf16.msra.mxu0 0
      %1152 = vmatprep.subr.bf16.mxu0 0
      %1153 = vmatpush1.bf16.msra.mxu0 0
      %1154 = vmatprep.subr.bf16.mxu0 0
      %1155 = vmatpush1.bf16.msra.mxu0 0
      %1156 = vmatprep.subr.bf16.mxu0 0
      %1157 = vmatpush1.bf16.msra.mxu0 0
      %1158 = vmatprep.subr.bf16.mxu0 0
      %1159 = vmatpush1.bf16.msra.mxu0 0
      %1160 = vmatprep.subr.bf16.mxu0 0
      %1161 = vmatpush1.bf16.msra.mxu0 0
      %1162 = vmatprep.subr.bf16.mxu0 0
      %1163 = vmatpush1.bf16.msra.mxu0 0
      %1164 = vmatprep.subr.bf16.mxu0 0
      %1165 = vmatpush1.bf16.msra.mxu0 0
      %1166 = vmatprep.subr.bf16.mxu0 0
      %1167 = vmatpush1.bf16.msra.mxu0 0
      %1168 = vmatprep.subr.bf16.mxu0 0
      %1169 = vmatpush1.bf16.msra.mxu0 0
      %1170 = vmatprep.subr.bf16.mxu0 0
      %1171 = vmatpush1.bf16.msra.mxu0 0
      %1172 = vmatprep.subr.bf16.mxu0 0
      %1173 = vmatpush1.bf16.msra.mxu0 0
      %1174 = vmatprep.subr.bf16.mxu0 0
      %1175 = vmatpush1.bf16.msra.mxu0 0
      %1176 = vmatprep.subr.bf16.mxu0 0
      %1177 = vmatpush1.bf16.msra.mxu0 0
      %1178 = vmatprep.mubr.bf16.mxu0 0
      %1179 = vmatmul.mubr.bf16.gmra.mrb[0].mxu0 %v505
      %v1180 = vpop.f32.mrb[0].mxu0
      %v1181 = vadd.f32 %v1132, %v1180
      %v1182 = vpop.f32.mrb[0].mxu0
      %v1183 = vpop.f32.mrb[0].mxu0
      %v1184 = vadd.f32 %v1132, %v1183
      %v1185 = vpop.f32.mrb[0].mxu0
      %1186 = vdwg.mxu0
      %s1187 = scalar_lea.vmem %s4, 32
      %v1188 = vld [vmem:[%s1187] sm:$0xf]
      %v1189 = vld [vmem:[%s1187 + $0x4] sm:$0xf]
      %v1190 = vld [vmem:[%s1187 + $0x8] sm:$0xf]
      %v1191 = vld [vmem:[%s1187 + $0xc] sm:$0xf]
      %s1192 = scalar_lea.vmem %s5, 2
      %v1193 = vld [vmem:[%s1192] sm:$0x1]
      %v1195 = vlaneseq
      %v1196 = vshrl.u32 %v1195, 7
      %v1197 = vsub.s32 0, %v1196
      %v1198 = vrot.slane %v1193, %v1197
      %v1204 = vunpack.c.l.b16 %v1188
      %v1205 = vunpack.c.l.b16 %v1189
      %v1206 = vunpack.c.l.b16 %v1190
      %v1207 = vunpack.c.l.b16 %v1191
      %v1208 = vpack.c.b16 %v1205, %v1204
      %v1209 = vpack.c.b16 %v1207, %v1206
      %1212 = vmatprep.subr.bf16.mxu0 0
      %1213 = vmatpush1.bf16.msra.mxu0 %v1208
      %1214 = vmatprep.subr.bf16.mxu0 0
      %1215 = vmatpush1.bf16.msra.mxu0 %v1209
      %1216 = vmatprep.subr.bf16.mxu0 0
      %1217 = vmatpush1.bf16.msra.mxu0 0
      %1218 = vmatprep.subr.bf16.mxu0 0
      %1219 = vmatpush1.bf16.msra.mxu0 0
      %1220 = vmatprep.subr.bf16.mxu0 0
      %1221 = vmatpush1.bf16.msra.mxu0 0
      %1222 = vmatprep.subr.bf16.mxu0 0
      %1223 = vmatpush1.bf16.msra.mxu0 0
      %1224 = vmatprep.subr.bf16.mxu0 0
      %1225 = vmatpush1.bf16.msra.mxu0 0
      %1226 = vmatprep.subr.bf16.mxu0 0
      %1227 = vmatpush1.bf16.msra.mxu0 0
      %1228 = vmatprep.subr.bf16.mxu0 0
      %1229 = vmatpush1.bf16.msra.mxu0 0
      %1230 = vmatprep.subr.bf16.mxu0 0
      %1231 = vmatpush1.bf16.msra.mxu0 0
      %1232 = vmatprep.subr.bf16.mxu0 0
      %1233 = vmatpush1.bf16.msra.mxu0 0
      %1234 = vmatprep.subr.bf16.mxu0 0
      %1235 = vmatpush1.bf16.msra.mxu0 0
      %1236 = vmatprep.subr.bf16.mxu0 0
      %1237 = vmatpush1.bf16.msra.mxu0 0
      %1238 = vmatprep.subr.bf16.mxu0 0
      %1239 = vmatpush1.bf16.msra.mxu0 0
      %1240 = vmatprep.subr.bf16.mxu0 0
      %1241 = vmatpush1.bf16.msra.mxu0 0
      %1242 = vmatprep.subr.bf16.mxu0 0
      %1243 = vmatpush1.bf16.msra.mxu0 0
      %1244 = vmatprep.mubr.bf16.mxu0 0
      %1245 = vmatmul.mubr.bf16.gmra.mrb[0].mxu0 %v572
      %v1246 = vpop.f32.mrb[0].mxu0
      %v1247 = vadd.f32 %v1198, %v1246
      %v1248 = vpop.f32.mrb[0].mxu0
      %v1249 = vpop.f32.mrb[0].mxu0
      %v1250 = vadd.f32 %v1198, %v1249
      %v1251 = vpop.f32.mrb[0].mxu0
      %1252 = vdwg.mxu0
      %s1253 = scalar_lea.vmem %s6, 32
      %v1254 = vld [vmem:[%s1253] sm:$0xf]
      %v1255 = vld [vmem:[%s1253 + $0x4] sm:$0xf]
      %v1256 = vld [vmem:[%s1253 + $0x8] sm:$0xf]
      %v1257 = vld [vmem:[%s1253 + $0xc] sm:$0xf]
      %s1258 = scalar_lea.vmem %s7, 2
      %v1259 = vld [vmem:[%s1258] sm:$0x1]
      %v1261 = vlaneseq
      %v1262 = vshrl.u32 %v1261, 7
      %v1263 = vsub.s32 0, %v1262
      %v1264 = vrot.slane %v1259, %v1263
      %v1270 = vunpack.c.l.b16 %v1254
      %v1271 = vunpack.c.l.b16 %v1255
      %v1272 = vunpack.c.l.b16 %v1256
      %v1273 = vunpack.c.l.b16 %v1257
      %v1274 = vpack.c.b16 %v1271, %v1270
      %v1275 = vpack.c.b16 %v1273, %v1272
      %1278 = vmatprep.subr.bf16.mxu0 0
      %1279 = vmatpush1.bf16.msra.mxu0 %v1274
      %1280 = vmatprep.subr.bf16.mxu0 0
      %1281 = vmatpush1.bf16.msra.mxu0 %v1275
      %1282 = vmatprep.subr.bf16.mxu0 0
      %1283 = vmatpush1.bf16.msra.mxu0 0
      %1284 = vmatprep.subr.bf16.mxu0 0
      %1285 = vmatpush1.bf16.msra.mxu0 0
      %1286 = vmatprep.subr.bf16.mxu0 0
      %1287 = vmatpush1.bf16.msra.mxu0 0
      %1288 = vmatprep.subr.bf16.mxu0 0
      %1289 = vmatpush1.bf16.msra.mxu0 0
      %1290 = vmatprep.subr.bf16.mxu0 0
      %1291 = vmatpush1.bf16.msra.mxu0 0
      %1292 = vmatprep.subr.bf16.mxu0 0
      %1293 = vmatpush1.bf16.msra.mxu0 0
      %1294 = vmatprep.subr.bf16.mxu0 0
      %1295 = vmatpush1.bf16.msra.mxu0 0
      %1296 = vmatprep.subr.bf16.mxu0 0
      %1297 = vmatpush1.bf16.msra.mxu0 0
      %1298 = vmatprep.subr.bf16.mxu0 0
      %1299 = vmatpush1.bf16.msra.mxu0 0
      %1300 = vmatprep.subr.bf16.mxu0 0
      %1301 = vmatpush1.bf16.msra.mxu0 0
      %1302 = vmatprep.subr.bf16.mxu0 0
      %1303 = vmatpush1.bf16.msra.mxu0 0
      %1304 = vmatprep.subr.bf16.mxu0 0
      %1305 = vmatpush1.bf16.msra.mxu0 0
      %1306 = vmatprep.subr.bf16.mxu0 0
      %1307 = vmatpush1.bf16.msra.mxu0 0
      %1308 = vmatprep.subr.bf16.mxu0 0
      %1309 = vmatpush1.bf16.msra.mxu0 0
      %1310 = vmatprep.mubr.bf16.mxu0 0
      %1311 = vmatmul.mubr.bf16.gmra.mrb[0].mxu0 %v572
      %v1312 = vpop.f32.mrb[0].mxu0
      %v1313 = vadd.f32 %v1264, %v1312
      %v1314 = vpop.f32.mrb[0].mxu0
      %v1315 = vpop.f32.mrb[0].mxu0
      %v1316 = vadd.f32 %v1264, %v1315
      %v1317 = vpop.f32.mrb[0].mxu0
      %1318 = vdwg.mxu0
      %v1319 = vpack.c.bf16 %v1184, %v1181
      %v1320 = vpack.c.bf16 %v1250, %v1247
      %v1322 = vsel %vm681, %v1319, 0
      %v1325 = vsel %vm681, %v1320, 0
      %1327 = vmatprep.subr.bf16.mxu0 0
      %1328 = vmatpush1.bf16.xpose.msra.mxu0 %v1325
      %1329 = vmatprep.subr.bf16.mxu0 0
      %1330 = vmatpush1.bf16.xpose.msra.mxu0 0
      %1331 = vmatprep.subr.bf16.mxu0 0
      %1332 = vmatpush1.bf16.xpose.msra.mxu0 0
      %1333 = vmatprep.subr.bf16.mxu0 0
      %1334 = vmatpush1.bf16.xpose.msra.mxu0 0
      %1335 = vmatprep.subr.bf16.mxu0 0
      %1336 = vmatpush1.bf16.xpose.msra.mxu0 0
      %1337 = vmatprep.subr.bf16.mxu0 0
      %1338 = vmatpush1.bf16.xpose.msra.mxu0 0
      %1339 = vmatprep.subr.bf16.mxu0 0
      %1340 = vmatpush1.bf16.xpose.msra.mxu0 0
      %1341 = vmatprep.subr.bf16.mxu0 0
      %1342 = vmatpush1.bf16.xpose.msra.mxu0 0
      %1343 = vmatprep.subr.bf16.mxu0 0
      %1344 = vmatpush1.bf16.xpose.msra.mxu0 0
      %1345 = vmatprep.subr.bf16.mxu0 0
      %1346 = vmatpush1.bf16.xpose.msra.mxu0 0
      %1347 = vmatprep.subr.bf16.mxu0 0
      %1348 = vmatpush1.bf16.xpose.msra.mxu0 0
      %1349 = vmatprep.subr.bf16.mxu0 0
      %1350 = vmatpush1.bf16.xpose.msra.mxu0 0
      %1351 = vmatprep.subr.bf16.mxu0 0
      %1352 = vmatpush1.bf16.xpose.msra.mxu0 0
      %1353 = vmatprep.subr.bf16.mxu0 0
      %1354 = vmatpush1.bf16.xpose.msra.mxu0 0
      %1355 = vmatprep.subr.bf16.mxu0 0
      %1356 = vmatpush1.bf16.xpose.msra.mxu0 0
      %1357 = vmatprep.subr.bf16.mxu0 0
      %1358 = vmatpush1.bf16.xpose.msra.mxu0 0
      %1359 = vmatprep.mubr.bf16.mxu0 0
      %1360 = vmatmul.mubr.bf16.gmra.mrb[0].mxu0 %v1322
      %v1361 = vpop.f32.mrb[0].mxu0
      %v1362 = vadd.f32 0.0, %v1361
      %v1363 = vpop.f32.mrb[0].mxu0
      %v1364 = vpop.f32.mrb[0].mxu0
      %v1365 = vadd.f32 0.0, %v1364
      %v1366 = vpop.f32.mrb[0].mxu0
      %1367 = vdwg.mxu0
      %v1368 = vsel %vm729, %v1362, -inf
      %1369 = vmax.xlane.f32.xlu0 %v1368
      %v1370 = vpop.xlane.xlu0 %1369
      %v1371 = vsel %vm733, %v1365, -inf
      %1372 = vmax.xlane.f32.xlu0 %v1371
      %v1373 = vpop.xlane.xlu0 %1372
      %v1374 = vsub.f32 %v1362, %v1370
      %v1375 = vsub.f32 %v1365, %v1373
      %v1376 = vmul.f32 %v1374, 1.442695
      %v1377 = vpow.pop %v1376
      %v1378 = vmul.f32 %v1375, 1.442695
      %v1379 = vpow.pop %v1378
      %v1380 = vsel %vm729, %v1377, 0.0
      %1381 = vadd.xlane.f32.xlu0 %v1380
      %v1382 = vpop.xlane.xlu0 %1381
      %v1383 = vsel %vm733, %v1379, 0.0
      %1384 = vadd.xlane.f32.xlu0 %v1383
      %v1385 = vpop.xlane.xlu0 %1384
      %v1386 = vrcp.pop %v1382
      %v1387 = vmul.f32 %v1377, %v1386
      %v1388 = vrcp.pop %v1385
      %v1389 = vmul.f32 %v1379, %v1388
      %v1390 = vpack.c.bf16 %v1389, %v1387
      %v1391 = vpack.c.bf16 %v1316, %v1313
      %v1393 = vsel %vm729, %v1390, 0
      %v1396 = vsel %vm758, %v1391, 0
      %1398 = vmatprep.subr.bf16.mxu0 0
      %1399 = vmatpush1.bf16.msra.mxu0 %v1396
      %1400 = vmatprep.subr.bf16.mxu0 0
      %1401 = vmatpush1.bf16.msra.mxu0 0
      %1402 = vmatprep.subr.bf16.mxu0 0
      %1403 = vmatpush1.bf16.msra.mxu0 0
      %1404 = vmatprep.subr.bf16.mxu0 0
      %1405 = vmatpush1.bf16.msra.mxu0 0
      %1406 = vmatprep.subr.bf16.mxu0 0
      %1407 = vmatpush1.bf16.msra.mxu0 0
      %1408 = vmatprep.subr.bf16.mxu0 0
      %1409 = vmatpush1.bf16.msra.mxu0 0
      %1410 = vmatprep.subr.bf16.mxu0 0
      %1411 = vmatpush1.bf16.msra.mxu0 0
      %1412 = vmatprep.subr.bf16.mxu0 0
      %1413 = vmatpush1.bf16.msra.mxu0 0
      %1414 = vmatprep.subr.bf16.mxu0 0
      %1415 = vmatpush1.bf16.msra.mxu0 0
      %1416 = vmatprep.subr.bf16.mxu0 0
      %1417 = vmatpush1.bf16.msra.mxu0 0
      %1418 = vmatprep.subr.bf16.mxu0 0
      %1419 = vmatpush1.bf16.msra.mxu0 0
      %1420 = vmatprep.subr.bf16.mxu0 0
      %1421 = vmatpush1.bf16.msra.mxu0 0
      %1422 = vmatprep.subr.bf16.mxu0 0
      %1423 = vmatpush1.bf16.msra.mxu0 0
      %1424 = vmatprep.subr.bf16.mxu0 0
      %1425 = vmatpush1.bf16.msra.mxu0 0
      %1426 = vmatprep.subr.bf16.mxu0 0
      %1427 = vmatpush1.bf16.msra.mxu0 0
      %1428 = vmatprep.subr.bf16.mxu0 0
      %1429 = vmatpush1.bf16.msra.mxu0 0
      %1430 = vmatprep.mubr.bf16.mxu0 0
      %1431 = vmatmul.mubr.bf16.gmra.mrb[0].mxu0 %v1393
      %v1432 = vpop.f32.mrb[0].mxu0
      %v1433 = vadd.f32 0.0, %v1432
      %v1434 = vpop.f32.mrb[0].mxu0
      %v1435 = vpop.f32.mrb[0].mxu0
      %v1436 = vadd.f32 0.0, %v1435
      %v1437 = vpop.f32.mrb[0].mxu0
      %1438 = vdwg.mxu0
      %s1439 = scalar_lea.vmem %s2, 48
      %v1440 = vld [vmem:[%s1439] sm:$0xf]
      %v1441 = vld [vmem:[%s1439 + $0x4] sm:$0xf]
      %v1442 = vld [vmem:[%s1439 + $0x8] sm:$0xf]
      %v1443 = vld [vmem:[%s1439 + $0xc] sm:$0xf]
      %s1444 = scalar_lea.vmem %s3, 3
      %v1445 = vld [vmem:[%s1444] sm:$0x1]
      %v1447 = vlaneseq
      %v1448 = vshrl.u32 %v1447, 7
      %v1449 = vsub.s32 0, %v1448
      %v1450 = vrot.slane %v1445, %v1449
      %v1456 = vunpack.c.l.b16 %v1440
      %v1457 = vunpack.c.l.b16 %v1441
      %v1458 = vunpack.c.l.b16 %v1442
      %v1459 = vunpack.c.l.b16 %v1443
      %v1460 = vpack.c.b16 %v1457, %v1456
      %v1461 = vpack.c.b16 %v1459, %v1458
      %1464 = vmatprep.subr.bf16.mxu0 0
      %1465 = vmatpush1.bf16.msra.mxu0 %v1460
      %1466 = vmatprep.subr.bf16.mxu0 0
      %1467 = vmatpush1.bf16.msra.mxu0 %v1461
      %1468 = vmatprep.subr.bf16.mxu0 0
      %1469 = vmatpush1.bf16.msra.mxu0 0
      %1470 = vmatprep.subr.bf16.mxu0 0
      %1471 = vmatpush1.bf16.msra.mxu0 0
      %1472 = vmatprep.subr.bf16.mxu0 0
      %1473 = vmatpush1.bf16.msra.mxu0 0
      %1474 = vmatprep.subr.bf16.mxu0 0
      %1475 = vmatpush1.bf16.msra.mxu0 0
      %1476 = vmatprep.subr.bf16.mxu0 0
      %1477 = vmatpush1.bf16.msra.mxu0 0
      %1478 = vmatprep.subr.bf16.mxu0 0
      %1479 = vmatpush1.bf16.msra.mxu0 0
      %1480 = vmatprep.subr.bf16.mxu0 0
      %1481 = vmatpush1.bf16.msra.mxu0 0
      %1482 = vmatprep.subr.bf16.mxu0 0
      %1483 = vmatpush1.bf16.msra.mxu0 0
      %1484 = vmatprep.subr.bf16.mxu0 0
      %1485 = vmatpush1.bf16.msra.mxu0 0
      %1486 = vmatprep.subr.bf16.mxu0 0
      %1487 = vmatpush1.bf16.msra.mxu0 0
      %1488 = vmatprep.subr.bf16.mxu0 0
      %1489 = vmatpush1.bf16.msra.mxu0 0
      %1490 = vmatprep.subr.bf16.mxu0 0
      %1491 = vmatpush1.bf16.msra.mxu0 0
      %1492 = vmatprep.subr.bf16.mxu0 0
      %1493 = vmatpush1.bf16.msra.mxu0 0
      %1494 = vmatprep.subr.bf16.mxu0 0
      %1495 = vmatpush1.bf16.msra.mxu0 0
      %1496 = vmatprep.mubr.bf16.mxu0 0
      %1497 = vmatmul.mubr.bf16.gmra.mrb[0].mxu0 %v505
      %v1498 = vpop.f32.mrb[0].mxu0
      %v1499 = vadd.f32 %v1450, %v1498
      %v1500 = vpop.f32.mrb[0].mxu0
      %v1501 = vpop.f32.mrb[0].mxu0
      %v1502 = vadd.f32 %v1450, %v1501
      %v1503 = vpop.f32.mrb[0].mxu0
      %1504 = vdwg.mxu0
      %s1505 = scalar_lea.vmem %s4, 48
      %v1506 = vld [vmem:[%s1505] sm:$0xf]
      %v1507 = vld [vmem:[%s1505 + $0x4] sm:$0xf]
      %v1508 = vld [vmem:[%s1505 + $0x8] sm:$0xf]
      %v1509 = vld [vmem:[%s1505 + $0xc] sm:$0xf]
      %s1510 = scalar_lea.vmem %s5, 3
      %v1511 = vld [vmem:[%s1510] sm:$0x1]
      %v1513 = vlaneseq
      %v1514 = vshrl.u32 %v1513, 7
      %v1515 = vsub.s32 0, %v1514
      %v1516 = vrot.slane %v1511, %v1515
      %v1522 = vunpack.c.l.b16 %v1506
      %v1523 = vunpack.c.l.b16 %v1507
      %v1524 = vunpack.c.l.b16 %v1508
      %v1525 = vunpack.c.l.b16 %v1509
      %v1526 = vpack.c.b16 %v1523, %v1522
      %v1527 = vpack.c.b16 %v1525, %v1524
      %1530 = vmatprep.subr.bf16.mxu0 0
      %1531 = vmatpush1.bf16.msra.mxu0 %v1526
      %1532 = vmatprep.subr.bf16.mxu0 0
      %1533 = vmatpush1.bf16.msra.mxu0 %v1527
      %1534 = vmatprep.subr.bf16.mxu0 0
      %1535 = vmatpush1.bf16.msra.mxu0 0
      %1536 = vmatprep.subr.bf16.mxu0 0
      %1537 = vmatpush1.bf16.msra.mxu0 0
      %1538 = vmatprep.subr.bf16.mxu0 0
      %1539 = vmatpush1.bf16.msra.mxu0 0
      %1540 = vmatprep.subr.bf16.mxu0 0
      %1541 = vmatpush1.bf16.msra.mxu0 0
      %1542 = vmatprep.subr.bf16.mxu0 0
      %1543 = vmatpush1.bf16.msra.mxu0 0
      %1544 = vmatprep.subr.bf16.mxu0 0
      %1545 = vmatpush1.bf16.msra.mxu0 0
      %1546 = vmatprep.subr.bf16.mxu0 0
      %1547 = vmatpush1.bf16.msra.mxu0 0
      %1548 = vmatprep.subr.bf16.mxu0 0
      %1549 = vmatpush1.bf16.msra.mxu0 0
      %1550 = vmatprep.subr.bf16.mxu0 0
      %1551 = vmatpush1.bf16.msra.mxu0 0
      %1552 = vmatprep.subr.bf16.mxu0 0
      %1553 = vmatpush1.bf16.msra.mxu0 0
      %1554 = vmatprep.subr.bf16.mxu0 0
      %1555 = vmatpush1.bf16.msra.mxu0 0
      %1556 = vmatprep.subr.bf16.mxu0 0
      %1557 = vmatpush1.bf16.msra.mxu0 0
      %1558 = vmatprep.subr.bf16.mxu0 0
      %1559 = vmatpush1.bf16.msra.mxu0 0
      %1560 = vmatprep.subr.bf16.mxu0 0
      %1561 = vmatpush1.bf16.msra.mxu0 0
      %1562 = vmatprep.mubr.bf16.mxu0 0
      %1563 = vmatmul.mubr.bf16.gmra.mrb[0].mxu0 %v572
      %v1564 = vpop.f32.mrb[0].mxu0
      %v1565 = vadd.f32 %v1516, %v1564
      %v1566 = vpop.f32.mrb[0].mxu0
      %v1567 = vpop.f32.mrb[0].mxu0
      %v1568 = vadd.f32 %v1516, %v1567
      %v1569 = vpop.f32.mrb[0].mxu0
      %1570 = vdwg.mxu0
      %s1571 = scalar_lea.vmem %s6, 48
      %v1572 = vld [vmem:[%s1571] sm:$0xf]
      %v1573 = vld [vmem:[%s1571 + $0x4] sm:$0xf]
      %v1574 = vld [vmem:[%s1571 + $0x8] sm:$0xf]
      %v1575 = vld [vmem:[%s1571 + $0xc] sm:$0xf]
      %s1576 = scalar_lea.vmem %s7, 3
      %v1577 = vld [vmem:[%s1576] sm:$0x1]
      %v1579 = vlaneseq
      %v1580 = vshrl.u32 %v1579, 7
      %v1581 = vsub.s32 0, %v1580
      %v1582 = vrot.slane %v1577, %v1581
      %v1588 = vunpack.c.l.b16 %v1572
      %v1589 = vunpack.c.l.b16 %v1573
      %v1590 = vunpack.c.l.b16 %v1574
      %v1591 = vunpack.c.l.b16 %v1575
      %v1592 = vpack.c.b16 %v1589, %v1588
      %v1593 = vpack.c.b16 %v1591, %v1590
      %1596 = vmatprep.subr.bf16.mxu0 0
      %1597 = vmatpush1.bf16.msra.mxu0 %v1592
      %1598 = vmatprep.subr.bf16.mxu0 0
      %1599 = vmatpush1.bf16.msra.mxu0 %v1593
      %1600 = vmatprep.subr.bf16.mxu0 0
      %1601 = vmatpush1.bf16.msra.mxu0 0
      %1602 = vmatprep.subr.bf16.mxu0 0
      %1603 = vmatpush1.bf16.msra.mxu0 0
      %1604 = vmatprep.subr.bf16.mxu0 0
      %1605 = vmatpush1.bf16.msra.mxu0 0
      %1606 = vmatprep.subr.bf16.mxu0 0
      %1607 = vmatpush1.bf16.msra.mxu0 0
      %1608 = vmatprep.subr.bf16.mxu0 0
      %1609 = vmatpush1.bf16.msra.mxu0 0
      %1610 = vmatprep.subr.bf16.mxu0 0
      %1611 = vmatpush1.bf16.msra.mxu0 0
      %1612 = vmatprep.subr.bf16.mxu0 0
      %1613 = vmatpush1.bf16.msra.mxu0 0
      %1614 = vmatprep.subr.bf16.mxu0 0
      %1615 = vmatpush1.bf16.msra.mxu0 0
      %1616 = vmatprep.subr.bf16.mxu0 0
      %1617 = vmatpush1.bf16.msra.mxu0 0
      %1618 = vmatprep.subr.bf16.mxu0 0
      %1619 = vmatpush1.bf16.msra.mxu0 0
      %1620 = vmatprep.subr.bf16.mxu0 0
      %1621 = vmatpush1.bf16.msra.mxu0 0
      %1622 = vmatprep.subr.bf16.mxu0 0
      %1623 = vmatpush1.bf16.msra.mxu0 0
      %1624 = vmatprep.subr.bf16.mxu0 0
      %1625 = vmatpush1.bf16.msra.mxu0 0
      %1626 = vmatprep.subr.bf16.mxu0 0
      %1627 = vmatpush1.bf16.msra.mxu0 0
      %1628 = vmatprep.mubr.bf16.mxu0 0
      %1629 = vmatmul.mubr.bf16.gmra.mrb[0].mxu0 %v572
      %v1630 = vpop.f32.mrb[0].mxu0
      %v1631 = vadd.f32 %v1582, %v1630
      %v1632 = vpop.f32.mrb[0].mxu0
      %v1633 = vpop.f32.mrb[0].mxu0
      %v1634 = vadd.f32 %v1582, %v1633
      %v1635 = vpop.f32.mrb[0].mxu0
      %1636 = vdwg.mxu0
      %v1637 = vpack.c.bf16 %v1502, %v1499
      %v1638 = vpack.c.bf16 %v1568, %v1565
      %v1640 = vsel %vm681, %v1637, 0
      %v1643 = vsel %vm681, %v1638, 0
      %1645 = vmatprep.subr.bf16.mxu0 0
      %1646 = vmatpush1.bf16.xpose.msra.mxu0 %v1643
      %1647 = vmatprep.subr.bf16.mxu0 0
      %1648 = vmatpush1.bf16.xpose.msra.mxu0 0
      %1649 = vmatprep.subr.bf16.mxu0 0
      %1650 = vmatpush1.bf16.xpose.msra.mxu0 0
      %1651 = vmatprep.subr.bf16.mxu0 0
      %1652 = vmatpush1.bf16.xpose.msra.mxu0 0
      %1653 = vmatprep.subr.bf16.mxu0 0
      %1654 = vmatpush1.bf16.xpose.msra.mxu0 0
      %1655 = vmatprep.subr.bf16.mxu0 0
      %1656 = vmatpush1.bf16.xpose.msra.mxu0 0
      %1657 = vmatprep.subr.bf16.mxu0 0
      %1658 = vmatpush1.bf16.xpose.msra.mxu0 0
      %1659 = vmatprep.subr.bf16.mxu0 0
      %1660 = vmatpush1.bf16.xpose.msra.mxu0 0
      %1661 = vmatprep.subr.bf16.mxu0 0
      %1662 = vmatpush1.bf16.xpose.msra.mxu0 0
      %1663 = vmatprep.subr.bf16.mxu0 0
      %1664 = vmatpush1.bf16.xpose.msra.mxu0 0
      %1665 = vmatprep.subr.bf16.mxu0 0
      %1666 = vmatpush1.bf16.xpose.msra.mxu0 0
      %1667 = vmatprep.subr.bf16.mxu0 0
      %1668 = vmatpush1.bf16.xpose.msra.mxu0 0
      %1669 = vmatprep.subr.bf16.mxu0 0
      %1670 = vmatpush1.bf16.xpose.msra.mxu0 0
      %1671 = vmatprep.subr.bf16.mxu0 0
      %1672 = vmatpush1.bf16.xpose.msra.mxu0 0
      %1673 = vmatprep.subr.bf16.mxu0 0
      %1674 = vmatpush1.bf16.xpose.msra.mxu0 0
      %1675 = vmatprep.subr.bf16.mxu0 0
      %1676 = vmatpush1.bf16.xpose.msra.mxu0 0
      %1677 = vmatprep.mubr.bf16.mxu0 0
      %1678 = vmatmul.mubr.bf16.gmra.mrb[0].mxu0 %v1640
      %v1679 = vpop.f32.mrb[0].mxu0
      %v1680 = vadd.f32 0.0, %v1679
      %v1681 = vpop.f32.mrb[0].mxu0
      %v1682 = vpop.f32.mrb[0].mxu0
      %v1683 = vadd.f32 0.0, %v1682
      %v1684 = vpop.f32.mrb[0].mxu0
      %1685 = vdwg.mxu0
      %v1686 = vsel %vm729, %v1680, -inf
      %1687 = vmax.xlane.f32.xlu0 %v1686
      %v1688 = vpop.xlane.xlu0 %1687
      %v1689 = vsel %vm733, %v1683, -inf
      %1690 = vmax.xlane.f32.xlu0 %v1689
      %v1691 = vpop.xlane.xlu0 %1690
      %v1692 = vsub.f32 %v1680, %v1688
      %v1693 = vsub.f32 %v1683, %v1691
      %v1694 = vmul.f32 %v1692, 1.442695
      %v1695 = vpow.pop %v1694
      %v1696 = vmul.f32 %v1693, 1.442695
      %v1697 = vpow.pop %v1696
      %v1698 = vsel %vm729, %v1695, 0.0
      %1699 = vadd.xlane.f32.xlu0 %v1698
      %v1700 = vpop.xlane.xlu0 %1699
      %v1701 = vsel %vm733, %v1697, 0.0
      %1702 = vadd.xlane.f32.xlu0 %v1701
      %v1703 = vpop.xlane.xlu0 %1702
      %v1704 = vrcp.pop %v1700
      %v1705 = vmul.f32 %v1695, %v1704
      %v1706 = vrcp.pop %v1703
      %v1707 = vmul.f32 %v1697, %v1706
      %v1708 = vpack.c.bf16 %v1707, %v1705
      %v1709 = vpack.c.bf16 %v1634, %v1631
      %v1711 = vsel %vm729, %v1708, 0
      %v1714 = vsel %vm758, %v1709, 0
      %1716 = vmatprep.subr.bf16.mxu0 0
      %1717 = vmatpush1.bf16.msra.mxu0 %v1714
      %1718 = vmatprep.subr.bf16.mxu0 0
      %1719 = vmatpush1.bf16.msra.mxu0 0
      %1720 = vmatprep.subr.bf16.mxu0 0
      %1721 = vmatpush1.bf16.msra.mxu0 0
      %1722 = vmatprep.subr.bf16.mxu0 0
      %1723 = vmatpush1.bf16.msra.mxu0 0
      %1724 = vmatprep.subr.bf16.mxu0 0
      %1725 = vmatpush1.bf16.msra.mxu0 0
      %1726 = vmatprep.subr.bf16.mxu0 0
      %1727 = vmatpush1.bf16.msra.mxu0 0
      %1728 = vmatprep.subr.bf16.mxu0 0
      %1729 = vmatpush1.bf16.msra.mxu0 0
      %1730 = vmatprep.subr.bf16.mxu0 0
      %1731 = vmatpush1.bf16.msra.mxu0 0
      %1732 = vmatprep.subr.bf16.mxu0 0
      %1733 = vmatpush1.bf16.msra.mxu0 0
      %1734 = vmatprep.subr.bf16.mxu0 0
      %1735 = vmatpush1.bf16.msra.mxu0 0
      %1736 = vmatprep.subr.bf16.mxu0 0
      %1737 = vmatpush1.bf16.msra.mxu0 0
      %1738 = vmatprep.subr.bf16.mxu0 0
      %1739 = vmatpush1.bf16.msra.mxu0 0
      %1740 = vmatprep.subr.bf16.mxu0 0
      %1741 = vmatpush1.bf16.msra.mxu0 0
      %1742 = vmatprep.subr.bf16.mxu0 0
      %1743 = vmatpush1.bf16.msra.mxu0 0
      %1744 = vmatprep.subr.bf16.mxu0 0
      %1745 = vmatpush1.bf16.msra.mxu0 0
      %1746 = vmatprep.subr.bf16.mxu0 0
      %1747 = vmatpush1.bf16.msra.mxu0 0
      %1748 = vmatprep.mubr.bf16.mxu0 0
      %1749 = vmatmul.mubr.bf16.gmra.mrb[0].mxu0 %v1711
      %v1750 = vpop.f32.mrb[0].mxu0
      %v1751 = vadd.f32 0.0, %v1750
      %v1752 = vpop.f32.mrb[0].mxu0
      %v1753 = vpop.f32.mrb[0].mxu0
      %v1754 = vadd.f32 0.0, %v1753
      %v1755 = vpop.f32.mrb[0].mxu0
      %1756 = vdwg.mxu0
      %1759 = vrot.lane.b32.xlu0 %v1115, 8
      %v1760 = vpop.permute.xlu0 %1759
      %1761 = vrot.lane.b32.xlu0 %v1118, 8
      %v1762 = vpop.permute.xlu0 %1761
      %1767 = vrot.lane.b32.xlu0 %v1433, 16
      %v1768 = vpop.permute.xlu0 %1767
      %1769 = vrot.lane.b32.xlu0 %v1436, 16
      %v1770 = vpop.permute.xlu0 %1769
      %1775 = vrot.lane.b32.xlu0 %v1751, 24
      %v1776 = vpop.permute.xlu0 %1775
      %1777 = vrot.lane.b32.xlu0 %v1754, 24
      %v1778 = vpop.permute.xlu0 %1777
      %v1781 = vsel %vm681, %v797, %v1760
      %v1782 = vsel %vm681, %v800, %v1762
      %vm1783 = vcmask 130048
      %v1784 = vsel %vm1783, %v1781, %v1768
      %v1785 = vsel %vm1783, %v1782, %v1770
      %vm1786 = vcmask 195584
      %v1787 = vsel %vm1786, %v1784, %v1776
      %v1788 = vsel %vm1786, %v1785, %v1778
      %v1789 = vpack.c.bf16 %v1788, %v1787
      %v1790 = vld [vmem:[%s8] sm:$0xf]
      %v1791 = vld [vmem:[%s8 + $0x4] sm:$0xf]
      %v1792 = vld [vmem:[%s8 + $0x8] sm:$0xf]
      %v1793 = vld [vmem:[%s8 + $0xc] sm:$0xf]
      %v1794 = vld [vmem:[%s9] sm:$0x1]
      %v1796 = vlaneseq
      %v1797 = vshrl.u32 %v1796, 7
      %v1798 = vsub.s32 0, %v1797
      %v1799 = vrot.slane %v1794, %v1798
      %v1805 = vunpack.c.l.b16 %v1790
      %v1806 = vunpack.c.l.b16 %v1791
      %v1807 = vunpack.c.l.b16 %v1792
      %v1808 = vunpack.c.l.b16 %v1793
      %v1809 = vpack.c.b16 %v1806, %v1805
      %v1810 = vpack.c.b16 %v1808, %v1807
      %v1814 = vsel %vm503, %v1789, 0
      %1816 = vmatprep.subr.bf16.mxu0 0
      %1817 = vmatpush1.bf16.msra.mxu0 %v1809
      %1818 = vmatprep.subr.bf16.mxu0 0
      %1819 = vmatpush1.bf16.msra.mxu0 %v1810
      %1820 = vmatprep.subr.bf16.mxu0 0
      %1821 = vmatpush1.bf16.msra.mxu0 0
      %1822 = vmatprep.subr.bf16.mxu0 0
      %1823 = vmatpush1.bf16.msra.mxu0 0
      %1824 = vmatprep.subr.bf16.mxu0 0
      %1825 = vmatpush1.bf16.msra.mxu0 0
      %1826 = vmatprep.subr.bf16.mxu0 0
      %1827 = vmatpush1.bf16.msra.mxu0 0
      %1828 = vmatprep.subr.bf16.mxu0 0
      %1829 = vmatpush1.bf16.msra.mxu0 0
      %1830 = vmatprep.subr.bf16.mxu0 0
      %1831 = vmatpush1.bf16.msra.mxu0 0
      %1832 = vmatprep.subr.bf16.mxu0 0
      %1833 = vmatpush1.bf16.msra.mxu0 0
      %1834 = vmatprep.subr.bf16.mxu0 0
      %1835 = vmatpush1.bf16.msra.mxu0 0
      %1836 = vmatprep.subr.bf16.mxu0 0
      %1837 = vmatpush1.bf16.msra.mxu0 0
      %1838 = vmatprep.subr.bf16.mxu0 0
      %1839 = vmatpush1.bf16.msra.mxu0 0
      %1840 = vmatprep.subr.bf16.mxu0 0
      %1841 = vmatpush1.bf16.msra.mxu0 0
      %1842 = vmatprep.subr.bf16.mxu0 0
      %1843 = vmatpush1.bf16.msra.mxu0 0
      %1844 = vmatprep.subr.bf16.mxu0 0
      %1845 = vmatpush1.bf16.msra.mxu0 0
      %1846 = vmatprep.subr.bf16.mxu0 0
      %1847 = vmatpush1.bf16.msra.mxu0 0
      %1848 = vmatprep.mubr.bf16.mxu0 0
      %1849 = vmatmul.mubr.bf16.gmra.mrb[0].mxu0 %v1814
      %v1850 = vpop.f32.mrb[0].mxu0
      %v1851 = vadd.f32 %v1799, %v1850
      %v1852 = vpop.f32.mrb[0].mxu0
      %v1853 = vpop.f32.mrb[0].mxu0
      %v1854 = vadd.f32 %v1799, %v1853
      %v1855 = vpop.f32.mrb[0].mxu0
      %1856 = vdwg.mxu0
      %v1857 = vadd.f32 %v474, %v1851
      %v1858 = vadd.f32 %v475, %v1854
      %v1859 = vld [vmem:[%s10] sm:$0x1]
      %v1860 = vld [vmem:[%s11] sm:$0x1]
      %v1861 = vsel %vm503, %v1857, 0.0
      %1862 = vadd.xlane.f32.xlu0 %v1861
      %v1863 = vpop.xlane.xlu0 %1862
      %vm1864 = vcmask 254976
      %v1865 = vsel %vm1864, %v1858, 0.0
      %1866 = vadd.xlane.f32.xlu0 %v1865
      %v1867 = vpop.xlane.xlu0 %1866
      %v1868 = vrcp.pop 32.0
      %v1869 = vmul.f32 %v1863, %v1868
      %v1870 = vmul.f32 %v1867, %v1868
      %v1871 = vsub.f32 %v1857, %v1869
      %v1872 = vsub.f32 %v1858, %v1870
      %v1873 = vmul.f32 %v1871, %v1871
      %v1874 = vmul.f32 %v1872, %v1872
      %v1875 = vsel %vm503, %v1873, 0.0
      %1876 = vadd.xlane.f32.xlu0 %v1875
      %v1877 = vpop.xlane.xlu0 %1876
      %v1878 = vsel %vm1864, %v1874, 0.0
      %1879 = vadd.xlane.f32.xlu0 %v1878
      %v1880 = vpop.xlane.xlu0 %1879
      %v1881 = vmul.f32 %v1877, %v1868
      %v1882 = vmul.f32 %v1880, %v1868
      %v1883 = vadd.f32 %v1881, 1e-05
      %v1884 = vadd.f32 %v1882, 1e-05
      %v1885 = vrsqrt.pop %v1883
      %v1886 = vrsqrt.pop %v1884
      %v1887 = vmul.f32 %v1871, %v1885
      %v1888 = vmul.f32 %v1872, %v1886
      %v1890 = vlaneseq
      %v1891 = vshrl.u32 %v1890, 7
      %v1892 = vsub.s32 0, %v1891
      %v1893 = vrot.slane %v1859, %v1892
      %v1895 = vmul.f32 %v1887, %v1893
      %v1896 = vmul.f32 %v1888, %v1893
      %v1898 = vlaneseq
      %v1899 = vshrl.u32 %v1898, 7
      %v1900 = vsub.s32 0, %v1899
      %v1901 = vrot.slane %v1860, %v1900
      %v1903 = vadd.f32 %v1895, %v1901
      %v1904 = vadd.f32 %v1896, %v1901
      %1905 = vst.msk [vmem:[%s471] sm:$0xff] %vm503, %v1903
      %1906 = vst.msk [vmem:[%s471 + $0x8] sm:$0x3] %vm1864, %v1904
      %s1907 = smul.u32 2, %s28
      %p1908 = scmp.lt.s32.totalorder %s27, 1
      %s1909 = scalar_select %p1908, %s27, 1
      %p1910 = scmp.lt.s32.totalorder %s1907, 1
      %s1911 = scalar_select %p1910, %s1907, 1
      %s1912 = smul.addr %s1909, 2
      %s1913 = sadd.s32 %s1911, %s1912
      %s1914 = smul.addr %s1913, 8
      %s1915 = scalar_lea.vmem %s12, %s1914
      // Predicated region
      $region69: #{transformer_forward.14} parent=67 // pred_check
        %p1916 = pneg %p319
      $region70: #{transformer_forward.14} parent=67 // pred_check_branch
        %1918 = sbr.rel (%p1916) target = $region72
      $region71: #{transformer_forward.14} parent=67 // pred_region
        %s1919 = smul.u32 2, %s28
      $region72: #{transformer_forward.14} parent=67 // pred_fallthru
        _
    $region68: #{transformer_forward.14} parent=5 // pred_fallthru
      _
    %p1920 = scmp.le.s32.totalorder 2, %s18
    // Predicated region
    $region73: #{transformer_forward.14} parent=5 // pred_check
      %p1921 = pneg %p1920
    $region74: #{transformer_forward.14} parent=5 // pred_check_branch
      %1923 = sbr.rel (%p1921) target = $region76
    $region75: #{transformer_forward.14} parent=5 // pred_region
      %s1924 = ssub.s32 %s18, 2
      // Predicated region
      $region77: #{transformer_forward.14} parent=75 // pred_check
        %p1925 = pneg %p325
      $region78: #{transformer_forward.14} parent=75 // pred_check_branch
        %1927 = sbr.rel (%p1925) target = $region80
      $region79: #{transformer_forward.14} parent=75 // pred_region
        %s1928 = smul.u32 2, %s30
        %p1929 = scmp.lt.s32.totalorder %s29, 1
        %s1930 = scalar_select %p1929, %s29, 1
        %p1931 = scmp.lt.s32.totalorder %s1928, 1
        %s1932 = scalar_select %p1931, %s1928, 1
        %s1933 = smul.addr %s1930, 2
        %s1934 = sadd.s32 %s1932, %s1933
        %s1935 = smul.addr %s1934, 8
        %s1936 = scalar_lea.vmem %s12, %s1935
      $region80: #{transformer_forward.14} parent=75 // pred_fallthru
        _
    $region76: #{transformer_forward.14} parent=5 // pred_fallthru
      _
  $region6: #{transformer_forward.14} parent=0 // loop_footer
    %s22 = sadd.s32 1, %s18
  $region7: #{transformer_forward.14} parent=0 // loop_footer_branch
    %17 = sbr.rel target = $region3
  $region8: #{transformer_forward.14} parent=0 // loop_exit
    _

// kernel: transformer_forward.10
$region0: #{transformer_forward.10}
  #allocation0 [shape = 'u32[]', space=smem, size = 0x4, offset = 0x4, fixed_abs, tag = 'smem constant byte address 0x4 - core index']
  #allocation1 [shape = 'u32[144,128]{1,0:T(1,128)}', space=vmem, size = 0x12000, scoped, tag = 'internal scratch']
  %s0 = inlined_call_operand.vmem [shape: f32[2,8,32], index: 0, kind: input, shape index: {}, may-alias: {0,1}]
  %s1 = inlined_call_operand.vmem [shape: f32[2,8,32], index: 1, kind: input, shape index: {}, may-alias: {0,1}]
  %s2 = inlined_call_operand.vmem [shape: bf16[4,32,8], index: 2, kind: input, shape index: {}]
  %s3 = inlined_call_operand.vmem [shape: f32[4,1,8], index: 3, kind: input, shape index: {}]
  %s4 = inlined_call_operand.vmem [shape: bf16[4,32,8], index: 4, kind: input, shape index: {}]
  %s5 = inlined_call_operand.vmem [shape: f32[4,1,8], index: 5, kind: input, shape index: {}]
  %s6 = inlined_call_operand.vmem [shape: bf16[4,32,8], index: 6, kind: input, shape index: {}]
  %s7 = inlined_call_operand.vmem [shape: f32[4,1,8], index: 7, kind: input, shape index: {}]
  %s8 = inlined_call_operand.vmem [shape: bf16[32,32], index: 8, kind: input, shape index: {}]
  %s9 = inlined_call_operand.vmem [shape: f32[1,32], index: 9, kind: input, shape index: {}]
  %s10 = inlined_call_operand.vmem [shape: f32[1,32], index: 10, kind: input, shape index: {}]
  %s11 = inlined_call_operand.vmem [shape: f32[1,32], index: 11, kind: input, shape index: {}]
  %s12 = inlined_call_operand.vmem [shape: f32[2,8,32], index: 12, kind: output, shape index: {}]
  %s13 = sld [smem:[#allocation0]]
  $region81: #{transformer_forward.10} parent=0
    _
  %s15 = ssub.s32 1, %s13
  %s16 = scalar_select 0, %s15, %s13
  loop: start=0, step=1, limit=4
  $region2: #{transformer_forward.10} parent=0 // loop_pre_header
    _
  $region3: #{transformer_forward.10} parent=0 // loop_header
    %s18 = sphi 0, %s22
    %p19 = scmp.ge.s32.totalorder %s18, 4
    %s25 = sphi 0, %s37
    %s26 = sphi 0, %s33
    %s27 = sphi 0, %s25
    %s28 = sphi 0, %s26
    %s29 = sphi 0, %s27
    %s30 = sphi 0, %s28
    %s42 = sphi 0, %s44
    %s45 = sphi 0, %s42
    %s46 = sphi 0, %s45
    %s62 = sphi 0, %s46
    %s68 = sphi 0, %s70
    %s71 = sphi 0, %s68
    %s72 = sphi 0, %s71
    %s88 = sphi 0, %s72
    %s92 = sphi 0, %s92
    %s94 = sphi 0, %s92
    %s95 = sphi 0, %s94
    %s109 = sphi 0, %s95
    %s113 = sphi 0, %s113
    %s115 = sphi 0, %s113
    %s116 = sphi 0, %s115
    %s130 = sphi 0, %s116
    %s134 = sphi 0, %s134
    %s136 = sphi 0, %s134
    %s137 = sphi 0, %s136
    %s151 = sphi 0, %s137
    %s155 = sphi 0, %s155
    %s157 = sphi 0, %s155
    %s158 = sphi 0, %s157
    %s172 = sphi 0, %s158
    %s176 = sphi 0, %s176
    %s178 = sphi 0, %s176
    %s179 = sphi 0, %s178
    %s193 = sphi 0, %s179
    %s197 = sphi 0, %s197
    %s199 = sphi 0, %s197
    %s200 = sphi 0, %s199
    %s214 = sphi 0, %s200
    %s218 = sphi 0, %s218
    %s220 = sphi 0, %s218
    %s221 = sphi 0, %s220
    %s235 = sphi 0, %s221
    %s239 = sphi 0, %s239
    %s241 = sphi 0, %s239
    %s242 = sphi 0, %s241
    %s256 = sphi 0, %s242
    %s260 = sphi 0, %s260
    %s262 = sphi 0, %s260
    %s263 = sphi 0, %s262
    %s277 = sphi 0, %s263
    %s281 = sphi 0, %s281
    %s283 = sphi 0, %s281
    %s284 = sphi 0, %s283
    %s298 = sphi 0, %s284
    %s306 = sphi 0, %s308
    %s309 = sphi 0, %s306
    %s310 = sphi 0, %s309
    %s326 = sphi 0, %s310
  $region4: #{transformer_forward.10} parent=0 // loop_header_branch
    %21 = sbr.rel (%p19) target = $region8
  $region5: #{transformer_forward.10} parent=0 // loop_body
    %s23 = ssub.s32 %s18, 1
    %s24 = ssub.s32 %s18, 2
    %s31 = sadd.s32 1, %s26
    %p32 = scmp.ge.s32.totalorder %s31, 1
    %s33 = scalar_select %p32, 0, %s31
    %s34 = sadd.s32 1, %s25
    %s35 = scalar_select %p32, %s34, %s25
    %p36 = scmp.ge.s32.totalorder %s35, 2
    %s37 = scalar_select %p36, 0, %s35
    %s38 = ssub.s32 %s25, %s37
    %s39 = ssub.s32 %s26, %s33
    %s40 = sor.u32 %s38, %s39
    %p41 = scmp.eq.s32.totalorder %s40, 0
    %s43 = sadd.s32 %s42, 1
    %s44 = scalar_select %p41, %s42, %s43
    %p47 = pneg %p41
    %p48 = scmp.eq.s32.totalorder %s18, 1
    %p49 = por %p47, %p48
    %p50 = scmp.ne.s32.totalorder %s42, %s45
    %p51 = scmp.eq.s32.totalorder %s18, 0
    %p52 = por %p50, %p51
    %p53 = scmp.ne.s32.totalorder %s42, %s45
    %p54 = scmp.eq.s32.totalorder %s23, 1
    %p55 = por %p53, %p54
    %p56 = scmp.ne.s32.totalorder %s45, %s46
    %p57 = scmp.eq.s32.totalorder %s23, 0
    %p58 = por %p56, %p57
    %p59 = scmp.ne.s32.totalorder %s45, %s46
    %p60 = scmp.eq.s32.totalorder %s24, 1
    %p61 = por %p59, %p60
    %p63 = scmp.ne.s32.totalorder %s46, %s62
    %p64 = scmp.eq.s32.totalorder %s24, 0
    %p65 = por %p63, %p64
    %s66 = ssub.s32 %s25, %s37
    %p67 = scmp.eq.s32.totalorder %s66, 0
    %s69 = sadd.s32 %s68, 1
    %s70 = scalar_select %p67, %s68, %s69
    %p73 = pneg %p67
    %p74 = scmp.eq.s32.totalorder %s18, 1
    %p75 = por %p73, %p74
    %p76 = scmp.ne.s32.totalorder %s68, %s71
    %p77 = scmp.eq.s32.totalorder %s18, 0
    %p78 = por %p76, %p77
    %p79 = scmp.ne.s32.totalorder %s68, %s71
    %p80 = scmp.eq.s32.totalorder %s23, 1
    %p81 = por %p79, %p80
    %p82 = scmp.ne.s32.totalorder %s71, %s72
    %p83 = scmp.eq.s32.totalorder %s23, 0
    %p84 = por %p82, %p83
    %p85 = scmp.ne.s32.totalorder %s71, %s72
    %p86 = scmp.eq.s32.totalorder %s24, 1
    %p87 = por %p85, %p86
    %p89 = scmp.ne.s32.totalorder %s72, %s88
    %p90 = scmp.eq.s32.totalorder %s24, 0
    %p91 = por %p89, %p90
    %s93 = sadd.s32 %s92, 1
    %p96 = scmp.eq.s32.totalorder %s18, 1
    %p97 = scmp.ne.s32.totalorder %s92, %s94
    %p98 = scmp.eq.s32.totalorder %s18, 0
    %p99 = por %p97, %p98
    %p100 = scmp.ne.s32.totalorder %s92, %s94
    %p101 = scmp.eq.s32.totalorder %s23, 1
    %p102 = por %p100, %p101
    %p103 = scmp.ne.s32.totalorder %s94, %s95
    %p104 = scmp.eq.s32.totalorder %s23, 0
    %p105 = por %p103, %p104
    %p106 = scmp.ne.s32.totalorder %s94, %s95
    %p107 = scmp.eq.s32.totalorder %s24, 1
    %p108 = por %p106, %p107
    %p110 = scmp.ne.s32.totalorder %s95, %s109
    %p111 = scmp.eq.s32.totalorder %s24, 0
    %p112 = por %p110, %p111
    %s114 = sadd.s32 %s113, 1
    %p117 = scmp.eq.s32.totalorder %s18, 1
    %p118 = scmp.ne.s32.totalorder %s113, %s115
    %p119 = scmp.eq.s32.totalorder %s18, 0
    %p120 = por %p118, %p119
    %p121 = scmp.ne.s32.totalorder %s113, %s115
    %p122 = scmp.eq.s32.totalorder %s23, 1
    %p123 = por %p121, %p122
    %p124 = scmp.ne.s32.totalorder %s115, %s116
    %p125 = scmp.eq.s32.totalorder %s23, 0
    %p126 = por %p124, %p125
    %p127 = scmp.ne.s32.totalorder %s115, %s116
    %p128 = scmp.eq.s32.totalorder %s24, 1
    %p129 = por %p127, %p128
    %p131 = scmp.ne.s32.totalorder %s116, %s130
    %p132 = scmp.eq.s32.totalorder %s24, 0
    %p133 = por %p131, %p132
    %s135 = sadd.s32 %s134, 1
    %p138 = scmp.eq.s32.totalorder %s18, 1
    %p139 = scmp.ne.s32.totalorder %s134, %s136
    %p140 = scmp.eq.s32.totalorder %s18, 0
    %p141 = por %p139, %p140
    %p142 = scmp.ne.s32.totalorder %s134, %s136
    %p143 = scmp.eq.s32.totalorder %s23, 1
    %p144 = por %p142, %p143
    %p145 = scmp.ne.s32.totalorder %s136, %s137
    %p146 = scmp.eq.s32.totalorder %s23, 0
    %p147 = por %p145, %p146
    %p148 = scmp.ne.s32.totalorder %s136, %s137
    %p149 = scmp.eq.s32.totalorder %s24, 1
    %p150 = por %p148, %p149
    %p152 = scmp.ne.s32.totalorder %s137, %s151
    %p153 = scmp.eq.s32.totalorder %s24, 0
    %p154 = por %p152, %p153
    %s156 = sadd.s32 %s155, 1
    %p159 = scmp.eq.s32.totalorder %s18, 1
    %p160 = scmp.ne.s32.totalorder %s155, %s157
    %p161 = scmp.eq.s32.totalorder %s18, 0
    %p162 = por %p160, %p161
    %p163 = scmp.ne.s32.totalorder %s155, %s157
    %p164 = scmp.eq.s32.totalorder %s23, 1
    %p165 = por %p163, %p164
    %p166 = scmp.ne.s32.totalorder %s157, %s158
    %p167 = scmp.eq.s32.totalorder %s23, 0
    %p168 = por %p166, %p167
    %p169 = scmp.ne.s32.totalorder %s157, %s158
    %p170 = scmp.eq.s32.totalorder %s24, 1
    %p171 = por %p169, %p170
    %p173 = scmp.ne.s32.totalorder %s158, %s172
    %p174 = scmp.eq.s32.totalorder %s24, 0
    %p175 = por %p173, %p174
    %s177 = sadd.s32 %s176, 1
    %p180 = scmp.eq.s32.totalorder %s18, 1
    %p181 = scmp.ne.s32.totalorder %s176, %s178
    %p182 = scmp.eq.s32.totalorder %s18, 0
    %p183 = por %p181, %p182
    %p184 = scmp.ne.s32.totalorder %s176, %s178
    %p185 = scmp.eq.s32.totalorder %s23, 1
    %p186 = por %p184, %p185
    %p187 = scmp.ne.s32.totalorder %s178, %s179
    %p188 = scmp.eq.s32.totalorder %s23, 0
    %p189 = por %p187, %p188
    %p190 = scmp.ne.s32.totalorder %s178, %s179
    %p191 = scmp.eq.s32.totalorder %s24, 1
    %p192 = por %p190, %p191
    %p194 = scmp.ne.s32.totalorder %s179, %s193
    %p195 = scmp.eq.s32.totalorder %s24, 0
    %p196 = por %p194, %p195
    %s198 = sadd.s32 %s197, 1
    %p201 = scmp.eq.s32.totalorder %s18, 1
    %p202 = scmp.ne.s32.totalorder %s197, %s199
    %p203 = scmp.eq.s32.totalorder %s18, 0
    %p204 = por %p202, %p203
    %p205 = scmp.ne.s32.totalorder %s197, %s199
    %p206 = scmp.eq.s32.totalorder %s23, 1
    %p207 = por %p205, %p206
    %p208 = scmp.ne.s32.totalorder %s199, %s200
    %p209 = scmp.eq.s32.totalorder %s23, 0
    %p210 = por %p208, %p209
    %p211 = scmp.ne.s32.totalorder %s199, %s200
    %p212 = scmp.eq.s32.totalorder %s24, 1
    %p213 = por %p211, %p212
    %p215 = scmp.ne.s32.totalorder %s200, %s214
    %p216 = scmp.eq.s32.totalorder %s24, 0
    %p217 = por %p215, %p216
    %s219 = sadd.s32 %s218, 1
    %p222 = scmp.eq.s32.totalorder %s18, 1
    %p223 = scmp.ne.s32.totalorder %s218, %s220
    %p224 = scmp.eq.s32.totalorder %s18, 0
    %p225 = por %p223, %p224
    %p226 = scmp.ne.s32.totalorder %s218, %s220
    %p227 = scmp.eq.s32.totalorder %s23, 1
    %p228 = por %p226, %p227
    %p229 = scmp.ne.s32.totalorder %s220, %s221
    %p230 = scmp.eq.s32.totalorder %s23, 0
    %p231 = por %p229, %p230
    %p232 = scmp.ne.s32.totalorder %s220, %s221
    %p233 = scmp.eq.s32.totalorder %s24, 1
    %p234 = por %p232, %p233
    %p236 = scmp.ne.s32.totalorder %s221, %s235
    %p237 = scmp.eq.s32.totalorder %s24, 0
    %p238 = por %p236, %p237
    %s240 = sadd.s32 %s239, 1
    %p243 = scmp.eq.s32.totalorder %s18, 1
    %p244 = scmp.ne.s32.totalorder %s239, %s241
    %p245 = scmp.eq.s32.totalorder %s18, 0
    %p246 = por %p244, %p245
    %p247 = scmp.ne.s32.totalorder %s239, %s241
    %p248 = scmp.eq.s32.totalorder %s23, 1
    %p249 = por %p247, %p248
    %p250 = scmp.ne.s32.totalorder %s241, %s242
    %p251 = scmp.eq.s32.totalorder %s23, 0
    %p252 = por %p250, %p251
    %p253 = scmp.ne.s32.totalorder %s241, %s242
    %p254 = scmp.eq.s32.totalorder %s24, 1
    %p255 = por %p253, %p254
    %p257 = scmp.ne.s32.totalorder %s242, %s256
    %p258 = scmp.eq.s32.totalorder %s24, 0
    %p259 = por %p257, %p258
    %s261 = sadd.s32 %s260, 1
    %p264 = scmp.eq.s32.totalorder %s18, 1
    %p265 = scmp.ne.s32.totalorder %s260, %s262
    %p266 = scmp.eq.s32.totalorder %s18, 0
    %p267 = por %p265, %p266
    %p268 = scmp.ne.s32.totalorder %s260, %s262
    %p269 = scmp.eq.s32.totalorder %s23, 1
    %p270 = por %p268, %p269
    %p271 = scmp.ne.s32.totalorder %s262, %s263
    %p272 = scmp.eq.s32.totalorder %s23, 0
    %p273 = por %p271, %p272
    %p274 = scmp.ne.s32.totalorder %s262, %s263
    %p275 = scmp.eq.s32.totalorder %s24, 1
    %p276 = por %p274, %p275
    %p278 = scmp.ne.s32.totalorder %s263, %s277
    %p279 = scmp.eq.s32.totalorder %s24, 0
    %p280 = por %p278, %p279
    %s282 = sadd.s32 %s281, 1
    %p285 = scmp.eq.s32.totalorder %s18, 1
    %p286 = scmp.ne.s32.totalorder %s281, %s283
    %p287 = scmp.eq.s32.totalorder %s18, 0
    %p288 = por %p286, %p287
    %p289 = scmp.ne.s32.totalorder %s281, %s283
    %p290 = scmp.eq.s32.totalorder %s23, 1
    %p291 = por %p289, %p290
    %p292 = scmp.ne.s32.totalorder %s283, %s284
    %p293 = scmp.eq.s32.totalorder %s23, 0
    %p294 = por %p292, %p293
    %p295 = scmp.ne.s32.totalorder %s283, %s284
    %p296 = scmp.eq.s32.totalorder %s24, 1
    %p297 = por %p295, %p296
    %p299 = scmp.ne.s32.totalorder %s284, %s298
    %p300 = scmp.eq.s32.totalorder %s24, 0
    %p301 = por %p299, %p300
    %s302 = ssub.s32 %s25, %s37
    %s303 = ssub.s32 %s26, %s33
    %s304 = sor.u32 %s302, %s303
    %p305 = scmp.eq.s32.totalorder %s304, 0
    %s307 = sadd.s32 %s306, 1
    %s308 = scalar_select %p305, %s306, %s307
    %p311 = pneg %p305
    %p312 = scmp.eq.s32.totalorder %s18, 1
    %p313 = por %p311, %p312
    %p314 = scmp.ne.s32.totalorder %s306, %s309
    %p315 = scmp.eq.s32.totalorder %s18, 0
    %p316 = por %p314, %p315
    %p317 = scmp.ne.s32.totalorder %s306, %s309
    %p318 = scmp.eq.s32.totalorder %s23, 1
    %p319 = por %p317, %p318
    %p320 = scmp.ne.s32.totalorder %s309, %s310
    %p321 = scmp.eq.s32.totalorder %s23, 0
    %p322 = por %p320, %p321
    %p323 = scmp.ne.s32.totalorder %s309, %s310
    %p324 = scmp.eq.s32.totalorder %s24, 1
    %p325 = por %p323, %p324
    %p327 = scmp.ne.s32.totalorder %s310, %s326
    %p328 = scmp.eq.s32.totalorder %s24, 0
    %p329 = por %p327, %p328
    %p330 = scmp.le.s32.totalorder 1, %s18
    %p331 = scmp.lt.s32.totalorder %s18, 3
    %p332 = pnand %p330, %p331
    %p333 = pneg %p332
    // Predicated region
    $region9: #{transformer_forward.10} parent=5 // pred_check
      _
    $region10: #{transformer_forward.10} parent=5 // pred_check_branch
      %335 = sbr.rel (%p332) target = $region12
    $region11: #{transformer_forward.10} parent=5 // pred_region
      %s336 = ssub.s32 %s18, 1
      // Predicated region
      $region13: #{transformer_forward.10} parent=11 // pred_check
        %p337 = pneg %p105
      $region14: #{transformer_forward.10} parent=11 // pred_check_branch
        %339 = sbr.rel (%p337) target = $region16
      $region15: #{transformer_forward.10} parent=11 // pred_region
        _
      $region16: #{transformer_forward.10} parent=11 // pred_fallthru
        _
      // Predicated region
      $region17: #{transformer_forward.10} parent=11 // pred_check
        %p340 = pneg %p126
      $region18: #{transformer_forward.10} parent=11 // pred_check_branch
        %342 = sbr.rel (%p340) target = $region20
      $region19: #{transformer_forward.10} parent=11 // pred_region
        _
      $region20: #{transformer_forward.10} parent=11 // pred_fallthru
        _
      // Predicated region
      $region21: #{transformer_forward.10} parent=11 // pred_check
        %p343 = pneg %p147
      $region22: #{transformer_forward.10} parent=11 // pred_check_branch
        %345 = sbr.rel (%p343) target = $region24
      $region23: #{transformer_forward.10} parent=11 // pred_region
        _
      $region24: #{transformer_forward.10} parent=11 // pred_fallthru
        _
      // Predicated region
      $region25: #{transformer_forward.10} parent=11 // pred_check
        %p346 = pneg %p168
      $region26: #{transformer_forward.10} parent=11 // pred_check_branch
        %348 = sbr.rel (%p346) target = $region28
      $region27: #{transformer_forward.10} parent=11 // pred_region
        _
      $region28: #{transformer_forward.10} parent=11 // pred_fallthru
        _
      // Predicated region
      $region29: #{transformer_forward.10} parent=11 // pred_check
        %p349 = pneg %p189
      $region30: #{transformer_forward.10} parent=11 // pred_check_branch
        %351 = sbr.rel (%p349) target = $region32
      $region31: #{transformer_forward.10} parent=11 // pred_region
        _
      $region32: #{transformer_forward.10} parent=11 // pred_fallthru
        _
      // Predicated region
      $region33: #{transformer_forward.10} parent=11 // pred_check
        %p352 = pneg %p210
      $region34: #{transformer_forward.10} parent=11 // pred_check_branch
        %354 = sbr.rel (%p352) target = $region36
      $region35: #{transformer_forward.10} parent=11 // pred_region
        _
      $region36: #{transformer_forward.10} parent=11 // pred_fallthru
        _
      // Predicated region
      $region37: #{transformer_forward.10} parent=11 // pred_check
        %p355 = pneg %p231
      $region38: #{transformer_forward.10} parent=11 // pred_check_branch
        %357 = sbr.rel (%p355) target = $region40
      $region39: #{transformer_forward.10} parent=11 // pred_region
        _
      $region40: #{transformer_forward.10} parent=11 // pred_fallthru
        _
      // Predicated region
      $region41: #{transformer_forward.10} parent=11 // pred_check
        %p358 = pneg %p252
      $region42: #{transformer_forward.10} parent=11 // pred_check_branch
        %360 = sbr.rel (%p358) target = $region44
      $region43: #{transformer_forward.10} parent=11 // pred_region
        _
      $region44: #{transformer_forward.10} parent=11 // pred_fallthru
        _
      // Predicated region
      $region45: #{transformer_forward.10} parent=11 // pred_check
        %p361 = pneg %p273
      $region46: #{transformer_forward.10} parent=11 // pred_check_branch
        %363 = sbr.rel (%p361) target = $region48
      $region47: #{transformer_forward.10} parent=11 // pred_region
        _
      $region48: #{transformer_forward.10} parent=11 // pred_fallthru
        _
      // Predicated region
      $region49: #{transformer_forward.10} parent=11 // pred_check
        %p364 = pneg %p294
      $region50: #{transformer_forward.10} parent=11 // pred_check_branch
        %366 = sbr.rel (%p364) target = $region52
      $region51: #{transformer_forward.10} parent=11 // pred_region
        _
      $region52: #{transformer_forward.10} parent=11 // pred_fallthru
        _
    $region12: #{transformer_forward.10} parent=5 // pred_fallthru
      _
    %p367 = scmp.lt.s32.totalorder %s18, 2
    // Predicated region
    $region53: #{transformer_forward.10} parent=5 // pred_check
      %p368 = pneg %p367
    $region54: #{transformer_forward.10} parent=5 // pred_check_branch
      %370 = sbr.rel (%p368) target = $region56
    $region55: #{transformer_forward.10} parent=5 // pred_region
      // Predicated region
      $region57: #{transformer_forward.10} parent=55 // pred_check
        %p371 = pneg %p52
      $region58: #{transformer_forward.10} parent=55 // pred_check_branch
        %373 = sbr.rel (%p371) target = $region60
      $region59: #{transformer_forward.10} parent=55 // pred_region
        %p374 = scmp.lt.s32.totalorder %s25, 1
        %s375 = scalar_select %p374, %s25, 1
        %p376 = scmp.lt.s32.totalorder %s26, 0
        %s377 = scalar_select %p376, %s26, 0
        %s378 = sadd.s32 %s377, %s375
        %s379 = smul.addr %s378, 8
        %s380 = scalar_lea.vmem %s0, %s379
      $region60: #{transformer_forward.10} parent=55 // pred_fallthru
        _
      // Predicated region
      $region61: #{transformer_forward.10} parent=55 // pred_check
        %p381 = pneg %p78
      $region62: #{transformer_forward.10} parent=55 // pred_check_branch
        %383 = sbr.rel (%p381) target = $region64
      $region63: #{transformer_forward.10} parent=55 // pred_region
        %p384 = scmp.lt.s32.totalorder %s25, 1
        %s385 = scalar_select %p384, %s25, 1
        %s386 = smul.addr %s385, 8
        %s387 = scalar_lea.vmem %s1, %s386
      $region64: #{transformer_forward.10} parent=55 // pred_fallthru
        _
    $region56: #{transformer_forward.10} parent=5 // pred_fallthru
      _
    %p388 = scmp.le.s32.totalorder 1, %s18
    %p389 = scmp.lt.s32.totalorder %s18, 3
    %p390 = pnand %p388, %p389
    %p391 = pneg %p390
    // Predicated region
    $region65: #{transformer_forward.10} parent=5 // pred_check
      _
    $region66: #{transformer_forward.10} parent=5 // pred_check_branch
      %393 = sbr.rel (%p390) target = $region68
    $region67: #{transformer_forward.10} parent=5 // pred_region
      %s394 = ssub.s32 %s18, 1
      %p395 = scmp.lt.s32.totalorder %s27, 1
      %s396 = scalar_select %p395, %s27, 1
      %p397 = scmp.lt.s32.totalorder %s28, 0
      %s398 = scalar_select %p397, %s28, 0
      %s399 = sadd.s32 %s398, %s396
      %s400 = smul.addr %s399, 8
      %s401 = scalar_lea.vmem %s0, %s400
      %p402 = pneg %p58
      %p403 = pneg %p55
      %p404 = scmp.lt.s32.totalorder %s27, 1
      %s405 = scalar_select %p404, %s27, 1
      %s406 = smul.addr %s405, 8
      %s407 = scalar_lea.vmem %s1, %s406
      %p408 = pneg %p84
      %p409 = pneg %p81
      %p410 = pneg %p105
      %p411 = pneg %p102
      %p412 = pneg %p126
      %p413 = pneg %p123
      %p414 = pneg %p147
      %p415 = pneg %p144
      %p416 = pneg %p168
      %p417 = pneg %p165
      %p418 = pneg %p189
      %p419 = pneg %p186
      %p420 = pneg %p210
      %p421 = pneg %p207
      %p422 = pneg %p231
      %p423 = pneg %p228
      %p424 = pneg %p252
      %p425 = pneg %p249
      %p426 = pneg %p273
      %p427 = pneg %p270
      %p428 = pneg %p294
      %p429 = pneg %p291
      %p430 = pneg %p322
      %p431 = pneg %p319
      %p432 = scmp.lt.s32.totalorder %s27, 1
      %s433 = scalar_select %p432, %s27, 1
      %p434 = scmp.lt.s32.totalorder %s28, 0
      %s435 = scalar_select %p434, %s28, 0
      %s436 = sadd.s32 %s435, %s433
      %s437 = smul.addr %s436, 8
      %s438 = scalar_lea.vmem %s12, %s437
      %p439 = scmp.lt.s32.totalorder %s27, 1
      %s440 = scalar_select %p439, %s27, 1
      %p441 = scmp.lt.s32.totalorder %s28, 0
      %s442 = scalar_select %p441, %s28, 0
      %s443 = sadd.s32 %s442, %s440
      %s444 = smul.addr %s443, 8
      %s445 = scalar_lea.vmem %s0, %s444
      %p446 = scmp.lt.s32.totalorder %s27, 1
      %s447 = scalar_select %p446, %s27, 1
      %s448 = smul.addr %s447, 8
      %s449 = scalar_lea.vmem %s1, %s448
      %p450 = scmp.lt.s32.totalorder %s27, 1
      %s451 = scalar_select %p450, %s27, 1
      %p452 = scmp.lt.s32.totalorder %s28, 0
      %s453 = scalar_select %p452, %s28, 0
      %s454 = sadd.s32 %s453, %s451
      %s455 = smul.addr %s454, 8
      %s456 = scalar_lea.vmem %s12, %s455
      %v458 = vld [vmem:[%s445] sm:$0xff]
      %v459 = vld [vmem:[%s449] sm:$0xff]
      %v460 = vpack.c.bf16 %v458, %v458
      %v461 = vpack.c.bf16 %v459, %v459
      %v462 = vld [vmem:[%s2] sm:$0xf]
      %v463 = vld [vmem:[%s2 + $0x4] sm:$0xf]
      %v464 = vld [vmem:[%s2 + $0x8] sm:$0xf]
      %v465 = vld [vmem:[%s2 + $0xc] sm:$0xf]
      %v466 = vld [vmem:[%s3] sm:$0x1]
      %v468 = vlaneseq
      %v469 = vshrl.u32 %v468, 7
      %v470 = vsub.s32 0, %v469
      %v471 = vrot.slane %v466, %v470
      %v477 = vunpack.c.l.b16 %v462
      %v478 = vunpack.c.l.b16 %v463
      %v479 = vunpack.c.l.b16 %v464
      %v480 = vunpack.c.l.b16 %v465
      %v481 = vpack.c.b16 %v478, %v477
      %v482 = vpack.c.b16 %v480, %v479
      %vm485 = vcmask 261120
      %v487 = vsel %vm485, %v460, 0
      %489 = vmatprep.subr.bf16.mxu0 0
      %490 = vmatpush1.bf16.msra.mxu0 %v481
      %491 = vmatprep.subr.bf16.mxu0 0
      %492 = vmatpush1.bf16.msra.mxu0 %v482
      %493 = vmatprep.subr.bf16.mxu0 0
      %494 = vmatpush1.bf16.msra.mxu0 0
      %495 = vmatprep.subr.bf16.mxu0 0
      %496 = vmatpush1.bf16.msra.mxu0 0
      %497 = vmatprep.subr.bf16.mxu0 0
      %498 = vmatpush1.bf16.msra.mxu0 0
      %499 = vmatprep.subr.bf16.mxu0 0
      %500 = vmatpush1.bf16.msra.mxu0 0
      %501 = vmatprep.subr.bf16.mxu0 0
      %502 = vmatpush1.bf16.msra.mxu0 0
      %503 = vmatprep.subr.bf16.mxu0 0
      %504 = vmatpush1.bf16.msra.mxu0 0
      %505 = vmatprep.subr.bf16.mxu0 0
      %506 = vmatpush1.bf16.msra.mxu0 0
      %507 = vmatprep.subr.bf16.mxu0 0
      %508 = vmatpush1.bf16.msra.mxu0 0
      %509 = vmatprep.subr.bf16.mxu0 0
      %510 = vmatpush1.bf16.msra.mxu0 0
      %511 = vmatprep.subr.bf16.mxu0 0
      %512 = vmatpush1.bf16.msra.mxu0 0
      %513 = vmatprep.subr.bf16.mxu0 0
      %514 = vmatpush1.bf16.msra.mxu0 0
      %515 = vmatprep.subr.bf16.mxu0 0
      %516 = vmatpush1.bf16.msra.mxu0 0
      %517 = vmatprep.subr.bf16.mxu0 0
      %518 = vmatpush1.bf16.msra.mxu0 0
      %519 = vmatprep.subr.bf16.mxu0 0
      %520 = vmatpush1.bf16.msra.mxu0 0
      %521 = vmatprep.mubr.bf16.mxu0 0
      %522 = vmatmul.mubr.bf16.gmra.mrb[0].mxu0 %v487
      %v523 = vpop.f32.mrb[0].mxu0
      %v524 = vadd.f32 %v471, %v523
      %v525 = vpop.f32.mrb[0].mxu0
      %v526 = vpop.f32.mrb[0].mxu0
      %v527 = vpop.f32.mrb[0].mxu0
      %528 = vdwg.mxu0
      %v529 = vld [vmem:[%s4] sm:$0xf]
      %v530 = vld [vmem:[%s4 + $0x4] sm:$0xf]
      %v531 = vld [vmem:[%s4 + $0x8] sm:$0xf]
      %v532 = vld [vmem:[%s4 + $0xc] sm:$0xf]
      %v533 = vld [vmem:[%s5] sm:$0x1]
      %v535 = vlaneseq
      %v536 = vshrl.u32 %v535, 7
      %v537 = vsub.s32 0, %v536
      %v538 = vrot.slane %v533, %v537
      %v544 = vunpack.c.l.b16 %v529
      %v545 = vunpack.c.l.b16 %v530
      %v546 = vunpack.c.l.b16 %v531
      %v547 = vunpack.c.l.b16 %v532
      %v548 = vpack.c.b16 %v545, %v544
      %v549 = vpack.c.b16 %v547, %v546
      %v553 = vsel %vm485, %v461, 0
      %555 = vmatprep.subr.bf16.mxu0 0
      %556 = vmatpush1.bf16.msra.mxu0 %v548
      %557 = vmatprep.subr.bf16.mxu0 0
      %558 = vmatpush1.bf16.msra.mxu0 %v549
      %559 = vmatprep.subr.bf16.mxu0 0
      %560 = vmatpush1.bf16.msra.mxu0 0
      %561 = vmatprep.subr.bf16.mxu0 0
      %562 = vmatpush1.bf16.msra.mxu0 0
      %563 = vmatprep.subr.bf16.mxu0 0
      %564 = vmatpush1.bf16.msra.mxu0 0
      %565 = vmatprep.subr.bf16.mxu0 0
      %566 = vmatpush1.bf16.msra.mxu0 0
      %567 = vmatprep.subr.bf16.mxu0 0
      %568 = vmatpush1.bf16.msra.mxu0 0
      %569 = vmatprep.subr.bf16.mxu0 0
      %570 = vmatpush1.bf16.msra.mxu0 0
      %571 = vmatprep.subr.bf16.mxu0 0
      %572 = vmatpush1.bf16.msra.mxu0 0
      %573 = vmatprep.subr.bf16.mxu0 0
      %574 = vmatpush1.bf16.msra.mxu0 0
      %575 = vmatprep.subr.bf16.mxu0 0
      %576 = vmatpush1.bf16.msra.mxu0 0
      %577 = vmatprep.subr.bf16.mxu0 0
      %578 = vmatpush1.bf16.msra.mxu0 0
      %579 = vmatprep.subr.bf16.mxu0 0
      %580 = vmatpush1.bf16.msra.mxu0 0
      %581 = vmatprep.subr.bf16.mxu0 0
      %582 = vmatpush1.bf16.msra.mxu0 0
      %583 = vmatprep.subr.bf16.mxu0 0
      %584 = vmatpush1.bf16.msra.mxu0 0
      %585 = vmatprep.subr.bf16.mxu0 0
      %586 = vmatpush1.bf16.msra.mxu0 0
      %587 = vmatprep.mubr.bf16.mxu0 0
      %588 = vmatmul.mubr.bf16.gmra.mrb[0].mxu0 %v553
      %v589 = vpop.f32.mrb[0].mxu0
      %v590 = vadd.f32 %v538, %v589
      %v591 = vpop.f32.mrb[0].mxu0
      %v592 = vpop.f32.mrb[0].mxu0
      %v593 = vpop.f32.mrb[0].mxu0
      %594 = vdwg.mxu0
      %v595 = vld [vmem:[%s6] sm:$0xf]
      %v596 = vld [vmem:[%s6 + $0x4] sm:$0xf]
      %v597 = vld [vmem:[%s6 + $0x8] sm:$0xf]
      %v598 = vld [vmem:[%s6 + $0xc] sm:$0xf]
      %v599 = vld [vmem:[%s7] sm:$0x1]
      %v601 = vlaneseq
      %v602 = vshrl.u32 %v601, 7
      %v603 = vsub.s32 0, %v602
      %v604 = vrot.slane %v599, %v603
      %v610 = vunpack.c.l.b16 %v595
      %v611 = vunpack.c.l.b16 %v596
      %v612 = vunpack.c.l.b16 %v597
      %v613 = vunpack.c.l.b16 %v598
      %v614 = vpack.c.b16 %v611, %v610
      %v615 = vpack.c.b16 %v613, %v612
      %618 = vmatprep.subr.bf16.mxu0 0
      %619 = vmatpush1.bf16.msra.mxu0 %v614
      %620 = vmatprep.subr.bf16.mxu0 0
      %621 = vmatpush1.bf16.msra.mxu0 %v615
      %622 = vmatprep.subr.bf16.mxu0 0
      %623 = vmatpush1.bf16.msra.mxu0 0
      %624 = vmatprep.subr.bf16.mxu0 0
      %625 = vmatpush1.bf16.msra.mxu0 0
      %626 = vmatprep.subr.bf16.mxu0 0
      %627 = vmatpush1.bf16.msra.mxu0 0
      %628 = vmatprep.subr.bf16.mxu0 0
      %629 = vmatpush1.bf16.msra.mxu0 0
      %630 = vmatprep.subr.bf16.mxu0 0
      %631 = vmatpush1.bf16.msra.mxu0 0
      %632 = vmatprep.subr.bf16.mxu0 0
      %633 = vmatpush1.bf16.msra.mxu0 0
      %634 = vmatprep.subr.bf16.mxu0 0
      %635 = vmatpush1.bf16.msra.mxu0 0
      %636 = vmatprep.subr.bf16.mxu0 0
      %637 = vmatpush1.bf16.msra.mxu0 0
      %638 = vmatprep.subr.bf16.mxu0 0
      %639 = vmatpush1.bf16.msra.mxu0 0
      %640 = vmatprep.subr.bf16.mxu0 0
      %641 = vmatpush1.bf16.msra.mxu0 0
      %642 = vmatprep.subr.bf16.mxu0 0
      %643 = vmatpush1.bf16.msra.mxu0 0
      %644 = vmatprep.subr.bf16.mxu0 0
      %645 = vmatpush1.bf16.msra.mxu0 0
      %646 = vmatprep.subr.bf16.mxu0 0
      %647 = vmatpush1.bf16.msra.mxu0 0
      %648 = vmatprep.subr.bf16.mxu0 0
      %649 = vmatpush1.bf16.msra.mxu0 0
      %650 = vmatprep.mubr.bf16.mxu0 0
      %651 = vmatmul.mubr.bf16.gmra.mrb[0].mxu0 %v553
      %v652 = vpop.f32.mrb[0].mxu0
      %v653 = vadd.f32 %v604, %v652
      %v654 = vpop.f32.mrb[0].mxu0
      %v655 = vpop.f32.mrb[0].mxu0
      %v656 = vpop.f32.mrb[0].mxu0
      %657 = vdwg.mxu0
      %v658 = vpack.c.bf16 %v524, %v524
      %v659 = vpack.c.bf16 %v590, %v590
      %vm660 = vcmask 64512
      %v662 = vsel %vm660, %v658, 0
      %v665 = vsel %vm660, %v659, 0
      %667 = vmatprep.subr.bf16.mxu0 0
      %668 = vmatpush1.bf16.xpose.msra.mxu0 %v665
      %669 = vmatprep.subr.bf16.mxu0 0
      %670 = vmatpush1.bf16.xpose.msra.mxu0 0
      %671 = vmatprep.subr.bf16.mxu0 0
      %672 = vmatpush1.bf16.xpose.msra.mxu0 0
      %673 = vmatprep.subr.bf16.mxu0 0
      %674 = vmatpush1.bf16.xpose.msra.mxu0 0
      %675 = vmatprep.subr.bf16.mxu0 0
      %676 = vmatpush1.bf16.xpose.msra.mxu0 0
      %677 = vmatprep.subr.bf16.mxu0 0
      %678 = vmatpush1.bf16.xpose.msra.mxu0 0
      %679 = vmatprep.subr.bf16.mxu0 0
      %680 = vmatpush1.bf16.xpose.msra.mxu0 0
      %681 = vmatprep.subr.bf16.mxu0 0
      %682 = vmatpush1.bf16.xpose.msra.mxu0 0
      %683 = vmatprep.subr.bf16.mxu0 0
      %684 = vmatpush1.bf16.xpose.msra.mxu0 0
      %685 = vmatprep.subr.bf16.mxu0 0
      %686 = vmatpush1.bf16.xpose.msra.mxu0 0
      %687 = vmatprep.subr.bf16.mxu0 0
      %688 = vmatpush1.bf16.xpose.msra.mxu0 0
      %689 = vmatprep.subr.bf16.mxu0 0
      %690 = vmatpush1.bf16.xpose.msra.mxu0 0
      %691 = vmatprep.subr.bf16.mxu0 0
      %692 = vmatpush1.bf16.xpose.msra.mxu0 0
      %693 = vmatprep.subr.bf16.mxu0 0
      %694 = vmatpush1.bf16.xpose.msra.mxu0 0
      %695 = vmatprep.subr.bf16.mxu0 0
      %696 = vmatpush1.bf16.xpose.msra.mxu0 0
      %697 = vmatprep.subr.bf16.mxu0 0
      %698 = vmatpush1.bf16.xpose.msra.mxu0 0
      %699 = vmatprep.mubr.bf16.mxu0 0
      %700 = vmatmul.mubr.bf16.gmra.mrb[0].mxu0 %v662
      %v701 = vpop.f32.mrb[0].mxu0
      %v702 = vadd.f32 0.0, %v701
      %v703 = vpop.f32.mrb[0].mxu0
      %v704 = vpop.f32.mrb[0].mxu0
      %v705 = vpop.f32.mrb[0].mxu0
      %706 = vdwg.mxu0
      %v707 = vsel %vm660, %v702, -inf
      %708 = vmax.xlane.f32.xlu0 %v707
      %v709 = vpop.xlane.xlu0 %708
      %v710 = vsub.f32 %v702, %v709
      %v711 = vmul.f32 %v710, 1.442695
      %v712 = vpow.pop %v711
      %v713 = vsel %vm660, %v712, 0.0
      %714 = vadd.xlane.f32.xlu0 %v713
      %v715 = vpop.xlane.xlu0 %714
      %v716 = vrcp.pop %v715
      %v717 = vmul.f32 %v712, %v716
      %v718 = vpack.c.bf16 %v717, %v717
      %v719 = vpack.c.bf16 %v653, %v653
      %v721 = vsel %vm660, %v718, 0
      %vm723 = vcmask 1043456
      %v725 = vsel %vm723, %v719, 0
      %727 = vmatprep.subr.bf16.mxu0 0
      %728 = vmatpush1.bf16.msra.mxu0 %v725
      %729 = vmatprep.subr.bf16.mxu0 0
      %730 = vmatpush1.bf16.msra.mxu0 0
      %731 = vmatprep.subr.bf16.mxu0 0
      %732 = vmatpush1.bf16.msra.mxu0 0
      %733 = vmatprep.subr.bf16.mxu0 0
      %734 = vmatpush1.bf16.msra.mxu0 0
      %735 = vmatprep.subr.bf16.mxu0 0
      %736 = vmatpush1.bf16.msra.mxu0 0
      %737 = vmatprep.subr.bf16.mxu0 0
      %738 = vmatpush1.bf16.msra.mxu0 0
      %739 = vmatprep.subr.bf16.mxu0 0
      %740 = vmatpush1.bf16.msra.mxu0 0
      %741 = vmatprep.subr.bf16.mxu0 0
      %742 = vmatpush1.bf16.msra.mxu0 0
      %743 = vmatprep.subr.bf16.mxu0 0
      %744 = vmatpush1.bf16.msra.mxu0 0
      %745 = vmatprep.subr.bf16.mxu0 0
      %746 = vmatpush1.bf16.msra.mxu0 0
      %747 = vmatprep.subr.bf16.mxu0 0
      %748 = vmatpush1.bf16.msra.mxu0 0
      %749 = vmatprep.subr.bf16.mxu0 0
      %750 = vmatpush1.bf16.msra.mxu0 0
      %751 = vmatprep.subr.bf16.mxu0 0
      %752 = vmatpush1.bf16.msra.mxu0 0
      %753 = vmatprep.subr.bf16.mxu0 0
      %754 = vmatpush1.bf16.msra.mxu0 0
      %755 = vmatprep.subr.bf16.mxu0 0
      %756 = vmatpush1.bf16.msra.mxu0 0
      %757 = vmatprep.subr.bf16.mxu0 0
      %758 = vmatpush1.bf16.msra.mxu0 0
      %759 = vmatprep.mubr.bf16.mxu0 0
      %760 = vmatmul.mubr.bf16.gmra.mrb[0].mxu0 %v721
      %v761 = vpop.f32.mrb[0].mxu0
      %v762 = vadd.f32 0.0, %v761
      %v763 = vpop.f32.mrb[0].mxu0
      %v764 = vpop.f32.mrb[0].mxu0
      %v765 = vpop.f32.mrb[0].mxu0
      %766 = vdwg.mxu0
      %s767 = scalar_lea.vmem %s2, 16
      %v768 = vld [vmem:[%s767] sm:$0xf]
      %v769 = vld [vmem:[%s767 + $0x4] sm:$0xf]
      %v770 = vld [vmem:[%s767 + $0x8] sm:$0xf]
      %v771 = vld [vmem:[%s767 + $0xc] sm:$0xf]
      %s772 = scalar_lea.vmem %s3, 1
      %v773 = vld [vmem:[%s772] sm:$0x1]
      %v775 = vlaneseq
      %v776 = vshrl.u32 %v775, 7
      %v777 = vsub.s32 0, %v776
      %v778 = vrot.slane %v773, %v777
      %v784 = vunpack.c.l.b16 %v768
      %v785 = vunpack.c.l.b16 %v769
      %v786 = vunpack.c.l.b16 %v770
      %v787 = vunpack.c.l.b16 %v771
      %v788 = vpack.c.b16 %v785, %v784
      %v789 = vpack.c.b16 %v787, %v786
      %792 = vmatprep.subr.bf16.mxu0 0
      %793 = vmatpush1.bf16.msra.mxu0 %v788
      %794 = vmatprep.subr.bf16.mxu0 0
      %795 = vmatpush1.bf16.msra.mxu0 %v789
      %796 = vmatprep.subr.bf16.mxu0 0
      %797 = vmatpush1.bf16.msra.mxu0 0
      %798 = vmatprep.subr.bf16.mxu0 0
      %799 = vmatpush1.bf16.msra.mxu0 0
      %800 = vmatprep.subr.bf16.mxu0 0
      %801 = vmatpush1.bf16.msra.mxu0 0
      %802 = vmatprep.subr.bf16.mxu0 0
      %803 = vmatpush1.bf16.msra.mxu0 0
      %804 = vmatprep.subr.bf16.mxu0 0
      %805 = vmatpush1.bf16.msra.mxu0 0
      %806 = vmatprep.subr.bf16.mxu0 0
      %807 = vmatpush1.bf16.msra.mxu0 0
      %808 = vmatprep.subr.bf16.mxu0 0
      %809 = vmatpush1.bf16.msra.mxu0 0
      %810 = vmatprep.subr.bf16.mxu0 0
      %811 = vmatpush1.bf16.msra.mxu0 0
      %812 = vmatprep.subr.bf16.mxu0 0
      %813 = vmatpush1.bf16.msra.mxu0 0
      %814 = vmatprep.subr.bf16.mxu0 0
      %815 = vmatpush1.bf16.msra.mxu0 0
      %816 = vmatprep.subr.bf16.mxu0 0
      %817 = vmatpush1.bf16.msra.mxu0 0
      %818 = vmatprep.subr.bf16.mxu0 0
      %819 = vmatpush1.bf16.msra.mxu0 0
      %820 = vmatprep.subr.bf16.mxu0 0
      %821 = vmatpush1.bf16.msra.mxu0 0
      %822 = vmatprep.subr.bf16.mxu0 0
      %823 = vmatpush1.bf16.msra.mxu0 0
      %824 = vmatprep.mubr.bf16.mxu0 0
      %825 = vmatmul.mubr.bf16.gmra.mrb[0].mxu0 %v487
      %v826 = vpop.f32.mrb[0].mxu0
      %v827 = vadd.f32 %v778, %v826
      %v828 = vpop.f32.mrb[0].mxu0
      %v829 = vpop.f32.mrb[0].mxu0
      %v830 = vpop.f32.mrb[0].mxu0
      %831 = vdwg.mxu0
      %s832 = scalar_lea.vmem %s4, 16
      %v833 = vld [vmem:[%s832] sm:$0xf]
      %v834 = vld [vmem:[%s832 + $0x4] sm:$0xf]
      %v835 = vld [vmem:[%s832 + $0x8] sm:$0xf]
      %v836 = vld [vmem:[%s832 + $0xc] sm:$0xf]
      %s837 = scalar_lea.vmem %s5, 1
      %v838 = vld [vmem:[%s837] sm:$0x1]
      %v840 = vlaneseq
      %v841 = vshrl.u32 %v840, 7
      %v842 = vsub.s32 0, %v841
      %v843 = vrot.slane %v838, %v842
      %v849 = vunpack.c.l.b16 %v833
      %v850 = vunpack.c.l.b16 %v834
      %v851 = vunpack.c.l.b16 %v835
      %v852 = vunpack.c.l.b16 %v836
      %v853 = vpack.c.b16 %v850, %v849
      %v854 = vpack.c.b16 %v852, %v851
      %857 = vmatprep.subr.bf16.mxu0 0
      %858 = vmatpush1.bf16.msra.mxu0 %v853
      %859 = vmatprep.subr.bf16.mxu0 0
      %860 = vmatpush1.bf16.msra.mxu0 %v854
      %861 = vmatprep.subr.bf16.mxu0 0
      %862 = vmatpush1.bf16.msra.mxu0 0
      %863 = vmatprep.subr.bf16.mxu0 0
      %864 = vmatpush1.bf16.msra.mxu0 0
      %865 = vmatprep.subr.bf16.mxu0 0
      %866 = vmatpush1.bf16.msra.mxu0 0
      %867 = vmatprep.subr.bf16.mxu0 0
      %868 = vmatpush1.bf16.msra.mxu0 0
      %869 = vmatprep.subr.bf16.mxu0 0
      %870 = vmatpush1.bf16.msra.mxu0 0
      %871 = vmatprep.subr.bf16.mxu0 0
      %872 = vmatpush1.bf16.msra.mxu0 0
      %873 = vmatprep.subr.bf16.mxu0 0
      %874 = vmatpush1.bf16.msra.mxu0 0
      %875 = vmatprep.subr.bf16.mxu0 0
      %876 = vmatpush1.bf16.msra.mxu0 0
      %877 = vmatprep.subr.bf16.mxu0 0
      %878 = vmatpush1.bf16.msra.mxu0 0
      %879 = vmatprep.subr.bf16.mxu0 0
      %880 = vmatpush1.bf16.msra.mxu0 0
      %881 = vmatprep.subr.bf16.mxu0 0
      %882 = vmatpush1.bf16.msra.mxu0 0
      %883 = vmatprep.subr.bf16.mxu0 0
      %884 = vmatpush1.bf16.msra.mxu0 0
      %885 = vmatprep.subr.bf16.mxu0 0
      %886 = vmatpush1.bf16.msra.mxu0 0
      %887 = vmatprep.subr.bf16.mxu0 0
      %888 = vmatpush1.bf16.msra.mxu0 0
      %889 = vmatprep.mubr.bf16.mxu0 0
      %890 = vmatmul.mubr.bf16.gmra.mrb[0].mxu0 %v553
      %v891 = vpop.f32.mrb[0].mxu0
      %v892 = vadd.f32 %v843, %v891
      %v893 = vpop.f32.mrb[0].mxu0
      %v894 = vpop.f32.mrb[0].mxu0
      %v895 = vpop.f32.mrb[0].mxu0
      %896 = vdwg.mxu0
      %s897 = scalar_lea.vmem %s6, 16
      %v898 = vld [vmem:[%s897] sm:$0xf]
      %v899 = vld [vmem:[%s897 + $0x4] sm:$0xf]
      %v900 = vld [vmem:[%s897 + $0x8] sm:$0xf]
      %v901 = vld [vmem:[%s897 + $0xc] sm:$0xf]
      %s902 = scalar_lea.vmem %s7, 1
      %v903 = vld [vmem:[%s902] sm:$0x1]
      %v905 = vlaneseq
      %v906 = vshrl.u32 %v905, 7
      %v907 = vsub.s32 0, %v906
      %v908 = vrot.slane %v903, %v907
      %v914 = vunpack.c.l.b16 %v898
      %v915 = vunpack.c.l.b16 %v899
      %v916 = vunpack.c.l.b16 %v900
      %v917 = vunpack.c.l.b16 %v901
      %v918 = vpack.c.b16 %v915, %v914
      %v919 = vpack.c.b16 %v917, %v916
      %922 = vmatprep.subr.bf16.mxu0 0
      %923 = vmatpush1.bf16.msra.mxu0 %v918
      %924 = vmatprep.subr.bf16.mxu0 0
      %925 = vmatpush1.bf16.msra.mxu0 %v919
      %926 = vmatprep.subr.bf16.mxu0 0
      %927 = vmatpush1.bf16.msra.mxu0 0
      %928 = vmatprep.subr.bf16.mxu0 0
      %929 = vmatpush1.bf16.msra.mxu0 0
      %930 = vmatprep.subr.bf16.mxu0 0
      %931 = vmatpush1.bf16.msra.mxu0 0
      %932 = vmatprep.subr.bf16.mxu0 0
      %933 = vmatpush1.bf16.msra.mxu0 0
      %934 = vmatprep.subr.bf16.mxu0 0
      %935 = vmatpush1.bf16.msra.mxu0 0
      %936 = vmatprep.subr.bf16.mxu0 0
      %937 = vmatpush1.bf16.msra.mxu0 0
      %938 = vmatprep.subr.bf16.mxu0 0
      %939 = vmatpush1.bf16.msra.mxu0 0
      %940 = vmatprep.subr.bf16.mxu0 0
      %941 = vmatpush1.bf16.msra.mxu0 0
      %942 = vmatprep.subr.bf16.mxu0 0
      %943 = vmatpush1.bf16.msra.mxu0 0
      %944 = vmatprep.subr.bf16.mxu0 0
      %945 = vmatpush1.bf16.msra.mxu0 0
      %946 = vmatprep.subr.bf16.mxu0 0
      %947 = vmatpush1.bf16.msra.mxu0 0
      %948 = vmatprep.subr.bf16.mxu0 0
      %949 = vmatpush1.bf16.msra.mxu0 0
      %950 = vmatprep.subr.bf16.mxu0 0
      %951 = vmatpush1.bf16.msra.mxu0 0
      %952 = vmatprep.subr.bf16.mxu0 0
      %953 = vmatpush1.bf16.msra.mxu0 0
      %954 = vmatprep.mubr.bf16.mxu0 0
      %955 = vmatmul.mubr.bf16.gmra.mrb[0].mxu0 %v553
      %v956 = vpop.f32.mrb[0].mxu0
      %v957 = vadd.f32 %v908, %v956
      %v958 = vpop.f32.mrb[0].mxu0
      %v959 = vpop.f32.mrb[0].mxu0
      %v960 = vpop.f32.mrb[0].mxu0
      %961 = vdwg.mxu0
      %v962 = vpack.c.bf16 %v827, %v827
      %v963 = vpack.c.bf16 %v892, %v892
      %v965 = vsel %vm660, %v962, 0
      %v968 = vsel %vm660, %v963, 0
      %970 = vmatprep.subr.bf16.mxu0 0
      %971 = vmatpush1.bf16.xpose.msra.mxu0 %v968
      %972 = vmatprep.subr.bf16.mxu0 0
      %973 = vmatpush1.bf16.xpose.msra.mxu0 0
      %974 = vmatprep.subr.bf16.mxu0 0
      %975 = vmatpush1.bf16.xpose.msra.mxu0 0
      %976 = vmatprep.subr.bf16.mxu0 0
      %977 = vmatpush1.bf16.xpose.msra.mxu0 0
      %978 = vmatprep.subr.bf16.mxu0 0
      %979 = vmatpush1.bf16.xpose.msra.mxu0 0
      %980 = vmatprep.subr.bf16.mxu0 0
      %981 = vmatpush1.bf16.xpose.msra.mxu0 0
      %982 = vmatprep.subr.bf16.mxu0 0
      %983 = vmatpush1.bf16.xpose.msra.mxu0 0
      %984 = vmatprep.subr.bf16.mxu0 0
      %985 = vmatpush1.bf16.xpose.msra.mxu0 0
      %986 = vmatprep.subr.bf16.mxu0 0
      %987 = vmatpush1.bf16.xpose.msra.mxu0 0
      %988 = vmatprep.subr.bf16.mxu0 0
      %989 = vmatpush1.bf16.xpose.msra.mxu0 0
      %990 = vmatprep.subr.bf16.mxu0 0
      %991 = vmatpush1.bf16.xpose.msra.mxu0 0
      %992 = vmatprep.subr.bf16.mxu0 0
      %993 = vmatpush1.bf16.xpose.msra.mxu0 0
      %994 = vmatprep.subr.bf16.mxu0 0
      %995 = vmatpush1.bf16.xpose.msra.mxu0 0
      %996 = vmatprep.subr.bf16.mxu0 0
      %997 = vmatpush1.bf16.xpose.msra.mxu0 0
      %998 = vmatprep.subr.bf16.mxu0 0
      %999 = vmatpush1.bf16.xpose.msra.mxu0 0
      %1000 = vmatprep.subr.bf16.mxu0 0
      %1001 = vmatpush1.bf16.xpose.msra.mxu0 0
      %1002 = vmatprep.mubr.bf16.mxu0 0
      %1003 = vmatmul.mubr.bf16.gmra.mrb[0].mxu0 %v965
      %v1004 = vpop.f32.mrb[0].mxu0
      %v1005 = vadd.f32 0.0, %v1004
      %v1006 = vpop.f32.mrb[0].mxu0
      %v1007 = vpop.f32.mrb[0].mxu0
      %v1008 = vpop.f32.mrb[0].mxu0
      %1009 = vdwg.mxu0
      %v1010 = vsel %vm660, %v1005, -inf
      %1011 = vmax.xlane.f32.xlu0 %v1010
      %v1012 = vpop.xlane.xlu0 %1011
      %v1013 = vsub.f32 %v1005, %v1012
      %v1014 = vmul.f32 %v1013, 1.442695
      %v1015 = vpow.pop %v1014
      %v1016 = vsel %vm660, %v1015, 0.0
      %1017 = vadd.xlane.f32.xlu0 %v1016
      %v1018 = vpop.xlane.xlu0 %1017
      %v1019 = vrcp.pop %v1018
      %v1020 = vmul.f32 %v1015, %v1019
      %v1021 = vpack.c.bf16 %v1020, %v1020
      %v1022 = vpack.c.bf16 %v957, %v957
      %v1024 = vsel %vm660, %v1021, 0
      %v1027 = vsel %vm723, %v1022, 0
      %1029 = vmatprep.subr.bf16.mxu0 0
      %1030 = vmatpush1.bf16.msra.mxu0 %v1027
      %1031 = vmatprep.subr.bf16.mxu0 0
      %1032 = vmatpush1.bf16.msra.mxu0 0
      %1033 = vmatprep.subr.bf16.mxu0 0
      %1034 = vmatpush1.bf16.msra.mxu0 0
      %1035 = vmatprep.subr.bf16.mxu0 0
      %1036 = vmatpush1.bf16.msra.mxu0 0
      %1037 = vmatprep.subr.bf16.mxu0 0
      %1038 = vmatpush1.bf16.msra.mxu0 0
      %1039 = vmatprep.subr.bf16.mxu0 0
      %1040 = vmatpush1.bf16.msra.mxu0 0
      %1041 = vmatprep.subr.bf16.mxu0 0
      %1042 = vmatpush1.bf16.msra.mxu0 0
      %1043 = vmatprep.subr.bf16.mxu0 0
      %1044 = vmatpush1.bf16.msra.mxu0 0
      %1045 = vmatprep.subr.bf16.mxu0 0
      %1046 = vmatpush1.bf16.msra.mxu0 0
      %1047 = vmatprep.subr.bf16.mxu0 0
      %1048 = vmatpush1.bf16.msra.mxu0 0
      %1049 = vmatprep.subr.bf16.mxu0 0
      %1050 = vmatpush1.bf16.msra.mxu0 0
      %1051 = vmatprep.subr.bf16.mxu0 0
      %1052 = vmatpush1.bf16.msra.mxu0 0
      %1053 = vmatprep.subr.bf16.mxu0 0
      %1054 = vmatpush1.bf16.msra.mxu0 0
      %1055 = vmatprep.subr.bf16.mxu0 0
      %1056 = vmatpush1.bf16.msra.mxu0 0
      %1057 = vmatprep.subr.bf16.mxu0 0
      %1058 = vmatpush1.bf16.msra.mxu0 0
      %1059 = vmatprep.subr.bf16.mxu0 0
      %1060 = vmatpush1.bf16.msra.mxu0 0
      %1061 = vmatprep.mubr.bf16.mxu0 0
      %1062 = vmatmul.mubr.bf16.gmra.mrb[0].mxu0 %v1024
      %v1063 = vpop.f32.mrb[0].mxu0
      %v1064 = vadd.f32 0.0, %v1063
      %v1065 = vpop.f32.mrb[0].mxu0
      %v1066 = vpop.f32.mrb[0].mxu0
      %v1067 = vpop.f32.mrb[0].mxu0
      %1068 = vdwg.mxu0
      %s1069 = scalar_lea.vmem %s2, 32
      %v1070 = vld [vmem:[%s1069] sm:$0xf]
      %v1071 = vld [vmem:[%s1069 + $0x4] sm:$0xf]
      %v1072 = vld [vmem:[%s1069 + $0x8] sm:$0xf]
      %v1073 = vld [vmem:[%s1069 + $0xc] sm:$0xf]
      %s1074 = scalar_lea.vmem %s3, 2
      %v1075 = vld [vmem:[%s1074] sm:$0x1]
      %v1077 = vlaneseq
      %v1078 = vshrl.u32 %v1077, 7
      %v1079 = vsub.s32 0, %v1078
      %v1080 = vrot.slane %v1075, %v1079
      %v1086 = vunpack.c.l.b16 %v1070
      %v1087 = vunpack.c.l.b16 %v1071
      %v1088 = vunpack.c.l.b16 %v1072
      %v1089 = vunpack.c.l.b16 %v1073
      %v1090 = vpack.c.b16 %v1087, %v1086
      %v1091 = vpack.c.b16 %v1089, %v1088
      %1094 = vmatprep.subr.bf16.mxu0 0
      %1095 = vmatpush1.bf16.msra.mxu0 %v1090
      %1096 = vmatprep.subr.bf16.mxu0 0
      %1097 = vmatpush1.bf16.msra.mxu0 %v1091
      %1098 = vmatprep.subr.bf16.mxu0 0
      %1099 = vmatpush1.bf16.msra.mxu0 0
      %1100 = vmatprep.subr.bf16.mxu0 0
      %1101 = vmatpush1.bf16.msra.mxu0 0
      %1102 = vmatprep.subr.bf16.mxu0 0
      %1103 = vmatpush1.bf16.msra.mxu0 0
      %1104 = vmatprep.subr.bf16.mxu0 0
      %1105 = vmatpush1.bf16.msra.mxu0 0
      %1106 = vmatprep.subr.bf16.mxu0 0
      %1107 = vmatpush1.bf16.msra.mxu0 0
      %1108 = vmatprep.subr.bf16.mxu0 0
      %1109 = vmatpush1.bf16.msra.mxu0 0
      %1110 = vmatprep.subr.bf16.mxu0 0
      %1111 = vmatpush1.bf16.msra.mxu0 0
      %1112 = vmatprep.subr.bf16.mxu0 0
      %1113 = vmatpush1.bf16.msra.mxu0 0
      %1114 = vmatprep.subr.bf16.mxu0 0
      %1115 = vmatpush1.bf16.msra.mxu0 0
      %1116 = vmatprep.subr.bf16.mxu0 0
      %1117 = vmatpush1.bf16.msra.mxu0 0
      %1118 = vmatprep.subr.bf16.mxu0 0
      %1119 = vmatpush1.bf16.msra.mxu0 0
      %1120 = vmatprep.subr.bf16.mxu0 0
      %1121 = vmatpush1.bf16.msra.mxu0 0
      %1122 = vmatprep.subr.bf16.mxu0 0
      %1123 = vmatpush1.bf16.msra.mxu0 0
      %1124 = vmatprep.subr.bf16.mxu0 0
      %1125 = vmatpush1.bf16.msra.mxu0 0
      %1126 = vmatprep.mubr.bf16.mxu0 0
      %1127 = vmatmul.mubr.bf16.gmra.mrb[0].mxu0 %v487
      %v1128 = vpop.f32.mrb[0].mxu0
      %v1129 = vadd.f32 %v1080, %v1128
      %v1130 = vpop.f32.mrb[0].mxu0
      %v1131 = vpop.f32.mrb[0].mxu0
      %v1132 = vpop.f32.mrb[0].mxu0
      %1133 = vdwg.mxu0
      %s1134 = scalar_lea.vmem %s4, 32
      %v1135 = vld [vmem:[%s1134] sm:$0xf]
      %v1136 = vld [vmem:[%s1134 + $0x4] sm:$0xf]
      %v1137 = vld [vmem:[%s1134 + $0x8] sm:$0xf]
      %v1138 = vld [vmem:[%s1134 + $0xc] sm:$0xf]
      %s1139 = scalar_lea.vmem %s5, 2
      %v1140 = vld [vmem:[%s1139] sm:$0x1]
      %v1142 = vlaneseq
      %v1143 = vshrl.u32 %v1142, 7
      %v1144 = vsub.s32 0, %v1143
      %v1145 = vrot.slane %v1140, %v1144
      %v1151 = vunpack.c.l.b16 %v1135
      %v1152 = vunpack.c.l.b16 %v1136
      %v1153 = vunpack.c.l.b16 %v1137
      %v1154 = vunpack.c.l.b16 %v1138
      %v1155 = vpack.c.b16 %v1152, %v1151
      %v1156 = vpack.c.b16 %v1154, %v1153
      %1159 = vmatprep.subr.bf16.mxu0 0
      %1160 = vmatpush1.bf16.msra.mxu0 %v1155
      %1161 = vmatprep.subr.bf16.mxu0 0
      %1162 = vmatpush1.bf16.msra.mxu0 %v1156
      %1163 = vmatprep.subr.bf16.mxu0 0
      %1164 = vmatpush1.bf16.msra.mxu0 0
      %1165 = vmatprep.subr.bf16.mxu0 0
      %1166 = vmatpush1.bf16.msra.mxu0 0
      %1167 = vmatprep.subr.bf16.mxu0 0
      %1168 = vmatpush1.bf16.msra.mxu0 0
      %1169 = vmatprep.subr.bf16.mxu0 0
      %1170 = vmatpush1.bf16.msra.mxu0 0
      %1171 = vmatprep.subr.bf16.mxu0 0
      %1172 = vmatpush1.bf16.msra.mxu0 0
      %1173 = vmatprep.subr.bf16.mxu0 0
      %1174 = vmatpush1.bf16.msra.mxu0 0
      %1175 = vmatprep.subr.bf16.mxu0 0
      %1176 = vmatpush1.bf16.msra.mxu0 0
      %1177 = vmatprep.subr.bf16.mxu0 0
      %1178 = vmatpush1.bf16.msra.mxu0 0
      %1179 = vmatprep.subr.bf16.mxu0 0
      %1180 = vmatpush1.bf16.msra.mxu0 0
      %1181 = vmatprep.subr.bf16.mxu0 0
      %1182 = vmatpush1.bf16.msra.mxu0 0
      %1183 = vmatprep.subr.bf16.mxu0 0
      %1184 = vmatpush1.bf16.msra.mxu0 0
      %1185 = vmatprep.subr.bf16.mxu0 0
      %1186 = vmatpush1.bf16.msra.mxu0 0
      %1187 = vmatprep.subr.bf16.mxu0 0
      %1188 = vmatpush1.bf16.msra.mxu0 0
      %1189 = vmatprep.subr.bf16.mxu0 0
      %1190 = vmatpush1.bf16.msra.mxu0 0
      %1191 = vmatprep.mubr.bf16.mxu0 0
      %1192 = vmatmul.mubr.bf16.gmra.mrb[0].mxu0 %v553
      %v1193 = vpop.f32.mrb[0].mxu0
      %v1194 = vadd.f32 %v1145, %v1193
      %v1195 = vpop.f32.mrb[0].mxu0
      %v1196 = vpop.f32.mrb[0].mxu0
      %v1197 = vpop.f32.mrb[0].mxu0
      %1198 = vdwg.mxu0
      %s1199 = scalar_lea.vmem %s6, 32
      %v1200 = vld [vmem:[%s1199] sm:$0xf]
      %v1201 = vld [vmem:[%s1199 + $0x4] sm:$0xf]
      %v1202 = vld [vmem:[%s1199 + $0x8] sm:$0xf]
      %v1203 = vld [vmem:[%s1199 + $0xc] sm:$0xf]
      %s1204 = scalar_lea.vmem %s7, 2
      %v1205 = vld [vmem:[%s1204] sm:$0x1]
      %v1207 = vlaneseq
      %v1208 = vshrl.u32 %v1207, 7
      %v1209 = vsub.s32 0, %v1208
      %v1210 = vrot.slane %v1205, %v1209
      %v1216 = vunpack.c.l.b16 %v1200
      %v1217 = vunpack.c.l.b16 %v1201
      %v1218 = vunpack.c.l.b16 %v1202
      %v1219 = vunpack.c.l.b16 %v1203
      %v1220 = vpack.c.b16 %v1217, %v1216
      %v1221 = vpack.c.b16 %v1219, %v1218
      %1224 = vmatprep.subr.bf16.mxu0 0
      %1225 = vmatpush1.bf16.msra.mxu0 %v1220
      %1226 = vmatprep.subr.bf16.mxu0 0
      %1227 = vmatpush1.bf16.msra.mxu0 %v1221
      %1228 = vmatprep.subr.bf16.mxu0 0
      %1229 = vmatpush1.bf16.msra.mxu0 0
      %1230 = vmatprep.subr.bf16.mxu0 0
      %1231 = vmatpush1.bf16.msra.mxu0 0
      %1232 = vmatprep.subr.bf16.mxu0 0
      %1233 = vmatpush1.bf16.msra.mxu0 0
      %1234 = vmatprep.subr.bf16.mxu0 0
      %1235 = vmatpush1.bf16.msra.mxu0 0
      %1236 = vmatprep.subr.bf16.mxu0 0
      %1237 = vmatpush1.bf16.msra.mxu0 0
      %1238 = vmatprep.subr.bf16.mxu0 0
      %1239 = vmatpush1.bf16.msra.mxu0 0
      %1240 = vmatprep.subr.bf16.mxu0 0
      %1241 = vmatpush1.bf16.msra.mxu0 0
      %1242 = vmatprep.subr.bf16.mxu0 0
      %1243 = vmatpush1.bf16.msra.mxu0 0
      %1244 = vmatprep.subr.bf16.mxu0 0
      %1245 = vmatpush1.bf16.msra.mxu0 0
      %1246 = vmatprep.subr.bf16.mxu0 0
      %1247 = vmatpush1.bf16.msra.mxu0 0
      %1248 = vmatprep.subr.bf16.mxu0 0
      %1249 = vmatpush1.bf16.msra.mxu0 0
      %1250 = vmatprep.subr.bf16.mxu0 0
      %1251 = vmatpush1.bf16.msra.mxu0 0
      %1252 = vmatprep.subr.bf16.mxu0 0
      %1253 = vmatpush1.bf16.msra.mxu0 0
      %1254 = vmatprep.subr.bf16.mxu0 0
      %1255 = vmatpush1.bf16.msra.mxu0 0
      %1256 = vmatprep.mubr.bf16.mxu0 0
      %1257 = vmatmul.mubr.bf16.gmra.mrb[0].mxu0 %v553
      %v1258 = vpop.f32.mrb[0].mxu0
      %v1259 = vadd.f32 %v1210, %v1258
      %v1260 = vpop.f32.mrb[0].mxu0
      %v1261 = vpop.f32.mrb[0].mxu0
      %v1262 = vpop.f32.mrb[0].mxu0
      %1263 = vdwg.mxu0
      %v1264 = vpack.c.bf16 %v1129, %v1129
      %v1265 = vpack.c.bf16 %v1194, %v1194
      %v1267 = vsel %vm660, %v1264, 0
      %v1270 = vsel %vm660, %v1265, 0
      %1272 = vmatprep.subr.bf16.mxu0 0
      %1273 = vmatpush1.bf16.xpose.msra.mxu0 %v1270
      %1274 = vmatprep.subr.bf16.mxu0 0
      %1275 = vmatpush1.bf16.xpose.msra.mxu0 0
      %1276 = vmatprep.subr.bf16.mxu0 0
      %1277 = vmatpush1.bf16.xpose.msra.mxu0 0
      %1278 = vmatprep.subr.bf16.mxu0 0
      %1279 = vmatpush1.bf16.xpose.msra.mxu0 0
      %1280 = vmatprep.subr.bf16.mxu0 0
      %1281 = vmatpush1.bf16.xpose.msra.mxu0 0
      %1282 = vmatprep.subr.bf16.mxu0 0
      %1283 = vmatpush1.bf16.xpose.msra.mxu0 0
      %1284 = vmatprep.subr.bf16.mxu0 0
      %1285 = vmatpush1.bf16.xpose.msra.mxu0 0
      %1286 = vmatprep.subr.bf16.mxu0 0
      %1287 = vmatpush1.bf16.xpose.msra.mxu0 0
      %1288 = vmatprep.subr.bf16.mxu0 0
      %1289 = vmatpush1.bf16.xpose.msra.mxu0 0
      %1290 = vmatprep.subr.bf16.mxu0 0
      %1291 = vmatpush1.bf16.xpose.msra.mxu0 0
      %1292 = vmatprep.subr.bf16.mxu0 0
      %1293 = vmatpush1.bf16.xpose.msra.mxu0 0
      %1294 = vmatprep.subr.bf16.mxu0 0
      %1295 = vmatpush1.bf16.xpose.msra.mxu0 0
      %1296 = vmatprep.subr.bf16.mxu0 0
      %1297 = vmatpush1.bf16.xpose.msra.mxu0 0
      %1298 = vmatprep.subr.bf16.mxu0 0
      %1299 = vmatpush1.bf16.xpose.msra.mxu0 0
      %1300 = vmatprep.subr.bf16.mxu0 0
      %1301 = vmatpush1.bf16.xpose.msra.mxu0 0
      %1302 = vmatprep.subr.bf16.mxu0 0
      %1303 = vmatpush1.bf16.xpose.msra.mxu0 0
      %1304 = vmatprep.mubr.bf16.mxu0 0
      %1305 = vmatmul.mubr.bf16.gmra.mrb[0].mxu0 %v1267
      %v1306 = vpop.f32.mrb[0].mxu0
      %v1307 = vadd.f32 0.0, %v1306
      %v1308 = vpop.f32.mrb[0].mxu0
      %v1309 = vpop.f32.mrb[0].mxu0
      %v1310 = vpop.f32.mrb[0].mxu0
      %1311 = vdwg.mxu0
      %v1312 = vsel %vm660, %v1307, -inf
      %1313 = vmax.xlane.f32.xlu0 %v1312
      %v1314 = vpop.xlane.xlu0 %1313
      %v1315 = vsub.f32 %v1307, %v1314
      %v1316 = vmul.f32 %v1315, 1.442695
      %v1317 = vpow.pop %v1316
      %v1318 = vsel %vm660, %v1317, 0.0
      %1319 = vadd.xlane.f32.xlu0 %v1318
      %v1320 = vpop.xlane.xlu0 %1319
      %v1321 = vrcp.pop %v1320
      %v1322 = vmul.f32 %v1317, %v1321
      %v1323 = vpack.c.bf16 %v1322, %v1322
      %v1324 = vpack.c.bf16 %v1259, %v1259
      %v1326 = vsel %vm660, %v1323, 0
      %v1329 = vsel %vm723, %v1324, 0
      %1331 = vmatprep.subr.bf16.mxu0 0
      %1332 = vmatpush1.bf16.msra.mxu0 %v1329
      %1333 = vmatprep.subr.bf16.mxu0 0
      %1334 = vmatpush1.bf16.msra.mxu0 0
      %1335 = vmatprep.subr.bf16.mxu0 0
      %1336 = vmatpush1.bf16.msra.mxu0 0
      %1337 = vmatprep.subr.bf16.mxu0 0
      %1338 = vmatpush1.bf16.msra.mxu0 0
      %1339 = vmatprep.subr.bf16.mxu0 0
      %1340 = vmatpush1.bf16.msra.mxu0 0
      %1341 = vmatprep.subr.bf16.mxu0 0
      %1342 = vmatpush1.bf16.msra.mxu0 0
      %1343 = vmatprep.subr.bf16.mxu0 0
      %1344 = vmatpush1.bf16.msra.mxu0 0
      %1345 = vmatprep.subr.bf16.mxu0 0
      %1346 = vmatpush1.bf16.msra.mxu0 0
      %1347 = vmatprep.subr.bf16.mxu0 0
      %1348 = vmatpush1.bf16.msra.mxu0 0
      %1349 = vmatprep.subr.bf16.mxu0 0
      %1350 = vmatpush1.bf16.msra.mxu0 0
      %1351 = vmatprep.subr.bf16.mxu0 0
      %1352 = vmatpush1.bf16.msra.mxu0 0
      %1353 = vmatprep.subr.bf16.mxu0 0
      %1354 = vmatpush1.bf16.msra.mxu0 0
      %1355 = vmatprep.subr.bf16.mxu0 0
      %1356 = vmatpush1.bf16.msra.mxu0 0
      %1357 = vmatprep.subr.bf16.mxu0 0
      %1358 = vmatpush1.bf16.msra.mxu0 0
      %1359 = vmatprep.subr.bf16.mxu0 0
      %1360 = vmatpush1.bf16.msra.mxu0 0
      %1361 = vmatprep.subr.bf16.mxu0 0
      %1362 = vmatpush1.bf16.msra.mxu0 0
      %1363 = vmatprep.mubr.bf16.mxu0 0
      %1364 = vmatmul.mubr.bf16.gmra.mrb[0].mxu0 %v1326
      %v1365 = vpop.f32.mrb[0].mxu0
      %v1366 = vadd.f32 0.0, %v1365
      %v1367 = vpop.f32.mrb[0].mxu0
      %v1368 = vpop.f32.mrb[0].mxu0
      %v1369 = vpop.f32.mrb[0].mxu0
      %1370 = vdwg.mxu0
      %s1371 = scalar_lea.vmem %s2, 48
      %v1372 = vld [vmem:[%s1371] sm:$0xf]
      %v1373 = vld [vmem:[%s1371 + $0x4] sm:$0xf]
      %v1374 = vld [vmem:[%s1371 + $0x8] sm:$0xf]
      %v1375 = vld [vmem:[%s1371 + $0xc] sm:$0xf]
      %s1376 = scalar_lea.vmem %s3, 3
      %v1377 = vld [vmem:[%s1376] sm:$0x1]
      %v1379 = vlaneseq
      %v1380 = vshrl.u32 %v1379, 7
      %v1381 = vsub.s32 0, %v1380
      %v1382 = vrot.slane %v1377, %v1381
      %v1388 = vunpack.c.l.b16 %v1372
      %v1389 = vunpack.c.l.b16 %v1373
      %v1390 = vunpack.c.l.b16 %v1374
      %v1391 = vunpack.c.l.b16 %v1375
      %v1392 = vpack.c.b16 %v1389, %v1388
      %v1393 = vpack.c.b16 %v1391, %v1390
      %1396 = vmatprep.subr.bf16.mxu0 0
      %1397 = vmatpush1.bf16.msra.mxu0 %v1392
      %1398 = vmatprep.subr.bf16.mxu0 0
      %1399 = vmatpush1.bf16.msra.mxu0 %v1393
      %1400 = vmatprep.subr.bf16.mxu0 0
      %1401 = vmatpush1.bf16.msra.mxu0 0
      %1402 = vmatprep.subr.bf16.mxu0 0
      %1403 = vmatpush1.bf16.msra.mxu0 0
      %1404 = vmatprep.subr.bf16.mxu0 0
      %1405 = vmatpush1.bf16.msra.mxu0 0
      %1406 = vmatprep.subr.bf16.mxu0 0
      %1407 = vmatpush1.bf16.msra.mxu0 0
      %1408 = vmatprep.subr.bf16.mxu0 0
      %1409 = vmatpush1.bf16.msra.mxu0 0
      %1410 = vmatprep.subr.bf16.mxu0 0
      %1411 = vmatpush1.bf16.msra.mxu0 0
      %1412 = vmatprep.subr.bf16.mxu0 0
      %1413 = vmatpush1.bf16.msra.mxu0 0
      %1414 = vmatprep.subr.bf16.mxu0 0
      %1415 = vmatpush1.bf16.msra.mxu0 0
      %1416 = vmatprep.subr.bf16.mxu0 0
      %1417 = vmatpush1.bf16.msra.mxu0 0
      %1418 = vmatprep.subr.bf16.mxu0 0
      %1419 = vmatpush1.bf16.msra.mxu0 0
      %1420 = vmatprep.subr.bf16.mxu0 0
      %1421 = vmatpush1.bf16.msra.mxu0 0
      %1422 = vmatprep.subr.bf16.mxu0 0
      %1423 = vmatpush1.bf16.msra.mxu0 0
      %1424 = vmatprep.subr.bf16.mxu0 0
      %1425 = vmatpush1.bf16.msra.mxu0 0
      %1426 = vmatprep.subr.bf16.mxu0 0
      %1427 = vmatpush1.bf16.msra.mxu0 0
      %1428 = vmatprep.mubr.bf16.mxu0 0
      %1429 = vmatmul.mubr.bf16.gmra.mrb[0].mxu0 %v487
      %v1430 = vpop.f32.mrb[0].mxu0
      %v1431 = vadd.f32 %v1382, %v1430
      %v1432 = vpop.f32.mrb[0].mxu0
      %v1433 = vpop.f32.mrb[0].mxu0
      %v1434 = vpop.f32.mrb[0].mxu0
      %1435 = vdwg.mxu0
      %s1436 = scalar_lea.vmem %s4, 48
      %v1437 = vld [vmem:[%s1436] sm:$0xf]
      %v1438 = vld [vmem:[%s1436 + $0x4] sm:$0xf]
      %v1439 = vld [vmem:[%s1436 + $0x8] sm:$0xf]
      %v1440 = vld [vmem:[%s1436 + $0xc] sm:$0xf]
      %s1441 = scalar_lea.vmem %s5, 3
      %v1442 = vld [vmem:[%s1441] sm:$0x1]
      %v1444 = vlaneseq
      %v1445 = vshrl.u32 %v1444, 7
      %v1446 = vsub.s32 0, %v1445
      %v1447 = vrot.slane %v1442, %v1446
      %v1453 = vunpack.c.l.b16 %v1437
      %v1454 = vunpack.c.l.b16 %v1438
      %v1455 = vunpack.c.l.b16 %v1439
      %v1456 = vunpack.c.l.b16 %v1440
      %v1457 = vpack.c.b16 %v1454, %v1453
      %v1458 = vpack.c.b16 %v1456, %v1455
      %1461 = vmatprep.subr.bf16.mxu0 0
      %1462 = vmatpush1.bf16.msra.mxu0 %v1457
      %1463 = vmatprep.subr.bf16.mxu0 0
      %1464 = vmatpush1.bf16.msra.mxu0 %v1458
      %1465 = vmatprep.subr.bf16.mxu0 0
      %1466 = vmatpush1.bf16.msra.mxu0 0
      %1467 = vmatprep.subr.bf16.mxu0 0
      %1468 = vmatpush1.bf16.msra.mxu0 0
      %1469 = vmatprep.subr.bf16.mxu0 0
      %1470 = vmatpush1.bf16.msra.mxu0 0
      %1471 = vmatprep.subr.bf16.mxu0 0
      %1472 = vmatpush1.bf16.msra.mxu0 0
      %1473 = vmatprep.subr.bf16.mxu0 0
      %1474 = vmatpush1.bf16.msra.mxu0 0
      %1475 = vmatprep.subr.bf16.mxu0 0
      %1476 = vmatpush1.bf16.msra.mxu0 0
      %1477 = vmatprep.subr.bf16.mxu0 0
      %1478 = vmatpush1.bf16.msra.mxu0 0
      %1479 = vmatprep.subr.bf16.mxu0 0
      %1480 = vmatpush1.bf16.msra.mxu0 0
      %1481 = vmatprep.subr.bf16.mxu0 0
      %1482 = vmatpush1.bf16.msra.mxu0 0
      %1483 = vmatprep.subr.bf16.mxu0 0
      %1484 = vmatpush1.bf16.msra.mxu0 0
      %1485 = vmatprep.subr.bf16.mxu0 0
      %1486 = vmatpush1.bf16.msra.mxu0 0
      %1487 = vmatprep.subr.bf16.mxu0 0
      %1488 = vmatpush1.bf16.msra.mxu0 0
      %1489 = vmatprep.subr.bf16.mxu0 0
      %1490 = vmatpush1.bf16.msra.mxu0 0
      %1491 = vmatprep.subr.bf16.mxu0 0
      %1492 = vmatpush1.bf16.msra.mxu0 0
      %1493 = vmatprep.mubr.bf16.mxu0 0
      %1494 = vmatmul.mubr.bf16.gmra.mrb[0].mxu0 %v553
      %v1495 = vpop.f32.mrb[0].mxu0
      %v1496 = vadd.f32 %v1447, %v1495
      %v1497 = vpop.f32.mrb[0].mxu0
      %v1498 = vpop.f32.mrb[0].mxu0
      %v1499 = vpop.f32.mrb[0].mxu0
      %1500 = vdwg.mxu0
      %s1501 = scalar_lea.vmem %s6, 48
      %v1502 = vld [vmem:[%s1501] sm:$0xf]
      %v1503 = vld [vmem:[%s1501 + $0x4] sm:$0xf]
      %v1504 = vld [vmem:[%s1501 + $0x8] sm:$0xf]
      %v1505 = vld [vmem:[%s1501 + $0xc] sm:$0xf]
      %s1506 = scalar_lea.vmem %s7, 3
      %v1507 = vld [vmem:[%s1506] sm:$0x1]
      %v1509 = vlaneseq
      %v1510 = vshrl.u32 %v1509, 7
      %v1511 = vsub.s32 0, %v1510
      %v1512 = vrot.slane %v1507, %v1511
      %v1518 = vunpack.c.l.b16 %v1502
      %v1519 = vunpack.c.l.b16 %v1503
      %v1520 = vunpack.c.l.b16 %v1504
      %v1521 = vunpack.c.l.b16 %v1505
      %v1522 = vpack.c.b16 %v1519, %v1518
      %v1523 = vpack.c.b16 %v1521, %v1520
      %1526 = vmatprep.subr.bf16.mxu0 0
      %1527 = vmatpush1.bf16.msra.mxu0 %v1522
      %1528 = vmatprep.subr.bf16.mxu0 0
      %1529 = vmatpush1.bf16.msra.mxu0 %v1523
      %1530 = vmatprep.subr.bf16.mxu0 0
      %1531 = vmatpush1.bf16.msra.mxu0 0
      %1532 = vmatprep.subr.bf16.mxu0 0
      %1533 = vmatpush1.bf16.msra.mxu0 0
      %1534 = vmatprep.subr.bf16.mxu0 0
      %1535 = vmatpush1.bf16.msra.mxu0 0
      %1536 = vmatprep.subr.bf16.mxu0 0
      %1537 = vmatpush1.bf16.msra.mxu0 0
      %1538 = vmatprep.subr.bf16.mxu0 0
      %1539 = vmatpush1.bf16.msra.mxu0 0
      %1540 = vmatprep.subr.bf16.mxu0 0
      %1541 = vmatpush1.bf16.msra.mxu0 0
      %1542 = vmatprep.subr.bf16.mxu0 0
      %1543 = vmatpush1.bf16.msra.mxu0 0
      %1544 = vmatprep.subr.bf16.mxu0 0
      %1545 = vmatpush1.bf16.msra.mxu0 0
      %1546 = vmatprep.subr.bf16.mxu0 0
      %1547 = vmatpush1.bf16.msra.mxu0 0
      %1548 = vmatprep.subr.bf16.mxu0 0
      %1549 = vmatpush1.bf16.msra.mxu0 0
      %1550 = vmatprep.subr.bf16.mxu0 0
      %1551 = vmatpush1.bf16.msra.mxu0 0
      %1552 = vmatprep.subr.bf16.mxu0 0
      %1553 = vmatpush1.bf16.msra.mxu0 0
      %1554 = vmatprep.subr.bf16.mxu0 0
      %1555 = vmatpush1.bf16.msra.mxu0 0
      %1556 = vmatprep.subr.bf16.mxu0 0
      %1557 = vmatpush1.bf16.msra.mxu0 0
      %1558 = vmatprep.mubr.bf16.mxu0 0
      %1559 = vmatmul.mubr.bf16.gmra.mrb[0].mxu0 %v553
      %v1560 = vpop.f32.mrb[0].mxu0
      %v1561 = vadd.f32 %v1512, %v1560
      %v1562 = vpop.f32.mrb[0].mxu0
      %v1563 = vpop.f32.mrb[0].mxu0
      %v1564 = vpop.f32.mrb[0].mxu0
      %1565 = vdwg.mxu0
      %v1566 = vpack.c.bf16 %v1431, %v1431
      %v1567 = vpack.c.bf16 %v1496, %v1496
      %v1569 = vsel %vm660, %v1566, 0
      %v1572 = vsel %vm660, %v1567, 0
      %1574 = vmatprep.subr.bf16.mxu0 0
      %1575 = vmatpush1.bf16.xpose.msra.mxu0 %v1572
      %1576 = vmatprep.subr.bf16.mxu0 0
      %1577 = vmatpush1.bf16.xpose.msra.mxu0 0
      %1578 = vmatprep.subr.bf16.mxu0 0
      %1579 = vmatpush1.bf16.xpose.msra.mxu0 0
      %1580 = vmatprep.subr.bf16.mxu0 0
      %1581 = vmatpush1.bf16.xpose.msra.mxu0 0
      %1582 = vmatprep.subr.bf16.mxu0 0
      %1583 = vmatpush1.bf16.xpose.msra.mxu0 0
      %1584 = vmatprep.subr.bf16.mxu0 0
      %1585 = vmatpush1.bf16.xpose.msra.mxu0 0
      %1586 = vmatprep.subr.bf16.mxu0 0
      %1587 = vmatpush1.bf16.xpose.msra.mxu0 0
      %1588 = vmatprep.subr.bf16.mxu0 0
      %1589 = vmatpush1.bf16.xpose.msra.mxu0 0
      %1590 = vmatprep.subr.bf16.mxu0 0
      %1591 = vmatpush1.bf16.xpose.msra.mxu0 0
      %1592 = vmatprep.subr.bf16.mxu0 0
      %1593 = vmatpush1.bf16.xpose.msra.mxu0 0
      %1594 = vmatprep.subr.bf16.mxu0 0
      %1595 = vmatpush1.bf16.xpose.msra.mxu0 0
      %1596 = vmatprep.subr.bf16.mxu0 0
      %1597 = vmatpush1.bf16.xpose.msra.mxu0 0
      %1598 = vmatprep.subr.bf16.mxu0 0
      %1599 = vmatpush1.bf16.xpose.msra.mxu0 0
      %1600 = vmatprep.subr.bf16.mxu0 0
      %1601 = vmatpush1.bf16.xpose.msra.mxu0 0
      %1602 = vmatprep.subr.bf16.mxu0 0
      %1603 = vmatpush1.bf16.xpose.msra.mxu0 0
      %1604 = vmatprep.subr.bf16.mxu0 0
      %1605 = vmatpush1.bf16.xpose.msra.mxu0 0
      %1606 = vmatprep.mubr.bf16.mxu0 0
      %1607 = vmatmul.mubr.bf16.gmra.mrb[0].mxu0 %v1569
      %v1608 = vpop.f32.mrb[0].mxu0
      %v1609 = vadd.f32 0.0, %v1608
      %v1610 = vpop.f32.mrb[0].mxu0
      %v1611 = vpop.f32.mrb[0].mxu0
      %v1612 = vpop.f32.mrb[0].mxu0
      %1613 = vdwg.mxu0
      %v1614 = vsel %vm660, %v1609, -inf
      %1615 = vmax.xlane.f32.xlu0 %v1614
      %v1616 = vpop.xlane.xlu0 %1615
      %v1617 = vsub.f32 %v1609, %v1616
      %v1618 = vmul.f32 %v1617, 1.442695
      %v1619 = vpow.pop %v1618
      %v1620 = vsel %vm660, %v1619, 0.0
      %1621 = vadd.xlane.f32.xlu0 %v1620
      %v1622 = vpop.xlane.xlu0 %1621
      %v1623 = vrcp.pop %v1622
      %v1624 = vmul.f32 %v1619, %v1623
      %v1625 = vpack.c.bf16 %v1624, %v1624
      %v1626 = vpack.c.bf16 %v1561, %v1561
      %v1628 = vsel %vm660, %v1625, 0
      %v1631 = vsel %vm723, %v1626, 0
      %1633 = vmatprep.subr.bf16.mxu0 0
      %1634 = vmatpush1.bf16.msra.mxu0 %v1631
      %1635 = vmatprep.subr.bf16.mxu0 0
      %1636 = vmatpush1.bf16.msra.mxu0 0
      %1637 = vmatprep.subr.bf16.mxu0 0
      %1638 = vmatpush1.bf16.msra.mxu0 0
      %1639 = vmatprep.subr.bf16.mxu0 0
      %1640 = vmatpush1.bf16.msra.mxu0 0
      %1641 = vmatprep.subr.bf16.mxu0 0
      %1642 = vmatpush1.bf16.msra.mxu0 0
      %1643 = vmatprep.subr.bf16.mxu0 0
      %1644 = vmatpush1.bf16.msra.mxu0 0
      %1645 = vmatprep.subr.bf16.mxu0 0
      %1646 = vmatpush1.bf16.msra.mxu0 0
      %1647 = vmatprep.subr.bf16.mxu0 0
      %1648 = vmatpush1.bf16.msra.mxu0 0
      %1649 = vmatprep.subr.bf16.mxu0 0
      %1650 = vmatpush1.bf16.msra.mxu0 0
      %1651 = vmatprep.subr.bf16.mxu0 0
      %1652 = vmatpush1.bf16.msra.mxu0 0
      %1653 = vmatprep.subr.bf16.mxu0 0
      %1654 = vmatpush1.bf16.msra.mxu0 0
      %1655 = vmatprep.subr.bf16.mxu0 0
      %1656 = vmatpush1.bf16.msra.mxu0 0
      %1657 = vmatprep.subr.bf16.mxu0 0
      %1658 = vmatpush1.bf16.msra.mxu0 0
      %1659 = vmatprep.subr.bf16.mxu0 0
      %1660 = vmatpush1.bf16.msra.mxu0 0
      %1661 = vmatprep.subr.bf16.mxu0 0
      %1662 = vmatpush1.bf16.msra.mxu0 0
      %1663 = vmatprep.subr.bf16.mxu0 0
      %1664 = vmatpush1.bf16.msra.mxu0 0
      %1665 = vmatprep.mubr.bf16.mxu0 0
      %1666 = vmatmul.mubr.bf16.gmra.mrb[0].mxu0 %v1628
      %v1667 = vpop.f32.mrb[0].mxu0
      %v1668 = vadd.f32 0.0, %v1667
      %v1669 = vpop.f32.mrb[0].mxu0
      %v1670 = vpop.f32.mrb[0].mxu0
      %v1671 = vpop.f32.mrb[0].mxu0
      %1672 = vdwg.mxu0
      %1674 = vrot.lane.b32.xlu0 %v1064, 8
      %v1675 = vpop.permute.xlu0 %1674
      %1678 = vrot.lane.b32.xlu0 %v1366, 16
      %v1679 = vpop.permute.xlu0 %1678
      %1682 = vrot.lane.b32.xlu0 %v1668, 24
      %v1683 = vpop.permute.xlu0 %1682
      %v1685 = vsel %vm660, %v762, %v1675
      %vm1686 = vcmask 130048
      %v1687 = vsel %vm1686, %v1685, %v1679
      %vm1688 = vcmask 195584
      %v1689 = vsel %vm1688, %v1687, %v1683
      %v1690 = vpack.c.bf16 %v1689, %v1689
      %v1691 = vld [vmem:[%s8] sm:$0xf]
      %v1692 = vld [vmem:[%s8 + $0x4] sm:$0xf]
      %v1693 = vld [vmem:[%s8 + $0x8] sm:$0xf]
      %v1694 = vld [vmem:[%s8 + $0xc] sm:$0xf]
      %v1695 = vld [vmem:[%s9] sm:$0x1]
      %v1697 = vlaneseq
      %v1698 = vshrl.u32 %v1697, 7
      %v1699 = vsub.s32 0, %v1698
      %v1700 = vrot.slane %v1695, %v1699
      %v1706 = vunpack.c.l.b16 %v1691
      %v1707 = vunpack.c.l.b16 %v1692
      %v1708 = vunpack.c.l.b16 %v1693
      %v1709 = vunpack.c.l.b16 %v1694
      %v1710 = vpack.c.b16 %v1707, %v1706
      %v1711 = vpack.c.b16 %v1709, %v1708
      %v1715 = vsel %vm485, %v1690, 0
      %1717 = vmatprep.subr.bf16.mxu0 0
      %1718 = vmatpush1.bf16.msra.mxu0 %v1710
      %1719 = vmatprep.subr.bf16.mxu0 0
      %1720 = vmatpush1.bf16.msra.mxu0 %v1711
      %1721 = vmatprep.subr.bf16.mxu0 0
      %1722 = vmatpush1.bf16.msra.mxu0 0
      %1723 = vmatprep.subr.bf16.mxu0 0
      %1724 = vmatpush1.bf16.msra.mxu0 0
      %1725 = vmatprep.subr.bf16.mxu0 0
      %1726 = vmatpush1.bf16.msra.mxu0 0
      %1727 = vmatprep.subr.bf16.mxu0 0
      %1728 = vmatpush1.bf16.msra.mxu0 0
      %1729 = vmatprep.subr.bf16.mxu0 0
      %1730 = vmatpush1.bf16.msra.mxu0 0
      %1731 = vmatprep.subr.bf16.mxu0 0
      %1732 = vmatpush1.bf16.msra.mxu0 0
      %1733 = vmatprep.subr.bf16.mxu0 0
      %1734 = vmatpush1.bf16.msra.mxu0 0
      %1735 = vmatprep.subr.bf16.mxu0 0
      %1736 = vmatpush1.bf16.msra.mxu0 0
      %1737 = vmatprep.subr.bf16.mxu0 0
      %1738 = vmatpush1.bf16.msra.mxu0 0
      %1739 = vmatprep.subr.bf16.mxu0 0
      %1740 = vmatpush1.bf16.msra.mxu0 0
      %1741 = vmatprep.subr.bf16.mxu0 0
      %1742 = vmatpush1.bf16.msra.mxu0 0
      %1743 = vmatprep.subr.bf16.mxu0 0
      %1744 = vmatpush1.bf16.msra.mxu0 0
      %1745 = vmatprep.subr.bf16.mxu0 0
      %1746 = vmatpush1.bf16.msra.mxu0 0
      %1747 = vmatprep.subr.bf16.mxu0 0
      %1748 = vmatpush1.bf16.msra.mxu0 0
      %1749 = vmatprep.mubr.bf16.mxu0 0
      %1750 = vmatmul.mubr.bf16.gmra.mrb[0].mxu0 %v1715
      %v1751 = vpop.f32.mrb[0].mxu0
      %v1752 = vadd.f32 %v1700, %v1751
      %v1753 = vpop.f32.mrb[0].mxu0
      %v1754 = vpop.f32.mrb[0].mxu0
      %v1755 = vpop.f32.mrb[0].mxu0
      %1756 = vdwg.mxu0
      %v1757 = vadd.f32 %v458, %v1752
      %v1758 = vld [vmem:[%s10] sm:$0x1]
      %v1759 = vld [vmem:[%s11] sm:$0x1]
      %v1760 = vsel %vm485, %v1757, 0.0
      %1761 = vadd.xlane.f32.xlu0 %v1760
      %v1762 = vpop.xlane.xlu0 %1761
      %v1763 = vrcp.pop 32.0
      %v1764 = vmul.f32 %v1762, %v1763
      %v1765 = vsub.f32 %v1757, %v1764
      %v1766 = vmul.f32 %v1765, %v1765
      %v1767 = vsel %vm485, %v1766, 0.0
      %1768 = vadd.xlane.f32.xlu0 %v1767
      %v1769 = vpop.xlane.xlu0 %1768
      %v1770 = vmul.f32 %v1769, %v1763
      %v1771 = vadd.f32 %v1770, 1e-05
      %v1772 = vrsqrt.pop %v1771
      %v1773 = vmul.f32 %v1765, %v1772
      %v1775 = vlaneseq
      %v1776 = vshrl.u32 %v1775, 7
      %v1777 = vsub.s32 0, %v1776
      %v1778 = vrot.slane %v1758, %v1777
      %v1780 = vmul.f32 %v1773, %v1778
      %v1782 = vlaneseq
      %v1783 = vshrl.u32 %v1782, 7
      %v1784 = vsub.s32 0, %v1783
      %v1785 = vrot.slane %v1759, %v1784
      %v1787 = vadd.f32 %v1780, %v1785
      %1788 = vst.msk [vmem:[%s456] sm:$0xff] %vm485, %v1787
      %p1789 = scmp.lt.s32.totalorder %s27, 1
      %s1790 = scalar_select %p1789, %s27, 1
      %p1791 = scmp.lt.s32.totalorder %s28, 0
      %s1792 = scalar_select %p1791, %s28, 0
      %s1793 = sadd.s32 %s1792, %s1790
      %s1794 = smul.addr %s1793, 8
      %s1795 = scalar_lea.vmem %s12, %s1794
      // Predicated region
      $region69: #{transformer_forward.10} parent=67 // pred_check
        %p1796 = pneg %p319
      $region70: #{transformer_forward.10} parent=67 // pred_check_branch
        %1798 = sbr.rel (%p1796) target = $region72
      $region71: #{transformer_forward.10} parent=67 // pred_region
        _
      $region72: #{transformer_forward.10} parent=67 // pred_fallthru
        _
    $region68: #{transformer_forward.10} parent=5 // pred_fallthru
      _
    %p1799 = scmp.le.s32.totalorder 2, %s18
    // Predicated region
    $region73: #{transformer_forward.10} parent=5 // pred_check
      %p1800 = pneg %p1799
    $region74: #{transformer_forward.10} parent=5 // pred_check_branch
      %1802 = sbr.rel (%p1800) target = $region76
    $region75: #{transformer_forward.10} parent=5 // pred_region
      %s1803 = ssub.s32 %s18, 2
      // Predicated region
      $region77: #{transformer_forward.10} parent=75 // pred_check
        %p1804 = pneg %p325
      $region78: #{transformer_forward.10} parent=75 // pred_check_branch
        %1806 = sbr.rel (%p1804) target = $region80
      $region79: #{transformer_forward.10} parent=75 // pred_region
        %p1807 = scmp.lt.s32.totalorder %s29, 1
        %s1808 = scalar_select %p1807, %s29, 1
        %p1809 = scmp.lt.s32.totalorder %s30, 0
        %s1810 = scalar_select %p1809, %s30, 0
        %s1811 = sadd.s32 %s1810, %s1808
        %s1812 = smul.addr %s1811, 8
        %s1813 = scalar_lea.vmem %s12, %s1812
      $region80: #{transformer_forward.10} parent=75 // pred_fallthru
        _
    $region76: #{transformer_forward.10} parent=5 // pred_fallthru
      _
  $region6: #{transformer_forward.10} parent=0 // loop_footer
    %s22 = sadd.s32 1, %s18
  $region7: #{transformer_forward.10} parent=0 // loop_footer_branch
    %17 = sbr.rel target = $region3
  $region8: #{transformer_forward.10} parent=0 // loop_exit
    _

// kernel: transformer_forward.16
$region0: #{transformer_forward.16}
  #allocation0 [shape = 'u32[]', space=smem, size = 0x4, offset = 0x4, fixed_abs, tag = 'smem constant byte address 0x4 - core index']
  #allocation1 [shape = 'u32[144,128]{1,0:T(1,128)}', space=vmem, size = 0x12000, scoped, tag = 'internal scratch']
  %s0 = inlined_call_operand.vmem [shape: f32[20,32], index: 0, kind: input, shape index: {}]
  %s1 = inlined_call_operand.vmem [shape: bf16[32,64], index: 1, kind: input, shape index: {}]
  %s2 = inlined_call_operand.vmem [shape: f32[1,64], index: 2, kind: input, shape index: {}]
  %s3 = inlined_call_operand.vmem [shape: bf16[64,32], index: 3, kind: input, shape index: {}]
  %s4 = inlined_call_operand.vmem [shape: f32[1,32], index: 4, kind: input, shape index: {}]
  %s5 = inlined_call_operand.vmem [shape: f32[1,32], index: 5, kind: input, shape index: {}]
  %s6 = inlined_call_operand.vmem [shape: f32[1,32], index: 6, kind: input, shape index: {}]
  %s7 = inlined_call_operand.vmem [shape: f32[20,32], index: 7, kind: output, shape index: {}]
  %s8 = sld [smem:[#allocation0]]
  $region38: #{transformer_forward.16} parent=0
    _
  %s10 = ssub.s32 1, %s8
  %s11 = scalar_select 0, %s10, %s8
  // Predicated region
  $region2: #{transformer_forward.16} parent=0 // pred_check
    _
  $region3: #{transformer_forward.16} parent=0 // pred_check_branch
    %13 = sbr.rel (0) target = $region5
  $region4: #{transformer_forward.16} parent=0 // pred_region
    _
  $region5: #{transformer_forward.16} parent=0 // pred_fallthru
    _
  // Predicated region
  $region6: #{transformer_forward.16} parent=0 // pred_check
    _
  $region7: #{transformer_forward.16} parent=0 // pred_check_branch
    %15 = sbr.rel (0) target = $region9
  $region8: #{transformer_forward.16} parent=0 // pred_region
    _
  $region9: #{transformer_forward.16} parent=0 // pred_fallthru
    _
  // Predicated region
  $region10: #{transformer_forward.16} parent=0 // pred_check
    _
  $region11: #{transformer_forward.16} parent=0 // pred_check_branch
    %17 = sbr.rel (0) target = $region13
  $region12: #{transformer_forward.16} parent=0 // pred_region
    _
  $region13: #{transformer_forward.16} parent=0 // pred_fallthru
    _
  // Predicated region
  $region14: #{transformer_forward.16} parent=0 // pred_check
    _
  $region15: #{transformer_forward.16} parent=0 // pred_check_branch
    %19 = sbr.rel (0) target = $region17
  $region16: #{transformer_forward.16} parent=0 // pred_region
    _
  $region17: #{transformer_forward.16} parent=0 // pred_fallthru
    _
  // Predicated region
  $region18: #{transformer_forward.16} parent=0 // pred_check
    _
  $region19: #{transformer_forward.16} parent=0 // pred_check_branch
    %21 = sbr.rel (0) target = $region21
  $region20: #{transformer_forward.16} parent=0 // pred_region
    _
  $region21: #{transformer_forward.16} parent=0 // pred_fallthru
    _
  // Predicated region
  $region22: #{transformer_forward.16} parent=0 // pred_check
    _
  $region23: #{transformer_forward.16} parent=0 // pred_check_branch
    %23 = sbr.rel (0) target = $region25
  $region24: #{transformer_forward.16} parent=0 // pred_region
    _
  $region25: #{transformer_forward.16} parent=0 // pred_fallthru
    _
  // Predicated region
  $region26: #{transformer_forward.16} parent=0 // pred_check
    _
  $region27: #{transformer_forward.16} parent=0 // pred_check_branch
    %25 = sbr.rel (0) target = $region29
  $region28: #{transformer_forward.16} parent=0 // pred_region
    _
  $region29: #{transformer_forward.16} parent=0 // pred_fallthru
    _
  %v27 = vld [vmem:[%s0] sm:$0xff]
  %v28 = vld [vmem:[%s0 + $0x8] sm:$0xff]
  %v29 = vld [vmem:[%s0 + $0x10] sm:$0xf]
  %v30 = vpack.c.bf16 %v28, %v27
  %v31 = vpack.c.bf16 %v29, %v29
  %v32 = vld [vmem:[%s1] sm:$0xf]
  %v33 = vld [vmem:[%s1 + $0x4] sm:$0xf]
  %v34 = vld [vmem:[%s1 + $0x8] sm:$0xf]
  %v35 = vld [vmem:[%s1 + $0xc] sm:$0xf]
  %v36 = vld [vmem:[%s2] sm:$0x1]
  %v38 = vlaneseq
  %v39 = vshrl.u32 %v38, 7
  %v40 = vsub.s32 0, %v39
  %v41 = vrot.slane %v36, %v40
  %v47 = vunpack.c.l.b16 %v32
  %v48 = vunpack.c.l.b16 %v33
  %v49 = vunpack.c.l.b16 %v34
  %v50 = vunpack.c.l.b16 %v35
  %v51 = vpack.c.b16 %v48, %v47
  %v52 = vpack.c.b16 %v50, %v49
  %vm55 = vcmask 261120
  %v57 = vsel %vm55, %v30, 0
  %v60 = vsel %vm55, %v31, 0
  %62 = vmatprep.subr.bf16.mxu0 0
  %63 = vmatpush1.bf16.msra.mxu0 %v51
  %64 = vmatprep.subr.bf16.mxu0 0
  %65 = vmatpush1.bf16.msra.mxu0 %v52
  %66 = vmatprep.subr.bf16.mxu0 0
  %67 = vmatpush1.bf16.msra.mxu0 0
  %68 = vmatprep.subr.bf16.mxu0 0
  %69 = vmatpush1.bf16.msra.mxu0 0
  %70 = vmatprep.subr.bf16.mxu0 0
  %71 = vmatpush1.bf16.msra.mxu0 0
  %72 = vmatprep.subr.bf16.mxu0 0
  %73 = vmatpush1.bf16.msra.mxu0 0
  %74 = vmatprep.subr.bf16.mxu0 0
  %75 = vmatpush1.bf16.msra.mxu0 0
  %76 = vmatprep.subr.bf16.mxu0 0
  %77 = vmatpush1.bf16.msra.mxu0 0
  %78 = vmatprep.subr.bf16.mxu0 0
  %79 = vmatpush1.bf16.msra.mxu0 0
  %80 = vmatprep.subr.bf16.mxu0 0
  %81 = vmatpush1.bf16.msra.mxu0 0
  %82 = vmatprep.subr.bf16.mxu0 0
  %83 = vmatpush1.bf16.msra.mxu0 0
  %84 = vmatprep.subr.bf16.mxu0 0
  %85 = vmatpush1.bf16.msra.mxu0 0
  %86 = vmatprep.subr.bf16.mxu0 0
  %87 = vmatpush1.bf16.msra.mxu0 0
  %88 = vmatprep.subr.bf16.mxu0 0
  %89 = vmatpush1.bf16.msra.mxu0 0
  %90 = vmatprep.subr.bf16.mxu0 0
  %91 = vmatpush1.bf16.msra.mxu0 0
  %92 = vmatprep.subr.bf16.mxu0 0
  %93 = vmatpush1.bf16.msra.mxu0 0
  %94 = vmatprep.mubr.bf16.mxu0 0
  %95 = vmatmul.mubr.bf16.gmra.mrb[0].mxu0 %v57
  %v96 = vpop.f32.mrb[0].mxu0
  %v97 = vadd.f32 %v41, %v96
  %v98 = vpop.f32.mrb[0].mxu0
  %v99 = vpop.f32.mrb[0].mxu0
  %v100 = vadd.f32 %v41, %v99
  %v101 = vpop.f32.mrb[0].mxu0
  %102 = vmatprep.mubr.bf16.mxu0 0
  %103 = vmatmul.mubr.bf16.gmra.mrb[0].mxu0 %v60
  %v104 = vpop.f32.mrb[0].mxu0
  %v105 = vadd.f32 %v41, %v104
  %v106 = vpop.f32.mrb[0].mxu0
  %v107 = vpop.f32.mrb[0].mxu0
  %v108 = vpop.f32.mrb[0].mxu0
  %109 = vdwg.mxu0
  %v110 = vmax.f32 %v97, 0.0
  %v111 = vmax.f32 %v100, 0.0
  %v112 = vmax.f32 %v105, 0.0
  %v113 = vpack.c.bf16 %v111, %v110
  %v114 = vpack.c.bf16 %v112, %v112
  %v115 = vld [vmem:[%s3] sm:$0xf]
  %v116 = vld [vmem:[%s3 + $0x4] sm:$0xf]
  %v117 = vld [vmem:[%s3 + $0x8] sm:$0xf]
  %v118 = vld [vmem:[%s3 + $0xc] sm:$0xf]
  %v119 = vld [vmem:[%s3 + $0x10] sm:$0xf]
  %v120 = vld [vmem:[%s3 + $0x14] sm:$0xf]
  %v121 = vld [vmem:[%s3 + $0x18] sm:$0xf]
  %v122 = vld [vmem:[%s3 + $0x1c] sm:$0xf]
  %v123 = vld [vmem:[%s4] sm:$0x1]
  %v125 = vlaneseq
  %v126 = vshrl.u32 %v125, 7
  %v127 = vsub.s32 0, %v126
  %v128 = vrot.slane %v123, %v127
  %v138 = vunpack.c.l.b16 %v115
  %v139 = vunpack.c.l.b16 %v116
  %v140 = vunpack.c.l.b16 %v117
  %v141 = vunpack.c.l.b16 %v118
  %v142 = vunpack.c.l.b16 %v119
  %v143 = vunpack.c.l.b16 %v120
  %v144 = vunpack.c.l.b16 %v121
  %v145 = vunpack.c.l.b16 %v122
  %v146 = vpack.c.b16 %v139, %v138
  %v147 = vpack.c.b16 %v141, %v140
  %v148 = vpack.c.b16 %v143, %v142
  %v149 = vpack.c.b16 %v145, %v144
  %vm154 = vcmask 523264
  %v156 = vsel %vm154, %v113, 0
  %v159 = vsel %vm154, %v114, 0
  %161 = vmatprep.subr.bf16.mxu0 0
  %162 = vmatpush1.bf16.msra.mxu0 %v146
  %163 = vmatprep.subr.bf16.mxu0 0
  %164 = vmatpush1.bf16.msra.mxu0 %v147
  %165 = vmatprep.subr.bf16.mxu0 0
  %166 = vmatpush1.bf16.msra.mxu0 %v148
  %167 = vmatprep.subr.bf16.mxu0 0
  %168 = vmatpush1.bf16.msra.mxu0 %v149
  %169 = vmatprep.subr.bf16.mxu0 0
  %170 = vmatpush1.bf16.msra.mxu0 0
  %171 = vmatprep.subr.bf16.mxu0 0
  %172 = vmatpush1.bf16.msra.mxu0 0
  %173 = vmatprep.subr.bf16.mxu0 0
  %174 = vmatpush1.bf16.msra.mxu0 0
  %175 = vmatprep.subr.bf16.mxu0 0
  %176 = vmatpush1.bf16.msra.mxu0 0
  %177 = vmatprep.subr.bf16.mxu0 0
  %178 = vmatpush1.bf16.msra.mxu0 0
  %179 = vmatprep.subr.bf16.mxu0 0
  %180 = vmatpush1.bf16.msra.mxu0 0
  %181 = vmatprep.subr.bf16.mxu0 0
  %182 = vmatpush1.bf16.msra.mxu0 0
  %183 = vmatprep.subr.bf16.mxu0 0
  %184 = vmatpush1.bf16.msra.mxu0 0
  %185 = vmatprep.subr.bf16.mxu0 0
  %186 = vmatpush1.bf16.msra.mxu0 0
  %187 = vmatprep.subr.bf16.mxu0 0
  %188 = vmatpush1.bf16.msra.mxu0 0
  %189 = vmatprep.subr.bf16.mxu0 0
  %190 = vmatpush1.bf16.msra.mxu0 0
  %191 = vmatprep.subr.bf16.mxu0 0
  %192 = vmatpush1.bf16.msra.mxu0 0
  %193 = vmatprep.mubr.bf16.mxu0 0
  %194 = vmatmul.mubr.bf16.gmra.mrb[0].mxu0 %v156
  %v195 = vpop.f32.mrb[0].mxu0
  %v196 = vadd.f32 %v128, %v195
  %v197 = vpop.f32.mrb[0].mxu0
  %v198 = vpop.f32.mrb[0].mxu0
  %v199 = vadd.f32 %v128, %v198
  %v200 = vpop.f32.mrb[0].mxu0
  %201 = vmatprep.mubr.bf16.mxu0 0
  %202 = vmatmul.mubr.bf16.gmra.mrb[0].mxu0 %v159
  %v203 = vpop.f32.mrb[0].mxu0
  %v204 = vadd.f32 %v128, %v203
  %v205 = vpop.f32.mrb[0].mxu0
  %v206 = vpop.f32.mrb[0].mxu0
  %v207 = vpop.f32.mrb[0].mxu0
  %208 = vdwg.mxu0
  %v209 = vadd.f32 %v27, %v196
  %v210 = vadd.f32 %v28, %v199
  %v211 = vadd.f32 %v29, %v204
  %v212 = vld [vmem:[%s5] sm:$0x1]
  %v213 = vld [vmem:[%s6] sm:$0x1]
  %v214 = vsel %vm55, %v209, 0.0
  %215 = vadd.xlane.f32.xlu0 %v214
  %v216 = vpop.xlane.xlu0 %215
  %v217 = vsel %vm55, %v210, 0.0
  %218 = vadd.xlane.f32.xlu0 %v217
  %v219 = vpop.xlane.xlu0 %218
  %vm220 = vcmask 257024
  %v221 = vsel %vm220, %v211, 0.0
  %222 = vadd.xlane.f32.xlu0 %v221
  %v223 = vpop.xlane.xlu0 %222
  %v224 = vrcp.pop 32.0
  %v225 = vmul.f32 %v216, %v224
  %v226 = vmul.f32 %v219, %v224
  %v227 = vmul.f32 %v223, %v224
  %v228 = vsub.f32 %v209, %v225
  %v229 = vsub.f32 %v210, %v226
  %v230 = vsub.f32 %v211, %v227
  %v231 = vmul.f32 %v228, %v228
  %v232 = vmul.f32 %v229, %v229
  %v233 = vmul.f32 %v230, %v230
  %v234 = vsel %vm55, %v231, 0.0
  %235 = vadd.xlane.f32.xlu0 %v234
  %v236 = vpop.xlane.xlu0 %235
  %v237 = vsel %vm55, %v232, 0.0
  %238 = vadd.xlane.f32.xlu0 %v237
  %v239 = vpop.xlane.xlu0 %238
  %v240 = vsel %vm220, %v233, 0.0
  %241 = vadd.xlane.f32.xlu0 %v240
  %v242 = vpop.xlane.xlu0 %241
  %v243 = vmul.f32 %v236, %v224
  %v244 = vmul.f32 %v239, %v224
  %v245 = vmul.f32 %v242, %v224
  %v246 = vadd.f32 %v243, 1e-05
  %v247 = vadd.f32 %v244, 1e-05
  %v248 = vadd.f32 %v245, 1e-05
  %v249 = vrsqrt.pop %v246
  %v250 = vrsqrt.pop %v247
  %v251 = vrsqrt.pop %v248
  %v252 = vmul.f32 %v228, %v249
  %v253 = vmul.f32 %v229, %v250
  %v254 = vmul.f32 %v230, %v251
  %v256 = vlaneseq
  %v257 = vshrl.u32 %v256, 7
  %v258 = vsub.s32 0, %v257
  %v259 = vrot.slane %v212, %v258
  %v261 = vmul.f32 %v252, %v259
  %v262 = vmul.f32 %v253, %v259
  %v263 = vmul.f32 %v254, %v259
  %v265 = vlaneseq
  %v266 = vshrl.u32 %v265, 7
  %v267 = vsub.s32 0, %v266
  %v268 = vrot.slane %v213, %v267
  %v270 = vadd.f32 %v261, %v268
  %v271 = vadd.f32 %v262, %v268
  %v272 = vadd.f32 %v263, %v268
  %273 = vst.msk [vmem:[%s7] sm:$0xff] %vm55, %v270
  %274 = vst.msk [vmem:[%s7 + $0x8] sm:$0xff] %vm55, %v271
  %275 = vst.msk [vmem:[%s7 + $0x10] sm:$0xf] %vm220, %v272
  // Predicated region
  $region30: #{transformer_forward.16} parent=0 // pred_check
    _
  $region31: #{transformer_forward.16} parent=0 // pred_check_branch
    %277 = sbr.rel (0) target = $region33
  $region32: #{transformer_forward.16} parent=0 // pred_region
    _
  $region33: #{transformer_forward.16} parent=0 // pred_fallthru
    _
  // Predicated region
  $region34: #{transformer_forward.16} parent=0 // pred_check
    _
  $region35: #{transformer_forward.16} parent=0 // pred_check_branch
    %279 = sbr.rel (0) target = $region37
  $region36: #{transformer_forward.16} parent=0 // pred_region
    _
  $region37: #{transformer_forward.16} parent=0 // pred_fallthru
    _

// kernel: transformer_forward.15
$region0: #{transformer_forward.15}
  #allocation0 [shape = 'u32[]', space=smem, size = 0x4, offset = 0x4, fixed_abs, tag = 'smem constant byte address 0x4 - core index']
  #allocation1 [shape = 'u32[144,128]{1,0:T(1,128)}', space=vmem, size = 0x12000, scoped, tag = 'internal scratch']
  %s0 = inlined_call_operand.vmem [shape: f32[2,10,32], index: 0, kind: input, shape index: {}]
  %s1 = inlined_call_operand.vmem [shape: f32[2,8,32], index: 1, kind: input, shape index: {}]
  %s2 = inlined_call_operand.vmem [shape: bf16[4,32,8], index: 2, kind: input, shape index: {}]
  %s3 = inlined_call_operand.vmem [shape: f32[4,1,8], index: 3, kind: input, shape index: {}]
  %s4 = inlined_call_operand.vmem [shape: bf16[4,32,8], index: 4, kind: input, shape index: {}]
  %s5 = inlined_call_operand.vmem [shape: f32[4,1,8], index: 5, kind: input, shape index: {}]
  %s6 = inlined_call_operand.vmem [shape: bf16[4,32,8], index: 6, kind: input, shape index: {}]
  %s7 = inlined_call_operand.vmem [shape: f32[4,1,8], index: 7, kind: input, shape index: {}]
  %s8 = inlined_call_operand.vmem [shape: bf16[32,32], index: 8, kind: input, shape index: {}]
  %s9 = inlined_call_operand.vmem [shape: f32[1,32], index: 9, kind: input, shape index: {}]
  %s10 = inlined_call_operand.vmem [shape: f32[1,32], index: 10, kind: input, shape index: {}]
  %s11 = inlined_call_operand.vmem [shape: f32[1,32], index: 11, kind: input, shape index: {}]
  %s12 = inlined_call_operand.vmem [shape: f32[2,10,32], index: 12, kind: output, shape index: {}]
  %s13 = sld [smem:[#allocation0]]
  $region81: #{transformer_forward.15} parent=0
    _
  %s15 = ssub.s32 1, %s13
  %s16 = scalar_select 0, %s15, %s13
  loop: start=0, step=1, limit=4
  $region2: #{transformer_forward.15} parent=0 // loop_pre_header
    _
  $region3: #{transformer_forward.15} parent=0 // loop_header
    %s18 = sphi 0, %s22
    %p19 = scmp.ge.s32.totalorder %s18, 4
    %s25 = sphi 0, %s37
    %s26 = sphi 0, %s33
    %s27 = sphi 0, %s25
    %s28 = sphi 0, %s26
    %s29 = sphi 0, %s27
    %s30 = sphi 0, %s28
    %s42 = sphi 0, %s44
    %s45 = sphi 0, %s42
    %s46 = sphi 0, %s45
    %s62 = sphi 0, %s46
    %s68 = sphi 0, %s70
    %s71 = sphi 0, %s68
    %s72 = sphi 0, %s71
    %s88 = sphi 0, %s72
    %s92 = sphi 0, %s92
    %s94 = sphi 0, %s92
    %s95 = sphi 0, %s94
    %s109 = sphi 0, %s95
    %s113 = sphi 0, %s113
    %s115 = sphi 0, %s113
    %s116 = sphi 0, %s115
    %s130 = sphi 0, %s116
    %s134 = sphi 0, %s134
    %s136 = sphi 0, %s134
    %s137 = sphi 0, %s136
    %s151 = sphi 0, %s137
    %s155 = sphi 0, %s155
    %s157 = sphi 0, %s155
    %s158 = sphi 0, %s157
    %s172 = sphi 0, %s158
    %s176 = sphi 0, %s176
    %s178 = sphi 0, %s176
    %s179 = sphi 0, %s178
    %s193 = sphi 0, %s179
    %s197 = sphi 0, %s197
    %s199 = sphi 0, %s197
    %s200 = sphi 0, %s199
    %s214 = sphi 0, %s200
    %s218 = sphi 0, %s218
    %s220 = sphi 0, %s218
    %s221 = sphi 0, %s220
    %s235 = sphi 0, %s221
    %s239 = sphi 0, %s239
    %s241 = sphi 0, %s239
    %s242 = sphi 0, %s241
    %s256 = sphi 0, %s242
    %s260 = sphi 0, %s260
    %s262 = sphi 0, %s260
    %s263 = sphi 0, %s262
    %s277 = sphi 0, %s263
    %s281 = sphi 0, %s281
    %s283 = sphi 0, %s281
    %s284 = sphi 0, %s283
    %s298 = sphi 0, %s284
    %s306 = sphi 0, %s308
    %s309 = sphi 0, %s306
    %s310 = sphi 0, %s309
    %s326 = sphi 0, %s310
  $region4: #{transformer_forward.15} parent=0 // loop_header_branch
    %21 = sbr.rel (%p19) target = $region8
  $region5: #{transformer_forward.15} parent=0 // loop_body
    %s23 = ssub.s32 %s18, 1
    %s24 = ssub.s32 %s18, 2
    %s31 = sadd.s32 1, %s26
    %p32 = scmp.ge.s32.totalorder %s31, 1
    %s33 = scalar_select %p32, 0, %s31
    %s34 = sadd.s32 1, %s25
    %s35 = scalar_select %p32, %s34, %s25
    %p36 = scmp.ge.s32.totalorder %s35, 2
    %s37 = scalar_select %p36, 0, %s35
    %s38 = ssub.s32 %s25, %s37
    %s39 = ssub.s32 %s26, %s33
    %s40 = sor.u32 %s38, %s39
    %p41 = scmp.eq.s32.totalorder %s40, 0
    %s43 = sadd.s32 %s42, 1
    %s44 = scalar_select %p41, %s42, %s43
    %p47 = pneg %p41
    %p48 = scmp.eq.s32.totalorder %s18, 1
    %p49 = por %p47, %p48
    %p50 = scmp.ne.s32.totalorder %s42, %s45
    %p51 = scmp.eq.s32.totalorder %s18, 0
    %p52 = por %p50, %p51
    %p53 = scmp.ne.s32.totalorder %s42, %s45
    %p54 = scmp.eq.s32.totalorder %s23, 1
    %p55 = por %p53, %p54
    %p56 = scmp.ne.s32.totalorder %s45, %s46
    %p57 = scmp.eq.s32.totalorder %s23, 0
    %p58 = por %p56, %p57
    %p59 = scmp.ne.s32.totalorder %s45, %s46
    %p60 = scmp.eq.s32.totalorder %s24, 1
    %p61 = por %p59, %p60
    %p63 = scmp.ne.s32.totalorder %s46, %s62
    %p64 = scmp.eq.s32.totalorder %s24, 0
    %p65 = por %p63, %p64
    %s66 = ssub.s32 %s25, %s37
    %p67 = scmp.eq.s32.totalorder %s66, 0
    %s69 = sadd.s32 %s68, 1
    %s70 = scalar_select %p67, %s68, %s69
    %p73 = pneg %p67
    %p74 = scmp.eq.s32.totalorder %s18, 1
    %p75 = por %p73, %p74
    %p76 = scmp.ne.s32.totalorder %s68, %s71
    %p77 = scmp.eq.s32.totalorder %s18, 0
    %p78 = por %p76, %p77
    %p79 = scmp.ne.s32.totalorder %s68, %s71
    %p80 = scmp.eq.s32.totalorder %s23, 1
    %p81 = por %p79, %p80
    %p82 = scmp.ne.s32.totalorder %s71, %s72
    %p83 = scmp.eq.s32.totalorder %s23, 0
    %p84 = por %p82, %p83
    %p85 = scmp.ne.s32.totalorder %s71, %s72
    %p86 = scmp.eq.s32.totalorder %s24, 1
    %p87 = por %p85, %p86
    %p89 = scmp.ne.s32.totalorder %s72, %s88
    %p90 = scmp.eq.s32.totalorder %s24, 0
    %p91 = por %p89, %p90
    %s93 = sadd.s32 %s92, 1
    %p96 = scmp.eq.s32.totalorder %s18, 1
    %p97 = scmp.ne.s32.totalorder %s92, %s94
    %p98 = scmp.eq.s32.totalorder %s18, 0
    %p99 = por %p97, %p98
    %p100 = scmp.ne.s32.totalorder %s92, %s94
    %p101 = scmp.eq.s32.totalorder %s23, 1
    %p102 = por %p100, %p101
    %p103 = scmp.ne.s32.totalorder %s94, %s95
    %p104 = scmp.eq.s32.totalorder %s23, 0
    %p105 = por %p103, %p104
    %p106 = scmp.ne.s32.totalorder %s94, %s95
    %p107 = scmp.eq.s32.totalorder %s24, 1
    %p108 = por %p106, %p107
    %p110 = scmp.ne.s32.totalorder %s95, %s109
    %p111 = scmp.eq.s32.totalorder %s24, 0
    %p112 = por %p110, %p111
    %s114 = sadd.s32 %s113, 1
    %p117 = scmp.eq.s32.totalorder %s18, 1
    %p118 = scmp.ne.s32.totalorder %s113, %s115
    %p119 = scmp.eq.s32.totalorder %s18, 0
    %p120 = por %p118, %p119
    %p121 = scmp.ne.s32.totalorder %s113, %s115
    %p122 = scmp.eq.s32.totalorder %s23, 1
    %p123 = por %p121, %p122
    %p124 = scmp.ne.s32.totalorder %s115, %s116
    %p125 = scmp.eq.s32.totalorder %s23, 0
    %p126 = por %p124, %p125
    %p127 = scmp.ne.s32.totalorder %s115, %s116
    %p128 = scmp.eq.s32.totalorder %s24, 1
    %p129 = por %p127, %p128
    %p131 = scmp.ne.s32.totalorder %s116, %s130
    %p132 = scmp.eq.s32.totalorder %s24, 0
    %p133 = por %p131, %p132
    %s135 = sadd.s32 %s134, 1
    %p138 = scmp.eq.s32.totalorder %s18, 1
    %p139 = scmp.ne.s32.totalorder %s134, %s136
    %p140 = scmp.eq.s32.totalorder %s18, 0
    %p141 = por %p139, %p140
    %p142 = scmp.ne.s32.totalorder %s134, %s136
    %p143 = scmp.eq.s32.totalorder %s23, 1
    %p144 = por %p142, %p143
    %p145 = scmp.ne.s32.totalorder %s136, %s137
    %p146 = scmp.eq.s32.totalorder %s23, 0
    %p147 = por %p145, %p146
    %p148 = scmp.ne.s32.totalorder %s136, %s137
    %p149 = scmp.eq.s32.totalorder %s24, 1
    %p150 = por %p148, %p149
    %p152 = scmp.ne.s32.totalorder %s137, %s151
    %p153 = scmp.eq.s32.totalorder %s24, 0
    %p154 = por %p152, %p153
    %s156 = sadd.s32 %s155, 1
    %p159 = scmp.eq.s32.totalorder %s18, 1
    %p160 = scmp.ne.s32.totalorder %s155, %s157
    %p161 = scmp.eq.s32.totalorder %s18, 0
    %p162 = por %p160, %p161
    %p163 = scmp.ne.s32.totalorder %s155, %s157
    %p164 = scmp.eq.s32.totalorder %s23, 1
    %p165 = por %p163, %p164
    %p166 = scmp.ne.s32.totalorder %s157, %s158
    %p167 = scmp.eq.s32.totalorder %s23, 0
    %p168 = por %p166, %p167
    %p169 = scmp.ne.s32.totalorder %s157, %s158
    %p170 = scmp.eq.s32.totalorder %s24, 1
    %p171 = por %p169, %p170
    %p173 = scmp.ne.s32.totalorder %s158, %s172
    %p174 = scmp.eq.s32.totalorder %s24, 0
    %p175 = por %p173, %p174
    %s177 = sadd.s32 %s176, 1
    %p180 = scmp.eq.s32.totalorder %s18, 1
    %p181 = scmp.ne.s32.totalorder %s176, %s178
    %p182 = scmp.eq.s32.totalorder %s18, 0
    %p183 = por %p181, %p182
    %p184 = scmp.ne.s32.totalorder %s176, %s178
    %p185 = scmp.eq.s32.totalorder %s23, 1
    %p186 = por %p184, %p185
    %p187 = scmp.ne.s32.totalorder %s178, %s179
    %p188 = scmp.eq.s32.totalorder %s23, 0
    %p189 = por %p187, %p188
    %p190 = scmp.ne.s32.totalorder %s178, %s179
    %p191 = scmp.eq.s32.totalorder %s24, 1
    %p192 = por %p190, %p191
    %p194 = scmp.ne.s32.totalorder %s179, %s193
    %p195 = scmp.eq.s32.totalorder %s24, 0
    %p196 = por %p194, %p195
    %s198 = sadd.s32 %s197, 1
    %p201 = scmp.eq.s32.totalorder %s18, 1
    %p202 = scmp.ne.s32.totalorder %s197, %s199
    %p203 = scmp.eq.s32.totalorder %s18, 0
    %p204 = por %p202, %p203
    %p205 = scmp.ne.s32.totalorder %s197, %s199
    %p206 = scmp.eq.s32.totalorder %s23, 1
    %p207 = por %p205, %p206
    %p208 = scmp.ne.s32.totalorder %s199, %s200
    %p209 = scmp.eq.s32.totalorder %s23, 0
    %p210 = por %p208, %p209
    %p211 = scmp.ne.s32.totalorder %s199, %s200
    %p212 = scmp.eq.s32.totalorder %s24, 1
    %p213 = por %p211, %p212
    %p215 = scmp.ne.s32.totalorder %s200, %s214
    %p216 = scmp.eq.s32.totalorder %s24, 0
    %p217 = por %p215, %p216
    %s219 = sadd.s32 %s218, 1
    %p222 = scmp.eq.s32.totalorder %s18, 1
    %p223 = scmp.ne.s32.totalorder %s218, %s220
    %p224 = scmp.eq.s32.totalorder %s18, 0
    %p225 = por %p223, %p224
    %p226 = scmp.ne.s32.totalorder %s218, %s220
    %p227 = scmp.eq.s32.totalorder %s23, 1
    %p228 = por %p226, %p227
    %p229 = scmp.ne.s32.totalorder %s220, %s221
    %p230 = scmp.eq.s32.totalorder %s23, 0
    %p231 = por %p229, %p230
    %p232 = scmp.ne.s32.totalorder %s220, %s221
    %p233 = scmp.eq.s32.totalorder %s24, 1
    %p234 = por %p232, %p233
    %p236 = scmp.ne.s32.totalorder %s221, %s235
    %p237 = scmp.eq.s32.totalorder %s24, 0
    %p238 = por %p236, %p237
    %s240 = sadd.s32 %s239, 1
    %p243 = scmp.eq.s32.totalorder %s18, 1
    %p244 = scmp.ne.s32.totalorder %s239, %s241
    %p245 = scmp.eq.s32.totalorder %s18, 0
    %p246 = por %p244, %p245
    %p247 = scmp.ne.s32.totalorder %s239, %s241
    %p248 = scmp.eq.s32.totalorder %s23, 1
    %p249 = por %p247, %p248
    %p250 = scmp.ne.s32.totalorder %s241, %s242
    %p251 = scmp.eq.s32.totalorder %s23, 0
    %p252 = por %p250, %p251
    %p253 = scmp.ne.s32.totalorder %s241, %s242
    %p254 = scmp.eq.s32.totalorder %s24, 1
    %p255 = por %p253, %p254
    %p257 = scmp.ne.s32.totalorder %s242, %s256
    %p258 = scmp.eq.s32.totalorder %s24, 0
    %p259 = por %p257, %p258
    %s261 = sadd.s32 %s260, 1
    %p264 = scmp.eq.s32.totalorder %s18, 1
    %p265 = scmp.ne.s32.totalorder %s260, %s262
    %p266 = scmp.eq.s32.totalorder %s18, 0
    %p267 = por %p265, %p266
    %p268 = scmp.ne.s32.totalorder %s260, %s262
    %p269 = scmp.eq.s32.totalorder %s23, 1
    %p270 = por %p268, %p269
    %p271 = scmp.ne.s32.totalorder %s262, %s263
    %p272 = scmp.eq.s32.totalorder %s23, 0
    %p273 = por %p271, %p272
    %p274 = scmp.ne.s32.totalorder %s262, %s263
    %p275 = scmp.eq.s32.totalorder %s24, 1
    %p276 = por %p274, %p275
    %p278 = scmp.ne.s32.totalorder %s263, %s277
    %p279 = scmp.eq.s32.totalorder %s24, 0
    %p280 = por %p278, %p279
    %s282 = sadd.s32 %s281, 1
    %p285 = scmp.eq.s32.totalorder %s18, 1
    %p286 = scmp.ne.s32.totalorder %s281, %s283
    %p287 = scmp.eq.s32.totalorder %s18, 0
    %p288 = por %p286, %p287
    %p289 = scmp.ne.s32.totalorder %s281, %s283
    %p290 = scmp.eq.s32.totalorder %s23, 1
    %p291 = por %p289, %p290
    %p292 = scmp.ne.s32.totalorder %s283, %s284
    %p293 = scmp.eq.s32.totalorder %s23, 0
    %p294 = por %p292, %p293
    %p295 = scmp.ne.s32.totalorder %s283, %s284
    %p296 = scmp.eq.s32.totalorder %s24, 1
    %p297 = por %p295, %p296
    %p299 = scmp.ne.s32.totalorder %s284, %s298
    %p300 = scmp.eq.s32.totalorder %s24, 0
    %p301 = por %p299, %p300
    %s302 = ssub.s32 %s25, %s37
    %s303 = ssub.s32 %s26, %s33
    %s304 = sor.u32 %s302, %s303
    %p305 = scmp.eq.s32.totalorder %s304, 0
    %s307 = sadd.s32 %s306, 1
    %s308 = scalar_select %p305, %s306, %s307
    %p311 = pneg %p305
    %p312 = scmp.eq.s32.totalorder %s18, 1
    %p313 = por %p311, %p312
    %p314 = scmp.ne.s32.totalorder %s306, %s309
    %p315 = scmp.eq.s32.totalorder %s18, 0
    %p316 = por %p314, %p315
    %p317 = scmp.ne.s32.totalorder %s306, %s309
    %p318 = scmp.eq.s32.totalorder %s23, 1
    %p319 = por %p317, %p318
    %p320 = scmp.ne.s32.totalorder %s309, %s310
    %p321 = scmp.eq.s32.totalorder %s23, 0
    %p322 = por %p320, %p321
    %p323 = scmp.ne.s32.totalorder %s309, %s310
    %p324 = scmp.eq.s32.totalorder %s24, 1
    %p325 = por %p323, %p324
    %p327 = scmp.ne.s32.totalorder %s310, %s326
    %p328 = scmp.eq.s32.totalorder %s24, 0
    %p329 = por %p327, %p328
    %p330 = scmp.le.s32.totalorder 1, %s18
    %p331 = scmp.lt.s32.totalorder %s18, 3
    %p332 = pnand %p330, %p331
    %p333 = pneg %p332
    // Predicated region
    $region9: #{transformer_forward.15} parent=5 // pred_check
      _
    $region10: #{transformer_forward.15} parent=5 // pred_check_branch
      %335 = sbr.rel (%p332) target = $region12
    $region11: #{transformer_forward.15} parent=5 // pred_region
      %s336 = ssub.s32 %s18, 1
      // Predicated region
      $region13: #{transformer_forward.15} parent=11 // pred_check
        %p337 = pneg %p105
      $region14: #{transformer_forward.15} parent=11 // pred_check_branch
        %339 = sbr.rel (%p337) target = $region16
      $region15: #{transformer_forward.15} parent=11 // pred_region
        _
      $region16: #{transformer_forward.15} parent=11 // pred_fallthru
        _
      // Predicated region
      $region17: #{transformer_forward.15} parent=11 // pred_check
        %p340 = pneg %p126
      $region18: #{transformer_forward.15} parent=11 // pred_check_branch
        %342 = sbr.rel (%p340) target = $region20
      $region19: #{transformer_forward.15} parent=11 // pred_region
        _
      $region20: #{transformer_forward.15} parent=11 // pred_fallthru
        _
      // Predicated region
      $region21: #{transformer_forward.15} parent=11 // pred_check
        %p343 = pneg %p147
      $region22: #{transformer_forward.15} parent=11 // pred_check_branch
        %345 = sbr.rel (%p343) target = $region24
      $region23: #{transformer_forward.15} parent=11 // pred_region
        _
      $region24: #{transformer_forward.15} parent=11 // pred_fallthru
        _
      // Predicated region
      $region25: #{transformer_forward.15} parent=11 // pred_check
        %p346 = pneg %p168
      $region26: #{transformer_forward.15} parent=11 // pred_check_branch
        %348 = sbr.rel (%p346) target = $region28
      $region27: #{transformer_forward.15} parent=11 // pred_region
        _
      $region28: #{transformer_forward.15} parent=11 // pred_fallthru
        _
      // Predicated region
      $region29: #{transformer_forward.15} parent=11 // pred_check
        %p349 = pneg %p189
      $region30: #{transformer_forward.15} parent=11 // pred_check_branch
        %351 = sbr.rel (%p349) target = $region32
      $region31: #{transformer_forward.15} parent=11 // pred_region
        _
      $region32: #{transformer_forward.15} parent=11 // pred_fallthru
        _
      // Predicated region
      $region33: #{transformer_forward.15} parent=11 // pred_check
        %p352 = pneg %p210
      $region34: #{transformer_forward.15} parent=11 // pred_check_branch
        %354 = sbr.rel (%p352) target = $region36
      $region35: #{transformer_forward.15} parent=11 // pred_region
        _
      $region36: #{transformer_forward.15} parent=11 // pred_fallthru
        _
      // Predicated region
      $region37: #{transformer_forward.15} parent=11 // pred_check
        %p355 = pneg %p231
      $region38: #{transformer_forward.15} parent=11 // pred_check_branch
        %357 = sbr.rel (%p355) target = $region40
      $region39: #{transformer_forward.15} parent=11 // pred_region
        _
      $region40: #{transformer_forward.15} parent=11 // pred_fallthru
        _
      // Predicated region
      $region41: #{transformer_forward.15} parent=11 // pred_check
        %p358 = pneg %p252
      $region42: #{transformer_forward.15} parent=11 // pred_check_branch
        %360 = sbr.rel (%p358) target = $region44
      $region43: #{transformer_forward.15} parent=11 // pred_region
        _
      $region44: #{transformer_forward.15} parent=11 // pred_fallthru
        _
      // Predicated region
      $region45: #{transformer_forward.15} parent=11 // pred_check
        %p361 = pneg %p273
      $region46: #{transformer_forward.15} parent=11 // pred_check_branch
        %363 = sbr.rel (%p361) target = $region48
      $region47: #{transformer_forward.15} parent=11 // pred_region
        _
      $region48: #{transformer_forward.15} parent=11 // pred_fallthru
        _
      // Predicated region
      $region49: #{transformer_forward.15} parent=11 // pred_check
        %p364 = pneg %p294
      $region50: #{transformer_forward.15} parent=11 // pred_check_branch
        %366 = sbr.rel (%p364) target = $region52
      $region51: #{transformer_forward.15} parent=11 // pred_region
        _
      $region52: #{transformer_forward.15} parent=11 // pred_fallthru
        _
    $region12: #{transformer_forward.15} parent=5 // pred_fallthru
      _
    %p367 = scmp.lt.s32.totalorder %s18, 2
    // Predicated region
    $region53: #{transformer_forward.15} parent=5 // pred_check
      %p368 = pneg %p367
    $region54: #{transformer_forward.15} parent=5 // pred_check_branch
      %370 = sbr.rel (%p368) target = $region56
    $region55: #{transformer_forward.15} parent=5 // pred_region
      // Predicated region
      $region57: #{transformer_forward.15} parent=55 // pred_check
        %p371 = pneg %p52
      $region58: #{transformer_forward.15} parent=55 // pred_check_branch
        %373 = sbr.rel (%p371) target = $region60
      $region59: #{transformer_forward.15} parent=55 // pred_region
        %s374 = smul.u32 2, %s26
        %p375 = scmp.lt.s32.totalorder %s25, 1
        %s376 = scalar_select %p375, %s25, 1
        %p377 = scmp.lt.s32.totalorder %s374, 1
        %s378 = scalar_select %p377, %s374, 1
        %s379 = smul.addr %s376, 2
        %s380 = sadd.s32 %s378, %s379
        %s381 = smul.addr %s380, 8
        %s382 = scalar_lea.vmem %s0, %s381
        %s383 = smul.u32 2, %s26
      $region60: #{transformer_forward.15} parent=55 // pred_fallthru
        _
      // Predicated region
      $region61: #{transformer_forward.15} parent=55 // pred_check
        %p384 = pneg %p78
      $region62: #{transformer_forward.15} parent=55 // pred_check_branch
        %386 = sbr.rel (%p384) target = $region64
      $region63: #{transformer_forward.15} parent=55 // pred_region
        %p387 = scmp.lt.s32.totalorder %s25, 1
        %s388 = scalar_select %p387, %s25, 1
        %s389 = smul.addr %s388, 8
        %s390 = scalar_lea.vmem %s1, %s389
      $region64: #{transformer_forward.15} parent=55 // pred_fallthru
        _
    $region56: #{transformer_forward.15} parent=5 // pred_fallthru
      _
    %p391 = scmp.le.s32.totalorder 1, %s18
    %p392 = scmp.lt.s32.totalorder %s18, 3
    %p393 = pnand %p391, %p392
    %p394 = pneg %p393
    // Predicated region
    $region65: #{transformer_forward.15} parent=5 // pred_check
      _
    $region66: #{transformer_forward.15} parent=5 // pred_check_branch
      %396 = sbr.rel (%p393) target = $region68
    $region67: #{transformer_forward.15} parent=5 // pred_region
      %s397 = ssub.s32 %s18, 1
      %s398 = smul.u32 2, %s28
      %p399 = scmp.lt.s32.totalorder %s27, 1
      %s400 = scalar_select %p399, %s27, 1
      %p401 = scmp.lt.s32.totalorder %s398, 1
      %s402 = scalar_select %p401, %s398, 1
      %s403 = smul.addr %s400, 2
      %s404 = sadd.s32 %s402, %s403
      %s405 = smul.addr %s404, 8
      %s406 = scalar_lea.vmem %s0, %s405
      %p407 = pneg %p58
      %p408 = pneg %p55
      %p409 = scmp.lt.s32.totalorder %s27, 1
      %s410 = scalar_select %p409, %s27, 1
      %s411 = smul.addr %s410, 8
      %s412 = scalar_lea.vmem %s1, %s411
      %p413 = pneg %p84
      %p414 = pneg %p81
      %p415 = pneg %p105
      %p416 = pneg %p102
      %p417 = pneg %p126
      %p418 = pneg %p123
      %p419 = pneg %p147
      %p420 = pneg %p144
      %p421 = pneg %p168
      %p422 = pneg %p165
      %p423 = pneg %p189
      %p424 = pneg %p186
      %p425 = pneg %p210
      %p426 = pneg %p207
      %p427 = pneg %p231
      %p428 = pneg %p228
      %p429 = pneg %p252
      %p430 = pneg %p249
      %p431 = pneg %p273
      %p432 = pneg %p270
      %p433 = pneg %p294
      %p434 = pneg %p291
      %p435 = pneg %p322
      %p436 = pneg %p319
      %s437 = smul.u32 2, %s28
      %p438 = scmp.lt.s32.totalorder %s27, 1
      %s439 = scalar_select %p438, %s27, 1
      %p440 = scmp.lt.s32.totalorder %s437, 1
      %s441 = scalar_select %p440, %s437, 1
      %s442 = smul.addr %s439, 2
      %s443 = sadd.s32 %s441, %s442
      %s444 = smul.addr %s443, 8
      %s445 = scalar_lea.vmem %s12, %s444
      %s446 = smul.u32 2, %s28
      %p447 = scmp.lt.s32.totalorder %s27, 1
      %s448 = scalar_select %p447, %s27, 1
      %p449 = scmp.lt.s32.totalorder %s446, 1
      %s450 = scalar_select %p449, %s446, 1
      %s451 = smul.addr %s448, 2
      %s452 = sadd.s32 %s450, %s451
      %s453 = smul.addr %s452, 8
      %s454 = scalar_lea.vmem %s0, %s453
      %s455 = smul.u32 2, %s28
      %p456 = scmp.lt.s32.totalorder %s27, 1
      %s457 = scalar_select %p456, %s27, 1
      %s458 = smul.addr %s457, 8
      %s459 = scalar_lea.vmem %s1, %s458
      %s460 = smul.u32 2, %s28
      %p461 = scmp.lt.s32.totalorder %s27, 1
      %s462 = scalar_select %p461, %s27, 1
      %p463 = scmp.lt.s32.totalorder %s460, 1
      %s464 = scalar_select %p463, %s460, 1
      %s465 = smul.addr %s462, 2
      %s466 = sadd.s32 %s464, %s465
      %s467 = smul.addr %s466, 8
      %s468 = scalar_lea.vmem %s12, %s467
      %s469 = smul.u32 2, %s28
      %v471 = vld [vmem:[%s454] sm:$0xff]
      %v472 = vld [vmem:[%s454 + $0x8] sm:$0x3]
      %v473 = vld [vmem:[%s459] sm:$0xff]
      %v474 = vpack.c.bf16 %v472, %v471
      %v475 = vpack.c.bf16 %v473, %v473
      %v476 = vld [vmem:[%s2] sm:$0xf]
      %v477 = vld [vmem:[%s2 + $0x4] sm:$0xf]
      %v478 = vld [vmem:[%s2 + $0x8] sm:$0xf]
      %v479 = vld [vmem:[%s2 + $0xc] sm:$0xf]
      %v480 = vld [vmem:[%s3] sm:$0x1]
      %v482 = vlaneseq
      %v483 = vshrl.u32 %v482, 7
      %v484 = vsub.s32 0, %v483
      %v485 = vrot.slane %v480, %v484
      %v491 = vunpack.c.l.b16 %v476
      %v492 = vunpack.c.l.b16 %v477
      %v493 = vunpack.c.l.b16 %v478
      %v494 = vunpack.c.l.b16 %v479
      %v495 = vpack.c.b16 %v492, %v491
      %v496 = vpack.c.b16 %v494, %v493
      %vm499 = vcmask 261120
      %v501 = vsel %vm499, %v474, 0
      %503 = vmatprep.subr.bf16.mxu0 0
      %504 = vmatpush1.bf16.msra.mxu0 %v495
      %505 = vmatprep.subr.bf16.mxu0 0
      %506 = vmatpush1.bf16.msra.mxu0 %v496
      %507 = vmatprep.subr.bf16.mxu0 0
      %508 = vmatpush1.bf16.msra.mxu0 0
      %509 = vmatprep.subr.bf16.mxu0 0
      %510 = vmatpush1.bf16.msra.mxu0 0
      %511 = vmatprep.subr.bf16.mxu0 0
      %512 = vmatpush1.bf16.msra.mxu0 0
      %513 = vmatprep.subr.bf16.mxu0 0
      %514 = vmatpush1.bf16.msra.mxu0 0
      %515 = vmatprep.subr.bf16.mxu0 0
      %516 = vmatpush1.bf16.msra.mxu0 0
      %517 = vmatprep.subr.bf16.mxu0 0
      %518 = vmatpush1.bf16.msra.mxu0 0
      %519 = vmatprep.subr.bf16.mxu0 0
      %520 = vmatpush1.bf16.msra.mxu0 0
      %521 = vmatprep.subr.bf16.mxu0 0
      %522 = vmatpush1.bf16.msra.mxu0 0
      %523 = vmatprep.subr.bf16.mxu0 0
      %524 = vmatpush1.bf16.msra.mxu0 0
      %525 = vmatprep.subr.bf16.mxu0 0
      %526 = vmatpush1.bf16.msra.mxu0 0
      %527 = vmatprep.subr.bf16.mxu0 0
      %528 = vmatpush1.bf16.msra.mxu0 0
      %529 = vmatprep.subr.bf16.mxu0 0
      %530 = vmatpush1.bf16.msra.mxu0 0
      %531 = vmatprep.subr.bf16.mxu0 0
      %532 = vmatpush1.bf16.msra.mxu0 0
      %533 = vmatprep.subr.bf16.mxu0 0
      %534 = vmatpush1.bf16.msra.mxu0 0
      %535 = vmatprep.mubr.bf16.mxu0 0
      %536 = vmatmul.mubr.bf16.gmra.mrb[0].mxu0 %v501
      %v537 = vpop.f32.mrb[0].mxu0
      %v538 = vadd.f32 %v485, %v537
      %v539 = vpop.f32.mrb[0].mxu0
      %v540 = vpop.f32.mrb[0].mxu0
      %v541 = vadd.f32 %v485, %v540
      %v542 = vpop.f32.mrb[0].mxu0
      %543 = vdwg.mxu0
      %v544 = vld [vmem:[%s4] sm:$0xf]
      %v545 = vld [vmem:[%s4 + $0x4] sm:$0xf]
      %v546 = vld [vmem:[%s4 + $0x8] sm:$0xf]
      %v547 = vld [vmem:[%s4 + $0xc] sm:$0xf]
      %v548 = vld [vmem:[%s5] sm:$0x1]
      %v550 = vlaneseq
      %v551 = vshrl.u32 %v550, 7
      %v552 = vsub.s32 0, %v551
      %v553 = vrot.slane %v548, %v552
      %v559 = vunpack.c.l.b16 %v544
      %v560 = vunpack.c.l.b16 %v545
      %v561 = vunpack.c.l.b16 %v546
      %v562 = vunpack.c.l.b16 %v547
      %v563 = vpack.c.b16 %v560, %v559
      %v564 = vpack.c.b16 %v562, %v561
      %v568 = vsel %vm499, %v475, 0
      %570 = vmatprep.subr.bf16.mxu0 0
      %571 = vmatpush1.bf16.msra.mxu0 %v563
      %572 = vmatprep.subr.bf16.mxu0 0
      %573 = vmatpush1.bf16.msra.mxu0 %v564
      %574 = vmatprep.subr.bf16.mxu0 0
      %575 = vmatpush1.bf16.msra.mxu0 0
      %576 = vmatprep.subr.bf16.mxu0 0
      %577 = vmatpush1.bf16.msra.mxu0 0
      %578 = vmatprep.subr.bf16.mxu0 0
      %579 = vmatpush1.bf16.msra.mxu0 0
      %580 = vmatprep.subr.bf16.mxu0 0
      %581 = vmatpush1.bf16.msra.mxu0 0
      %582 = vmatprep.subr.bf16.mxu0 0
      %583 = vmatpush1.bf16.msra.mxu0 0
      %584 = vmatprep.subr.bf16.mxu0 0
      %585 = vmatpush1.bf16.msra.mxu0 0
      %586 = vmatprep.subr.bf16.mxu0 0
      %587 = vmatpush1.bf16.msra.mxu0 0
      %588 = vmatprep.subr.bf16.mxu0 0
      %589 = vmatpush1.bf16.msra.mxu0 0
      %590 = vmatprep.subr.bf16.mxu0 0
      %591 = vmatpush1.bf16.msra.mxu0 0
      %592 = vmatprep.subr.bf16.mxu0 0
      %593 = vmatpush1.bf16.msra.mxu0 0
      %594 = vmatprep.subr.bf16.mxu0 0
      %595 = vmatpush1.bf16.msra.mxu0 0
      %596 = vmatprep.subr.bf16.mxu0 0
      %597 = vmatpush1.bf16.msra.mxu0 0
      %598 = vmatprep.subr.bf16.mxu0 0
      %599 = vmatpush1.bf16.msra.mxu0 0
      %600 = vmatprep.subr.bf16.mxu0 0
      %601 = vmatpush1.bf16.msra.mxu0 0
      %602 = vmatprep.mubr.bf16.mxu0 0
      %603 = vmatmul.mubr.bf16.gmra.mrb[0].mxu0 %v568
      %v604 = vpop.f32.mrb[0].mxu0
      %v605 = vadd.f32 %v553, %v604
      %v606 = vpop.f32.mrb[0].mxu0
      %v607 = vpop.f32.mrb[0].mxu0
      %v608 = vpop.f32.mrb[0].mxu0
      %609 = vdwg.mxu0
      %v610 = vld [vmem:[%s6] sm:$0xf]
      %v611 = vld [vmem:[%s6 + $0x4] sm:$0xf]
      %v612 = vld [vmem:[%s6 + $0x8] sm:$0xf]
      %v613 = vld [vmem:[%s6 + $0xc] sm:$0xf]
      %v614 = vld [vmem:[%s7] sm:$0x1]
      %v616 = vlaneseq
      %v617 = vshrl.u32 %v616, 7
      %v618 = vsub.s32 0, %v617
      %v619 = vrot.slane %v614, %v618
      %v625 = vunpack.c.l.b16 %v610
      %v626 = vunpack.c.l.b16 %v611
      %v627 = vunpack.c.l.b16 %v612
      %v628 = vunpack.c.l.b16 %v613
      %v629 = vpack.c.b16 %v626, %v625
      %v630 = vpack.c.b16 %v628, %v627
      %633 = vmatprep.subr.bf16.mxu0 0
      %634 = vmatpush1.bf16.msra.mxu0 %v629
      %635 = vmatprep.subr.bf16.mxu0 0
      %636 = vmatpush1.bf16.msra.mxu0 %v630
      %637 = vmatprep.subr.bf16.mxu0 0
      %638 = vmatpush1.bf16.msra.mxu0 0
      %639 = vmatprep.subr.bf16.mxu0 0
      %640 = vmatpush1.bf16.msra.mxu0 0
      %641 = vmatprep.subr.bf16.mxu0 0
      %642 = vmatpush1.bf16.msra.mxu0 0
      %643 = vmatprep.subr.bf16.mxu0 0
      %644 = vmatpush1.bf16.msra.mxu0 0
      %645 = vmatprep.subr.bf16.mxu0 0
      %646 = vmatpush1.bf16.msra.mxu0 0
      %647 = vmatprep.subr.bf16.mxu0 0
      %648 = vmatpush1.bf16.msra.mxu0 0
      %649 = vmatprep.subr.bf16.mxu0 0
      %650 = vmatpush1.bf16.msra.mxu0 0
      %651 = vmatprep.subr.bf16.mxu0 0
      %652 = vmatpush1.bf16.msra.mxu0 0
      %653 = vmatprep.subr.bf16.mxu0 0
      %654 = vmatpush1.bf16.msra.mxu0 0
      %655 = vmatprep.subr.bf16.mxu0 0
      %656 = vmatpush1.bf16.msra.mxu0 0
      %657 = vmatprep.subr.bf16.mxu0 0
      %658 = vmatpush1.bf16.msra.mxu0 0
      %659 = vmatprep.subr.bf16.mxu0 0
      %660 = vmatpush1.bf16.msra.mxu0 0
      %661 = vmatprep.subr.bf16.mxu0 0
      %662 = vmatpush1.bf16.msra.mxu0 0
      %663 = vmatprep.subr.bf16.mxu0 0
      %664 = vmatpush1.bf16.msra.mxu0 0
      %665 = vmatprep.mubr.bf16.mxu0 0
      %666 = vmatmul.mubr.bf16.gmra.mrb[0].mxu0 %v568
      %v667 = vpop.f32.mrb[0].mxu0
      %v668 = vadd.f32 %v619, %v667
      %v669 = vpop.f32.mrb[0].mxu0
      %v670 = vpop.f32.mrb[0].mxu0
      %v671 = vpop.f32.mrb[0].mxu0
      %672 = vdwg.mxu0
      %v673 = vpack.c.bf16 %v541, %v538
      %v674 = vpack.c.bf16 %v605, %v605
      %vm675 = vcmask 64512
      %v677 = vsel %vm675, %v673, 0
      %v680 = vsel %vm675, %v674, 0
      %682 = vmatprep.subr.bf16.mxu0 0
      %683 = vmatpush1.bf16.xpose.msra.mxu0 %v680
      %684 = vmatprep.subr.bf16.mxu0 0
      %685 = vmatpush1.bf16.xpose.msra.mxu0 0
      %686 = vmatprep.subr.bf16.mxu0 0
      %687 = vmatpush1.bf16.xpose.msra.mxu0 0
      %688 = vmatprep.subr.bf16.mxu0 0
      %689 = vmatpush1.bf16.xpose.msra.mxu0 0
      %690 = vmatprep.subr.bf16.mxu0 0
      %691 = vmatpush1.bf16.xpose.msra.mxu0 0
      %692 = vmatprep.subr.bf16.mxu0 0
      %693 = vmatpush1.bf16.xpose.msra.mxu0 0
      %694 = vmatprep.subr.bf16.mxu0 0
      %695 = vmatpush1.bf16.xpose.msra.mxu0 0
      %696 = vmatprep.subr.bf16.mxu0 0
      %697 = vmatpush1.bf16.xpose.msra.mxu0 0
      %698 = vmatprep.subr.bf16.mxu0 0
      %699 = vmatpush1.bf16.xpose.msra.mxu0 0
      %700 = vmatprep.subr.bf16.mxu0 0
      %701 = vmatpush1.bf16.xpose.msra.mxu0 0
      %702 = vmatprep.subr.bf16.mxu0 0
      %703 = vmatpush1.bf16.xpose.msra.mxu0 0
      %704 = vmatprep.subr.bf16.mxu0 0
      %705 = vmatpush1.bf16.xpose.msra.mxu0 0
      %706 = vmatprep.subr.bf16.mxu0 0
      %707 = vmatpush1.bf16.xpose.msra.mxu0 0
      %708 = vmatprep.subr.bf16.mxu0 0
      %709 = vmatpush1.bf16.xpose.msra.mxu0 0
      %710 = vmatprep.subr.bf16.mxu0 0
      %711 = vmatpush1.bf16.xpose.msra.mxu0 0
      %712 = vmatprep.subr.bf16.mxu0 0
      %713 = vmatpush1.bf16.xpose.msra.mxu0 0
      %714 = vmatprep.mubr.bf16.mxu0 0
      %715 = vmatmul.mubr.bf16.gmra.mrb[0].mxu0 %v677
      %v716 = vpop.f32.mrb[0].mxu0
      %v717 = vadd.f32 0.0, %v716
      %v718 = vpop.f32.mrb[0].mxu0
      %v719 = vpop.f32.mrb[0].mxu0
      %v720 = vadd.f32 0.0, %v719
      %v721 = vpop.f32.mrb[0].mxu0
      %722 = vdwg.mxu0
      %v723 = vsel %vm675, %v717, -inf
      %724 = vmax.xlane.f32.xlu0 %v723
      %v725 = vpop.xlane.xlu0 %724
      %vm726 = vcmask 58368
      %v727 = vsel %vm726, %v720, -inf
      %728 = vmax.xlane.f32.xlu0 %v727
      %v729 = vpop.xlane.xlu0 %728
      %v730 = vsub.f32 %v717, %v725
      %v731 = vsub.f32 %v720, %v729
      %v732 = vmul.f32 %v730, 1.442695
      %v733 = vpow.pop %v732
      %v734 = vmul.f32 %v731, 1.442695
      %v735 = vpow.pop %v734
      %v736 = vsel %vm675, %v733, 0.0
      %737 = vadd.xlane.f32.xlu0 %v736
      %v738 = vpop.xlane.xlu0 %737
      %v739 = vsel %vm726, %v735, 0.0
      %740 = vadd.xlane.f32.xlu0 %v739
      %v741 = vpop.xlane.xlu0 %740
      %v742 = vrcp.pop %v738
      %v743 = vmul.f32 %v733, %v742
      %v744 = vrcp.pop %v741
      %v745 = vmul.f32 %v735, %v744
      %v746 = vpack.c.bf16 %v745, %v743
      %v747 = vpack.c.bf16 %v668, %v668
      %v749 = vsel %vm675, %v746, 0
      %vm751 = vcmask 1043456
      %v753 = vsel %vm751, %v747, 0
      %755 = vmatprep.subr.bf16.mxu0 0
      %756 = vmatpush1.bf16.msra.mxu0 %v753
      %757 = vmatprep.subr.bf16.mxu0 0
      %758 = vmatpush1.bf16.msra.mxu0 0
      %759 = vmatprep.subr.bf16.mxu0 0
      %760 = vmatpush1.bf16.msra.mxu0 0
      %761 = vmatprep.subr.bf16.mxu0 0
      %762 = vmatpush1.bf16.msra.mxu0 0
      %763 = vmatprep.subr.bf16.mxu0 0
      %764 = vmatpush1.bf16.msra.mxu0 0
      %765 = vmatprep.subr.bf16.mxu0 0
      %766 = vmatpush1.bf16.msra.mxu0 0
      %767 = vmatprep.subr.bf16.mxu0 0
      %768 = vmatpush1.bf16.msra.mxu0 0
      %769 = vmatprep.subr.bf16.mxu0 0
      %770 = vmatpush1.bf16.msra.mxu0 0
      %771 = vmatprep.subr.bf16.mxu0 0
      %772 = vmatpush1.bf16.msra.mxu0 0
      %773 = vmatprep.subr.bf16.mxu0 0
      %774 = vmatpush1.bf16.msra.mxu0 0
      %775 = vmatprep.subr.bf16.mxu0 0
      %776 = vmatpush1.bf16.msra.mxu0 0
      %777 = vmatprep.subr.bf16.mxu0 0
      %778 = vmatpush1.bf16.msra.mxu0 0
      %779 = vmatprep.subr.bf16.mxu0 0
      %780 = vmatpush1.bf16.msra.mxu0 0
      %781 = vmatprep.subr.bf16.mxu0 0
      %782 = vmatpush1.bf16.msra.mxu0 0
      %783 = vmatprep.subr.bf16.mxu0 0
      %784 = vmatpush1.bf16.msra.mxu0 0
      %785 = vmatprep.subr.bf16.mxu0 0
      %786 = vmatpush1.bf16.msra.mxu0 0
      %787 = vmatprep.mubr.bf16.mxu0 0
      %788 = vmatmul.mubr.bf16.gmra.mrb[0].mxu0 %v749
      %v789 = vpop.f32.mrb[0].mxu0
      %v790 = vadd.f32 0.0, %v789
      %v791 = vpop.f32.mrb[0].mxu0
      %v792 = vpop.f32.mrb[0].mxu0
      %v793 = vadd.f32 0.0, %v792
      %v794 = vpop.f32.mrb[0].mxu0
      %795 = vdwg.mxu0
      %s796 = scalar_lea.vmem %s2, 16
      %v797 = vld [vmem:[%s796] sm:$0xf]
      %v798 = vld [vmem:[%s796 + $0x4] sm:$0xf]
      %v799 = vld [vmem:[%s796 + $0x8] sm:$0xf]
      %v800 = vld [vmem:[%s796 + $0xc] sm:$0xf]
      %s801 = scalar_lea.vmem %s3, 1
      %v802 = vld [vmem:[%s801] sm:$0x1]
      %v804 = vlaneseq
      %v805 = vshrl.u32 %v804, 7
      %v806 = vsub.s32 0, %v805
      %v807 = vrot.slane %v802, %v806
      %v813 = vunpack.c.l.b16 %v797
      %v814 = vunpack.c.l.b16 %v798
      %v815 = vunpack.c.l.b16 %v799
      %v816 = vunpack.c.l.b16 %v800
      %v817 = vpack.c.b16 %v814, %v813
      %v818 = vpack.c.b16 %v816, %v815
      %821 = vmatprep.subr.bf16.mxu0 0
      %822 = vmatpush1.bf16.msra.mxu0 %v817
      %823 = vmatprep.subr.bf16.mxu0 0
      %824 = vmatpush1.bf16.msra.mxu0 %v818
      %825 = vmatprep.subr.bf16.mxu0 0
      %826 = vmatpush1.bf16.msra.mxu0 0
      %827 = vmatprep.subr.bf16.mxu0 0
      %828 = vmatpush1.bf16.msra.mxu0 0
      %829 = vmatprep.subr.bf16.mxu0 0
      %830 = vmatpush1.bf16.msra.mxu0 0
      %831 = vmatprep.subr.bf16.mxu0 0
      %832 = vmatpush1.bf16.msra.mxu0 0
      %833 = vmatprep.subr.bf16.mxu0 0
      %834 = vmatpush1.bf16.msra.mxu0 0
      %835 = vmatprep.subr.bf16.mxu0 0
      %836 = vmatpush1.bf16.msra.mxu0 0
      %837 = vmatprep.subr.bf16.mxu0 0
      %838 = vmatpush1.bf16.msra.mxu0 0
      %839 = vmatprep.subr.bf16.mxu0 0
      %840 = vmatpush1.bf16.msra.mxu0 0
      %841 = vmatprep.subr.bf16.mxu0 0
      %842 = vmatpush1.bf16.msra.mxu0 0
      %843 = vmatprep.subr.bf16.mxu0 0
      %844 = vmatpush1.bf16.msra.mxu0 0
      %845 = vmatprep.subr.bf16.mxu0 0
      %846 = vmatpush1.bf16.msra.mxu0 0
      %847 = vmatprep.subr.bf16.mxu0 0
      %848 = vmatpush1.bf16.msra.mxu0 0
      %849 = vmatprep.subr.bf16.mxu0 0
      %850 = vmatpush1.bf16.msra.mxu0 0
      %851 = vmatprep.subr.bf16.mxu0 0
      %852 = vmatpush1.bf16.msra.mxu0 0
      %853 = vmatprep.mubr.bf16.mxu0 0
      %854 = vmatmul.mubr.bf16.gmra.mrb[0].mxu0 %v501
      %v855 = vpop.f32.mrb[0].mxu0
      %v856 = vadd.f32 %v807, %v855
      %v857 = vpop.f32.mrb[0].mxu0
      %v858 = vpop.f32.mrb[0].mxu0
      %v859 = vadd.f32 %v807, %v858
      %v860 = vpop.f32.mrb[0].mxu0
      %861 = vdwg.mxu0
      %s862 = scalar_lea.vmem %s4, 16
      %v863 = vld [vmem:[%s862] sm:$0xf]
      %v864 = vld [vmem:[%s862 + $0x4] sm:$0xf]
      %v865 = vld [vmem:[%s862 + $0x8] sm:$0xf]
      %v866 = vld [vmem:[%s862 + $0xc] sm:$0xf]
      %s867 = scalar_lea.vmem %s5, 1
      %v868 = vld [vmem:[%s867] sm:$0x1]
      %v870 = vlaneseq
      %v871 = vshrl.u32 %v870, 7
      %v872 = vsub.s32 0, %v871
      %v873 = vrot.slane %v868, %v872
      %v879 = vunpack.c.l.b16 %v863
      %v880 = vunpack.c.l.b16 %v864
      %v881 = vunpack.c.l.b16 %v865
      %v882 = vunpack.c.l.b16 %v866
      %v883 = vpack.c.b16 %v880, %v879
      %v884 = vpack.c.b16 %v882, %v881
      %887 = vmatprep.subr.bf16.mxu0 0
      %888 = vmatpush1.bf16.msra.mxu0 %v883
      %889 = vmatprep.subr.bf16.mxu0 0
      %890 = vmatpush1.bf16.msra.mxu0 %v884
      %891 = vmatprep.subr.bf16.mxu0 0
      %892 = vmatpush1.bf16.msra.mxu0 0
      %893 = vmatprep.subr.bf16.mxu0 0
      %894 = vmatpush1.bf16.msra.mxu0 0
      %895 = vmatprep.subr.bf16.mxu0 0
      %896 = vmatpush1.bf16.msra.mxu0 0
      %897 = vmatprep.subr.bf16.mxu0 0
      %898 = vmatpush1.bf16.msra.mxu0 0
      %899 = vmatprep.subr.bf16.mxu0 0
      %900 = vmatpush1.bf16.msra.mxu0 0
      %901 = vmatprep.subr.bf16.mxu0 0
      %902 = vmatpush1.bf16.msra.mxu0 0
      %903 = vmatprep.subr.bf16.mxu0 0
      %904 = vmatpush1.bf16.msra.mxu0 0
      %905 = vmatprep.subr.bf16.mxu0 0
      %906 = vmatpush1.bf16.msra.mxu0 0
      %907 = vmatprep.subr.bf16.mxu0 0
      %908 = vmatpush1.bf16.msra.mxu0 0
      %909 = vmatprep.subr.bf16.mxu0 0
      %910 = vmatpush1.bf16.msra.mxu0 0
      %911 = vmatprep.subr.bf16.mxu0 0
      %912 = vmatpush1.bf16.msra.mxu0 0
      %913 = vmatprep.subr.bf16.mxu0 0
      %914 = vmatpush1.bf16.msra.mxu0 0
      %915 = vmatprep.subr.bf16.mxu0 0
      %916 = vmatpush1.bf16.msra.mxu0 0
      %917 = vmatprep.subr.bf16.mxu0 0
      %918 = vmatpush1.bf16.msra.mxu0 0
      %919 = vmatprep.mubr.bf16.mxu0 0
      %920 = vmatmul.mubr.bf16.gmra.mrb[0].mxu0 %v568
      %v921 = vpop.f32.mrb[0].mxu0
      %v922 = vadd.f32 %v873, %v921
      %v923 = vpop.f32.mrb[0].mxu0
      %v924 = vpop.f32.mrb[0].mxu0
      %v925 = vpop.f32.mrb[0].mxu0
      %926 = vdwg.mxu0
      %s927 = scalar_lea.vmem %s6, 16
      %v928 = vld [vmem:[%s927] sm:$0xf]
      %v929 = vld [vmem:[%s927 + $0x4] sm:$0xf]
      %v930 = vld [vmem:[%s927 + $0x8] sm:$0xf]
      %v931 = vld [vmem:[%s927 + $0xc] sm:$0xf]
      %s932 = scalar_lea.vmem %s7, 1
      %v933 = vld [vmem:[%s932] sm:$0x1]
      %v935 = vlaneseq
      %v936 = vshrl.u32 %v935, 7
      %v937 = vsub.s32 0, %v936
      %v938 = vrot.slane %v933, %v937
      %v944 = vunpack.c.l.b16 %v928
      %v945 = vunpack.c.l.b16 %v929
      %v946 = vunpack.c.l.b16 %v930
      %v947 = vunpack.c.l.b16 %v931
      %v948 = vpack.c.b16 %v945, %v944
      %v949 = vpack.c.b16 %v947, %v946
      %952 = vmatprep.subr.bf16.mxu0 0
      %953 = vmatpush1.bf16.msra.mxu0 %v948
      %954 = vmatprep.subr.bf16.mxu0 0
      %955 = vmatpush1.bf16.msra.mxu0 %v949
      %956 = vmatprep.subr.bf16.mxu0 0
      %957 = vmatpush1.bf16.msra.mxu0 0
      %958 = vmatprep.subr.bf16.mxu0 0
      %959 = vmatpush1.bf16.msra.mxu0 0
      %960 = vmatprep.subr.bf16.mxu0 0
      %961 = vmatpush1.bf16.msra.mxu0 0
      %962 = vmatprep.subr.bf16.mxu0 0
      %963 = vmatpush1.bf16.msra.mxu0 0
      %964 = vmatprep.subr.bf16.mxu0 0
      %965 = vmatpush1.bf16.msra.mxu0 0
      %966 = vmatprep.subr.bf16.mxu0 0
      %967 = vmatpush1.bf16.msra.mxu0 0
      %968 = vmatprep.subr.bf16.mxu0 0
      %969 = vmatpush1.bf16.msra.mxu0 0
      %970 = vmatprep.subr.bf16.mxu0 0
      %971 = vmatpush1.bf16.msra.mxu0 0
      %972 = vmatprep.subr.bf16.mxu0 0
      %973 = vmatpush1.bf16.msra.mxu0 0
      %974 = vmatprep.subr.bf16.mxu0 0
      %975 = vmatpush1.bf16.msra.mxu0 0
      %976 = vmatprep.subr.bf16.mxu0 0
      %977 = vmatpush1.bf16.msra.mxu0 0
      %978 = vmatprep.subr.bf16.mxu0 0
      %979 = vmatpush1.bf16.msra.mxu0 0
      %980 = vmatprep.subr.bf16.mxu0 0
      %981 = vmatpush1.bf16.msra.mxu0 0
      %982 = vmatprep.subr.bf16.mxu0 0
      %983 = vmatpush1.bf16.msra.mxu0 0
      %984 = vmatprep.mubr.bf16.mxu0 0
      %985 = vmatmul.mubr.bf16.gmra.mrb[0].mxu0 %v568
      %v986 = vpop.f32.mrb[0].mxu0
      %v987 = vadd.f32 %v938, %v986
      %v988 = vpop.f32.mrb[0].mxu0
      %v989 = vpop.f32.mrb[0].mxu0
      %v990 = vpop.f32.mrb[0].mxu0
      %991 = vdwg.mxu0
      %v992 = vpack.c.bf16 %v859, %v856
      %v993 = vpack.c.bf16 %v922, %v922
      %v995 = vsel %vm675, %v992, 0
      %v998 = vsel %vm675, %v993, 0
      %1000 = vmatprep.subr.bf16.mxu0 0
      %1001 = vmatpush1.bf16.xpose.msra.mxu0 %v998
      %1002 = vmatprep.subr.bf16.mxu0 0
      %1003 = vmatpush1.bf16.xpose.msra.mxu0 0
      %1004 = vmatprep.subr.bf16.mxu0 0
      %1005 = vmatpush1.bf16.xpose.msra.mxu0 0
      %1006 = vmatprep.subr.bf16.mxu0 0
      %1007 = vmatpush1.bf16.xpose.msra.mxu0 0
      %1008 = vmatprep.subr.bf16.mxu0 0
      %1009 = vmatpush1.bf16.xpose.msra.mxu0 0
      %1010 = vmatprep.subr.bf16.mxu0 0
      %1011 = vmatpush1.bf16.xpose.msra.mxu0 0
      %1012 = vmatprep.subr.bf16.mxu0 0
      %1013 = vmatpush1.bf16.xpose.msra.mxu0 0
      %1014 = vmatprep.subr.bf16.mxu0 0
      %1015 = vmatpush1.bf16.xpose.msra.mxu0 0
      %1016 = vmatprep.subr.bf16.mxu0 0
      %1017 = vmatpush1.bf16.xpose.msra.mxu0 0
      %1018 = vmatprep.subr.bf16.mxu0 0
      %1019 = vmatpush1.bf16.xpose.msra.mxu0 0
      %1020 = vmatprep.subr.bf16.mxu0 0
      %1021 = vmatpush1.bf16.xpose.msra.mxu0 0
      %1022 = vmatprep.subr.bf16.mxu0 0
      %1023 = vmatpush1.bf16.xpose.msra.mxu0 0
      %1024 = vmatprep.subr.bf16.mxu0 0
      %1025 = vmatpush1.bf16.xpose.msra.mxu0 0
      %1026 = vmatprep.subr.bf16.mxu0 0
      %1027 = vmatpush1.bf16.xpose.msra.mxu0 0
      %1028 = vmatprep.subr.bf16.mxu0 0
      %1029 = vmatpush1.bf16.xpose.msra.mxu0 0
      %1030 = vmatprep.subr.bf16.mxu0 0
      %1031 = vmatpush1.bf16.xpose.msra.mxu0 0
      %1032 = vmatprep.mubr.bf16.mxu0 0
      %1033 = vmatmul.mubr.bf16.gmra.mrb[0].mxu0 %v995
      %v1034 = vpop.f32.mrb[0].mxu0
      %v1035 = vadd.f32 0.0, %v1034
      %v1036 = vpop.f32.mrb[0].mxu0
      %v1037 = vpop.f32.mrb[0].mxu0
      %v1038 = vadd.f32 0.0, %v1037
      %v1039 = vpop.f32.mrb[0].mxu0
      %1040 = vdwg.mxu0
      %v1041 = vsel %vm675, %v1035, -inf
      %1042 = vmax.xlane.f32.xlu0 %v1041
      %v1043 = vpop.xlane.xlu0 %1042
      %v1044 = vsel %vm726, %v1038, -inf
      %1045 = vmax.xlane.f32.xlu0 %v1044
      %v1046 = vpop.xlane.xlu0 %1045
      %v1047 = vsub.f32 %v1035, %v1043
      %v1048 = vsub.f32 %v1038, %v1046
      %v1049 = vmul.f32 %v1047, 1.442695
      %v1050 = vpow.pop %v1049
      %v1051 = vmul.f32 %v1048, 1.442695
      %v1052 = vpow.pop %v1051
      %v1053 = vsel %vm675, %v1050, 0.0
      %1054 = vadd.xlane.f32.xlu0 %v1053
      %v1055 = vpop.xlane.xlu0 %1054
      %v1056 = vsel %vm726, %v1052, 0.0
      %1057 = vadd.xlane.f32.xlu0 %v1056
      %v1058 = vpop.xlane.xlu0 %1057
      %v1059 = vrcp.pop %v1055
      %v1060 = vmul.f32 %v1050, %v1059
      %v1061 = vrcp.pop %v1058
      %v1062 = vmul.f32 %v1052, %v1061
      %v1063 = vpack.c.bf16 %v1062, %v1060
      %v1064 = vpack.c.bf16 %v987, %v987
      %v1066 = vsel %vm675, %v1063, 0
      %v1069 = vsel %vm751, %v1064, 0
      %1071 = vmatprep.subr.bf16.mxu0 0
      %1072 = vmatpush1.bf16.msra.mxu0 %v1069
      %1073 = vmatprep.subr.bf16.mxu0 0
      %1074 = vmatpush1.bf16.msra.mxu0 0
      %1075 = vmatprep.subr.bf16.mxu0 0
      %1076 = vmatpush1.bf16.msra.mxu0 0
      %1077 = vmatprep.subr.bf16.mxu0 0
      %1078 = vmatpush1.bf16.msra.mxu0 0
      %1079 = vmatprep.subr.bf16.mxu0 0
      %1080 = vmatpush1.bf16.msra.mxu0 0
      %1081 = vmatprep.subr.bf16.mxu0 0
      %1082 = vmatpush1.bf16.msra.mxu0 0
      %1083 = vmatprep.subr.bf16.mxu0 0
      %1084 = vmatpush1.bf16.msra.mxu0 0
      %1085 = vmatprep.subr.bf16.mxu0 0
      %1086 = vmatpush1.bf16.msra.mxu0 0
      %1087 = vmatprep.subr.bf16.mxu0 0
      %1088 = vmatpush1.bf16.msra.mxu0 0
      %1089 = vmatprep.subr.bf16.mxu0 0
      %1090 = vmatpush1.bf16.msra.mxu0 0
      %1091 = vmatprep.subr.bf16.mxu0 0
      %1092 = vmatpush1.bf16.msra.mxu0 0
      %1093 = vmatprep.subr.bf16.mxu0 0
      %1094 = vmatpush1.bf16.msra.mxu0 0
      %1095 = vmatprep.subr.bf16.mxu0 0
      %1096 = vmatpush1.bf16.msra.mxu0 0
      %1097 = vmatprep.subr.bf16.mxu0 0
      %1098 = vmatpush1.bf16.msra.mxu0 0
      %1099 = vmatprep.subr.bf16.mxu0 0
      %1100 = vmatpush1.bf16.msra.mxu0 0
      %1101 = vmatprep.subr.bf16.mxu0 0
      %1102 = vmatpush1.bf16.msra.mxu0 0
      %1103 = vmatprep.mubr.bf16.mxu0 0
      %1104 = vmatmul.mubr.bf16.gmra.mrb[0].mxu0 %v1066
      %v1105 = vpop.f32.mrb[0].mxu0
      %v1106 = vadd.f32 0.0, %v1105
      %v1107 = vpop.f32.mrb[0].mxu0
      %v1108 = vpop.f32.mrb[0].mxu0
      %v1109 = vadd.f32 0.0, %v1108
      %v1110 = vpop.f32.mrb[0].mxu0
      %1111 = vdwg.mxu0
      %s1112 = scalar_lea.vmem %s2, 32
      %v1113 = vld [vmem:[%s1112] sm:$0xf]
      %v1114 = vld [vmem:[%s1112 + $0x4] sm:$0xf]
      %v1115 = vld [vmem:[%s1112 + $0x8] sm:$0xf]
      %v1116 = vld [vmem:[%s1112 + $0xc] sm:$0xf]
      %s1117 = scalar_lea.vmem %s3, 2
      %v1118 = vld [vmem:[%s1117] sm:$0x1]
      %v1120 = vlaneseq
      %v1121 = vshrl.u32 %v1120, 7
      %v1122 = vsub.s32 0, %v1121
      %v1123 = vrot.slane %v1118, %v1122
      %v1129 = vunpack.c.l.b16 %v1113
      %v1130 = vunpack.c.l.b16 %v1114
      %v1131 = vunpack.c.l.b16 %v1115
      %v1132 = vunpack.c.l.b16 %v1116
      %v1133 = vpack.c.b16 %v1130, %v1129
      %v1134 = vpack.c.b16 %v1132, %v1131
      %1137 = vmatprep.subr.bf16.mxu0 0
      %1138 = vmatpush1.bf16.msra.mxu0 %v1133
      %1139 = vmatprep.subr.bf16.mxu0 0
      %1140 = vmatpush1.bf16.msra.mxu0 %v1134
      %1141 = vmatprep.subr.bf16.mxu0 0
      %1142 = vmatpush1.bf16.msra.mxu0 0
      %1143 = vmatprep.subr.bf16.mxu0 0
      %1144 = vmatpush1.bf16.msra.mxu0 0
      %1145 = vmatprep.subr.bf16.mxu0 0
      %1146 = vmatpush1.bf16.msra.mxu0 0
      %1147 = vmatprep.subr.bf16.mxu0 0
      %1148 = vmatpush1.bf16.msra.mxu0 0
      %1149 = vmatprep.subr.bf16.mxu0 0
      %1150 = vmatpush1.bf16.msra.mxu0 0
      %1151 = vmatprep.subr.bf16.mxu0 0
      %1152 = vmatpush1.bf16.msra.mxu0 0
      %1153 = vmatprep.subr.bf16.mxu0 0
      %1154 = vmatpush1.bf16.msra.mxu0 0
      %1155 = vmatprep.subr.bf16.mxu0 0
      %1156 = vmatpush1.bf16.msra.mxu0 0
      %1157 = vmatprep.subr.bf16.mxu0 0
      %1158 = vmatpush1.bf16.msra.mxu0 0
      %1159 = vmatprep.subr.bf16.mxu0 0
      %1160 = vmatpush1.bf16.msra.mxu0 0
      %1161 = vmatprep.subr.bf16.mxu0 0
      %1162 = vmatpush1.bf16.msra.mxu0 0
      %1163 = vmatprep.subr.bf16.mxu0 0
      %1164 = vmatpush1.bf16.msra.mxu0 0
      %1165 = vmatprep.subr.bf16.mxu0 0
      %1166 = vmatpush1.bf16.msra.mxu0 0
      %1167 = vmatprep.subr.bf16.mxu0 0
      %1168 = vmatpush1.bf16.msra.mxu0 0
      %1169 = vmatprep.mubr.bf16.mxu0 0
      %1170 = vmatmul.mubr.bf16.gmra.mrb[0].mxu0 %v501
      %v1171 = vpop.f32.mrb[0].mxu0
      %v1172 = vadd.f32 %v1123, %v1171
      %v1173 = vpop.f32.mrb[0].mxu0
      %v1174 = vpop.f32.mrb[0].mxu0
      %v1175 = vadd.f32 %v1123, %v1174
      %v1176 = vpop.f32.mrb[0].mxu0
      %1177 = vdwg.mxu0
      %s1178 = scalar_lea.vmem %s4, 32
      %v1179 = vld [vmem:[%s1178] sm:$0xf]
      %v1180 = vld [vmem:[%s1178 + $0x4] sm:$0xf]
      %v1181 = vld [vmem:[%s1178 + $0x8] sm:$0xf]
      %v1182 = vld [vmem:[%s1178 + $0xc] sm:$0xf]
      %s1183 = scalar_lea.vmem %s5, 2
      %v1184 = vld [vmem:[%s1183] sm:$0x1]
      %v1186 = vlaneseq
      %v1187 = vshrl.u32 %v1186, 7
      %v1188 = vsub.s32 0, %v1187
      %v1189 = vrot.slane %v1184, %v1188
      %v1195 = vunpack.c.l.b16 %v1179
      %v1196 = vunpack.c.l.b16 %v1180
      %v1197 = vunpack.c.l.b16 %v1181
      %v1198 = vunpack.c.l.b16 %v1182
      %v1199 = vpack.c.b16 %v1196, %v1195
      %v1200 = vpack.c.b16 %v1198, %v1197
      %1203 = vmatprep.subr.bf16.mxu0 0
      %1204 = vmatpush1.bf16.msra.mxu0 %v1199
      %1205 = vmatprep.subr.bf16.mxu0 0
      %1206 = vmatpush1.bf16.msra.mxu0 %v1200
      %1207 = vmatprep.subr.bf16.mxu0 0
      %1208 = vmatpush1.bf16.msra.mxu0 0
      %1209 = vmatprep.subr.bf16.mxu0 0
      %1210 = vmatpush1.bf16.msra.mxu0 0
      %1211 = vmatprep.subr.bf16.mxu0 0
      %1212 = vmatpush1.bf16.msra.mxu0 0
      %1213 = vmatprep.subr.bf16.mxu0 0
      %1214 = vmatpush1.bf16.msra.mxu0 0
      %1215 = vmatprep.subr.bf16.mxu0 0
      %1216 = vmatpush1.bf16.msra.mxu0 0
      %1217 = vmatprep.subr.bf16.mxu0 0
      %1218 = vmatpush1.bf16.msra.mxu0 0
      %1219 = vmatprep.subr.bf16.mxu0 0
      %1220 = vmatpush1.bf16.msra.mxu0 0
      %1221 = vmatprep.subr.bf16.mxu0 0
      %1222 = vmatpush1.bf16.msra.mxu0 0
      %1223 = vmatprep.subr.bf16.mxu0 0
      %1224 = vmatpush1.bf16.msra.mxu0 0
      %1225 = vmatprep.subr.bf16.mxu0 0
      %1226 = vmatpush1.bf16.msra.mxu0 0
      %1227 = vmatprep.subr.bf16.mxu0 0
      %1228 = vmatpush1.bf16.msra.mxu0 0
      %1229 = vmatprep.subr.bf16.mxu0 0
      %1230 = vmatpush1.bf16.msra.mxu0 0
      %1231 = vmatprep.subr.bf16.mxu0 0
      %1232 = vmatpush1.bf16.msra.mxu0 0
      %1233 = vmatprep.subr.bf16.mxu0 0
      %1234 = vmatpush1.bf16.msra.mxu0 0
      %1235 = vmatprep.mubr.bf16.mxu0 0
      %1236 = vmatmul.mubr.bf16.gmra.mrb[0].mxu0 %v568
      %v1237 = vpop.f32.mrb[0].mxu0
      %v1238 = vadd.f32 %v1189, %v1237
      %v1239 = vpop.f32.mrb[0].mxu0
      %v1240 = vpop.f32.mrb[0].mxu0
      %v1241 = vpop.f32.mrb[0].mxu0
      %1242 = vdwg.mxu0
      %s1243 = scalar_lea.vmem %s6, 32
      %v1244 = vld [vmem:[%s1243] sm:$0xf]
      %v1245 = vld [vmem:[%s1243 + $0x4] sm:$0xf]
      %v1246 = vld [vmem:[%s1243 + $0x8] sm:$0xf]
      %v1247 = vld [vmem:[%s1243 + $0xc] sm:$0xf]
      %s1248 = scalar_lea.vmem %s7, 2
      %v1249 = vld [vmem:[%s1248] sm:$0x1]
      %v1251 = vlaneseq
      %v1252 = vshrl.u32 %v1251, 7
      %v1253 = vsub.s32 0, %v1252
      %v1254 = vrot.slane %v1249, %v1253
      %v1260 = vunpack.c.l.b16 %v1244
      %v1261 = vunpack.c.l.b16 %v1245
      %v1262 = vunpack.c.l.b16 %v1246
      %v1263 = vunpack.c.l.b16 %v1247
      %v1264 = vpack.c.b16 %v1261, %v1260
      %v1265 = vpack.c.b16 %v1263, %v1262
      %1268 = vmatprep.subr.bf16.mxu0 0
      %1269 = vmatpush1.bf16.msra.mxu0 %v1264
      %1270 = vmatprep.subr.bf16.mxu0 0
      %1271 = vmatpush1.bf16.msra.mxu0 %v1265
      %1272 = vmatprep.subr.bf16.mxu0 0
      %1273 = vmatpush1.bf16.msra.mxu0 0
      %1274 = vmatprep.subr.bf16.mxu0 0
      %1275 = vmatpush1.bf16.msra.mxu0 0
      %1276 = vmatprep.subr.bf16.mxu0 0
      %1277 = vmatpush1.bf16.msra.mxu0 0
      %1278 = vmatprep.subr.bf16.mxu0 0
      %1279 = vmatpush1.bf16.msra.mxu0 0
      %1280 = vmatprep.subr.bf16.mxu0 0
      %1281 = vmatpush1.bf16.msra.mxu0 0
      %1282 = vmatprep.subr.bf16.mxu0 0
      %1283 = vmatpush1.bf16.msra.mxu0 0
      %1284 = vmatprep.subr.bf16.mxu0 0
      %1285 = vmatpush1.bf16.msra.mxu0 0
      %1286 = vmatprep.subr.bf16.mxu0 0
      %1287 = vmatpush1.bf16.msra.mxu0 0
      %1288 = vmatprep.subr.bf16.mxu0 0
      %1289 = vmatpush1.bf16.msra.mxu0 0
      %1290 = vmatprep.subr.bf16.mxu0 0
      %1291 = vmatpush1.bf16.msra.mxu0 0
      %1292 = vmatprep.subr.bf16.mxu0 0
      %1293 = vmatpush1.bf16.msra.mxu0 0
      %1294 = vmatprep.subr.bf16.mxu0 0
      %1295 = vmatpush1.bf16.msra.mxu0 0
      %1296 = vmatprep.subr.bf16.mxu0 0
      %1297 = vmatpush1.bf16.msra.mxu0 0
      %1298 = vmatprep.subr.bf16.mxu0 0
      %1299 = vmatpush1.bf16.msra.mxu0 0
      %1300 = vmatprep.mubr.bf16.mxu0 0
      %1301 = vmatmul.mubr.bf16.gmra.mrb[0].mxu0 %v568
      %v1302 = vpop.f32.mrb[0].mxu0
      %v1303 = vadd.f32 %v1254, %v1302
      %v1304 = vpop.f32.mrb[0].mxu0
      %v1305 = vpop.f32.mrb[0].mxu0
      %v1306 = vpop.f32.mrb[0].mxu0
      %1307 = vdwg.mxu0
      %v1308 = vpack.c.bf16 %v1175, %v1172
      %v1309 = vpack.c.bf16 %v1238, %v1238
      %v1311 = vsel %vm675, %v1308, 0
      %v1314 = vsel %vm675, %v1309, 0
      %1316 = vmatprep.subr.bf16.mxu0 0
      %1317 = vmatpush1.bf16.xpose.msra.mxu0 %v1314
      %1318 = vmatprep.subr.bf16.mxu0 0
      %1319 = vmatpush1.bf16.xpose.msra.mxu0 0
      %1320 = vmatprep.subr.bf16.mxu0 0
      %1321 = vmatpush1.bf16.xpose.msra.mxu0 0
      %1322 = vmatprep.subr.bf16.mxu0 0
      %1323 = vmatpush1.bf16.xpose.msra.mxu0 0
      %1324 = vmatprep.subr.bf16.mxu0 0
      %1325 = vmatpush1.bf16.xpose.msra.mxu0 0
      %1326 = vmatprep.subr.bf16.mxu0 0
      %1327 = vmatpush1.bf16.xpose.msra.mxu0 0
      %1328 = vmatprep.subr.bf16.mxu0 0
      %1329 = vmatpush1.bf16.xpose.msra.mxu0 0
      %1330 = vmatprep.subr.bf16.mxu0 0
      %1331 = vmatpush1.bf16.xpose.msra.mxu0 0
      %1332 = vmatprep.subr.bf16.mxu0 0
      %1333 = vmatpush1.bf16.xpose.msra.mxu0 0
      %1334 = vmatprep.subr.bf16.mxu0 0
      %1335 = vmatpush1.bf16.xpose.msra.mxu0 0
      %1336 = vmatprep.subr.bf16.mxu0 0
      %1337 = vmatpush1.bf16.xpose.msra.mxu0 0
      %1338 = vmatprep.subr.bf16.mxu0 0
      %1339 = vmatpush1.bf16.xpose.msra.mxu0 0
      %1340 = vmatprep.subr.bf16.mxu0 0
      %1341 = vmatpush1.bf16.xpose.msra.mxu0 0
      %1342 = vmatprep.subr.bf16.mxu0 0
      %1343 = vmatpush1.bf16.xpose.msra.mxu0 0
      %1344 = vmatprep.subr.bf16.mxu0 0
      %1345 = vmatpush1.bf16.xpose.msra.mxu0 0
      %1346 = vmatprep.subr.bf16.mxu0 0
      %1347 = vmatpush1.bf16.xpose.msra.mxu0 0
      %1348 = vmatprep.mubr.bf16.mxu0 0
      %1349 = vmatmul.mubr.bf16.gmra.mrb[0].mxu0 %v1311
      %v1350 = vpop.f32.mrb[0].mxu0
      %v1351 = vadd.f32 0.0, %v1350
      %v1352 = vpop.f32.mrb[0].mxu0
      %v1353 = vpop.f32.mrb[0].mxu0
      %v1354 = vadd.f32 0.0, %v1353
      %v1355 = vpop.f32.mrb[0].mxu0
      %1356 = vdwg.mxu0
      %v1357 = vsel %vm675, %v1351, -inf
      %1358 = vmax.xlane.f32.xlu0 %v1357
      %v1359 = vpop.xlane.xlu0 %1358
      %v1360 = vsel %vm726, %v1354, -inf
      %1361 = vmax.xlane.f32.xlu0 %v1360
      %v1362 = vpop.xlane.xlu0 %1361
      %v1363 = vsub.f32 %v1351, %v1359
      %v1364 = vsub.f32 %v1354, %v1362
      %v1365 = vmul.f32 %v1363, 1.442695
      %v1366 = vpow.pop %v1365
      %v1367 = vmul.f32 %v1364, 1.442695
      %v1368 = vpow.pop %v1367
      %v1369 = vsel %vm675, %v1366, 0.0
      %1370 = vadd.xlane.f32.xlu0 %v1369
      %v1371 = vpop.xlane.xlu0 %1370
      %v1372 = vsel %vm726, %v1368, 0.0
      %1373 = vadd.xlane.f32.xlu0 %v1372
      %v1374 = vpop.xlane.xlu0 %1373
      %v1375 = vrcp.pop %v1371
      %v1376 = vmul.f32 %v1366, %v1375
      %v1377 = vrcp.pop %v1374
      %v1378 = vmul.f32 %v1368, %v1377
      %v1379 = vpack.c.bf16 %v1378, %v1376
      %v1380 = vpack.c.bf16 %v1303, %v1303
      %v1382 = vsel %vm675, %v1379, 0
      %v1385 = vsel %vm751, %v1380, 0
      %1387 = vmatprep.subr.bf16.mxu0 0
      %1388 = vmatpush1.bf16.msra.mxu0 %v1385
      %1389 = vmatprep.subr.bf16.mxu0 0
      %1390 = vmatpush1.bf16.msra.mxu0 0
      %1391 = vmatprep.subr.bf16.mxu0 0
      %1392 = vmatpush1.bf16.msra.mxu0 0
      %1393 = vmatprep.subr.bf16.mxu0 0
      %1394 = vmatpush1.bf16.msra.mxu0 0
      %1395 = vmatprep.subr.bf16.mxu0 0
      %1396 = vmatpush1.bf16.msra.mxu0 0
      %1397 = vmatprep.subr.bf16.mxu0 0
      %1398 = vmatpush1.bf16.msra.mxu0 0
      %1399 = vmatprep.subr.bf16.mxu0 0
      %1400 = vmatpush1.bf16.msra.mxu0 0
      %1401 = vmatprep.subr.bf16.mxu0 0
      %1402 = vmatpush1.bf16.msra.mxu0 0
      %1403 = vmatprep.subr.bf16.mxu0 0
      %1404 = vmatpush1.bf16.msra.mxu0 0
      %1405 = vmatprep.subr.bf16.mxu0 0
      %1406 = vmatpush1.bf16.msra.mxu0 0
      %1407 = vmatprep.subr.bf16.mxu0 0
      %1408 = vmatpush1.bf16.msra.mxu0 0
      %1409 = vmatprep.subr.bf16.mxu0 0
      %1410 = vmatpush1.bf16.msra.mxu0 0
      %1411 = vmatprep.subr.bf16.mxu0 0
      %1412 = vmatpush1.bf16.msra.mxu0 0
      %1413 = vmatprep.subr.bf16.mxu0 0
      %1414 = vmatpush1.bf16.msra.mxu0 0
      %1415 = vmatprep.subr.bf16.mxu0 0
      %1416 = vmatpush1.bf16.msra.mxu0 0
      %1417 = vmatprep.subr.bf16.mxu0 0
      %1418 = vmatpush1.bf16.msra.mxu0 0
      %1419 = vmatprep.mubr.bf16.mxu0 0
      %1420 = vmatmul.mubr.bf16.gmra.mrb[0].mxu0 %v1382
      %v1421 = vpop.f32.mrb[0].mxu0
      %v1422 = vadd.f32 0.0, %v1421
      %v1423 = vpop.f32.mrb[0].mxu0
      %v1424 = vpop.f32.mrb[0].mxu0
      %v1425 = vadd.f32 0.0, %v1424
      %v1426 = vpop.f32.mrb[0].mxu0
      %1427 = vdwg.mxu0
      %s1428 = scalar_lea.vmem %s2, 48
      %v1429 = vld [vmem:[%s1428] sm:$0xf]
      %v1430 = vld [vmem:[%s1428 + $0x4] sm:$0xf]
      %v1431 = vld [vmem:[%s1428 + $0x8] sm:$0xf]
      %v1432 = vld [vmem:[%s1428 + $0xc] sm:$0xf]
      %s1433 = scalar_lea.vmem %s3, 3
      %v1434 = vld [vmem:[%s1433] sm:$0x1]
      %v1436 = vlaneseq
      %v1437 = vshrl.u32 %v1436, 7
      %v1438 = vsub.s32 0, %v1437
      %v1439 = vrot.slane %v1434, %v1438
      %v1445 = vunpack.c.l.b16 %v1429
      %v1446 = vunpack.c.l.b16 %v1430
      %v1447 = vunpack.c.l.b16 %v1431
      %v1448 = vunpack.c.l.b16 %v1432
      %v1449 = vpack.c.b16 %v1446, %v1445
      %v1450 = vpack.c.b16 %v1448, %v1447
      %1453 = vmatprep.subr.bf16.mxu0 0
      %1454 = vmatpush1.bf16.msra.mxu0 %v1449
      %1455 = vmatprep.subr.bf16.mxu0 0
      %1456 = vmatpush1.bf16.msra.mxu0 %v1450
      %1457 = vmatprep.subr.bf16.mxu0 0
      %1458 = vmatpush1.bf16.msra.mxu0 0
      %1459 = vmatprep.subr.bf16.mxu0 0
      %1460 = vmatpush1.bf16.msra.mxu0 0
      %1461 = vmatprep.subr.bf16.mxu0 0
      %1462 = vmatpush1.bf16.msra.mxu0 0
      %1463 = vmatprep.subr.bf16.mxu0 0
      %1464 = vmatpush1.bf16.msra.mxu0 0
      %1465 = vmatprep.subr.bf16.mxu0 0
      %1466 = vmatpush1.bf16.msra.mxu0 0
      %1467 = vmatprep.subr.bf16.mxu0 0
      %1468 = vmatpush1.bf16.msra.mxu0 0
      %1469 = vmatprep.subr.bf16.mxu0 0
      %1470 = vmatpush1.bf16.msra.mxu0 0
      %1471 = vmatprep.subr.bf16.mxu0 0
      %1472 = vmatpush1.bf16.msra.mxu0 0
      %1473 = vmatprep.subr.bf16.mxu0 0
      %1474 = vmatpush1.bf16.msra.mxu0 0
      %1475 = vmatprep.subr.bf16.mxu0 0
      %1476 = vmatpush1.bf16.msra.mxu0 0
      %1477 = vmatprep.subr.bf16.mxu0 0
      %1478 = vmatpush1.bf16.msra.mxu0 0
      %1479 = vmatprep.subr.bf16.mxu0 0
      %1480 = vmatpush1.bf16.msra.mxu0 0
      %1481 = vmatprep.subr.bf16.mxu0 0
      %1482 = vmatpush1.bf16.msra.mxu0 0
      %1483 = vmatprep.subr.bf16.mxu0 0
      %1484 = vmatpush1.bf16.msra.mxu0 0
      %1485 = vmatprep.mubr.bf16.mxu0 0
      %1486 = vmatmul.mubr.bf16.gmra.mrb[0].mxu0 %v501
      %v1487 = vpop.f32.mrb[0].mxu0
      %v1488 = vadd.f32 %v1439, %v1487
      %v1489 = vpop.f32.mrb[0].mxu0
      %v1490 = vpop.f32.mrb[0].mxu0
      %v1491 = vadd.f32 %v1439, %v1490
      %v1492 = vpop.f32.mrb[0].mxu0
      %1493 = vdwg.mxu0
      %s1494 = scalar_lea.vmem %s4, 48
      %v1495 = vld [vmem:[%s1494] sm:$0xf]
      %v1496 = vld [vmem:[%s1494 + $0x4] sm:$0xf]
      %v1497 = vld [vmem:[%s1494 + $0x8] sm:$0xf]
      %v1498 = vld [vmem:[%s1494 + $0xc] sm:$0xf]
      %s1499 = scalar_lea.vmem %s5, 3
      %v1500 = vld [vmem:[%s1499] sm:$0x1]
      %v1502 = vlaneseq
      %v1503 = vshrl.u32 %v1502, 7
      %v1504 = vsub.s32 0, %v1503
      %v1505 = vrot.slane %v1500, %v1504
      %v1511 = vunpack.c.l.b16 %v1495
      %v1512 = vunpack.c.l.b16 %v1496
      %v1513 = vunpack.c.l.b16 %v1497
      %v1514 = vunpack.c.l.b16 %v1498
      %v1515 = vpack.c.b16 %v1512, %v1511
      %v1516 = vpack.c.b16 %v1514, %v1513
      %1519 = vmatprep.subr.bf16.mxu0 0
      %1520 = vmatpush1.bf16.msra.mxu0 %v1515
      %1521 = vmatprep.subr.bf16.mxu0 0
      %1522 = vmatpush1.bf16.msra.mxu0 %v1516
      %1523 = vmatprep.subr.bf16.mxu0 0
      %1524 = vmatpush1.bf16.msra.mxu0 0
      %1525 = vmatprep.subr.bf16.mxu0 0
      %1526 = vmatpush1.bf16.msra.mxu0 0
      %1527 = vmatprep.subr.bf16.mxu0 0
      %1528 = vmatpush1.bf16.msra.mxu0 0
      %1529 = vmatprep.subr.bf16.mxu0 0
      %1530 = vmatpush1.bf16.msra.mxu0 0
      %1531 = vmatprep.subr.bf16.mxu0 0
      %1532 = vmatpush1.bf16.msra.mxu0 0
      %1533 = vmatprep.subr.bf16.mxu0 0
      %1534 = vmatpush1.bf16.msra.mxu0 0
      %1535 = vmatprep.subr.bf16.mxu0 0
      %1536 = vmatpush1.bf16.msra.mxu0 0
      %1537 = vmatprep.subr.bf16.mxu0 0
      %1538 = vmatpush1.bf16.msra.mxu0 0
      %1539 = vmatprep.subr.bf16.mxu0 0
      %1540 = vmatpush1.bf16.msra.mxu0 0
      %1541 = vmatprep.subr.bf16.mxu0 0
      %1542 = vmatpush1.bf16.msra.mxu0 0
      %1543 = vmatprep.subr.bf16.mxu0 0
      %1544 = vmatpush1.bf16.msra.mxu0 0
      %1545 = vmatprep.subr.bf16.mxu0 0
      %1546 = vmatpush1.bf16.msra.mxu0 0
      %1547 = vmatprep.subr.bf16.mxu0 0
      %1548 = vmatpush1.bf16.msra.mxu0 0
      %1549 = vmatprep.subr.bf16.mxu0 0
      %1550 = vmatpush1.bf16.msra.mxu0 0
      %1551 = vmatprep.mubr.bf16.mxu0 0
      %1552 = vmatmul.mubr.bf16.gmra.mrb[0].mxu0 %v568
      %v1553 = vpop.f32.mrb[0].mxu0
      %v1554 = vadd.f32 %v1505, %v1553
      %v1555 = vpop.f32.mrb[0].mxu0
      %v1556 = vpop.f32.mrb[0].mxu0
      %v1557 = vpop.f32.mrb[0].mxu0
      %1558 = vdwg.mxu0
      %s1559 = scalar_lea.vmem %s6, 48
      %v1560 = vld [vmem:[%s1559] sm:$0xf]
      %v1561 = vld [vmem:[%s1559 + $0x4] sm:$0xf]
      %v1562 = vld [vmem:[%s1559 + $0x8] sm:$0xf]
      %v1563 = vld [vmem:[%s1559 + $0xc] sm:$0xf]
      %s1564 = scalar_lea.vmem %s7, 3
      %v1565 = vld [vmem:[%s1564] sm:$0x1]
      %v1567 = vlaneseq
      %v1568 = vshrl.u32 %v1567, 7
      %v1569 = vsub.s32 0, %v1568
      %v1570 = vrot.slane %v1565, %v1569
      %v1576 = vunpack.c.l.b16 %v1560
      %v1577 = vunpack.c.l.b16 %v1561
      %v1578 = vunpack.c.l.b16 %v1562
      %v1579 = vunpack.c.l.b16 %v1563
      %v1580 = vpack.c.b16 %v1577, %v1576
      %v1581 = vpack.c.b16 %v1579, %v1578
      %1584 = vmatprep.subr.bf16.mxu0 0
      %1585 = vmatpush1.bf16.msra.mxu0 %v1580
      %1586 = vmatprep.subr.bf16.mxu0 0
      %1587 = vmatpush1.bf16.msra.mxu0 %v1581
      %1588 = vmatprep.subr.bf16.mxu0 0
      %1589 = vmatpush1.bf16.msra.mxu0 0
      %1590 = vmatprep.subr.bf16.mxu0 0
      %1591 = vmatpush1.bf16.msra.mxu0 0
      %1592 = vmatprep.subr.bf16.mxu0 0
      %1593 = vmatpush1.bf16.msra.mxu0 0
      %1594 = vmatprep.subr.bf16.mxu0 0
      %1595 = vmatpush1.bf16.msra.mxu0 0
      %1596 = vmatprep.subr.bf16.mxu0 0
      %1597 = vmatpush1.bf16.msra.mxu0 0
      %1598 = vmatprep.subr.bf16.mxu0 0
      %1599 = vmatpush1.bf16.msra.mxu0 0
      %1600 = vmatprep.subr.bf16.mxu0 0
      %1601 = vmatpush1.bf16.msra.mxu0 0
      %1602 = vmatprep.subr.bf16.mxu0 0
      %1603 = vmatpush1.bf16.msra.mxu0 0
      %1604 = vmatprep.subr.bf16.mxu0 0
      %1605 = vmatpush1.bf16.msra.mxu0 0
      %1606 = vmatprep.subr.bf16.mxu0 0
      %1607 = vmatpush1.bf16.msra.mxu0 0
      %1608 = vmatprep.subr.bf16.mxu0 0
      %1609 = vmatpush1.bf16.msra.mxu0 0
      %1610 = vmatprep.subr.bf16.mxu0 0
      %1611 = vmatpush1.bf16.msra.mxu0 0
      %1612 = vmatprep.subr.bf16.mxu0 0
      %1613 = vmatpush1.bf16.msra.mxu0 0
      %1614 = vmatprep.subr.bf16.mxu0 0
      %1615 = vmatpush1.bf16.msra.mxu0 0
      %1616 = vmatprep.mubr.bf16.mxu0 0
      %1617 = vmatmul.mubr.bf16.gmra.mrb[0].mxu0 %v568
      %v1618 = vpop.f32.mrb[0].mxu0
      %v1619 = vadd.f32 %v1570, %v1618
      %v1620 = vpop.f32.mrb[0].mxu0
      %v1621 = vpop.f32.mrb[0].mxu0
      %v1622 = vpop.f32.mrb[0].mxu0
      %1623 = vdwg.mxu0
      %v1624 = vpack.c.bf16 %v1491, %v1488
      %v1625 = vpack.c.bf16 %v1554, %v1554
      %v1627 = vsel %vm675, %v1624, 0
      %v1630 = vsel %vm675, %v1625, 0
      %1632 = vmatprep.subr.bf16.mxu0 0
      %1633 = vmatpush1.bf16.xpose.msra.mxu0 %v1630
      %1634 = vmatprep.subr.bf16.mxu0 0
      %1635 = vmatpush1.bf16.xpose.msra.mxu0 0
      %1636 = vmatprep.subr.bf16.mxu0 0
      %1637 = vmatpush1.bf16.xpose.msra.mxu0 0
      %1638 = vmatprep.subr.bf16.mxu0 0
      %1639 = vmatpush1.bf16.xpose.msra.mxu0 0
      %1640 = vmatprep.subr.bf16.mxu0 0
      %1641 = vmatpush1.bf16.xpose.msra.mxu0 0
      %1642 = vmatprep.subr.bf16.mxu0 0
      %1643 = vmatpush1.bf16.xpose.msra.mxu0 0
      %1644 = vmatprep.subr.bf16.mxu0 0
      %1645 = vmatpush1.bf16.xpose.msra.mxu0 0
      %1646 = vmatprep.subr.bf16.mxu0 0
      %1647 = vmatpush1.bf16.xpose.msra.mxu0 0
      %1648 = vmatprep.subr.bf16.mxu0 0
      %1649 = vmatpush1.bf16.xpose.msra.mxu0 0
      %1650 = vmatprep.subr.bf16.mxu0 0
      %1651 = vmatpush1.bf16.xpose.msra.mxu0 0
      %1652 = vmatprep.subr.bf16.mxu0 0
      %1653 = vmatpush1.bf16.xpose.msra.mxu0 0
      %1654 = vmatprep.subr.bf16.mxu0 0
      %1655 = vmatpush1.bf16.xpose.msra.mxu0 0
      %1656 = vmatprep.subr.bf16.mxu0 0
      %1657 = vmatpush1.bf16.xpose.msra.mxu0 0
      %1658 = vmatprep.subr.bf16.mxu0 0
      %1659 = vmatpush1.bf16.xpose.msra.mxu0 0
      %1660 = vmatprep.subr.bf16.mxu0 0
      %1661 = vmatpush1.bf16.xpose.msra.mxu0 0
      %1662 = vmatprep.subr.bf16.mxu0 0
      %1663 = vmatpush1.bf16.xpose.msra.mxu0 0
      %1664 = vmatprep.mubr.bf16.mxu0 0
      %1665 = vmatmul.mubr.bf16.gmra.mrb[0].mxu0 %v1627
      %v1666 = vpop.f32.mrb[0].mxu0
      %v1667 = vadd.f32 0.0, %v1666
      %v1668 = vpop.f32.mrb[0].mxu0
      %v1669 = vpop.f32.mrb[0].mxu0
      %v1670 = vadd.f32 0.0, %v1669
      %v1671 = vpop.f32.mrb[0].mxu0
      %1672 = vdwg.mxu0
      %v1673 = vsel %vm675, %v1667, -inf
      %1674 = vmax.xlane.f32.xlu0 %v1673
      %v1675 = vpop.xlane.xlu0 %1674
      %v1676 = vsel %vm726, %v1670, -inf
      %1677 = vmax.xlane.f32.xlu0 %v1676
      %v1678 = vpop.xlane.xlu0 %1677
      %v1679 = vsub.f32 %v1667, %v1675
      %v1680 = vsub.f32 %v1670, %v1678
      %v1681 = vmul.f32 %v1679, 1.442695
      %v1682 = vpow.pop %v1681
      %v1683 = vmul.f32 %v1680, 1.442695
      %v1684 = vpow.pop %v1683
      %v1685 = vsel %vm675, %v1682, 0.0
      %1686 = vadd.xlane.f32.xlu0 %v1685
      %v1687 = vpop.xlane.xlu0 %1686
      %v1688 = vsel %vm726, %v1684, 0.0
      %1689 = vadd.xlane.f32.xlu0 %v1688
      %v1690 = vpop.xlane.xlu0 %1689
      %v1691 = vrcp.pop %v1687
      %v1692 = vmul.f32 %v1682, %v1691
      %v1693 = vrcp.pop %v1690
      %v1694 = vmul.f32 %v1684, %v1693
      %v1695 = vpack.c.bf16 %v1694, %v1692
      %v1696 = vpack.c.bf16 %v1619, %v1619
      %v1698 = vsel %vm675, %v1695, 0
      %v1701 = vsel %vm751, %v1696, 0
      %1703 = vmatprep.subr.bf16.mxu0 0
      %1704 = vmatpush1.bf16.msra.mxu0 %v1701
      %1705 = vmatprep.subr.bf16.mxu0 0
      %1706 = vmatpush1.bf16.msra.mxu0 0
      %1707 = vmatprep.subr.bf16.mxu0 0
      %1708 = vmatpush1.bf16.msra.mxu0 0
      %1709 = vmatprep.subr.bf16.mxu0 0
      %1710 = vmatpush1.bf16.msra.mxu0 0
      %1711 = vmatprep.subr.bf16.mxu0 0
      %1712 = vmatpush1.bf16.msra.mxu0 0
      %1713 = vmatprep.subr.bf16.mxu0 0
      %1714 = vmatpush1.bf16.msra.mxu0 0
      %1715 = vmatprep.subr.bf16.mxu0 0
      %1716 = vmatpush1.bf16.msra.mxu0 0
      %1717 = vmatprep.subr.bf16.mxu0 0
      %1718 = vmatpush1.bf16.msra.mxu0 0
      %1719 = vmatprep.subr.bf16.mxu0 0
      %1720 = vmatpush1.bf16.msra.mxu0 0
      %1721 = vmatprep.subr.bf16.mxu0 0
      %1722 = vmatpush1.bf16.msra.mxu0 0
      %1723 = vmatprep.subr.bf16.mxu0 0
      %1724 = vmatpush1.bf16.msra.mxu0 0
      %1725 = vmatprep.subr.bf16.mxu0 0
      %1726 = vmatpush1.bf16.msra.mxu0 0
      %1727 = vmatprep.subr.bf16.mxu0 0
      %1728 = vmatpush1.bf16.msra.mxu0 0
      %1729 = vmatprep.subr.bf16.mxu0 0
      %1730 = vmatpush1.bf16.msra.mxu0 0
      %1731 = vmatprep.subr.bf16.mxu0 0
      %1732 = vmatpush1.bf16.msra.mxu0 0
      %1733 = vmatprep.subr.bf16.mxu0 0
      %1734 = vmatpush1.bf16.msra.mxu0 0
      %1735 = vmatprep.mubr.bf16.mxu0 0
      %1736 = vmatmul.mubr.bf16.gmra.mrb[0].mxu0 %v1698
      %v1737 = vpop.f32.mrb[0].mxu0
      %v1738 = vadd.f32 0.0, %v1737
      %v1739 = vpop.f32.mrb[0].mxu0
      %v1740 = vpop.f32.mrb[0].mxu0
      %v1741 = vadd.f32 0.0, %v1740
      %v1742 = vpop.f32.mrb[0].mxu0
      %1743 = vdwg.mxu0
      %1746 = vrot.lane.b32.xlu0 %v1106, 8
      %v1747 = vpop.permute.xlu0 %1746
      %1748 = vrot.lane.b32.xlu0 %v1109, 8
      %v1749 = vpop.permute.xlu0 %1748
      %1754 = vrot.lane.b32.xlu0 %v1422, 16
      %v1755 = vpop.permute.xlu0 %1754
      %1756 = vrot.lane.b32.xlu0 %v1425, 16
      %v1757 = vpop.permute.xlu0 %1756
      %1762 = vrot.lane.b32.xlu0 %v1738, 24
      %v1763 = vpop.permute.xlu0 %1762
      %1764 = vrot.lane.b32.xlu0 %v1741, 24
      %v1765 = vpop.permute.xlu0 %1764
      %v1768 = vsel %vm675, %v790, %v1747
      %v1769 = vsel %vm675, %v793, %v1749
      %vm1770 = vcmask 130048
      %v1771 = vsel %vm1770, %v1768, %v1755
      %v1772 = vsel %vm1770, %v1769, %v1757
      %vm1773 = vcmask 195584
      %v1774 = vsel %vm1773, %v1771, %v1763
      %v1775 = vsel %vm1773, %v1772, %v1765
      %v1776 = vpack.c.bf16 %v1775, %v1774
      %v1777 = vld [vmem:[%s8] sm:$0xf]
      %v1778 = vld [vmem:[%s8 + $0x4] sm:$0xf]
      %v1779 = vld [vmem:[%s8 + $0x8] sm:$0xf]
      %v1780 = vld [vmem:[%s8 + $0xc] sm:$0xf]
      %v1781 = vld [vmem:[%s9] sm:$0x1]
      %v1783 = vlaneseq
      %v1784 = vshrl.u32 %v1783, 7
      %v1785 = vsub.s32 0, %v1784
      %v1786 = vrot.slane %v1781, %v1785
      %v1792 = vunpack.c.l.b16 %v1777
      %v1793 = vunpack.c.l.b16 %v1778
      %v1794 = vunpack.c.l.b16 %v1779
      %v1795 = vunpack.c.l.b16 %v1780
      %v1796 = vpack.c.b16 %v1793, %v1792
      %v1797 = vpack.c.b16 %v1795, %v1794
      %v1801 = vsel %vm499, %v1776, 0
      %1803 = vmatprep.subr.bf16.mxu0 0
      %1804 = vmatpush1.bf16.msra.mxu0 %v1796
      %1805 = vmatprep.subr.bf16.mxu0 0
      %1806 = vmatpush1.bf16.msra.mxu0 %v1797
      %1807 = vmatprep.subr.bf16.mxu0 0
      %1808 = vmatpush1.bf16.msra.mxu0 0
      %1809 = vmatprep.subr.bf16.mxu0 0
      %1810 = vmatpush1.bf16.msra.mxu0 0
      %1811 = vmatprep.subr.bf16.mxu0 0
      %1812 = vmatpush1.bf16.msra.mxu0 0
      %1813 = vmatprep.subr.bf16.mxu0 0
      %1814 = vmatpush1.bf16.msra.mxu0 0
      %1815 = vmatprep.subr.bf16.mxu0 0
      %1816 = vmatpush1.bf16.msra.mxu0 0
      %1817 = vmatprep.subr.bf16.mxu0 0
      %1818 = vmatpush1.bf16.msra.mxu0 0
      %1819 = vmatprep.subr.bf16.mxu0 0
      %1820 = vmatpush1.bf16.msra.mxu0 0
      %1821 = vmatprep.subr.bf16.mxu0 0
      %1822 = vmatpush1.bf16.msra.mxu0 0
      %1823 = vmatprep.subr.bf16.mxu0 0
      %1824 = vmatpush1.bf16.msra.mxu0 0
      %1825 = vmatprep.subr.bf16.mxu0 0
      %1826 = vmatpush1.bf16.msra.mxu0 0
      %1827 = vmatprep.subr.bf16.mxu0 0
      %1828 = vmatpush1.bf16.msra.mxu0 0
      %1829 = vmatprep.subr.bf16.mxu0 0
      %1830 = vmatpush1.bf16.msra.mxu0 0
      %1831 = vmatprep.subr.bf16.mxu0 0
      %1832 = vmatpush1.bf16.msra.mxu0 0
      %1833 = vmatprep.subr.bf16.mxu0 0
      %1834 = vmatpush1.bf16.msra.mxu0 0
      %1835 = vmatprep.mubr.bf16.mxu0 0
      %1836 = vmatmul.mubr.bf16.gmra.mrb[0].mxu0 %v1801
      %v1837 = vpop.f32.mrb[0].mxu0
      %v1838 = vadd.f32 %v1786, %v1837
      %v1839 = vpop.f32.mrb[0].mxu0
      %v1840 = vpop.f32.mrb[0].mxu0
      %v1841 = vadd.f32 %v1786, %v1840
      %v1842 = vpop.f32.mrb[0].mxu0
      %1843 = vdwg.mxu0
      %v1844 = vadd.f32 %v471, %v1838
      %v1845 = vadd.f32 %v472, %v1841
      %v1846 = vld [vmem:[%s10] sm:$0x1]
      %v1847 = vld [vmem:[%s11] sm:$0x1]
      %v1848 = vsel %vm499, %v1844, 0.0
      %1849 = vadd.xlane.f32.xlu0 %v1848
      %v1850 = vpop.xlane.xlu0 %1849
      %vm1851 = vcmask 254976
      %v1852 = vsel %vm1851, %v1845, 0.0
      %1853 = vadd.xlane.f32.xlu0 %v1852
      %v1854 = vpop.xlane.xlu0 %1853
      %v1855 = vrcp.pop 32.0
      %v1856 = vmul.f32 %v1850, %v1855
      %v1857 = vmul.f32 %v1854, %v1855
      %v1858 = vsub.f32 %v1844, %v1856
      %v1859 = vsub.f32 %v1845, %v1857
      %v1860 = vmul.f32 %v1858, %v1858
      %v1861 = vmul.f32 %v1859, %v1859
      %v1862 = vsel %vm499, %v1860, 0.0
      %1863 = vadd.xlane.f32.xlu0 %v1862
      %v1864 = vpop.xlane.xlu0 %1863
      %v1865 = vsel %vm1851, %v1861, 0.0
      %1866 = vadd.xlane.f32.xlu0 %v1865
      %v1867 = vpop.xlane.xlu0 %1866
      %v1868 = vmul.f32 %v1864, %v1855
      %v1869 = vmul.f32 %v1867, %v1855
      %v1870 = vadd.f32 %v1868, 1e-05
      %v1871 = vadd.f32 %v1869, 1e-05
      %v1872 = vrsqrt.pop %v1870
      %v1873 = vrsqrt.pop %v1871
      %v1874 = vmul.f32 %v1858, %v1872
      %v1875 = vmul.f32 %v1859, %v1873
      %v1877 = vlaneseq
      %v1878 = vshrl.u32 %v1877, 7
      %v1879 = vsub.s32 0, %v1878
      %v1880 = vrot.slane %v1846, %v1879
      %v1882 = vmul.f32 %v1874, %v1880
      %v1883 = vmul.f32 %v1875, %v1880
      %v1885 = vlaneseq
      %v1886 = vshrl.u32 %v1885, 7
      %v1887 = vsub.s32 0, %v1886
      %v1888 = vrot.slane %v1847, %v1887
      %v1890 = vadd.f32 %v1882, %v1888
      %v1891 = vadd.f32 %v1883, %v1888
      %1892 = vst.msk [vmem:[%s468] sm:$0xff] %vm499, %v1890
      %1893 = vst.msk [vmem:[%s468 + $0x8] sm:$0x3] %vm1851, %v1891
      %s1894 = smul.u32 2, %s28
      %p1895 = scmp.lt.s32.totalorder %s27, 1
      %s1896 = scalar_select %p1895, %s27, 1
      %p1897 = scmp.lt.s32.totalorder %s1894, 1
      %s1898 = scalar_select %p1897, %s1894, 1
      %s1899 = smul.addr %s1896, 2
      %s1900 = sadd.s32 %s1898, %s1899
      %s1901 = smul.addr %s1900, 8
      %s1902 = scalar_lea.vmem %s12, %s1901
      // Predicated region
      $region69: #{transformer_forward.15} parent=67 // pred_check
        %p1903 = pneg %p319
      $region70: #{transformer_forward.15} parent=67 // pred_check_branch
        %1905 = sbr.rel (%p1903) target = $region72
      $region71: #{transformer_forward.15} parent=67 // pred_region
        %s1906 = smul.u32 2, %s28
      $region72: #{transformer_forward.15} parent=67 // pred_fallthru
        _
    $region68: #{transformer_forward.15} parent=5 // pred_fallthru
      _
    %p1907 = scmp.le.s32.totalorder 2, %s18
    // Predicated region
    $region73: #{transformer_forward.15} parent=5 // pred_check
      %p1908 = pneg %p1907
    $region74: #{transformer_forward.15} parent=5 // pred_check_branch
      %1910 = sbr.rel (%p1908) target = $region76
    $region75: #{transformer_forward.15} parent=5 // pred_region
      %s1911 = ssub.s32 %s18, 2
      // Predicated region
      $region77: #{transformer_forward.15} parent=75 // pred_check
        %p1912 = pneg %p325
      $region78: #{transformer_forward.15} parent=75 // pred_check_branch
        %1914 = sbr.rel (%p1912) target = $region80
      $region79: #{transformer_forward.15} parent=75 // pred_region
        %s1915 = smul.u32 2, %s30
        %p1916 = scmp.lt.s32.totalorder %s29, 1
        %s1917 = scalar_select %p1916, %s29, 1
        %p1918 = scmp.lt.s32.totalorder %s1915, 1
        %s1919 = scalar_select %p1918, %s1915, 1
        %s1920 = smul.addr %s1917, 2
        %s1921 = sadd.s32 %s1919, %s1920
        %s1922 = smul.addr %s1921, 8
        %s1923 = scalar_lea.vmem %s12, %s1922
      $region80: #{transformer_forward.15} parent=75 // pred_fallthru
        _
    $region76: #{transformer_forward.15} parent=5 // pred_fallthru
      _
  $region6: #{transformer_forward.15} parent=0 // loop_footer
    %s22 = sadd.s32 1, %s18
  $region7: #{transformer_forward.15} parent=0 // loop_footer_branch
    %17 = sbr.rel target = $region3
  $region8: #{transformer_forward.15} parent=0 // loop_exit
    _

// kernel: transformer_forward.19
$region0: #{transformer_forward.19}
  #allocation0 [shape = 'u32[]', space=smem, size = 0x4, offset = 0x4, fixed_abs, tag = 'smem constant byte address 0x4 - core index']
  #allocation1 [shape = 'u32[144,128]{1,0:T(1,128)}', space=vmem, size = 0x12000, scoped, tag = 'internal scratch']
  %s0 = inlined_call_operand.vmem [shape: f32[20,32], index: 0, kind: input, shape index: {}]
  %s1 = inlined_call_operand.vmem [shape: bf16[32,64], index: 1, kind: input, shape index: {}]
  %s2 = inlined_call_operand.vmem [shape: f32[1,64], index: 2, kind: input, shape index: {}]
  %s3 = inlined_call_operand.vmem [shape: bf16[64,32], index: 3, kind: input, shape index: {}]
  %s4 = inlined_call_operand.vmem [shape: f32[1,32], index: 4, kind: input, shape index: {}]
  %s5 = inlined_call_operand.vmem [shape: f32[1,32], index: 5, kind: input, shape index: {}]
  %s6 = inlined_call_operand.vmem [shape: f32[1,32], index: 6, kind: input, shape index: {}]
  %s7 = inlined_call_operand.vmem [shape: f32[1,32], index: 7, kind: input, shape index: {}]
  %s8 = inlined_call_operand.vmem [shape: f32[1,32], index: 8, kind: input, shape index: {}]
  %s9 = inlined_call_operand.vmem [shape: f32[20,32], index: 9, kind: output, shape index: {}]
  %s10 = sld [smem:[#allocation0]]
  $region46: #{transformer_forward.19} parent=0
    _
  %s12 = ssub.s32 1, %s10
  %s13 = scalar_select 0, %s12, %s10
  // Predicated region
  $region2: #{transformer_forward.19} parent=0 // pred_check
    _
  $region3: #{transformer_forward.19} parent=0 // pred_check_branch
    %15 = sbr.rel (0) target = $region5
  $region4: #{transformer_forward.19} parent=0 // pred_region
    _
  $region5: #{transformer_forward.19} parent=0 // pred_fallthru
    _
  // Predicated region
  $region6: #{transformer_forward.19} parent=0 // pred_check
    _
  $region7: #{transformer_forward.19} parent=0 // pred_check_branch
    %17 = sbr.rel (0) target = $region9
  $region8: #{transformer_forward.19} parent=0 // pred_region
    _
  $region9: #{transformer_forward.19} parent=0 // pred_fallthru
    _
  // Predicated region
  $region10: #{transformer_forward.19} parent=0 // pred_check
    _
  $region11: #{transformer_forward.19} parent=0 // pred_check_branch
    %19 = sbr.rel (0) target = $region13
  $region12: #{transformer_forward.19} parent=0 // pred_region
    _
  $region13: #{transformer_forward.19} parent=0 // pred_fallthru
    _
  // Predicated region
  $region14: #{transformer_forward.19} parent=0 // pred_check
    _
  $region15: #{transformer_forward.19} parent=0 // pred_check_branch
    %21 = sbr.rel (0) target = $region17
  $region16: #{transformer_forward.19} parent=0 // pred_region
    _
  $region17: #{transformer_forward.19} parent=0 // pred_fallthru
    _
  // Predicated region
  $region18: #{transformer_forward.19} parent=0 // pred_check
    _
  $region19: #{transformer_forward.19} parent=0 // pred_check_branch
    %23 = sbr.rel (0) target = $region21
  $region20: #{transformer_forward.19} parent=0 // pred_region
    _
  $region21: #{transformer_forward.19} parent=0 // pred_fallthru
    _
  // Predicated region
  $region22: #{transformer_forward.19} parent=0 // pred_check
    _
  $region23: #{transformer_forward.19} parent=0 // pred_check_branch
    %25 = sbr.rel (0) target = $region25
  $region24: #{transformer_forward.19} parent=0 // pred_region
    _
  $region25: #{transformer_forward.19} parent=0 // pred_fallthru
    _
  // Predicated region
  $region26: #{transformer_forward.19} parent=0 // pred_check
    _
  $region27: #{transformer_forward.19} parent=0 // pred_check_branch
    %27 = sbr.rel (0) target = $region29
  $region28: #{transformer_forward.19} parent=0 // pred_region
    _
  $region29: #{transformer_forward.19} parent=0 // pred_fallthru
    _
  // Predicated region
  $region30: #{transformer_forward.19} parent=0 // pred_check
    _
  $region31: #{transformer_forward.19} parent=0 // pred_check_branch
    %29 = sbr.rel (0) target = $region33
  $region32: #{transformer_forward.19} parent=0 // pred_region
    _
  $region33: #{transformer_forward.19} parent=0 // pred_fallthru
    _
  // Predicated region
  $region34: #{transformer_forward.19} parent=0 // pred_check
    _
  $region35: #{transformer_forward.19} parent=0 // pred_check_branch
    %31 = sbr.rel (0) target = $region37
  $region36: #{transformer_forward.19} parent=0 // pred_region
    _
  $region37: #{transformer_forward.19} parent=0 // pred_fallthru
    _
  %v33 = vld [vmem:[%s0] sm:$0xff]
  %v34 = vld [vmem:[%s0 + $0x8] sm:$0xff]
  %v35 = vld [vmem:[%s0 + $0x10] sm:$0xf]
  %v36 = vpack.c.bf16 %v34, %v33
  %v37 = vpack.c.bf16 %v35, %v35
  %v38 = vld [vmem:[%s1] sm:$0xf]
  %v39 = vld [vmem:[%s1 + $0x4] sm:$0xf]
  %v40 = vld [vmem:[%s1 + $0x8] sm:$0xf]
  %v41 = vld [vmem:[%s1 + $0xc] sm:$0xf]
  %v42 = vld [vmem:[%s2] sm:$0x1]
  %v44 = vlaneseq
  %v45 = vshrl.u32 %v44, 7
  %v46 = vsub.s32 0, %v45
  %v47 = vrot.slane %v42, %v46
  %v53 = vunpack.c.l.b16 %v38
  %v54 = vunpack.c.l.b16 %v39
  %v55 = vunpack.c.l.b16 %v40
  %v56 = vunpack.c.l.b16 %v41
  %v57 = vpack.c.b16 %v54, %v53
  %v58 = vpack.c.b16 %v56, %v55
  %vm61 = vcmask 261120
  %v63 = vsel %vm61, %v36, 0
  %v66 = vsel %vm61, %v37, 0
  %68 = vmatprep.subr.bf16.mxu0 0
  %69 = vmatpush1.bf16.msra.mxu0 %v57
  %70 = vmatprep.subr.bf16.mxu0 0
  %71 = vmatpush1.bf16.msra.mxu0 %v58
  %72 = vmatprep.subr.bf16.mxu0 0
  %73 = vmatpush1.bf16.msra.mxu0 0
  %74 = vmatprep.subr.bf16.mxu0 0
  %75 = vmatpush1.bf16.msra.mxu0 0
  %76 = vmatprep.subr.bf16.mxu0 0
  %77 = vmatpush1.bf16.msra.mxu0 0
  %78 = vmatprep.subr.bf16.mxu0 0
  %79 = vmatpush1.bf16.msra.mxu0 0
  %80 = vmatprep.subr.bf16.mxu0 0
  %81 = vmatpush1.bf16.msra.mxu0 0
  %82 = vmatprep.subr.bf16.mxu0 0
  %83 = vmatpush1.bf16.msra.mxu0 0
  %84 = vmatprep.subr.bf16.mxu0 0
  %85 = vmatpush1.bf16.msra.mxu0 0
  %86 = vmatprep.subr.bf16.mxu0 0
  %87 = vmatpush1.bf16.msra.mxu0 0
  %88 = vmatprep.subr.bf16.mxu0 0
  %89 = vmatpush1.bf16.msra.mxu0 0
  %90 = vmatprep.subr.bf16.mxu0 0
  %91 = vmatpush1.bf16.msra.mxu0 0
  %92 = vmatprep.subr.bf16.mxu0 0
  %93 = vmatpush1.bf16.msra.mxu0 0
  %94 = vmatprep.subr.bf16.mxu0 0
  %95 = vmatpush1.bf16.msra.mxu0 0
  %96 = vmatprep.subr.bf16.mxu0 0
  %97 = vmatpush1.bf16.msra.mxu0 0
  %98 = vmatprep.subr.bf16.mxu0 0
  %99 = vmatpush1.bf16.msra.mxu0 0
  %100 = vmatprep.mubr.bf16.mxu0 0
  %101 = vmatmul.mubr.bf16.gmra.mrb[0].mxu0 %v63
  %v102 = vpop.f32.mrb[0].mxu0
  %v103 = vadd.f32 %v47, %v102
  %v104 = vpop.f32.mrb[0].mxu0
  %v105 = vpop.f32.mrb[0].mxu0
  %v106 = vadd.f32 %v47, %v105
  %v107 = vpop.f32.mrb[0].mxu0
  %108 = vmatprep.mubr.bf16.mxu0 0
  %109 = vmatmul.mubr.bf16.gmra.mrb[0].mxu0 %v66
  %v110 = vpop.f32.mrb[0].mxu0
  %v111 = vadd.f32 %v47, %v110
  %v112 = vpop.f32.mrb[0].mxu0
  %v113 = vpop.f32.mrb[0].mxu0
  %v114 = vpop.f32.mrb[0].mxu0
  %115 = vdwg.mxu0
  %v116 = vmax.f32 %v103, 0.0
  %v117 = vmax.f32 %v106, 0.0
  %v118 = vmax.f32 %v111, 0.0
  %v119 = vpack.c.bf16 %v117, %v116
  %v120 = vpack.c.bf16 %v118, %v118
  %v121 = vld [vmem:[%s3] sm:$0xf]
  %v122 = vld [vmem:[%s3 + $0x4] sm:$0xf]
  %v123 = vld [vmem:[%s3 + $0x8] sm:$0xf]
  %v124 = vld [vmem:[%s3 + $0xc] sm:$0xf]
  %v125 = vld [vmem:[%s3 + $0x10] sm:$0xf]
  %v126 = vld [vmem:[%s3 + $0x14] sm:$0xf]
  %v127 = vld [vmem:[%s3 + $0x18] sm:$0xf]
  %v128 = vld [vmem:[%s3 + $0x1c] sm:$0xf]
  %v129 = vld [vmem:[%s4] sm:$0x1]
  %v131 = vlaneseq
  %v132 = vshrl.u32 %v131, 7
  %v133 = vsub.s32 0, %v132
  %v134 = vrot.slane %v129, %v133
  %v144 = vunpack.c.l.b16 %v121
  %v145 = vunpack.c.l.b16 %v122
  %v146 = vunpack.c.l.b16 %v123
  %v147 = vunpack.c.l.b16 %v124
  %v148 = vunpack.c.l.b16 %v125
  %v149 = vunpack.c.l.b16 %v126
  %v150 = vunpack.c.l.b16 %v127
  %v151 = vunpack.c.l.b16 %v128
  %v152 = vpack.c.b16 %v145, %v144
  %v153 = vpack.c.b16 %v147, %v146
  %v154 = vpack.c.b16 %v149, %v148
  %v155 = vpack.c.b16 %v151, %v150
  %vm160 = vcmask 523264
  %v162 = vsel %vm160, %v119, 0
  %v165 = vsel %vm160, %v120, 0
  %167 = vmatprep.subr.bf16.mxu0 0
  %168 = vmatpush1.bf16.msra.mxu0 %v152
  %169 = vmatprep.subr.bf16.mxu0 0
  %170 = vmatpush1.bf16.msra.mxu0 %v153
  %171 = vmatprep.subr.bf16.mxu0 0
  %172 = vmatpush1.bf16.msra.mxu0 %v154
  %173 = vmatprep.subr.bf16.mxu0 0
  %174 = vmatpush1.bf16.msra.mxu0 %v155
  %175 = vmatprep.subr.bf16.mxu0 0
  %176 = vmatpush1.bf16.msra.mxu0 0
  %177 = vmatprep.subr.bf16.mxu0 0
  %178 = vmatpush1.bf16.msra.mxu0 0
  %179 = vmatprep.subr.bf16.mxu0 0
  %180 = vmatpush1.bf16.msra.mxu0 0
  %181 = vmatprep.subr.bf16.mxu0 0
  %182 = vmatpush1.bf16.msra.mxu0 0
  %183 = vmatprep.subr.bf16.mxu0 0
  %184 = vmatpush1.bf16.msra.mxu0 0
  %185 = vmatprep.subr.bf16.mxu0 0
  %186 = vmatpush1.bf16.msra.mxu0 0
  %187 = vmatprep.subr.bf16.mxu0 0
  %188 = vmatpush1.bf16.msra.mxu0 0
  %189 = vmatprep.subr.bf16.mxu0 0
  %190 = vmatpush1.bf16.msra.mxu0 0
  %191 = vmatprep.subr.bf16.mxu0 0
  %192 = vmatpush1.bf16.msra.mxu0 0
  %193 = vmatprep.subr.bf16.mxu0 0
  %194 = vmatpush1.bf16.msra.mxu0 0
  %195 = vmatprep.subr.bf16.mxu0 0
  %196 = vmatpush1.bf16.msra.mxu0 0
  %197 = vmatprep.subr.bf16.mxu0 0
  %198 = vmatpush1.bf16.msra.mxu0 0
  %199 = vmatprep.mubr.bf16.mxu0 0
  %200 = vmatmul.mubr.bf16.gmra.mrb[0].mxu0 %v162
  %v201 = vpop.f32.mrb[0].mxu0
  %v202 = vadd.f32 %v134, %v201
  %v203 = vpop.f32.mrb[0].mxu0
  %v204 = vpop.f32.mrb[0].mxu0
  %v205 = vadd.f32 %v134, %v204
  %v206 = vpop.f32.mrb[0].mxu0
  %207 = vmatprep.mubr.bf16.mxu0 0
  %208 = vmatmul.mubr.bf16.gmra.mrb[0].mxu0 %v165
  %v209 = vpop.f32.mrb[0].mxu0
  %v210 = vadd.f32 %v134, %v209
  %v211 = vpop.f32.mrb[0].mxu0
  %v212 = vpop.f32.mrb[0].mxu0
  %v213 = vpop.f32.mrb[0].mxu0
  %214 = vdwg.mxu0
  %v215 = vadd.f32 %v33, %v202
  %v216 = vadd.f32 %v34, %v205
  %v217 = vadd.f32 %v35, %v210
  %v218 = vld [vmem:[%s5] sm:$0x1]
  %v219 = vld [vmem:[%s6] sm:$0x1]
  %v220 = vsel %vm61, %v215, 0.0
  %221 = vadd.xlane.f32.xlu0 %v220
  %v222 = vpop.xlane.xlu0 %221
  %v223 = vsel %vm61, %v216, 0.0
  %224 = vadd.xlane.f32.xlu0 %v223
  %v225 = vpop.xlane.xlu0 %224
  %vm226 = vcmask 257024
  %v227 = vsel %vm226, %v217, 0.0
  %228 = vadd.xlane.f32.xlu0 %v227
  %v229 = vpop.xlane.xlu0 %228
  %v230 = vrcp.pop 32.0
  %v231 = vmul.f32 %v222, %v230
  %v232 = vmul.f32 %v225, %v230
  %v233 = vmul.f32 %v229, %v230
  %v234 = vsub.f32 %v215, %v231
  %v235 = vsub.f32 %v216, %v232
  %v236 = vsub.f32 %v217, %v233
  %v237 = vmul.f32 %v234, %v234
  %v238 = vmul.f32 %v235, %v235
  %v239 = vmul.f32 %v236, %v236
  %v240 = vsel %vm61, %v237, 0.0
  %241 = vadd.xlane.f32.xlu0 %v240
  %v242 = vpop.xlane.xlu0 %241
  %v243 = vsel %vm61, %v238, 0.0
  %244 = vadd.xlane.f32.xlu0 %v243
  %v245 = vpop.xlane.xlu0 %244
  %v246 = vsel %vm226, %v239, 0.0
  %247 = vadd.xlane.f32.xlu0 %v246
  %v248 = vpop.xlane.xlu0 %247
  %v249 = vmul.f32 %v242, %v230
  %v250 = vmul.f32 %v245, %v230
  %v251 = vmul.f32 %v248, %v230
  %v252 = vadd.f32 %v249, 1e-05
  %v253 = vadd.f32 %v250, 1e-05
  %v254 = vadd.f32 %v251, 1e-05
  %v255 = vrsqrt.pop %v252
  %v256 = vrsqrt.pop %v253
  %v257 = vrsqrt.pop %v254
  %v258 = vmul.f32 %v234, %v255
  %v259 = vmul.f32 %v235, %v256
  %v260 = vmul.f32 %v236, %v257
  %v262 = vlaneseq
  %v263 = vshrl.u32 %v262, 7
  %v264 = vsub.s32 0, %v263
  %v265 = vrot.slane %v218, %v264
  %v267 = vmul.f32 %v258, %v265
  %v268 = vmul.f32 %v259, %v265
  %v269 = vmul.f32 %v260, %v265
  %v271 = vlaneseq
  %v272 = vshrl.u32 %v271, 7
  %v273 = vsub.s32 0, %v272
  %v274 = vrot.slane %v219, %v273
  %v276 = vadd.f32 %v267, %v274
  %v277 = vadd.f32 %v268, %v274
  %v278 = vadd.f32 %v269, %v274
  %v279 = vld [vmem:[%s7] sm:$0x1]
  %v280 = vld [vmem:[%s8] sm:$0x1]
  %v281 = vsel %vm61, %v276, 0.0
  %282 = vadd.xlane.f32.xlu0 %v281
  %v283 = vpop.xlane.xlu0 %282
  %v284 = vsel %vm61, %v277, 0.0
  %285 = vadd.xlane.f32.xlu0 %v284
  %v286 = vpop.xlane.xlu0 %285
  %v287 = vsel %vm226, %v278, 0.0
  %288 = vadd.xlane.f32.xlu0 %v287
  %v289 = vpop.xlane.xlu0 %288
  %v290 = vmul.f32 %v283, %v230
  %v291 = vmul.f32 %v286, %v230
  %v292 = vmul.f32 %v289, %v230
  %v293 = vsub.f32 %v276, %v290
  %v294 = vsub.f32 %v277, %v291
  %v295 = vsub.f32 %v278, %v292
  %v296 = vmul.f32 %v293, %v293
  %v297 = vmul.f32 %v294, %v294
  %v298 = vmul.f32 %v295, %v295
  %v299 = vsel %vm61, %v296, 0.0
  %300 = vadd.xlane.f32.xlu0 %v299
  %v301 = vpop.xlane.xlu0 %300
  %v302 = vsel %vm61, %v297, 0.0
  %303 = vadd.xlane.f32.xlu0 %v302
  %v304 = vpop.xlane.xlu0 %303
  %v305 = vsel %vm226, %v298, 0.0
  %306 = vadd.xlane.f32.xlu0 %v305
  %v307 = vpop.xlane.xlu0 %306
  %v308 = vmul.f32 %v301, %v230
  %v309 = vmul.f32 %v304, %v230
  %v310 = vmul.f32 %v307, %v230
  %v311 = vadd.f32 %v308, 1e-05
  %v312 = vadd.f32 %v309, 1e-05
  %v313 = vadd.f32 %v310, 1e-05
  %v314 = vrsqrt.pop %v311
  %v315 = vrsqrt.pop %v312
  %v316 = vrsqrt.pop %v313
  %v317 = vmul.f32 %v293, %v314
  %v318 = vmul.f32 %v294, %v315
  %v319 = vmul.f32 %v295, %v316
  %v321 = vlaneseq
  %v322 = vshrl.u32 %v321, 7
  %v323 = vsub.s32 0, %v322
  %v324 = vrot.slane %v279, %v323
  %v326 = vmul.f32 %v317, %v324
  %v327 = vmul.f32 %v318, %v324
  %v328 = vmul.f32 %v319, %v324
  %v330 = vlaneseq
  %v331 = vshrl.u32 %v330, 7
  %v332 = vsub.s32 0, %v331
  %v333 = vrot.slane %v280, %v332
  %v335 = vadd.f32 %v326, %v333
  %v336 = vadd.f32 %v327, %v333
  %v337 = vadd.f32 %v328, %v333
  %338 = vst.msk [vmem:[%s9] sm:$0xff] %vm61, %v335
  %339 = vst.msk [vmem:[%s9 + $0x8] sm:$0xff] %vm61, %v336
  %340 = vst.msk [vmem:[%s9 + $0x10] sm:$0xf] %vm226, %v337
  // Predicated region
  $region38: #{transformer_forward.19} parent=0 // pred_check
    _
  $region39: #{transformer_forward.19} parent=0 // pred_check_branch
    %342 = sbr.rel (0) target = $region41
  $region40: #{transformer_forward.19} parent=0 // pred_region
    _
  $region41: #{transformer_forward.19} parent=0 // pred_fallthru
    _
  // Predicated region
  $region42: #{transformer_forward.19} parent=0 // pred_check
    _
  $region43: #{transformer_forward.19} parent=0 // pred_check_branch
    %344 = sbr.rel (0) target = $region45
  $region44: #{transformer_forward.19} parent=0 // pred_region
    _
  $region45: #{transformer_forward.19} parent=0 // pred_fallthru
    _

</llo_original>
